<compile_context>
chip_gen: v5e
topology: v5e:2x2
jax: 0.10.0
libtpu: 0.0.40
codegen_flags: <defaults>
</compile_context>

<pallas_src>
import math
import jax
import jax.numpy as jnp
from jax import lax
from jax.experimental import pallas as pl
from jax.experimental.pallas import tpu as pltpu

# ---------------- model hyper-parameters (module defaults, small images) ----
OUTPUT_DIM   = 7                 # action dim
OUT_PAD      = 128               # lane-padded output width
XT_LANES     = 8                 # packed [t | xt(7)] operand width
VISUAL_DIM   = 1024              # DecisionNCE visual embed dim
LANG_DIM     = 1024              # DecisionNCE language embed dim
TIME_DIM     = 32
TIME_HIDDEN  = 256
HIDDEN       = 256
NUM_BLOCKS   = 3
VIEW_NUM     = 2
FRAMES       = 1
N_VIEWS      = FRAMES * VIEW_NUM
IMG_C, IMG_H, IMG_W = 3, 16, 16
IMG_FEAT     = IMG_C * IMG_H * IMG_W                 # 768
B_TILE_MAX   = 128               # safe on v5e/v6e/v7x (raise to 256 on v6e/v7x)

DEC_IN_DIM = VISUAL_DIM * N_VIEWS + LANG_DIM + TIME_HIDDEN + OUTPUT_DIM


# ---------------- packed-bias layout (all segments 128-lane aligned) --------
def _build_bias_layout():
    segs = [("b_vis", VISUAL_DIM), ("tb1", TIME_HIDDEN), ("tb2", TIME_HIDDEN),
            ("b_d1", HIDDEN), ("b_out", OUT_PAD)]
    for i in range(NUM_BLOCKS):
        segs += [(f"g{i}", HIDDEN), (f"be{i}", HIDDEN),
                 (f"ba{i}", HIDDEN * 4), (f"bb{i}", HIDDEN)]
    table, off = {}, 0
    for name, n in segs:
        table[name] = (off, n)
        off += n
    return table, off


_BIAS_OFF, BIAS_TOTAL = _build_bias_layout()          # BIAS_TOTAL = 7296 = 57*128


# ---------------- math helpers -----------------------------------------------
def _mish_fast(x):
    # mish(x) = x*tanh(softplus(x)); with u = 1+exp(x): tanh(log u) = (u^2-1)/(u^2+1)
    u = 1.0 + jnp.exp(jnp.minimum(x, 20.0))
    u2 = u * u
    y = x * (u2 - 1.0) * pl.reciprocal(u2 + 1.0, approx=True)
    return jnp.where(x > 20.0, x, y)


def _mish_ref(x):
    sp = jnp.where(x > 20.0, x, jnp.log1p(jnp.exp(jnp.minimum(x, 20.0))))
    return x * jnp.tanh(sp)


def _layernorm(x, gamma, beta, eps=1e-5):
    mu = jnp.mean(x, axis=-1, keepdims=True)
    var = jnp.mean((x - mu) ** 2, axis=-1, keepdims=True)
    return (x - mu) * lax.rsqrt(var + eps) * gamma + beta


# ---------------- fused Pallas kernel ----------------------------------------
def _fused_kernel(xt_t_ref, img_ref, lang_ref, tk_ref, bias_ref,
                  tW1_ref, tW2_ref, W_time_ref, W_xt_ref,
                  w_vis_ref, W_img_ref, W_lang_ref,
                  Wa_ref, Wb_ref, W_out_ref, o_ref):
    bt = xt_t_ref.shape[0]                       # batch-tile rows (static)
    n_views = img_ref.shape[0] // bt             # F * V            (static)

    def bvec(name):                              # 128-aligned static lane slice
        off, n = _BIAS_OFF[name]
        return bias_ref[:, off:off + n]

    # --- LearnedPosEmb + time MLP (kept in f32 end-to-end) ------------------
    t = xt_t_ref[:, 0:1]                                       # (bt, 1) f32
    f = t * tk_ref[...]                                        # tk pre-scaled by 2*pi
    emb = jnp.concatenate([jnp.cos(f), jnp.sin(f)], axis=-1)   # (bt, 32)
    h = jnp.dot(emb, tW1_ref[...], preferred_element_type=jnp.float32) + bvec("tb1")
    h = _mish_fast(h)
    t_feat = jnp.dot(h, tW2_ref[...], preferred_element_type=jnp.float32) + bvec("tb2")

    # --- decoder.dense1 over concat([image, lang, time, xt]) (split weights) -
    x = (jnp.dot(lang_ref[...], W_lang_ref[...], preferred_element_type=jnp.float32)
         + jnp.dot(t_feat, W_time_ref[...], preferred_element_type=jnp.float32)
         + jnp.dot(xt_t_ref[...], W_xt_ref[...], preferred_element_type=jnp.float32)
         + bvec("b_d1"))

    # --- visual encoder: ONE merged dot over all views of the tile ----------
    # TODO(synk): the pretrained DecisionNCE (CLIP) visual backbone cannot be
    # reproduced; it is replaced by a deterministic linear projection -> 1024.
    feat = (jnp.dot(img_ref[...], w_vis_ref[...], preferred_element_type=jnp.float32)
            + bvec("b_vis")).astype(jnp.bfloat16)              # (n_views*bt, 1024)
    for v in range(n_views):                                   # static tiny loop
        x = x + jnp.dot(feat[v * bt:(v + 1) * bt, :],
                        W_img_ref[v * VISUAL_DIM:(v + 1) * VISUAL_DIM, :],
                        preferred_element_type=jnp.float32)

    # --- MLPResNet blocks: x + dense2(mish(dense1(LN(dropout(x))))) ---------
    for i in range(NUM_BLOCKS):
        identity = x                              # Dropout(0.1) == identity (eval)
        out = _layernorm(x, bvec(f"g{i}"), bvec(f"be{i}"))     # LN in f32
        out = (jnp.dot(out.astype(jnp.bfloat16), Wa_ref[i],
                       preferred_element_type=jnp.float32) + bvec(f"ba{i}"))
        out = _mish_fast(out).astype(jnp.bfloat16)
        out = (jnp.dot(out, Wb_ref[i],
                       preferred_element_type=jnp.float32) + bvec(f"bb{i}"))
        x = identity + out

    # --- decoder.dense2(mish(x)), lane-padded 128-wide output ---------------
    x = _mish_fast(x).astype(jnp.bfloat16)
    o_ref[...] = (jnp.dot(x, W_out_ref[...], preferred_element_type=jnp.float32)
                  + bvec("b_out"))


# ---------------- pallas_call wrapper -----------------------------------------
def _fused_call(kp, xt_t, img, lang, b_tile, grid_b):
    act_map = lambda i: (i, 0)
    const2 = lambda i: (0, 0)
    const3 = lambda i: (0, 0, 0)

    in_specs = [
        pl.BlockSpec((b_tile, XT_LANES), act_map),               # xt_t
        pl.BlockSpec((N_VIEWS * b_tile, IMG_FEAT), act_map),     # img (view-major/tile)
        pl.BlockSpec((b_tile, LANG_DIM), act_map),               # lang
        pl.BlockSpec(kp["tk"].shape, const2),                    # time kernel (pre-2pi)
        pl.BlockSpec(kp["bias"].shape, const2),                  # packed biases / LN
        pl.BlockSpec(kp["tW1"].shape, const2),
        pl.BlockSpec(kp["tW2"].shape, const2),
        pl.BlockSpec(kp["W_time"].shape, const2),
        pl.BlockSpec(kp["W_xt"].shape, const2),
        pl.BlockSpec(kp["w_vis"].shape, const2),
        pl.BlockSpec(kp["W_img"].shape, const2),
        pl.BlockSpec(kp["W_lang"].shape, const2),
        pl.BlockSpec(kp["Wa"].shape, const3),
        pl.BlockSpec(kp["Wb"].shape, const3),
        pl.BlockSpec(kp["W_out"].shape, const2),
    ]
    out_spec = pl.BlockSpec((b_tile, OUT_PAD), act_map)

    return pl.pallas_call(
        _fused_kernel,
        grid=(grid_b,),
        in_specs=in_specs,
        out_specs=out_spec,
        out_shape=jax.ShapeDtypeStruct((grid_b * b_tile, OUT_PAD), jnp.float32),
        compiler_params=pltpu.CompilerParams(
            dimension_semantics=("parallel",),
            vmem_limit_bytes=40 * 1024 * 1024),
    )(xt_t, img, lang, kp["tk"], kp["bias"], kp["tW1"], kp["tW2"],
      kp["W_time"], kp["W_xt"], kp["w_vis"], kp["W_img"], kp["W_lang"],
      kp["Wa"], kp["Wb"], kp["W_out"])


def _round_up(n, m):
    return ((n + m - 1) // m) * m


def forward(kparams, xt, t, imgs, cond, b_tile_max=B_TILE_MAX):
    """Mirrors VisualDiffusion_pretrain.forward with cond given as a tensor."""
    B, F, V, C, H, W = imgs.shape
    b_tile = min(b_tile_max, _round_up(B, 8))
    grid_b = pl.cdiv(B, b_tile)
    B_pad = grid_b * b_tile

    # packed [t | xt] operand (f32): lane 0 = t, lanes 1..7 = xt
    xt2 = xt.reshape(B, -1).astype(jnp.float32)
    t2 = jnp.asarray(t, jnp.float32).reshape(-1)
    xt_t = jnp.zeros((B_pad, XT_LANES), jnp.float32)
    xt_t = xt_t.at[:B, 0].set(t2).at[:B, 1:1 + OUTPUT_DIM].set(xt2)

    # language condition (tensor branch of the module)
    lang = jnp.zeros((B_pad, LANG_DIM), jnp.bfloat16).at[:B].set(cond.astype(jnp.bfloat16))

    # images: view-major *within each batch tile* so the kernel needs only ONE
    # merged (F*V*B_t, 768) @ (768, 1024) matmul per tile (wrapper-side layout plumbing)
    img_vm = jnp.transpose(imgs, (1, 2, 0, 3, 4, 5)).reshape(F * V, B, C * H * W)
    img_vm = jnp.zeros((F * V, B_pad, IMG_FEAT), jnp.float32).at[:, :B, :].set(img_vm)
    img_tiled = (img_vm.reshape(F * V, grid_b, b_tile, IMG_FEAT)
                 .transpose(1, 0, 2, 3)
                 .reshape(grid_b * F * V * b_tile, IMG_FEAT)
                 .astype(jnp.bfloat16))

    out = _fused_call(kparams, xt_t, img_tiled, lang, b_tile, grid_b)  # (B_pad, 128)
    return out[:B, :OUTPUT_DIM]


# ---------------- deterministic parameter init -------------------------------
def _linear_init(key, fan_in, fan_out):
    kw, kb = jax.random.split(key)
    bound = 1.0 / math.sqrt(fan_in)
    w = jax.random.uniform(kw, (fan_in, fan_out), jnp.float32, -bound, bound)
    b = jax.random.uniform(kb, (1, fan_out), jnp.float32, -bound, bound)
    return w, b


def init_params(key):
    keys = list(jax.random.split(key, 6 + 2 * NUM_BLOCKS))
    p = {}

    # synthetic visual encoder (stand-in for DecisionNCE visual backbone)
    p["w_vis"], p["b_vis"] = _linear_init(keys[0], IMG_FEAT, VISUAL_DIM)

    # LearnedPosEmb: kernel (time_dim//2, 1), randn * 0.2  -> stored transposed
    tk = jax.random.normal(keys[1], (TIME_DIM // 2, 1), jnp.float32) * 0.2
    p["time_kernel_T"] = tk.T                                  # (1, 16)

    # time MLP: Linear(32,256) -> mish -> Linear(256,256)
    p["tW1"], p["tb1"] = _linear_init(keys[2], TIME_DIM, TIME_HIDDEN)
    p["tW2"], p["tb2"] = _linear_init(keys[3], TIME_HIDDEN, TIME_HIDDEN)

    # decoder.dense1 over concat([image(2048), lang(1024), time(256), xt(7)])
    Wd1, p["b_d1"] = _linear_init(keys[4], DEC_IN_DIM, HIDDEN)
    o0 = VISUAL_DIM * N_VIEWS
    o1 = o0 + LANG_DIM
    o2 = o1 + TIME_HIDDEN
    p["W_img"], p["W_lang"] = Wd1[:o0], Wd1[o0:o1]
    p["W_time"], p["W_xt"] = Wd1[o1:o2], Wd1[o2:]

    # MLPResNet blocks
    blocks = []
    for i in range(NUM_BLOCKS):
        Wa, ba = _linear_init(keys[5 + 2 * i], HIDDEN, HIDDEN * 4)
        Wb, bb = _linear_init(keys[6 + 2 * i], HIDDEN * 4, HIDDEN)
        blocks.append({"g": jnp.ones((1, HIDDEN), jnp.float32),
                       "b": jnp.zeros((1, HIDDEN), jnp.float32),
                       "Wa": Wa, "ba": ba, "Wb": Wb, "bb": bb})
    p["blocks"] = blocks

    # decoder.dense2
    p["W_out"], p["b_out"] = _linear_init(keys[5 + 2 * NUM_BLOCKS], HIDDEN, OUTPUT_DIM)
    return p


def prepare_kernel_params(p):
    """Pack/stack parameters for the fused kernel (bf16 big weights, f32 biases)."""
    bf = lambda a: a.astype(jnp.bfloat16)

    bias = jnp.zeros((1, BIAS_TOTAL), jnp.float32)

    def put(vec, name, val):
        off, _ = _BIAS_OFF[name]
        val = val.reshape(1, -1)
        return vec.at[:, off:off + val.shape[1]].set(val)

    bias = put(bias, "b_vis", p["b_vis"])
    bias = put(bias, "tb1", p["tb1"])
    bias = put(bias, "tb2", p["tb2"])
    bias = put(bias, "b_d1", p["b_d1"])
    bias = put(bias, "b_out", p["b_out"])          # only 7 of the 128 reserved lanes
    for i, blk in enumerate(p["blocks"]):
        bias = put(bias, f"g{i}", blk["g"])
        bias = put(bias, f"be{i}", blk["b"])
        bias = put(bias, f"ba{i}", blk["ba"])
        bias = put(bias, f"bb{i}", blk["bb"])

    W_xt8 = jnp.zeros((XT_LANES, HIDDEN), jnp.float32).at[1:1 + OUTPUT_DIM, :].set(p["W_xt"])
    W_out_pad = jnp.zeros((HIDDEN, OUT_PAD), jnp.bfloat16).at[:, :OUTPUT_DIM].set(bf(p["W_out"]))

    return {
        "tk": (2.0 * math.pi) * p["time_kernel_T"],            # fold 2*pi, f32
        "bias": bias,
        "tW1": p["tW1"], "tW2": p["tW2"],                      # f32 time path
        "W_time": p["W_time"],                                 # f32 (small)
        "W_xt": W_xt8,                                         # f32, row 0 (t lane) = 0
        "w_vis": bf(p["w_vis"]),
        "W_img": bf(p["W_img"]),
        "W_lang": bf(p["W_lang"]),
        "Wa": jnp.stack([bf(b["Wa"]) for b in p["blocks"]]),   # (3, 256, 1024)
        "Wb": jnp.stack([bf(b["Wb"]) for b in p["blocks"]]),   # (3, 1024, 256)
        "W_out": W_out_pad,
    }


# ---------------- pure-JAX reference (full f32) -------------------------------
def reference_forward(params, xt, t, imgs, cond):
    B, F, V, C, H, W = imgs.shape
    img_flat = imgs.reshape(B * F * V, -1)
    feat = img_flat @ params["w_vis"] + params["b_vis"]
    image_feature = feat.reshape(B, -1)
    t2 = jnp.asarray(t, jnp.float32).reshape(-1, 1)
    f = 2.0 * math.pi * (t2 @ params["time_kernel_T"])
    temb = jnp.concatenate([jnp.cos(f), jnp.sin(f)], axis=-1)
    h = _mish_ref(temb @ params["tW1"] + params["tb1"])
    t_feat = h @ params["tW2"] + params["tb2"]
    xin = jnp.concatenate([image_feature, cond, t_feat, xt.reshape(B, -1)], axis=-1)
    Wd1 = jnp.concatenate([params["W_img"], params["W_lang"],
                           params["W_time"], params["W_xt"]], axis=0)
    x = xin @ Wd1 + params["b_d1"]
    for blk in params["blocks"]:
        out = _layernorm(x, blk["g"], blk["b"])
        out = _mish_ref(out @ blk["Wa"] + blk["ba"])
        out = out @ blk["Wb"] + blk["bb"]
        x = x + out
    x = _mish_ref(x)
    return x @ params["W_out"] + params["b_out"]


# ---------------- main --------------------------------------------------------
if __name__ == "__main__":
    key = jax.random.PRNGKey(0)
    kp_, kx, kt, ki, kc = jax.random.split(key, 5)
    params = init_params(kp_)
    kparams = prepare_kernel_params(params)

    B = 2
    xt = jax.random.normal(kx, (B, OUTPUT_DIM), jnp.float32)             # noisy action
    t = jax.random.uniform(kt, (B,), jnp.float32)                        # timestep
    imgs = jax.random.normal(
        ki, (B, FRAMES, VIEW_NUM, IMG_C, IMG_H, IMG_W), jnp.float32)     # [B,F,V,C,H,W]
    cond = jax.random.normal(kc, (B, LANG_DIM), jnp.float32)             # lang embedding

    out = forward(kparams, xt, t, imgs, cond)
    out = jax.block_until_ready(out)

    assert out.shape == (B, OUTPUT_DIM)
    ref = reference_forward(params, xt, t, imgs, cond)
    if not jnp.allclose(out, ref, rtol=2e-2, atol=2e-2):
        raise AssertionError("Pallas output mismatches pure-JAX reference")

    print("KERNEL_OK")
</pallas_src>

<mosaic_0001>
module attributes {stable_mosaic.version = 11 : i64} {
  func.func @_fused_kernel(%arg0: i32, %arg1: memref<8x8xf32, #tpu.memory_space<vmem>>, %arg2: memref<16x768xbf16, #tpu.memory_space<vmem>>, %arg3: memref<8x1024xbf16, #tpu.memory_space<vmem>>, %arg4: memref<1x16xf32, #tpu.memory_space<vmem>>, %arg5: memref<1x7296xf32, #tpu.memory_space<vmem>>, %arg6: memref<32x256xf32, #tpu.memory_space<vmem>>, %arg7: memref<256x256xf32, #tpu.memory_space<vmem>>, %arg8: memref<256x256xf32, #tpu.memory_space<vmem>>, %arg9: memref<8x256xf32, #tpu.memory_space<vmem>>, %arg10: memref<768x1024xbf16, #tpu.memory_space<vmem>>, %arg11: memref<2048x256xbf16, #tpu.memory_space<vmem>>, %arg12: memref<1024x256xbf16, #tpu.memory_space<vmem>>, %arg13: memref<3x256x1024xbf16, #tpu.memory_space<vmem>>, %arg14: memref<3x1024x256xbf16, #tpu.memory_space<vmem>>, %arg15: memref<256x128xbf16, #tpu.memory_space<vmem>>, %arg16: memref<8x128xf32, #tpu.memory_space<vmem>>) attributes {dimension_semantics = [#tpu.dimension_semantics<parallel>], iteration_bounds = array<i64: 1>, scalar_prefetch = 0 : i64, scratch_operands = 0 : i64, tpu.core_type = #tpu.core_type<tc>, window_params = [{transform_indices = @transform_0, window_bounds = array<i64: 8, 8>}, {transform_indices = @transform_1, window_bounds = array<i64: 16, 768>}, {transform_indices = @transform_2, window_bounds = array<i64: 8, 1024>}, {pipeline_mode = #tpu.pipeline_mode<synchronous>, transform_indices = @transform_3, window_bounds = array<i64: 1, 16>}, {pipeline_mode = #tpu.pipeline_mode<synchronous>, transform_indices = @transform_4, window_bounds = array<i64: 1, 7296>}, {pipeline_mode = #tpu.pipeline_mode<synchronous>, transform_indices = @transform_5, window_bounds = array<i64: 32, 256>}, {pipeline_mode = #tpu.pipeline_mode<synchronous>, transform_indices = @transform_6, window_bounds = array<i64: 256, 256>}, {pipeline_mode = #tpu.pipeline_mode<synchronous>, transform_indices = @transform_7, window_bounds = array<i64: 256, 256>}, {pipeline_mode = #tpu.pipeline_mode<synchronous>, transform_indices = @transform_8, window_bounds = array<i64: 8, 256>}, {pipeline_mode = #tpu.pipeline_mode<synchronous>, transform_indices = @transform_9, window_bounds = array<i64: 768, 1024>}, {pipeline_mode = #tpu.pipeline_mode<synchronous>, transform_indices = @transform_10, window_bounds = array<i64: 2048, 256>}, {pipeline_mode = #tpu.pipeline_mode<synchronous>, transform_indices = @transform_11, window_bounds = array<i64: 1024, 256>}, {pipeline_mode = #tpu.pipeline_mode<synchronous>, transform_indices = @transform_12, window_bounds = array<i64: 3, 256, 1024>}, {pipeline_mode = #tpu.pipeline_mode<synchronous>, transform_indices = @transform_13, window_bounds = array<i64: 3, 1024, 256>}, {pipeline_mode = #tpu.pipeline_mode<synchronous>, transform_indices = @transform_14, window_bounds = array<i64: 256, 128>}, {transform_indices = @transform_15, window_bounds = array<i64: 8, 128>}]} {
    %c0 = arith.constant 0 : index
    %c0_0 = arith.constant 0 : index
    %0 = vector.load %arg1[%c0, %c0_0] : memref<8x8xf32, #tpu.memory_space<vmem>>, vector<8x1xf32>
    %c0_1 = arith.constant 0 : index
    %c0_2 = arith.constant 0 : index
    %1 = vector.load %arg4[%c0_1, %c0_2] : memref<1x16xf32, #tpu.memory_space<vmem>>, vector<1x16xf32>
    %2 = vector.broadcast %0 : vector<8x1xf32> to vector<8x16xf32>
    %3 = vector.broadcast %1 : vector<1x16xf32> to vector<8x16xf32>
    %4 = arith.mulf %2, %3 : vector<8x16xf32>
    %5 = math.cos %4 : vector<8x16xf32>
    %6 = math.sin %4 : vector<8x16xf32>
    %7 = tpu.concatenate %5, %6 in 1 : vector<8x16xf32>, vector<8x16xf32> -> vector<8x32xf32>
    %c0_3 = arith.constant 0 : index
    %c0_4 = arith.constant 0 : index
    %8 = vector.load %arg6[%c0_3, %c0_4] : memref<32x256xf32, #tpu.memory_space<vmem>>, vector<32x256xf32>
    %cst = arith.constant dense<0.000000e+00> : vector<8x256xf32>
    %9 = tpu.matmul %7, %8, %cst {dimension_numbers = #tpu.dot_dimension_numbers<[1], [0], [0], [1], [0, 0, 1, 1], [], []>} : vector<8x32xf32>, vector<32x256xf32>, vector<8x256xf32> -> vector<8x256xf32>
    %c0_5 = arith.constant 0 : index
    %c1024 = arith.constant 1024 : index
    %10 = vector.load %arg5[%c0_5, %c1024] : memref<1x7296xf32, #tpu.memory_space<vmem>>, vector<1x256xf32>
    %11 = vector.broadcast %10 : vector<1x256xf32> to vector<8x256xf32>
    %12 = arith.addf %9, %11 : vector<8x256xf32>
    %cst_6 = arith.constant 2.000000e+01 : f32
    %13 = vector.broadcast %cst_6 : f32 to vector<8x256xf32>
    %14 = arith.minimumf %12, %13 : vector<8x256xf32>
    %15 = math.exp %14 : vector<8x256xf32>
    %cst_7 = arith.constant 1.000000e+00 : f32
    %16 = vector.broadcast %cst_7 : f32 to vector<8x256xf32>
    %17 = arith.addf %16, %15 : vector<8x256xf32>
    %18 = arith.mulf %17, %17 : vector<8x256xf32>
    %cst_8 = arith.constant 1.000000e+00 : f32
    %19 = vector.broadcast %cst_8 : f32 to vector<8x256xf32>
    %20 = arith.subf %18, %19 : vector<8x256xf32>
    %21 = arith.mulf %12, %20 : vector<8x256xf32>
    %cst_9 = arith.constant 1.000000e+00 : f32
    %22 = vector.broadcast %cst_9 : f32 to vector<8x256xf32>
    %23 = arith.addf %18, %22 : vector<8x256xf32>
    %24 = tpu.reciprocal %23 {approx = true} : vector<8x256xf32> -> vector<8x256xf32>
    %25 = arith.mulf %21, %24 : vector<8x256xf32>
    %cst_10 = arith.constant 2.000000e+01 : f32
    %26 = vector.broadcast %cst_10 : f32 to vector<8x256xf32>
    %27 = arith.cmpf ogt, %12, %26 : vector<8x256xf32>
    %28 = arith.select %27, %12, %25 : vector<8x256xi1>, vector<8x256xf32>
    %c0_11 = arith.constant 0 : index
    %c0_12 = arith.constant 0 : index
    %29 = vector.load %arg7[%c0_11, %c0_12] : memref<256x256xf32, #tpu.memory_space<vmem>>, vector<256x256xf32>
    %cst_13 = arith.constant dense<0.000000e+00> : vector<8x256xf32>
    %30 = tpu.matmul %28, %29, %cst_13 {dimension_numbers = #tpu.dot_dimension_numbers<[1], [0], [0], [1], [0, 0, 1, 1], [], []>} : vector<8x256xf32>, vector<256x256xf32>, vector<8x256xf32> -> vector<8x256xf32>
    %c0_14 = arith.constant 0 : index
    %c1280 = arith.constant 1280 : index
    %31 = vector.load %arg5[%c0_14, %c1280] : memref<1x7296xf32, #tpu.memory_space<vmem>>, vector<1x256xf32>
    %32 = vector.broadcast %31 : vector<1x256xf32> to vector<8x256xf32>
    %33 = arith.addf %30, %32 : vector<8x256xf32>
    %c0_15 = arith.constant 0 : index
    %c0_16 = arith.constant 0 : index
    %34 = vector.load %arg3[%c0_15, %c0_16] : memref<8x1024xbf16, #tpu.memory_space<vmem>>, vector<8x1024xbf16>
    %c0_17 = arith.constant 0 : index
    %c0_18 = arith.constant 0 : index
    %35 = vector.load %arg12[%c0_17, %c0_18] : memref<1024x256xbf16, #tpu.memory_space<vmem>>, vector<1024x256xbf16>
    %cst_19 = arith.constant dense<0.000000e+00> : vector<8x256xf32>
    %36 = tpu.matmul %34, %35, %cst_19 {dimension_numbers = #tpu.dot_dimension_numbers<[1], [0], [0], [1], [0, 0, 1, 1], [], []>} : vector<8x1024xbf16>, vector<1024x256xbf16>, vector<8x256xf32> -> vector<8x256xf32>
    %c0_20 = arith.constant 0 : index
    %c0_21 = arith.constant 0 : index
    %37 = vector.load %arg8[%c0_20, %c0_21] : memref<256x256xf32, #tpu.memory_space<vmem>>, vector<256x256xf32>
    %cst_22 = arith.constant dense<0.000000e+00> : vector<8x256xf32>
    %38 = tpu.matmul %33, %37, %cst_22 {dimension_numbers = #tpu.dot_dimension_numbers<[1], [0], [0], [1], [0, 0, 1, 1], [], []>} : vector<8x256xf32>, vector<256x256xf32>, vector<8x256xf32> -> vector<8x256xf32>
    %39 = arith.addf %36, %38 : vector<8x256xf32>
    %c0_23 = arith.constant 0 : index
    %c0_24 = arith.constant 0 : index
    %40 = vector.load %arg1[%c0_23, %c0_24] : memref<8x8xf32, #tpu.memory_space<vmem>>, vector<8x8xf32>
    %c0_25 = arith.constant 0 : index
    %c0_26 = arith.constant 0 : index
    %41 = vector.load %arg9[%c0_25, %c0_26] : memref<8x256xf32, #tpu.memory_space<vmem>>, vector<8x256xf32>
    %cst_27 = arith.constant dense<0.000000e+00> : vector<8x256xf32>
    %42 = tpu.matmul %40, %41, %cst_27 {dimension_numbers = #tpu.dot_dimension_numbers<[1], [0], [0], [1], [0, 0, 1, 1], [], []>} : vector<8x8xf32>, vector<8x256xf32>, vector<8x256xf32> -> vector<8x256xf32>
    %43 = arith.addf %39, %42 : vector<8x256xf32>
    %c0_28 = arith.constant 0 : index
    %c1536 = arith.constant 1536 : index
    %44 = vector.load %arg5[%c0_28, %c1536] : memref<1x7296xf32, #tpu.memory_space<vmem>>, vector<1x256xf32>
    %45 = vector.broadcast %44 : vector<1x256xf32> to vector<8x256xf32>
    %46 = arith.addf %43, %45 : vector<8x256xf32>
    %c0_29 = arith.constant 0 : index
    %c0_30 = arith.constant 0 : index
    %47 = vector.load %arg2[%c0_29, %c0_30] : memref<16x768xbf16, #tpu.memory_space<vmem>>, vector<16x768xbf16>
    %c0_31 = arith.constant 0 : index
    %c0_32 = arith.constant 0 : index
    %48 = vector.load %arg10[%c0_31, %c0_32] : memref<768x1024xbf16, #tpu.memory_space<vmem>>, vector<768x1024xbf16>
    %cst_33 = arith.constant dense<0.000000e+00> : vector<16x1024xf32>
    %49 = tpu.matmul %47, %48, %cst_33 {dimension_numbers = #tpu.dot_dimension_numbers<[1], [0], [0], [1], [0, 0, 1, 1], [], []>} : vector<16x768xbf16>, vector<768x1024xbf16>, vector<16x1024xf32> -> vector<16x1024xf32>
    %c0_34 = arith.constant 0 : index
    %c0_35 = arith.constant 0 : index
    %50 = vector.load %arg5[%c0_34, %c0_35] : memref<1x7296xf32, #tpu.memory_space<vmem>>, vector<1x1024xf32>
    %51 = vector.broadcast %50 : vector<1x1024xf32> to vector<16x1024xf32>
    %52 = arith.addf %49, %51 : vector<16x1024xf32>
    %53 = arith.truncf %52 : vector<16x1024xf32> to vector<16x1024xbf16>
    %54 = vector.extract_strided_slice %53 {offsets = [0, 0], sizes = [8, 1024], strides = [1, 1]} : vector<16x1024xbf16> to vector<8x1024xbf16>
    %c0_36 = arith.constant 0 : index
    %c0_37 = arith.constant 0 : index
    %55 = vector.load %arg11[%c0_36, %c0_37] : memref<2048x256xbf16, #tpu.memory_space<vmem>>, vector<1024x256xbf16>
    %cst_38 = arith.constant dense<0.000000e+00> : vector<8x256xf32>
    %56 = tpu.matmul %54, %55, %cst_38 {dimension_numbers = #tpu.dot_dimension_numbers<[1], [0], [0], [1], [0, 0, 1, 1], [], []>} : vector<8x1024xbf16>, vector<1024x256xbf16>, vector<8x256xf32> -> vector<8x256xf32>
    %57 = arith.addf %46, %56 : vector<8x256xf32>
    %58 = vector.extract_strided_slice %53 {offsets = [8, 0], sizes = [8, 1024], strides = [1, 1]} : vector<16x1024xbf16> to vector<8x1024xbf16>
    %c1024_39 = arith.constant 1024 : index
    %c0_40 = arith.constant 0 : index
    %59 = vector.load %arg11[%c1024_39, %c0_40] : memref<2048x256xbf16, #tpu.memory_space<vmem>>, vector<1024x256xbf16>
    %cst_41 = arith.constant dense<0.000000e+00> : vector<8x256xf32>
    %60 = tpu.matmul %58, %59, %cst_41 {dimension_numbers = #tpu.dot_dimension_numbers<[1], [0], [0], [1], [0, 0, 1, 1], [], []>} : vector<8x1024xbf16>, vector<1024x256xbf16>, vector<8x256xf32> -> vector<8x256xf32>
    %61 = arith.addf %57, %60 : vector<8x256xf32>
    %c0_42 = arith.constant 0 : index
    %c1920 = arith.constant 1920 : index
    %62 = vector.load %arg5[%c0_42, %c1920] : memref<1x7296xf32, #tpu.memory_space<vmem>>, vector<1x256xf32>
    %c0_43 = arith.constant 0 : index
    %c2176 = arith.constant 2176 : index
    %63 = vector.load %arg5[%c0_43, %c2176] : memref<1x7296xf32, #tpu.memory_space<vmem>>, vector<1x256xf32>
    %cst_44 = arith.constant dense<0.000000e+00> : vector<8xf32>
    %64 = vector.multi_reduction <add>, %61, %cst_44 [1] : vector<8x256xf32> to vector<8xf32>
    %65 = vector.shape_cast %64 : vector<8xf32> to vector<8x1xf32>
    %cst_45 = arith.constant 2.560000e+02 : f32
    %66 = vector.broadcast %cst_45 : f32 to vector<8x1xf32>
    %67 = arith.divf %65, %66 : vector<8x1xf32>
    %68 = vector.broadcast %67 : vector<8x1xf32> to vector<8x256xf32>
    %69 = arith.subf %61, %68 : vector<8x256xf32>
    %70 = arith.mulf %69, %69 : vector<8x256xf32>
    %cst_46 = arith.constant dense<0.000000e+00> : vector<8xf32>
    %71 = vector.multi_reduction <add>, %70, %cst_46 [1] : vector<8x256xf32> to vector<8xf32>
    %72 = vector.shape_cast %71 : vector<8xf32> to vector<8x1xf32>
    %cst_47 = arith.constant 2.560000e+02 : f32
    %73 = vector.broadcast %cst_47 : f32 to vector<8x1xf32>
    %74 = arith.divf %72, %73 : vector<8x1xf32>
    %75 = vector.broadcast %67 : vector<8x1xf32> to vector<8x256xf32>
    %76 = arith.subf %61, %75 : vector<8x256xf32>
    %cst_48 = arith.constant 9.99999974E-6 : f32
    %77 = vector.broadcast %cst_48 : f32 to vector<8x1xf32>
    %78 = arith.addf %74, %77 : vector<8x1xf32>
    %79 = math.rsqrt %78 : vector<8x1xf32>
    %80 = vector.broadcast %79 : vector<8x1xf32> to vector<8x256xf32>
    %81 = arith.mulf %76, %80 : vector<8x256xf32>
    %82 = vector.broadcast %62 : vector<1x256xf32> to vector<8x256xf32>
    %83 = arith.mulf %81, %82 : vector<8x256xf32>
    %84 = vector.broadcast %63 : vector<1x256xf32> to vector<8x256xf32>
    %85 = arith.addf %83, %84 : vector<8x256xf32>
    %86 = arith.truncf %85 : vector<8x256xf32> to vector<8x256xbf16>
    %c0_49 = arith.constant 0 : index
    %c0_50 = arith.constant 0 : index
    %c0_51 = arith.constant 0 : index
    %87 = vector.load %arg13[%c0_49, %c0_50, %c0_51] : memref<3x256x1024xbf16, #tpu.memory_space<vmem>>, vector<1x256x1024xbf16>
    %88 = vector.shape_cast %87 : vector<1x256x1024xbf16> to vector<256x1024xbf16>
    %cst_52 = arith.constant dense<0.000000e+00> : vector<8x1024xf32>
    %89 = tpu.matmul %86, %88, %cst_52 {dimension_numbers = #tpu.dot_dimension_numbers<[1], [0], [0], [1], [0, 0, 1, 1], [], []>} : vector<8x256xbf16>, vector<256x1024xbf16>, vector<8x1024xf32> -> vector<8x1024xf32>
    %c0_53 = arith.constant 0 : index
    %c2432 = arith.constant 2432 : index
    %90 = vector.load %arg5[%c0_53, %c2432] : memref<1x7296xf32, #tpu.memory_space<vmem>>, vector<1x1024xf32>
    %91 = vector.broadcast %90 : vector<1x1024xf32> to vector<8x1024xf32>
    %92 = arith.addf %89, %91 : vector<8x1024xf32>
    %cst_54 = arith.constant 2.000000e+01 : f32
    %93 = vector.broadcast %cst_54 : f32 to vector<8x1024xf32>
    %94 = arith.minimumf %92, %93 : vector<8x1024xf32>
    %95 = math.exp %94 : vector<8x1024xf32>
    %cst_55 = arith.constant 1.000000e+00 : f32
    %96 = vector.broadcast %cst_55 : f32 to vector<8x1024xf32>
    %97 = arith.addf %96, %95 : vector<8x1024xf32>
    %98 = arith.mulf %97, %97 : vector<8x1024xf32>
    %cst_56 = arith.constant 1.000000e+00 : f32
    %99 = vector.broadcast %cst_56 : f32 to vector<8x1024xf32>
    %100 = arith.subf %98, %99 : vector<8x1024xf32>
    %101 = arith.mulf %92, %100 : vector<8x1024xf32>
    %cst_57 = arith.constant 1.000000e+00 : f32
    %102 = vector.broadcast %cst_57 : f32 to vector<8x1024xf32>
    %103 = arith.addf %98, %102 : vector<8x1024xf32>
    %104 = tpu.reciprocal %103 {approx = true} : vector<8x1024xf32> -> vector<8x1024xf32>
    %105 = arith.mulf %101, %104 : vector<8x1024xf32>
    %cst_58 = arith.constant 2.000000e+01 : f32
    %106 = vector.broadcast %cst_58 : f32 to vector<8x1024xf32>
    %107 = arith.cmpf ogt, %92, %106 : vector<8x1024xf32>
    %108 = arith.select %107, %92, %105 : vector<8x1024xi1>, vector<8x1024xf32>
    %109 = arith.truncf %108 : vector<8x1024xf32> to vector<8x1024xbf16>
    %c0_59 = arith.constant 0 : index
    %c0_60 = arith.constant 0 : index
    %c0_61 = arith.constant 0 : index
    %110 = vector.load %arg14[%c0_59, %c0_60, %c0_61] : memref<3x1024x256xbf16, #tpu.memory_space<vmem>>, vector<1x1024x256xbf16>
    %111 = vector.shape_cast %110 : vector<1x1024x256xbf16> to vector<1024x256xbf16>
    %cst_62 = arith.constant dense<0.000000e+00> : vector<8x256xf32>
    %112 = tpu.matmul %109, %111, %cst_62 {dimension_numbers = #tpu.dot_dimension_numbers<[1], [0], [0], [1], [0, 0, 1, 1], [], []>} : vector<8x1024xbf16>, vector<1024x256xbf16>, vector<8x256xf32> -> vector<8x256xf32>
    %c0_63 = arith.constant 0 : index
    %c3456 = arith.constant 3456 : index
    %113 = vector.load %arg5[%c0_63, %c3456] : memref<1x7296xf32, #tpu.memory_space<vmem>>, vector<1x256xf32>
    %114 = vector.broadcast %113 : vector<1x256xf32> to vector<8x256xf32>
    %115 = arith.addf %112, %114 : vector<8x256xf32>
    %116 = arith.addf %61, %115 : vector<8x256xf32>
    %c0_64 = arith.constant 0 : index
    %c3712 = arith.constant 3712 : index
    %117 = vector.load %arg5[%c0_64, %c3712] : memref<1x7296xf32, #tpu.memory_space<vmem>>, vector<1x256xf32>
    %c0_65 = arith.constant 0 : index
    %c3968 = arith.constant 3968 : index
    %118 = vector.load %arg5[%c0_65, %c3968] : memref<1x7296xf32, #tpu.memory_space<vmem>>, vector<1x256xf32>
    %cst_66 = arith.constant dense<0.000000e+00> : vector<8xf32>
    %119 = vector.multi_reduction <add>, %116, %cst_66 [1] : vector<8x256xf32> to vector<8xf32>
    %120 = vector.shape_cast %119 : vector<8xf32> to vector<8x1xf32>
    %cst_67 = arith.constant 2.560000e+02 : f32
    %121 = vector.broadcast %cst_67 : f32 to vector<8x1xf32>
    %122 = arith.divf %120, %121 : vector<8x1xf32>
    %123 = vector.broadcast %122 : vector<8x1xf32> to vector<8x256xf32>
    %124 = arith.subf %116, %123 : vector<8x256xf32>
    %125 = arith.mulf %124, %124 : vector<8x256xf32>
    %cst_68 = arith.constant dense<0.000000e+00> : vector<8xf32>
    %126 = vector.multi_reduction <add>, %125, %cst_68 [1] : vector<8x256xf32> to vector<8xf32>
    %127 = vector.shape_cast %126 : vector<8xf32> to vector<8x1xf32>
    %cst_69 = arith.constant 2.560000e+02 : f32
    %128 = vector.broadcast %cst_69 : f32 to vector<8x1xf32>
    %129 = arith.divf %127, %128 : vector<8x1xf32>
    %130 = vector.broadcast %122 : vector<8x1xf32> to vector<8x256xf32>
    %131 = arith.subf %116, %130 : vector<8x256xf32>
    %cst_70 = arith.constant 9.99999974E-6 : f32
    %132 = vector.broadcast %cst_70 : f32 to vector<8x1xf32>
    %133 = arith.addf %129, %132 : vector<8x1xf32>
    %134 = math.rsqrt %133 : vector<8x1xf32>
    %135 = vector.broadcast %134 : vector<8x1xf32> to vector<8x256xf32>
    %136 = arith.mulf %131, %135 : vector<8x256xf32>
    %137 = vector.broadcast %117 : vector<1x256xf32> to vector<8x256xf32>
    %138 = arith.mulf %136, %137 : vector<8x256xf32>
    %139 = vector.broadcast %118 : vector<1x256xf32> to vector<8x256xf32>
    %140 = arith.addf %138, %139 : vector<8x256xf32>
    %141 = arith.truncf %140 : vector<8x256xf32> to vector<8x256xbf16>
    %c1 = arith.constant 1 : index
    %c0_71 = arith.constant 0 : index
    %c0_72 = arith.constant 0 : index
    %142 = vector.load %arg13[%c1, %c0_71, %c0_72] : memref<3x256x1024xbf16, #tpu.memory_space<vmem>>, vector<1x256x1024xbf16>
    %143 = vector.shape_cast %142 : vector<1x256x1024xbf16> to vector<256x1024xbf16>
    %cst_73 = arith.constant dense<0.000000e+00> : vector<8x1024xf32>
    %144 = tpu.matmul %141, %143, %cst_73 {dimension_numbers = #tpu.dot_dimension_numbers<[1], [0], [0], [1], [0, 0, 1, 1], [], []>} : vector<8x256xbf16>, vector<256x1024xbf16>, vector<8x1024xf32> -> vector<8x1024xf32>
    %c0_74 = arith.constant 0 : index
    %c4224 = arith.constant 4224 : index
    %145 = vector.load %arg5[%c0_74, %c4224] : memref<1x7296xf32, #tpu.memory_space<vmem>>, vector<1x1024xf32>
    %146 = vector.broadcast %145 : vector<1x1024xf32> to vector<8x1024xf32>
    %147 = arith.addf %144, %146 : vector<8x1024xf32>
    %cst_75 = arith.constant 2.000000e+01 : f32
    %148 = vector.broadcast %cst_75 : f32 to vector<8x1024xf32>
    %149 = arith.minimumf %147, %148 : vector<8x1024xf32>
    %150 = math.exp %149 : vector<8x1024xf32>
    %cst_76 = arith.constant 1.000000e+00 : f32
    %151 = vector.broadcast %cst_76 : f32 to vector<8x1024xf32>
    %152 = arith.addf %151, %150 : vector<8x1024xf32>
    %153 = arith.mulf %152, %152 : vector<8x1024xf32>
    %cst_77 = arith.constant 1.000000e+00 : f32
    %154 = vector.broadcast %cst_77 : f32 to vector<8x1024xf32>
    %155 = arith.subf %153, %154 : vector<8x1024xf32>
    %156 = arith.mulf %147, %155 : vector<8x1024xf32>
    %cst_78 = arith.constant 1.000000e+00 : f32
    %157 = vector.broadcast %cst_78 : f32 to vector<8x1024xf32>
    %158 = arith.addf %153, %157 : vector<8x1024xf32>
    %159 = tpu.reciprocal %158 {approx = true} : vector<8x1024xf32> -> vector<8x1024xf32>
    %160 = arith.mulf %156, %159 : vector<8x1024xf32>
    %cst_79 = arith.constant 2.000000e+01 : f32
    %161 = vector.broadcast %cst_79 : f32 to vector<8x1024xf32>
    %162 = arith.cmpf ogt, %147, %161 : vector<8x1024xf32>
    %163 = arith.select %162, %147, %160 : vector<8x1024xi1>, vector<8x1024xf32>
    %164 = arith.truncf %163 : vector<8x1024xf32> to vector<8x1024xbf16>
    %c1_80 = arith.constant 1 : index
    %c0_81 = arith.constant 0 : index
    %c0_82 = arith.constant 0 : index
    %165 = vector.load %arg14[%c1_80, %c0_81, %c0_82] : memref<3x1024x256xbf16, #tpu.memory_space<vmem>>, vector<1x1024x256xbf16>
    %166 = vector.shape_cast %165 : vector<1x1024x256xbf16> to vector<1024x256xbf16>
    %cst_83 = arith.constant dense<0.000000e+00> : vector<8x256xf32>
    %167 = tpu.matmul %164, %166, %cst_83 {dimension_numbers = #tpu.dot_dimension_numbers<[1], [0], [0], [1], [0, 0, 1, 1], [], []>} : vector<8x1024xbf16>, vector<1024x256xbf16>, vector<8x256xf32> -> vector<8x256xf32>
    %c0_84 = arith.constant 0 : index
    %c5248 = arith.constant 5248 : index
    %168 = vector.load %arg5[%c0_84, %c5248] : memref<1x7296xf32, #tpu.memory_space<vmem>>, vector<1x256xf32>
    %169 = vector.broadcast %168 : vector<1x256xf32> to vector<8x256xf32>
    %170 = arith.addf %167, %169 : vector<8x256xf32>
    %171 = arith.addf %116, %170 : vector<8x256xf32>
    %c0_85 = arith.constant 0 : index
    %c5504 = arith.constant 5504 : index
    %172 = vector.load %arg5[%c0_85, %c5504] : memref<1x7296xf32, #tpu.memory_space<vmem>>, vector<1x256xf32>
    %c0_86 = arith.constant 0 : index
    %c5760 = arith.constant 5760 : index
    %173 = vector.load %arg5[%c0_86, %c5760] : memref<1x7296xf32, #tpu.memory_space<vmem>>, vector<1x256xf32>
    %cst_87 = arith.constant dense<0.000000e+00> : vector<8xf32>
    %174 = vector.multi_reduction <add>, %171, %cst_87 [1] : vector<8x256xf32> to vector<8xf32>
    %175 = vector.shape_cast %174 : vector<8xf32> to vector<8x1xf32>
    %cst_88 = arith.constant 2.560000e+02 : f32
    %176 = vector.broadcast %cst_88 : f32 to vector<8x1xf32>
    %177 = arith.divf %175, %176 : vector<8x1xf32>
    %178 = vector.broadcast %177 : vector<8x1xf32> to vector<8x256xf32>
    %179 = arith.subf %171, %178 : vector<8x256xf32>
    %180 = arith.mulf %179, %179 : vector<8x256xf32>
    %cst_89 = arith.constant dense<0.000000e+00> : vector<8xf32>
    %181 = vector.multi_reduction <add>, %180, %cst_89 [1] : vector<8x256xf32> to vector<8xf32>
    %182 = vector.shape_cast %181 : vector<8xf32> to vector<8x1xf32>
    %cst_90 = arith.constant 2.560000e+02 : f32
    %183 = vector.broadcast %cst_90 : f32 to vector<8x1xf32>
    %184 = arith.divf %182, %183 : vector<8x1xf32>
    %185 = vector.broadcast %177 : vector<8x1xf32> to vector<8x256xf32>
    %186 = arith.subf %171, %185 : vector<8x256xf32>
    %cst_91 = arith.constant 9.99999974E-6 : f32
    %187 = vector.broadcast %cst_91 : f32 to vector<8x1xf32>
    %188 = arith.addf %184, %187 : vector<8x1xf32>
    %189 = math.rsqrt %188 : vector<8x1xf32>
    %190 = vector.broadcast %189 : vector<8x1xf32> to vector<8x256xf32>
    %191 = arith.mulf %186, %190 : vector<8x256xf32>
    %192 = vector.broadcast %172 : vector<1x256xf32> to vector<8x256xf32>
    %193 = arith.mulf %191, %192 : vector<8x256xf32>
    %194 = vector.broadcast %173 : vector<1x256xf32> to vector<8x256xf32>
    %195 = arith.addf %193, %194 : vector<8x256xf32>
    %196 = arith.truncf %195 : vector<8x256xf32> to vector<8x256xbf16>
    %c2 = arith.constant 2 : index
    %c0_92 = arith.constant 0 : index
    %c0_93 = arith.constant 0 : index
    %197 = vector.load %arg13[%c2, %c0_92, %c0_93] : memref<3x256x1024xbf16, #tpu.memory_space<vmem>>, vector<1x256x1024xbf16>
    %198 = vector.shape_cast %197 : vector<1x256x1024xbf16> to vector<256x1024xbf16>
    %cst_94 = arith.constant dense<0.000000e+00> : vector<8x1024xf32>
    %199 = tpu.matmul %196, %198, %cst_94 {dimension_numbers = #tpu.dot_dimension_numbers<[1], [0], [0], [1], [0, 0, 1, 1], [], []>} : vector<8x256xbf16>, vector<256x1024xbf16>, vector<8x1024xf32> -> vector<8x1024xf32>
    %c0_95 = arith.constant 0 : index
    %c6016 = arith.constant 6016 : index
    %200 = vector.load %arg5[%c0_95, %c6016] : memref<1x7296xf32, #tpu.memory_space<vmem>>, vector<1x1024xf32>
    %201 = vector.broadcast %200 : vector<1x1024xf32> to vector<8x1024xf32>
    %202 = arith.addf %199, %201 : vector<8x1024xf32>
    %cst_96 = arith.constant 2.000000e+01 : f32
    %203 = vector.broadcast %cst_96 : f32 to vector<8x1024xf32>
    %204 = arith.minimumf %202, %203 : vector<8x1024xf32>
    %205 = math.exp %204 : vector<8x1024xf32>
    %cst_97 = arith.constant 1.000000e+00 : f32
    %206 = vector.broadcast %cst_97 : f32 to vector<8x1024xf32>
    %207 = arith.addf %206, %205 : vector<8x1024xf32>
    %208 = arith.mulf %207, %207 : vector<8x1024xf32>
    %cst_98 = arith.constant 1.000000e+00 : f32
    %209 = vector.broadcast %cst_98 : f32 to vector<8x1024xf32>
    %210 = arith.subf %208, %209 : vector<8x1024xf32>
    %211 = arith.mulf %202, %210 : vector<8x1024xf32>
    %cst_99 = arith.constant 1.000000e+00 : f32
    %212 = vector.broadcast %cst_99 : f32 to vector<8x1024xf32>
    %213 = arith.addf %208, %212 : vector<8x1024xf32>
    %214 = tpu.reciprocal %213 {approx = true} : vector<8x1024xf32> -> vector<8x1024xf32>
    %215 = arith.mulf %211, %214 : vector<8x1024xf32>
    %cst_100 = arith.constant 2.000000e+01 : f32
    %216 = vector.broadcast %cst_100 : f32 to vector<8x1024xf32>
    %217 = arith.cmpf ogt, %202, %216 : vector<8x1024xf32>
    %218 = arith.select %217, %202, %215 : vector<8x1024xi1>, vector<8x1024xf32>
    %219 = arith.truncf %218 : vector<8x1024xf32> to vector<8x1024xbf16>
    %c2_101 = arith.constant 2 : index
    %c0_102 = arith.constant 0 : index
    %c0_103 = arith.constant 0 : index
    %220 = vector.load %arg14[%c2_101, %c0_102, %c0_103] : memref<3x1024x256xbf16, #tpu.memory_space<vmem>>, vector<1x1024x256xbf16>
    %221 = vector.shape_cast %220 : vector<1x1024x256xbf16> to vector<1024x256xbf16>
    %cst_104 = arith.constant dense<0.000000e+00> : vector<8x256xf32>
    %222 = tpu.matmul %219, %221, %cst_104 {dimension_numbers = #tpu.dot_dimension_numbers<[1], [0], [0], [1], [0, 0, 1, 1], [], []>} : vector<8x1024xbf16>, vector<1024x256xbf16>, vector<8x256xf32> -> vector<8x256xf32>
    %c0_105 = arith.constant 0 : index
    %c7040 = arith.constant 7040 : index
    %223 = vector.load %arg5[%c0_105, %c7040] : memref<1x7296xf32, #tpu.memory_space<vmem>>, vector<1x256xf32>
    %224 = vector.broadcast %223 : vector<1x256xf32> to vector<8x256xf32>
    %225 = arith.addf %222, %224 : vector<8x256xf32>
    %226 = arith.addf %171, %225 : vector<8x256xf32>
    %cst_106 = arith.constant 2.000000e+01 : f32
    %227 = vector.broadcast %cst_106 : f32 to vector<8x256xf32>
    %228 = arith.minimumf %226, %227 : vector<8x256xf32>
    %229 = math.exp %228 : vector<8x256xf32>
    %cst_107 = arith.constant 1.000000e+00 : f32
    %230 = vector.broadcast %cst_107 : f32 to vector<8x256xf32>
    %231 = arith.addf %230, %229 : vector<8x256xf32>
    %232 = arith.mulf %231, %231 : vector<8x256xf32>
    %cst_108 = arith.constant 1.000000e+00 : f32
    %233 = vector.broadcast %cst_108 : f32 to vector<8x256xf32>
    %234 = arith.subf %232, %233 : vector<8x256xf32>
    %235 = arith.mulf %226, %234 : vector<8x256xf32>
    %cst_109 = arith.constant 1.000000e+00 : f32
    %236 = vector.broadcast %cst_109 : f32 to vector<8x256xf32>
    %237 = arith.addf %232, %236 : vector<8x256xf32>
    %238 = tpu.reciprocal %237 {approx = true} : vector<8x256xf32> -> vector<8x256xf32>
    %239 = arith.mulf %235, %238 : vector<8x256xf32>
    %cst_110 = arith.constant 2.000000e+01 : f32
    %240 = vector.broadcast %cst_110 : f32 to vector<8x256xf32>
    %241 = arith.cmpf ogt, %226, %240 : vector<8x256xf32>
    %242 = arith.select %241, %226, %239 : vector<8x256xi1>, vector<8x256xf32>
    %243 = arith.truncf %242 : vector<8x256xf32> to vector<8x256xbf16>
    %c0_111 = arith.constant 0 : index
    %c0_112 = arith.constant 0 : index
    %244 = vector.load %arg15[%c0_111, %c0_112] : memref<256x128xbf16, #tpu.memory_space<vmem>>, vector<256x128xbf16>
    %cst_113 = arith.constant dense<0.000000e+00> : vector<8x128xf32>
    %245 = tpu.matmul %243, %244, %cst_113 {dimension_numbers = #tpu.dot_dimension_numbers<[1], [0], [0], [1], [0, 0, 1, 1], [], []>} : vector<8x256xbf16>, vector<256x128xbf16>, vector<8x128xf32> -> vector<8x128xf32>
    %c0_114 = arith.constant 0 : index
    %c1792 = arith.constant 1792 : index
    %246 = vector.load %arg5[%c0_114, %c1792] : memref<1x7296xf32, #tpu.memory_space<vmem>>, vector<1x128xf32>
    %247 = vector.broadcast %246 : vector<1x128xf32> to vector<8x128xf32>
    %248 = arith.addf %245, %247 : vector<8x128xf32>
    %c0_115 = arith.constant 0 : index
    %c0_116 = arith.constant 0 : index
    %249 = vector.load %arg16[%c0_115, %c0_116] : memref<8x128xf32, #tpu.memory_space<vmem>>, vector<8x128xf32>
    tpu.vector_store %arg16[%c0_115, %c0_116], %248 {strides = array<i32>} : memref<8x128xf32, #tpu.memory_space<vmem>>, vector<8x128xf32>,
    return
  }
  func.func @transform_0(%arg0: i32) -> (i32, i32) {
    %c0_i32 = arith.constant 0 : i32
    %c0_i32_0 = arith.constant 0 : i32
    return %arg0, %c0_i32 : i32, i32
  }
  func.func @transform_1(%arg0: i32) -> (i32, i32) {
    %c0_i32 = arith.constant 0 : i32
    %c0_i32_0 = arith.constant 0 : i32
    return %arg0, %c0_i32 : i32, i32
  }
  func.func @transform_2(%arg0: i32) -> (i32, i32) {
    %c0_i32 = arith.constant 0 : i32
    %c0_i32_0 = arith.constant 0 : i32
    return %arg0, %c0_i32 : i32, i32
  }
  func.func @transform_3(%arg0: i32) -> (i32, i32) {
    %c0_i32 = arith.constant 0 : i32
    %c0_i32_0 = arith.constant 0 : i32
    %c0_i32_1 = arith.constant 0 : i32
    return %c0_i32, %c0_i32_0 : i32, i32
  }
  func.func @transform_4(%arg0: i32) -> (i32, i32) {
    %c0_i32 = arith.constant 0 : i32
    %c0_i32_0 = arith.constant 0 : i32
    %c0_i32_1 = arith.constant 0 : i32
    return %c0_i32, %c0_i32_0 : i32, i32
  }
  func.func @transform_5(%arg0: i32) -> (i32, i32) {
    %c0_i32 = arith.constant 0 : i32
    %c0_i32_0 = arith.constant 0 : i32
    %c0_i32_1 = arith.constant 0 : i32
    return %c0_i32, %c0_i32_0 : i32, i32
  }
  func.func @transform_6(%arg0: i32) -> (i32, i32) {
    %c0_i32 = arith.constant 0 : i32
    %c0_i32_0 = arith.constant 0 : i32
    %c0_i32_1 = arith.constant 0 : i32
    return %c0_i32, %c0_i32_0 : i32, i32
  }
  func.func @transform_7(%arg0: i32) -> (i32, i32) {
    %c0_i32 = arith.constant 0 : i32
    %c0_i32_0 = arith.constant 0 : i32
    %c0_i32_1 = arith.constant 0 : i32
    return %c0_i32, %c0_i32_0 : i32, i32
  }
  func.func @transform_8(%arg0: i32) -> (i32, i32) {
    %c0_i32 = arith.constant 0 : i32
    %c0_i32_0 = arith.constant 0 : i32
    %c0_i32_1 = arith.constant 0 : i32
    return %c0_i32, %c0_i32_0 : i32, i32
  }
  func.func @transform_9(%arg0: i32) -> (i32, i32) {
    %c0_i32 = arith.constant 0 : i32
    %c0_i32_0 = arith.constant 0 : i32
    %c0_i32_1 = arith.constant 0 : i32
    return %c0_i32, %c0_i32_0 : i32, i32
  }
  func.func @transform_10(%arg0: i32) -> (i32, i32) {
    %c0_i32 = arith.constant 0 : i32
    %c0_i32_0 = arith.constant 0 : i32
    %c0_i32_1 = arith.constant 0 : i32
    return %c0_i32, %c0_i32_0 : i32, i32
  }
  func.func @transform_11(%arg0: i32) -> (i32, i32) {
    %c0_i32 = arith.constant 0 : i32
    %c0_i32_0 = arith.constant 0 : i32
    %c0_i32_1 = arith.constant 0 : i32
    return %c0_i32, %c0_i32_0 : i32, i32
  }
  func.func @transform_12(%arg0: i32) -> (i32, i32, i32) {
    %c0_i32 = arith.constant 0 : i32
    %c0_i32_0 = arith.constant 0 : i32
    %c0_i32_1 = arith.constant 0 : i32
    %c0_i32_2 = arith.constant 0 : i32
    return %c0_i32, %c0_i32_0, %c0_i32_1 : i32, i32, i32
  }
  func.func @transform_13(%arg0: i32) -> (i32, i32, i32) {
    %c0_i32 = arith.constant 0 : i32
    %c0_i32_0 = arith.constant 0 : i32
    %c0_i32_1 = arith.constant 0 : i32
    %c0_i32_2 = arith.constant 0 : i32
    return %c0_i32, %c0_i32_0, %c0_i32_1 : i32, i32, i32
  }
  func.func @transform_14(%arg0: i32) -> (i32, i32) {
    %c0_i32 = arith.constant 0 : i32
    %c0_i32_0 = arith.constant 0 : i32
    %c0_i32_1 = arith.constant 0 : i32
    return %c0_i32, %c0_i32_0 : i32, i32
  }
  func.func @transform_15(%arg0: i32) -> (i32, i32) {
    %c0_i32 = arith.constant 0 : i32
    %c0_i32_0 = arith.constant 0 : i32
    return %arg0, %c0_i32 : i32, i32
  }
}

</mosaic_0001>

<llo_original>
// kernel: tpu_custom_call.1
$region0: #{tpu_custom_call.1}
  #allocation0 [shape = 'u32[]', space=smem, size = 0x4, offset = 0x4, fixed_abs, tag = 'smem constant byte address 0x4 - core index']
  #allocation1 [shape = 'u32[72,128]{1,0:T(1,128)}', space=vmem, size = 0x9000, scoped, tag = 'internal scratch']
  %s0 = inlined_call_operand.hbm [shape: f32[8,8], index: 0, kind: input, shape index: {}]
  %s1 = inlined_call_operand.hbm [shape: bf16[16,768], index: 1, kind: input, shape index: {}]
  %s2 = inlined_call_operand.hbm [shape: bf16[8,1024], index: 2, kind: input, shape index: {}]
  %s3 = inlined_call_operand.hbm [shape: f32[1,16], index: 3, kind: input, shape index: {}]
  %s4 = inlined_call_operand.hbm [shape: f32[1,7296], index: 4, kind: input, shape index: {}]
  %s5 = inlined_call_operand.hbm [shape: f32[32,256], index: 5, kind: input, shape index: {}]
  %s6 = inlined_call_operand.hbm [shape: f32[256,256], index: 6, kind: input, shape index: {}]
  %s7 = inlined_call_operand.hbm [shape: f32[256,256], index: 7, kind: input, shape index: {}]
  %s8 = inlined_call_operand.hbm [shape: f32[8,256], index: 8, kind: input, shape index: {}]
  %s9 = inlined_call_operand.hbm [shape: bf16[768,1024], index: 9, kind: input, shape index: {}]
  %s10 = inlined_call_operand.hbm [shape: bf16[2048,256], index: 10, kind: input, shape index: {}]
  %s11 = inlined_call_operand.hbm [shape: bf16[1024,256], index: 11, kind: input, shape index: {}]
  %s12 = inlined_call_operand.hbm [shape: bf16[3,256,1024], index: 12, kind: input, shape index: {}]
  %s13 = inlined_call_operand.hbm [shape: bf16[3,1024,256], index: 13, kind: input, shape index: {}]
  %s14 = inlined_call_operand.hbm [shape: bf16[256,128], index: 14, kind: input, shape index: {}]
  %s15 = inlined_call_operand.hbm [shape: f32[8,128], index: 15, kind: output, shape index: {}]
  %s16 = sld [smem:[#allocation0]]
  $region130: #{tpu_custom_call.1} parent=0
    _
  %s18 = ssub.s32 1, %s16
  %s19 = scalar_select 0, %s18, %s16
  $region1: #{tpu_custom_call.1} parent=0
    #allocation2 [shape = 'u8[4096]{0}', space=vmem, size = 0x1000, scoped, tag = 'input window, operand 0, single buffered']
    #allocation3 [shape = 's32[1]{0}', space=sflag, size = 0x4, scoped, tag = 'scoped memory for tpu_custom_call.1']
    #allocation4 [shape = 's32[1]{0}', space=sflag, size = 0x4, scoped, tag = 'scoped memory for tpu_custom_call.1']
    #allocation5 [shape = 'u8[24576]{0}', space=vmem, size = 0x6000, scoped, tag = 'input window, operand 1, single buffered']
    #allocation6 [shape = 's32[1]{0}', space=sflag, size = 0x4, scoped, tag = 'scoped memory for tpu_custom_call.1']
    #allocation7 [shape = 'u8[16384]{0}', space=vmem, size = 0x4000, scoped, tag = 'input window, operand 2, single buffered']
    #allocation8 [shape = 'u8[512]{0}', space=vmem, size = 0x400, scoped, tag = 'input window, operand 3, single buffered']
    #allocation9 [shape = 's32[1]{0}', space=sflag, size = 0x4, scoped, tag = 'scoped memory for tpu_custom_call.1']
    #allocation10 [shape = 'u8[29184]{0}', space=vmem, size = 0x7400, scoped, tag = 'input window, operand 4, single buffered']
    #allocation11 [shape = 'u8[32768]{0}', space=vmem, size = 0x8000, scoped, tag = 'input window, operand 5, single buffered']
    #allocation12 [shape = 's32[1]{0}', space=sflag, size = 0x4, scoped, tag = 'scoped memory for tpu_custom_call.1']
    #allocation13 [shape = 'u8[262144]{0}', space=vmem, size = 0x40000, scoped, tag = 'input window, operand 6, single buffered']
    #allocation14 [shape = 'u8[262144]{0}', space=vmem, size = 0x40000, scoped, tag = 'input window, operand 7, single buffered']
    #allocation15 [shape = 's32[1]{0}', space=sflag, size = 0x4, scoped, tag = 'scoped memory for tpu_custom_call.1']
    #allocation16 [shape = 'u8[8192]{0}', space=vmem, size = 0x2000, scoped, tag = 'input window, operand 8, single buffered']
    #allocation17 [shape = 'u8[1572864]{0}', space=vmem, size = 0x180000, scoped, tag = 'input window, operand 9, single buffered']
    #allocation18 [shape = 's32[1]{0}', space=sflag, size = 0x4, scoped, tag = 'scoped memory for tpu_custom_call.1']
    #allocation19 [shape = 'u8[1048576]{0}', space=vmem, size = 0x100000, scoped, tag = 'input window, operand 10, single buffered']
    #allocation20 [shape = 'u8[524288]{0}', space=vmem, size = 0x80000, scoped, tag = 'input window, operand 11, single buffered']
    #allocation21 [shape = 's32[1]{0}', space=sflag, size = 0x4, scoped, tag = 'scoped memory for tpu_custom_call.1']
    #allocation22 [shape = 'u8[1572864]{0}', space=vmem, size = 0x180000, scoped, tag = 'input window, operand 12, single buffered']
    #allocation23 [shape = 'u8[1572864]{0}', space=vmem, size = 0x180000, scoped, tag = 'input window, operand 13, single buffered']
    #allocation24 [shape = 's32[1]{0}', space=sflag, size = 0x4, scoped, tag = 'scoped memory for tpu_custom_call.1']
    #allocation25 [shape = 'u8[65536]{0}', space=vmem, size = 0x10000, scoped, tag = 'input window, operand 14, single buffered']
    #allocation26 [shape = 'u8[4096]{0}', space=vmem, size = 0x1000, scoped, tag = 'output window, operand 0, single buffered']
    %20 = vsyncpa [#allocation3], 0
    %21 = vsyncpa [#allocation6], 0
    %22 = vsyncpa [#allocation9], 0
    %23 = vsyncpa [#allocation12], 0
    %24 = vsyncpa [#allocation15], 0
    %25 = vsyncpa [#allocation18], 0
    %26 = vsyncpa [#allocation21], 0
    %27 = vsyncpa [#allocation24], 0
    %28 = vsyncpa [#allocation4], 0
    // Predicated region
    $region2: #{tpu_custom_call.1} parent=1 // pred_check
      _
    $region3: #{tpu_custom_call.1} parent=1 // pred_check_branch
      %30 = sbr.rel (0) target = $region5
    $region4: #{tpu_custom_call.1} parent=1 // pred_region
      %32 = vsyncadd [#allocation3], 0
      %s34 = sshll.u32 %s0, 4
      %s35 = int_to_ptr.hbm [resolvable:$true] %s34
      %s36 = sshll.u32 [#allocation2], 4
      %s37 = int_to_ptr.vmem [resolvable:$true] %s36
      %39 = dma.hbm_to_vmem [thread:$0]  %s35, 128, %s37, [#allocation3]
    $region5: #{tpu_custom_call.1} parent=1 // pred_fallthru
      _
    // Predicated region
    $region6: #{tpu_custom_call.1} parent=1 // pred_check
      _
    $region7: #{tpu_custom_call.1} parent=1 // pred_check_branch
      %41 = sbr.rel (0) target = $region9
    $region8: #{tpu_custom_call.1} parent=1 // pred_region
      %43 = vsyncadd [#allocation6], 0
      %s44 = sshll.u32 %s1, 4
      %s45 = int_to_ptr.hbm [resolvable:$true] %s44
      %s46 = sshll.u32 [#allocation5], 4
      %s47 = int_to_ptr.vmem [resolvable:$true] %s46
      %52 = dma.hbm_to_vmem [thread:$0]  %s45, 768, %s47, [#allocation6], 384, 384, 24
    $region9: #{tpu_custom_call.1} parent=1 // pred_fallthru
      _
    // Predicated region
    $region10: #{tpu_custom_call.1} parent=1 // pred_check
      _
    $region11: #{tpu_custom_call.1} parent=1 // pred_check_branch
      %54 = sbr.rel (0) target = $region13
    $region12: #{tpu_custom_call.1} parent=1 // pred_region
      %56 = vsyncadd [#allocation6], 0
      %s58 = sshll.u32 %s2, 4
      %s59 = int_to_ptr.hbm [resolvable:$true] %s58
      %s60 = sshll.u32 [#allocation7], 4
      %s61 = int_to_ptr.vmem [resolvable:$true] %s60
      %63 = dma.hbm_to_vmem [thread:$0]  %s59, 512, %s61, [#allocation6]
    $region13: #{tpu_custom_call.1} parent=1 // pred_fallthru
      _
    // Predicated region
    $region14: #{tpu_custom_call.1} parent=1 // pred_check
      _
    $region15: #{tpu_custom_call.1} parent=1 // pred_check_branch
      %65 = sbr.rel (0) target = $region17
    $region16: #{tpu_custom_call.1} parent=1 // pred_region
      %67 = vsyncadd [#allocation9], 0
      %s69 = sshll.u32 %s3, 4
      %s70 = int_to_ptr.hbm [resolvable:$true] %s69
      %s71 = sshll.u32 [#allocation8], 4
      %s72 = int_to_ptr.vmem [resolvable:$true] %s71
      %74 = dma.hbm_to_vmem [thread:$0]  %s70, 16, %s72, [#allocation9]
    $region17: #{tpu_custom_call.1} parent=1 // pred_fallthru
      _
    // Predicated region
    $region18: #{tpu_custom_call.1} parent=1 // pred_check
      _
    $region19: #{tpu_custom_call.1} parent=1 // pred_check_branch
      %76 = sbr.rel (0) target = $region21
    $region20: #{tpu_custom_call.1} parent=1 // pred_region
      %78 = vsyncadd [#allocation9], 0
      %s80 = sshll.u32 %s4, 4
      %s81 = int_to_ptr.hbm [resolvable:$true] %s80
      %s82 = sshll.u32 [#allocation10], 4
      %s83 = int_to_ptr.vmem [resolvable:$true] %s82
      %85 = dma.hbm_to_vmem [thread:$0]  %s81, 912, %s83, [#allocation9]
    $region21: #{tpu_custom_call.1} parent=1 // pred_fallthru
      _
    // Predicated region
    $region22: #{tpu_custom_call.1} parent=1 // pred_check
      _
    $region23: #{tpu_custom_call.1} parent=1 // pred_check_branch
      %87 = sbr.rel (0) target = $region25
    $region24: #{tpu_custom_call.1} parent=1 // pred_region
      %89 = vsyncadd [#allocation12], 0
      %s90 = sshll.u32 %s5, 4
      %s91 = int_to_ptr.hbm [resolvable:$true] %s90
      %s92 = sshll.u32 [#allocation11], 4
      %s93 = int_to_ptr.vmem [resolvable:$true] %s92
      %98 = dma.hbm_to_vmem [thread:$0]  %s91, 1024, %s93, [#allocation12], 256, 256, 16
    $region25: #{tpu_custom_call.1} parent=1 // pred_fallthru
      _
    // Predicated region
    $region26: #{tpu_custom_call.1} parent=1 // pred_check
      _
    $region27: #{tpu_custom_call.1} parent=1 // pred_check_branch
      %100 = sbr.rel (0) target = $region29
    $region28: #{tpu_custom_call.1} parent=1 // pred_region
      %102 = vsyncadd [#allocation12], 0
      %s103 = sshll.u32 %s6, 4
      %s104 = int_to_ptr.hbm [resolvable:$true] %s103
      %s105 = sshll.u32 [#allocation13], 4
      %s106 = int_to_ptr.vmem [resolvable:$true] %s105
      %111 = dma.hbm_to_vmem [thread:$0]  %s104, 8192, %s106, [#allocation12], 256, 256, 16
    $region29: #{tpu_custom_call.1} parent=1 // pred_fallthru
      _
    // Predicated region
    $region30: #{tpu_custom_call.1} parent=1 // pred_check
      _
    $region31: #{tpu_custom_call.1} parent=1 // pred_check_branch
      %113 = sbr.rel (0) target = $region33
    $region32: #{tpu_custom_call.1} parent=1 // pred_region
      %115 = vsyncadd [#allocation15], 0
      %s116 = sshll.u32 %s7, 4
      %s117 = int_to_ptr.hbm [resolvable:$true] %s116
      %s118 = sshll.u32 [#allocation14], 4
      %s119 = int_to_ptr.vmem [resolvable:$true] %s118
      %124 = dma.hbm_to_vmem [thread:$0]  %s117, 8192, %s119, [#allocation15], 256, 256, 16
    $region33: #{tpu_custom_call.1} parent=1 // pred_fallthru
      _
    // Predicated region
    $region34: #{tpu_custom_call.1} parent=1 // pred_check
      _
    $region35: #{tpu_custom_call.1} parent=1 // pred_check_branch
      %126 = sbr.rel (0) target = $region37
    $region36: #{tpu_custom_call.1} parent=1 // pred_region
      %128 = vsyncadd [#allocation15], 0
      %s130 = sshll.u32 %s8, 4
      %s131 = int_to_ptr.hbm [resolvable:$true] %s130
      %s132 = sshll.u32 [#allocation16], 4
      %s133 = int_to_ptr.vmem [resolvable:$true] %s132
      %135 = dma.hbm_to_vmem [thread:$0]  %s131, 256, %s133, [#allocation15]
    $region37: #{tpu_custom_call.1} parent=1 // pred_fallthru
      _
    // Predicated region
    $region38: #{tpu_custom_call.1} parent=1 // pred_check
      _
    $region39: #{tpu_custom_call.1} parent=1 // pred_check_branch
      %137 = sbr.rel (0) target = $region41
    $region40: #{tpu_custom_call.1} parent=1 // pred_region
      %139 = vsyncadd [#allocation18], 0
      %s140 = sshll.u32 %s9, 4
      %s141 = int_to_ptr.hbm [resolvable:$true] %s140
      %s142 = sshll.u32 [#allocation17], 4
      %s143 = int_to_ptr.vmem [resolvable:$true] %s142
      %148 = dma.hbm_to_vmem [thread:$0]  %s141, 49152, %s143, [#allocation18], 512, 512, 32
    $region41: #{tpu_custom_call.1} parent=1 // pred_fallthru
      _
    // Predicated region
    $region42: #{tpu_custom_call.1} parent=1 // pred_check
      _
    $region43: #{tpu_custom_call.1} parent=1 // pred_check_branch
      %150 = sbr.rel (0) target = $region45
    $region44: #{tpu_custom_call.1} parent=1 // pred_region
      %152 = vsyncadd [#allocation18], 0
      %s153 = sshll.u32 %s10, 4
      %s154 = int_to_ptr.hbm [resolvable:$true] %s153
      %s155 = sshll.u32 [#allocation19], 4
      %s156 = int_to_ptr.vmem [resolvable:$true] %s155
      %161 = dma.hbm_to_vmem [thread:$0]  %s154, 32768, %s156, [#allocation18], 128, 128, 8
    $region45: #{tpu_custom_call.1} parent=1 // pred_fallthru
      _
    // Predicated region
    $region46: #{tpu_custom_call.1} parent=1 // pred_check
      _
    $region47: #{tpu_custom_call.1} parent=1 // pred_check_branch
      %163 = sbr.rel (0) target = $region49
    $region48: #{tpu_custom_call.1} parent=1 // pred_region
      %165 = vsyncadd [#allocation21], 0
      %s166 = sshll.u32 %s11, 4
      %s167 = int_to_ptr.hbm [resolvable:$true] %s166
      %s168 = sshll.u32 [#allocation20], 4
      %s169 = int_to_ptr.vmem [resolvable:$true] %s168
      %174 = dma.hbm_to_vmem [thread:$0]  %s167, 16384, %s169, [#allocation21], 128, 128, 8
    $region49: #{tpu_custom_call.1} parent=1 // pred_fallthru
      _
    // Predicated region
    $region50: #{tpu_custom_call.1} parent=1 // pred_check
      _
    $region51: #{tpu_custom_call.1} parent=1 // pred_check_branch
      %176 = sbr.rel (0) target = $region53
    $region52: #{tpu_custom_call.1} parent=1 // pred_region
      %178 = vsyncadd [#allocation21], 0
      %s179 = sshll.u32 %s12, 4
      %s180 = int_to_ptr.hbm [resolvable:$true] %s179
      %s181 = sshll.u32 [#allocation22], 4
      %s182 = int_to_ptr.vmem [resolvable:$true] %s181
      %187 = dma.hbm_to_vmem [thread:$0]  %s180, 49152, %s182, [#allocation21], 512, 512, 32
    $region53: #{tpu_custom_call.1} parent=1 // pred_fallthru
      _
    // Predicated region
    $region54: #{tpu_custom_call.1} parent=1 // pred_check
      _
    $region55: #{tpu_custom_call.1} parent=1 // pred_check_branch
      %189 = sbr.rel (0) target = $region57
    $region56: #{tpu_custom_call.1} parent=1 // pred_region
      %191 = vsyncadd [#allocation24], 0
      %s192 = sshll.u32 %s13, 4
      %s193 = int_to_ptr.hbm [resolvable:$true] %s192
      %s194 = sshll.u32 [#allocation23], 4
      %s195 = int_to_ptr.vmem [resolvable:$true] %s194
      %200 = dma.hbm_to_vmem [thread:$0]  %s193, 49152, %s195, [#allocation24], 128, 128, 8
    $region57: #{tpu_custom_call.1} parent=1 // pred_fallthru
      _
    // Predicated region
    $region58: #{tpu_custom_call.1} parent=1 // pred_check
      _
    $region59: #{tpu_custom_call.1} parent=1 // pred_check_branch
      %202 = sbr.rel (0) target = $region61
    $region60: #{tpu_custom_call.1} parent=1 // pred_region
      %204 = vsyncadd [#allocation24], 0
      %s205 = sshll.u32 %s14, 4
      %s206 = int_to_ptr.hbm [resolvable:$true] %s205
      %s207 = sshll.u32 [#allocation25], 4
      %s208 = int_to_ptr.vmem [resolvable:$true] %s207
      %213 = dma.hbm_to_vmem [thread:$0]  %s206, 2048, %s208, [#allocation24], 64, 64, 4
    $region61: #{tpu_custom_call.1} parent=1 // pred_fallthru
      _
    // Predicated region
    $region62: #{tpu_custom_call.1} parent=1 // pred_check
      _
    $region63: #{tpu_custom_call.1} parent=1 // pred_check_branch
      %215 = sbr.rel (0) target = $region65
    $region64: #{tpu_custom_call.1} parent=1 // pred_region
      %217 = dma.done [#allocation3], 128
    $region65: #{tpu_custom_call.1} parent=1 // pred_fallthru
      _
    // Predicated region
    $region66: #{tpu_custom_call.1} parent=1 // pred_check
      _
    $region67: #{tpu_custom_call.1} parent=1 // pred_check_branch
      %219 = sbr.rel (0) target = $region69
    $region68: #{tpu_custom_call.1} parent=1 // pred_region
      %221 = dma.done [#allocation6], 768
    $region69: #{tpu_custom_call.1} parent=1 // pred_fallthru
      _
    // Predicated region
    $region70: #{tpu_custom_call.1} parent=1 // pred_check
      _
    $region71: #{tpu_custom_call.1} parent=1 // pred_check_branch
      %223 = sbr.rel (0) target = $region73
    $region72: #{tpu_custom_call.1} parent=1 // pred_region
      %225 = dma.done [#allocation6], 512
    $region73: #{tpu_custom_call.1} parent=1 // pred_fallthru
      _
    // Predicated region
    $region74: #{tpu_custom_call.1} parent=1 // pred_check
      _
    $region75: #{tpu_custom_call.1} parent=1 // pred_check_branch
      %227 = sbr.rel (0) target = $region77
    $region76: #{tpu_custom_call.1} parent=1 // pred_region
      %229 = dma.done [#allocation9], 16
    $region77: #{tpu_custom_call.1} parent=1 // pred_fallthru
      _
    // Predicated region
    $region78: #{tpu_custom_call.1} parent=1 // pred_check
      _
    $region79: #{tpu_custom_call.1} parent=1 // pred_check_branch
      %231 = sbr.rel (0) target = $region81
    $region80: #{tpu_custom_call.1} parent=1 // pred_region
      %233 = dma.done [#allocation9], 912
    $region81: #{tpu_custom_call.1} parent=1 // pred_fallthru
      _
    // Predicated region
    $region82: #{tpu_custom_call.1} parent=1 // pred_check
      _
    $region83: #{tpu_custom_call.1} parent=1 // pred_check_branch
      %235 = sbr.rel (0) target = $region85
    $region84: #{tpu_custom_call.1} parent=1 // pred_region
      %237 = dma.done [#allocation12], 1024
    $region85: #{tpu_custom_call.1} parent=1 // pred_fallthru
      _
    // Predicated region
    $region86: #{tpu_custom_call.1} parent=1 // pred_check
      _
    $region87: #{tpu_custom_call.1} parent=1 // pred_check_branch
      %239 = sbr.rel (0) target = $region89
    $region88: #{tpu_custom_call.1} parent=1 // pred_region
      %241 = dma.done [#allocation12], 8192
    $region89: #{tpu_custom_call.1} parent=1 // pred_fallthru
      _
    // Predicated region
    $region90: #{tpu_custom_call.1} parent=1 // pred_check
      _
    $region91: #{tpu_custom_call.1} parent=1 // pred_check_branch
      %243 = sbr.rel (0) target = $region93
    $region92: #{tpu_custom_call.1} parent=1 // pred_region
      %245 = dma.done [#allocation15], 8192
    $region93: #{tpu_custom_call.1} parent=1 // pred_fallthru
      _
    // Predicated region
    $region94: #{tpu_custom_call.1} parent=1 // pred_check
      _
    $region95: #{tpu_custom_call.1} parent=1 // pred_check_branch
      %247 = sbr.rel (0) target = $region97
    $region96: #{tpu_custom_call.1} parent=1 // pred_region
      %249 = dma.done [#allocation15], 256
    $region97: #{tpu_custom_call.1} parent=1 // pred_fallthru
      _
    // Predicated region
    $region98: #{tpu_custom_call.1} parent=1 // pred_check
      _
    $region99: #{tpu_custom_call.1} parent=1 // pred_check_branch
      %251 = sbr.rel (0) target = $region101
    $region100: #{tpu_custom_call.1} parent=1 // pred_region
      %253 = dma.done [#allocation18], 49152
    $region101: #{tpu_custom_call.1} parent=1 // pred_fallthru
      _
    // Predicated region
    $region102: #{tpu_custom_call.1} parent=1 // pred_check
      _
    $region103: #{tpu_custom_call.1} parent=1 // pred_check_branch
      %255 = sbr.rel (0) target = $region105
    $region104: #{tpu_custom_call.1} parent=1 // pred_region
      %257 = dma.done [#allocation18], 32768
    $region105: #{tpu_custom_call.1} parent=1 // pred_fallthru
      _
    // Predicated region
    $region106: #{tpu_custom_call.1} parent=1 // pred_check
      _
    $region107: #{tpu_custom_call.1} parent=1 // pred_check_branch
      %259 = sbr.rel (0) target = $region109
    $region108: #{tpu_custom_call.1} parent=1 // pred_region
      %261 = dma.done [#allocation21], 16384
    $region109: #{tpu_custom_call.1} parent=1 // pred_fallthru
      _
    // Predicated region
    $region110: #{tpu_custom_call.1} parent=1 // pred_check
      _
    $region111: #{tpu_custom_call.1} parent=1 // pred_check_branch
      %263 = sbr.rel (0) target = $region113
    $region112: #{tpu_custom_call.1} parent=1 // pred_region
      %265 = dma.done [#allocation21], 49152
    $region113: #{tpu_custom_call.1} parent=1 // pred_fallthru
      _
    // Predicated region
    $region114: #{tpu_custom_call.1} parent=1 // pred_check
      _
    $region115: #{tpu_custom_call.1} parent=1 // pred_check_branch
      %267 = sbr.rel (0) target = $region117
    $region116: #{tpu_custom_call.1} parent=1 // pred_region
      %269 = dma.done [#allocation24], 49152
    $region117: #{tpu_custom_call.1} parent=1 // pred_fallthru
      _
    // Predicated region
    $region118: #{tpu_custom_call.1} parent=1 // pred_check
      _
    $region119: #{tpu_custom_call.1} parent=1 // pred_check_branch
      %271 = sbr.rel (0) target = $region121
    $region120: #{tpu_custom_call.1} parent=1 // pred_region
      %273 = dma.done [#allocation24], 2048
    $region121: #{tpu_custom_call.1} parent=1 // pred_fallthru
      _
    %v274 = vld [vmem:[#allocation2] sm:$0xff]
    %v275 = vld [vmem:[#allocation8] sm:$0x1]
    %277 = vset.pattern.permute.xlu0 0
    %278 = vperm.xlu0 %277, %v274
    %v279 = vpop.permute.xlu0 %278
    %v282 = vperm.slane %v275, 0
    %v284 = vmul.f32 %v279, %v282
    %v285 = vand.u32 2147483647, %v284
    %vm286 = vcmp.le.f32.partialorder %v285, 0.7853982
    %vm287 = vcmp.lt.s32.totalorder %v284, 0
    %v288 = vand.u32 %v284, 2139095040
    %v289 = vshrl.u32 %v288, 23
    %v290 = vsub.s32 %v289, 127
    %v291 = vand.u32 2147483647, %v284
    %v292 = vand.u32 %v291, 8388607
    %v293 = vor.u32 %v292, 8388608
    %v294 = vsub.s32 0, %v293
    %v295 = vadd.s32 %v290, 1
    %vm296 = vcmp.gt.s32.totalorder %v295, 0
    %v297 = vsel %vm296, %v295, 0
    %v298 = vshrl.u32 %v297, 5
    %v299 = vand.u32 %v297, 31
    %v300 = vsub.s32 32, %v299
    %v301 = vshrl.u32 683565275, %v300
    %v302 = vshll.u32 683565275, %v299
    %v303 = vshrl.u32 2475754826, %v300
    %v304 = vor.u32 %v302, %v303
    %v305 = vshll.u32 2475754826, %v299
    %v306 = vshrl.u32 2131351028, %v300
    %v307 = vor.u32 %v305, %v306
    %v308 = vshll.u32 2131351028, %v299
    %v309 = vshrl.u32 2102212464, %v300
    %v310 = vor.u32 %v308, %v309
    %v311 = vshll.u32 2102212464, %v299
    %v312 = vshrl.u32 920167782, %v300
    %v313 = vor.u32 %v311, %v312
    %v314 = vshll.u32 920167782, %v299
    %v315 = vshrl.u32 1326507024, %v300
    %v316 = vor.u32 %v314, %v315
    %vm317 = vcmp.lt.s32.totalorder %v298, 1
    %vm318 = vcmp.lt.s32.totalorder %v298, 2
    %vm319 = vcmp.lt.s32.totalorder %v298, 3
    %vm320 = vcmp.lt.s32.totalorder %v298, 4
    %v321 = vsel %vm317, %v301, %v304
    %v322 = vsel %vm320, %v310, 2102212464
    %v323 = vsel %vm319, %v307, %v322
    %v324 = vsel %vm318, %v321, %v323
    %v325 = vsel %vm317, %v304, %v307
    %v326 = vsel %vm320, %v313, 920167782
    %v327 = vsel %vm319, %v310, %v326
    %v328 = vsel %vm318, %v325, %v327
    %v329 = vsel %vm317, %v307, %v310
    %v330 = vsel %vm320, %v316, 1326507024
    %v331 = vsel %vm319, %v313, %v330
    %v332 = vsel %vm318, %v329, %v331
    %v333 = vshll.u32 %v293, 8
    %v334 = vand.u32 %v333, 65535
    %v335 = vshrl.u32 %v333, 16
    %v336 = vand.u32 %v332, 65535
    %v337 = vshrl.u32 %v332, 16
    %v338 = vmul.u32 %v334, %v336
    %v339 = vmul.u32 %v334, %v337
    %v340 = vmul.u32 %v335, %v336
    %v341 = vmul.u32 %v335, %v337
    %v342 = vshll.u32 %v339, 16
    %v343 = vshrl.u32 %v339, 16
    %v344 = vshll.u32 %v340, 16
    %v345 = vshrl.u32 %v340, 16
    %vm346 = vc.u32 %v338, %v342
    %v347 = vsel %vm346, 1, 0
    %v348 = vadd.s32 %v338, %v342
    %v349 = vadd.s32 %v341, %v347
    %vm350 = vc.u32 %v348, %v344
    %v351 = vsel %vm350, 1, 0
    %v352 = vadd.s32 %v348, %v344
    %v353 = vadd.s32 %v349, %v351
    %v354 = vadd.s32 %v353, %v343
    %v355 = vadd.s32 %v354, %v345
    %v356 = vand.u32 %v333, 65535
    %v357 = vshrl.u32 %v333, 16
    %v358 = vand.u32 %v328, 65535
    %v359 = vshrl.u32 %v328, 16
    %v360 = vmul.u32 %v356, %v358
    %v361 = vmul.u32 %v356, %v359
    %v362 = vmul.u32 %v357, %v358
    %v363 = vmul.u32 %v357, %v359
    %v364 = vshll.u32 %v361, 16
    %v365 = vshrl.u32 %v361, 16
    %v366 = vshll.u32 %v362, 16
    %v367 = vshrl.u32 %v362, 16
    %vm368 = vc.u32 %v360, %v364
    %v369 = vsel %vm368, 1, 0
    %v370 = vadd.s32 %v360, %v364
    %v371 = vadd.s32 %v363, %v369
    %vm372 = vc.u32 %v370, %v366
    %v373 = vsel %vm372, 1, 0
    %v374 = vadd.s32 %v370, %v366
    %v375 = vadd.s32 %v371, %v373
    %v376 = vadd.s32 %v375, %v365
    %v377 = vadd.s32 %v376, %v367
    %v378 = vmul.u32 %v333, %v324
    %v379 = vadd.s32 %v355, %v374
    %vm380 = vc.u32 %v355, %v374
    %v381 = vadd.s32 %v377, 1
    %v382 = vsel %vm380, %v381, %v377
    %v383 = vadd.s32 %v378, %v382
    %v384 = vadd.s32 %v383, 536870912
    %v385 = vshrl.u32 %v384, 30
    %v386 = vshll.u32 %v385, 30
    %v387 = vsub.s32 %v383, %v386
    %vm388 = vcmp.lt.s32.totalorder %v387, 0
    %v389 = vsub.s32 0, %v387
    %v390 = vsel %vm388, %v389, %v387
    %v391 = vclz %v390
    %v392 = vsub.s32 %v391, 2
    %vm393 = vcmp.gt.s32.totalorder 0, %v392
    %v394 = vsel %vm393, 0, %v392
    %v395 = vsub.s32 32, %v394
    %v396 = vshll.u32 %v387, %v394
    %v397 = vshrl.u32 %v379, %v395
    %v398 = vor.u32 %v396, %v397
    %v399 = vsub.s32 4294967266, %v394
    %v400 = vadd.s32 %v399, 127
    %v401 = vshll.u32 %v400, 23
    %v402 = vor.u32 4788187, %v401
    %v403 = vand.u32 2147483647, %v402
    %v405 = vcvt.s32.f32 %v398
    %v406 = vmul.f32 %v405, %v403
    %v407 = vxor.u32 %v406, 2147483648
    %v408 = vsel %vm287, %v407, %v406
    %v409 = vsub.s32 4, %v385
    %v410 = vsel %vm287, %v409, %v385
    %v411 = vsel %vm286, %v284, %v408
    %v412 = vsel %vm286, 0, %v410
    %v413 = vmul.f32 %v411, %v411
    %v414 = vmul.f32 %v413, -0.001358992
    %v415 = vadd.f32 %v414, 0.041655596
    %v416 = vmul.f32 %v413, %v415
    %v417 = vadd.f32 %v416, -0.4999988
    %v418 = vmul.f32 %v413, %v417
    %v419 = vadd.f32 1.0, %v418
    %v420 = vmul.f32 %v411, %v411
    %v421 = vmul.f32 %v420, -0.00019511016
    %v422 = vadd.f32 %v421, 0.008332121
    %v423 = vmul.f32 %v420, %v422
    %v424 = vadd.f32 %v423, -0.16666654
    %v425 = vmul.f32 %v420, %v424
    %v426 = vadd.f32 %v425, 1.0
    %v427 = vmul.f32 %v426, %v411
    %vm428 = vweird.f32 %v284
    %v429 = vand.u32 %v412, 3
    %vm430 = vcmp.lt.s32.totalorder %v429, 2
    %vm431 = vcmp.eq.s32.totalorder %v429, 0
    %v432 = vxor.u32 %v427, 2147483648
    %v433 = vsel %vm431, %v419, %v432
    %vm434 = vcmp.eq.s32.totalorder %v429, 2
    %v435 = vxor.u32 %v419, 2147483648
    %v436 = vsel %vm434, %v435, %v427
    %v437 = vsel %vm430, %v433, %v436
    %v438 = vsel %vm428, nan, %v437
    %v439 = vand.u32 2147483647, %v284
    %vm440 = vcmp.le.f32.partialorder %v439, 0.7853982
    %vm441 = vcmp.lt.s32.totalorder %v284, 0
    %v442 = vand.u32 %v284, 2139095040
    %v443 = vshrl.u32 %v442, 23
    %v444 = vsub.s32 %v443, 127
    %v445 = vand.u32 2147483647, %v284
    %v446 = vand.u32 %v445, 8388607
    %v447 = vor.u32 %v446, 8388608
    %v448 = vsub.s32 0, %v447
    %v449 = vadd.s32 %v444, 1
    %vm450 = vcmp.gt.s32.totalorder %v449, 0
    %v451 = vsel %vm450, %v449, 0
    %v452 = vshrl.u32 %v451, 5
    %v453 = vand.u32 %v451, 31
    %v454 = vsub.s32 32, %v453
    %v455 = vshrl.u32 683565275, %v454
    %v456 = vshll.u32 683565275, %v453
    %v457 = vshrl.u32 2475754826, %v454
    %v458 = vor.u32 %v456, %v457
    %v459 = vshll.u32 2475754826, %v453
    %v460 = vshrl.u32 2131351028, %v454
    %v461 = vor.u32 %v459, %v460
    %v462 = vshll.u32 2131351028, %v453
    %v463 = vshrl.u32 2102212464, %v454
    %v464 = vor.u32 %v462, %v463
    %v465 = vshll.u32 2102212464, %v453
    %v466 = vshrl.u32 920167782, %v454
    %v467 = vor.u32 %v465, %v466
    %v468 = vshll.u32 920167782, %v453
    %v469 = vshrl.u32 1326507024, %v454
    %v470 = vor.u32 %v468, %v469
    %vm471 = vcmp.lt.s32.totalorder %v452, 1
    %vm472 = vcmp.lt.s32.totalorder %v452, 2
    %vm473 = vcmp.lt.s32.totalorder %v452, 3
    %vm474 = vcmp.lt.s32.totalorder %v452, 4
    %v475 = vsel %vm471, %v455, %v458
    %v476 = vsel %vm474, %v464, 2102212464
    %v477 = vsel %vm473, %v461, %v476
    %v478 = vsel %vm472, %v475, %v477
    %v479 = vsel %vm471, %v458, %v461
    %v480 = vsel %vm474, %v467, 920167782
    %v481 = vsel %vm473, %v464, %v480
    %v482 = vsel %vm472, %v479, %v481
    %v483 = vsel %vm471, %v461, %v464
    %v484 = vsel %vm474, %v470, 1326507024
    %v485 = vsel %vm473, %v467, %v484
    %v486 = vsel %vm472, %v483, %v485
    %v487 = vshll.u32 %v447, 8
    %v488 = vand.u32 %v487, 65535
    %v489 = vshrl.u32 %v487, 16
    %v490 = vand.u32 %v486, 65535
    %v491 = vshrl.u32 %v486, 16
    %v492 = vmul.u32 %v488, %v490
    %v493 = vmul.u32 %v488, %v491
    %v494 = vmul.u32 %v489, %v490
    %v495 = vmul.u32 %v489, %v491
    %v496 = vshll.u32 %v493, 16
    %v497 = vshrl.u32 %v493, 16
    %v498 = vshll.u32 %v494, 16
    %v499 = vshrl.u32 %v494, 16
    %vm500 = vc.u32 %v492, %v496
    %v501 = vsel %vm500, 1, 0
    %v502 = vadd.s32 %v492, %v496
    %v503 = vadd.s32 %v495, %v501
    %vm504 = vc.u32 %v502, %v498
    %v505 = vsel %vm504, 1, 0
    %v506 = vadd.s32 %v502, %v498
    %v507 = vadd.s32 %v503, %v505
    %v508 = vadd.s32 %v507, %v497
    %v509 = vadd.s32 %v508, %v499
    %v510 = vand.u32 %v487, 65535
    %v511 = vshrl.u32 %v487, 16
    %v512 = vand.u32 %v482, 65535
    %v513 = vshrl.u32 %v482, 16
    %v514 = vmul.u32 %v510, %v512
    %v515 = vmul.u32 %v510, %v513
    %v516 = vmul.u32 %v511, %v512
    %v517 = vmul.u32 %v511, %v513
    %v518 = vshll.u32 %v515, 16
    %v519 = vshrl.u32 %v515, 16
    %v520 = vshll.u32 %v516, 16
    %v521 = vshrl.u32 %v516, 16
    %vm522 = vc.u32 %v514, %v518
    %v523 = vsel %vm522, 1, 0
    %v524 = vadd.s32 %v514, %v518
    %v525 = vadd.s32 %v517, %v523
    %vm526 = vc.u32 %v524, %v520
    %v527 = vsel %vm526, 1, 0
    %v528 = vadd.s32 %v524, %v520
    %v529 = vadd.s32 %v525, %v527
    %v530 = vadd.s32 %v529, %v519
    %v531 = vadd.s32 %v530, %v521
    %v532 = vmul.u32 %v487, %v478
    %v533 = vadd.s32 %v509, %v528
    %vm534 = vc.u32 %v509, %v528
    %v535 = vadd.s32 %v531, 1
    %v536 = vsel %vm534, %v535, %v531
    %v537 = vadd.s32 %v532, %v536
    %v538 = vadd.s32 %v537, 536870912
    %v539 = vshrl.u32 %v538, 30
    %v540 = vshll.u32 %v539, 30
    %v541 = vsub.s32 %v537, %v540
    %vm542 = vcmp.lt.s32.totalorder %v541, 0
    %v543 = vsub.s32 0, %v541
    %v544 = vsel %vm542, %v543, %v541
    %v545 = vclz %v544
    %v546 = vsub.s32 %v545, 2
    %vm547 = vcmp.gt.s32.totalorder 0, %v546
    %v548 = vsel %vm547, 0, %v546
    %v549 = vsub.s32 32, %v548
    %v550 = vshll.u32 %v541, %v548
    %v551 = vshrl.u32 %v533, %v549
    %v552 = vor.u32 %v550, %v551
    %v553 = vsub.s32 4294967266, %v548
    %v554 = vadd.s32 %v553, 127
    %v555 = vshll.u32 %v554, 23
    %v556 = vor.u32 4788187, %v555
    %v557 = vand.u32 2147483647, %v556
    %v559 = vcvt.s32.f32 %v552
    %v560 = vmul.f32 %v559, %v557
    %v561 = vxor.u32 %v560, 2147483648
    %v562 = vsel %vm441, %v561, %v560
    %v563 = vsub.s32 4, %v539
    %v564 = vsel %vm441, %v563, %v539
    %v565 = vsel %vm440, %v284, %v562
    %v566 = vsel %vm440, 0, %v564
    %v567 = vmul.f32 %v565, %v565
    %v568 = vmul.f32 %v567, -0.001358992
    %v569 = vadd.f32 %v568, 0.041655596
    %v570 = vmul.f32 %v567, %v569
    %v571 = vadd.f32 %v570, -0.4999988
    %v572 = vmul.f32 %v567, %v571
    %v573 = vadd.f32 1.0, %v572
    %v574 = vmul.f32 %v565, %v565
    %v575 = vmul.f32 %v574, -0.00019511016
    %v576 = vadd.f32 %v575, 0.008332121
    %v577 = vmul.f32 %v574, %v576
    %v578 = vadd.f32 %v577, -0.16666654
    %v579 = vmul.f32 %v574, %v578
    %v580 = vadd.f32 %v579, 1.0
    %v581 = vmul.f32 %v580, %v565
    %vm582 = vweird.f32 %v284
    %v583 = vadd.s32 %v566, 3
    %v584 = vand.u32 %v583, 3
    %vm585 = vcmp.lt.s32.totalorder %v584, 2
    %vm586 = vcmp.eq.s32.totalorder %v584, 0
    %v587 = vxor.u32 %v581, 2147483648
    %v588 = vsel %vm586, %v573, %v587
    %vm589 = vcmp.eq.s32.totalorder %v584, 2
    %v590 = vxor.u32 %v573, 2147483648
    %v591 = vsel %vm589, %v590, %v581
    %v592 = vsel %vm585, %v588, %v591
    %v593 = vsel %vm582, nan, %v592
    %595 = vrot.lane.b32.xlu0 %v593, 16
    %v596 = vpop.permute.xlu0 %595
    %vm598 = vcmask 130048
    %v599 = vsel %vm598, %v438, %v596
    %v600 = vld [vmem:[#allocation11] sm:$0xff]
    %v601 = vld [vmem:[#allocation11 + $0x8] sm:$0xff]
    %v602 = vld [vmem:[#allocation11 + $0x10] sm:$0xff]
    %v603 = vld [vmem:[#allocation11 + $0x18] sm:$0xff]
    %v604 = vld [vmem:[#allocation11 + $0x20] sm:$0xff]
    %v605 = vld [vmem:[#allocation11 + $0x28] sm:$0xff]
    %v606 = vld [vmem:[#allocation11 + $0x30] sm:$0xff]
    %v607 = vld [vmem:[#allocation11 + $0x38] sm:$0xff]
    %v608 = vld [vmem:[#allocation10 + $0x8] sm:$0x3]
    %v610 = vperm.slane %v608, 0
    %v611 = vperm.slane %v608, 1
    %vm614 = vcmask 261120
    %v616 = vsel %vm614, %v599, 0
    %618 = vmatpush.msra.mxu0 0.0
    %619 = vmatpush.msra.mxu0 0.0
    %620 = vmatpush.msra.mxu0 0.0
    %621 = vmatpush.msra.mxu0 0.0
    %622 = vmatpush.msra.mxu0 0.0
    %623 = vmatpush.msra.mxu0 0.0
    %624 = vmatpush.msra.mxu0 0.0
    %625 = vmatpush.msra.mxu0 0.0
    %626 = vmatpush.msra.mxu0 0.0
    %627 = vmatpush.msra.mxu0 0.0
    %628 = vmatpush.msra.mxu0 0.0
    %629 = vmatpush.msra.mxu0 0.0
    %630 = vmatpush.msra.mxu0 %v606
    %631 = vmatpush.msra.mxu0 %v604
    %632 = vmatpush.msra.mxu0 %v602
    %633 = vmatpush.msra.mxu0 %v600
    %634 = vmatmul.f32.gmra.mxu0 %v616
    %v635 = vpop.f32.mrf.mxu0
    %v636 = vadd.f32 %v610, %v635
    %637 = vdwg.mxu0
    %638 = vmatpush.msra.mxu0 0.0
    %639 = vmatpush.msra.mxu0 0.0
    %640 = vmatpush.msra.mxu0 0.0
    %641 = vmatpush.msra.mxu0 0.0
    %642 = vmatpush.msra.mxu0 0.0
    %643 = vmatpush.msra.mxu0 0.0
    %644 = vmatpush.msra.mxu0 0.0
    %645 = vmatpush.msra.mxu0 0.0
    %646 = vmatpush.msra.mxu0 0.0
    %647 = vmatpush.msra.mxu0 0.0
    %648 = vmatpush.msra.mxu0 0.0
    %649 = vmatpush.msra.mxu0 0.0
    %650 = vmatpush.msra.mxu0 %v607
    %651 = vmatpush.msra.mxu0 %v605
    %652 = vmatpush.msra.mxu0 %v603
    %653 = vmatpush.msra.mxu0 %v601
    %654 = vmatmul.f32.gmra.mxu0 %v616
    %v655 = vpop.f32.mrf.mxu0
    %v656 = vadd.f32 %v611, %v655
    %657 = vdwg.mxu0
    %v658 = vmin.f32 %v636, 20.0
    %v659 = vmin.f32 %v656, 20.0
    %v660 = vmul.f32 %v658, 1.442695
    %v661 = vpow.pop %v660
    %v662 = vmul.f32 %v659, 1.442695
    %v663 = vpow.pop %v662
    %v664 = vadd.f32 %v661, 1.0
    %v665 = vadd.f32 %v663, 1.0
    %v666 = vmul.f32 %v664, %v664
    %v667 = vmul.f32 %v665, %v665
    %v668 = vsub.f32 %v666, 1.0
    %v669 = vsub.f32 %v667, 1.0
    %v670 = vmul.f32 %v636, %v668
    %v671 = vmul.f32 %v656, %v669
    %v672 = vadd.f32 %v666, 1.0
    %v673 = vadd.f32 %v667, 1.0
    %v674 = vrcp.pop %v672
    %v675 = vrcp.pop %v673
    %v676 = vmul.f32 %v670, %v674
    %v677 = vmul.f32 %v671, %v675
    %vm678 = vcmp.gt.f32.partialorder %v636, 20.0
    %vm679 = vcmp.gt.f32.partialorder %v656, 20.0
    %v680 = vsel %vm678, %v636, %v676
    %v681 = vsel %vm679, %v656, %v677
    %v682 = vld [vmem:[#allocation13] sm:$0xff]
    %v683 = vld [vmem:[#allocation13 + $0x8] sm:$0xff]
    %v684 = vld [vmem:[#allocation13 + $0x10] sm:$0xff]
    %v685 = vld [vmem:[#allocation13 + $0x18] sm:$0xff]
    %v686 = vld [vmem:[#allocation13 + $0x20] sm:$0xff]
    %v687 = vld [vmem:[#allocation13 + $0x28] sm:$0xff]
    %v688 = vld [vmem:[#allocation13 + $0x30] sm:$0xff]
    %v689 = vld [vmem:[#allocation13 + $0x38] sm:$0xff]
    %v690 = vld [vmem:[#allocation13 + $0x40] sm:$0xff]
    %v691 = vld [vmem:[#allocation13 + $0x48] sm:$0xff]
    %v692 = vld [vmem:[#allocation13 + $0x50] sm:$0xff]
    %v693 = vld [vmem:[#allocation13 + $0x58] sm:$0xff]
    %v694 = vld [vmem:[#allocation13 + $0x60] sm:$0xff]
    %v695 = vld [vmem:[#allocation13 + $0x68] sm:$0xff]
    %v696 = vld [vmem:[#allocation13 + $0x70] sm:$0xff]
    %v697 = vld [vmem:[#allocation13 + $0x78] sm:$0xff]
    %v698 = vld [vmem:[#allocation13 + $0x80] sm:$0xff]
    %v699 = vld [vmem:[#allocation13 + $0x88] sm:$0xff]
    %v700 = vld [vmem:[#allocation13 + $0x90] sm:$0xff]
    %v701 = vld [vmem:[#allocation13 + $0x98] sm:$0xff]
    %v702 = vld [vmem:[#allocation13 + $0xa0] sm:$0xff]
    %v703 = vld [vmem:[#allocation13 + $0xa8] sm:$0xff]
    %v704 = vld [vmem:[#allocation13 + $0xb0] sm:$0xff]
    %v705 = vld [vmem:[#allocation13 + $0xb8] sm:$0xff]
    %v706 = vld [vmem:[#allocation13 + $0xc0] sm:$0xff]
    %v707 = vld [vmem:[#allocation13 + $0xc8] sm:$0xff]
    %v708 = vld [vmem:[#allocation13 + $0xd0] sm:$0xff]
    %v709 = vld [vmem:[#allocation13 + $0xd8] sm:$0xff]
    %v710 = vld [vmem:[#allocation13 + $0xe0] sm:$0xff]
    %v711 = vld [vmem:[#allocation13 + $0xe8] sm:$0xff]
    %v712 = vld [vmem:[#allocation13 + $0xf0] sm:$0xff]
    %v713 = vld [vmem:[#allocation13 + $0xf8] sm:$0xff]
    %v714 = vld [vmem:[#allocation13 + $0x100] sm:$0xff]
    %v715 = vld [vmem:[#allocation13 + $0x108] sm:$0xff]
    %v716 = vld [vmem:[#allocation13 + $0x110] sm:$0xff]
    %v717 = vld [vmem:[#allocation13 + $0x118] sm:$0xff]
    %v718 = vld [vmem:[#allocation13 + $0x120] sm:$0xff]
    %v719 = vld [vmem:[#allocation13 + $0x128] sm:$0xff]
    %v720 = vld [vmem:[#allocation13 + $0x130] sm:$0xff]
    %v721 = vld [vmem:[#allocation13 + $0x138] sm:$0xff]
    %v722 = vld [vmem:[#allocation13 + $0x140] sm:$0xff]
    %v723 = vld [vmem:[#allocation13 + $0x148] sm:$0xff]
    %v724 = vld [vmem:[#allocation13 + $0x150] sm:$0xff]
    %v725 = vld [vmem:[#allocation13 + $0x158] sm:$0xff]
    %v726 = vld [vmem:[#allocation13 + $0x160] sm:$0xff]
    %v727 = vld [vmem:[#allocation13 + $0x168] sm:$0xff]
    %v728 = vld [vmem:[#allocation13 + $0x170] sm:$0xff]
    %v729 = vld [vmem:[#allocation13 + $0x178] sm:$0xff]
    %v730 = vld [vmem:[#allocation13 + $0x180] sm:$0xff]
    %v731 = vld [vmem:[#allocation13 + $0x188] sm:$0xff]
    %v732 = vld [vmem:[#allocation13 + $0x190] sm:$0xff]
    %v733 = vld [vmem:[#allocation13 + $0x198] sm:$0xff]
    %v734 = vld [vmem:[#allocation13 + $0x1a0] sm:$0xff]
    %v735 = vld [vmem:[#allocation13 + $0x1a8] sm:$0xff]
    %v736 = vld [vmem:[#allocation13 + $0x1b0] sm:$0xff]
    %v737 = vld [vmem:[#allocation13 + $0x1b8] sm:$0xff]
    %v738 = vld [vmem:[#allocation13 + $0x1c0] sm:$0xff]
    %v739 = vld [vmem:[#allocation13 + $0x1c8] sm:$0xff]
    %v740 = vld [vmem:[#allocation13 + $0x1d0] sm:$0xff]
    %v741 = vld [vmem:[#allocation13 + $0x1d8] sm:$0xff]
    %v742 = vld [vmem:[#allocation13 + $0x1e0] sm:$0xff]
    %v743 = vld [vmem:[#allocation13 + $0x1e8] sm:$0xff]
    %v744 = vld [vmem:[#allocation13 + $0x1f0] sm:$0xff]
    %v745 = vld [vmem:[#allocation13 + $0x1f8] sm:$0xff]
    %v746 = vld [vmem:[#allocation10 + $0xa] sm:$0x3]
    %v748 = vperm.slane %v746, 0
    %v749 = vperm.slane %v746, 1
    %752 = vmatpush.msra.mxu0 %v712
    %753 = vmatpush.msra.mxu0 %v710
    %754 = vmatpush.msra.mxu0 %v708
    %755 = vmatpush.msra.mxu0 %v706
    %756 = vmatpush.msra.mxu0 %v704
    %757 = vmatpush.msra.mxu0 %v702
    %758 = vmatpush.msra.mxu0 %v700
    %759 = vmatpush.msra.mxu0 %v698
    %760 = vmatpush.msra.mxu0 %v696
    %761 = vmatpush.msra.mxu0 %v694
    %762 = vmatpush.msra.mxu0 %v692
    %763 = vmatpush.msra.mxu0 %v690
    %764 = vmatpush.msra.mxu0 %v688
    %765 = vmatpush.msra.mxu0 %v686
    %766 = vmatpush.msra.mxu0 %v684
    %767 = vmatpush.msra.mxu0 %v682
    %768 = vmatmul.f32.gmra.mxu0 %v680
    %v769 = vpop.f32.mrf.mxu0
    %v770 = vadd.f32 %v748, %v769
    %771 = vdwg.mxu0
    %772 = vmatpush.msra.mxu0 %v744
    %773 = vmatpush.msra.mxu0 %v742
    %774 = vmatpush.msra.mxu0 %v740
    %775 = vmatpush.msra.mxu0 %v738
    %776 = vmatpush.msra.mxu0 %v736
    %777 = vmatpush.msra.mxu0 %v734
    %778 = vmatpush.msra.mxu0 %v732
    %779 = vmatpush.msra.mxu0 %v730
    %780 = vmatpush.msra.mxu0 %v728
    %781 = vmatpush.msra.mxu0 %v726
    %782 = vmatpush.msra.mxu0 %v724
    %783 = vmatpush.msra.mxu0 %v722
    %784 = vmatpush.msra.mxu0 %v720
    %785 = vmatpush.msra.mxu0 %v718
    %786 = vmatpush.msra.mxu0 %v716
    %787 = vmatpush.msra.mxu0 %v714
    %788 = vmatmul.f32.gmra.mxu0 %v681
    %v789 = vpop.f32.mrf.mxu0
    %v790 = vadd.f32 %v770, %v789
    %791 = vdwg.mxu0
    %792 = vmatpush.msra.mxu0 %v713
    %793 = vmatpush.msra.mxu0 %v711
    %794 = vmatpush.msra.mxu0 %v709
    %795 = vmatpush.msra.mxu0 %v707
    %796 = vmatpush.msra.mxu0 %v705
    %797 = vmatpush.msra.mxu0 %v703
    %798 = vmatpush.msra.mxu0 %v701
    %799 = vmatpush.msra.mxu0 %v699
    %800 = vmatpush.msra.mxu0 %v697
    %801 = vmatpush.msra.mxu0 %v695
    %802 = vmatpush.msra.mxu0 %v693
    %803 = vmatpush.msra.mxu0 %v691
    %804 = vmatpush.msra.mxu0 %v689
    %805 = vmatpush.msra.mxu0 %v687
    %806 = vmatpush.msra.mxu0 %v685
    %807 = vmatpush.msra.mxu0 %v683
    %808 = vmatmul.f32.gmra.mxu0 %v680
    %v809 = vpop.f32.mrf.mxu0
    %v810 = vadd.f32 %v749, %v809
    %811 = vdwg.mxu0
    %812 = vmatpush.msra.mxu0 %v745
    %813 = vmatpush.msra.mxu0 %v743
    %814 = vmatpush.msra.mxu0 %v741
    %815 = vmatpush.msra.mxu0 %v739
    %816 = vmatpush.msra.mxu0 %v737
    %817 = vmatpush.msra.mxu0 %v735
    %818 = vmatpush.msra.mxu0 %v733
    %819 = vmatpush.msra.mxu0 %v731
    %820 = vmatpush.msra.mxu0 %v729
    %821 = vmatpush.msra.mxu0 %v727
    %822 = vmatpush.msra.mxu0 %v725
    %823 = vmatpush.msra.mxu0 %v723
    %824 = vmatpush.msra.mxu0 %v721
    %825 = vmatpush.msra.mxu0 %v719
    %826 = vmatpush.msra.mxu0 %v717
    %827 = vmatpush.msra.mxu0 %v715
    %828 = vmatmul.f32.gmra.mxu0 %v681
    %v829 = vpop.f32.mrf.mxu0
    %v830 = vadd.f32 %v810, %v829
    %831 = vdwg.mxu0
    %v832 = vld [vmem:[#allocation7] sm:$0xff]
    %v833 = vld [vmem:[#allocation7 + $0x8] sm:$0xff]
    %v834 = vld [vmem:[#allocation7 + $0x10] sm:$0xff]
    %v835 = vld [vmem:[#allocation7 + $0x18] sm:$0xff]
    %v836 = vld [vmem:[#allocation20] sm:$0xff]
    %v837 = vld [vmem:[#allocation20 + $0x8] sm:$0xff]
    %v838 = vld [vmem:[#allocation20 + $0x10] sm:$0xff]
    %v839 = vld [vmem:[#allocation20 + $0x18] sm:$0xff]
    %v840 = vld [vmem:[#allocation20 + $0x20] sm:$0xff]
    %v841 = vld [vmem:[#allocation20 + $0x28] sm:$0xff]
    %v842 = vld [vmem:[#allocation20 + $0x30] sm:$0xff]
    %v843 = vld [vmem:[#allocation20 + $0x38] sm:$0xff]
    %v844 = vld [vmem:[#allocation20 + $0x40] sm:$0xff]
    %v845 = vld [vmem:[#allocation20 + $0x48] sm:$0xff]
    %v846 = vld [vmem:[#allocation20 + $0x50] sm:$0xff]
    %v847 = vld [vmem:[#allocation20 + $0x58] sm:$0xff]
    %v848 = vld [vmem:[#allocation20 + $0x60] sm:$0xff]
    %v849 = vld [vmem:[#allocation20 + $0x68] sm:$0xff]
    %v850 = vld [vmem:[#allocation20 + $0x70] sm:$0xff]
    %v851 = vld [vmem:[#allocation20 + $0x78] sm:$0xff]
    %v852 = vld [vmem:[#allocation20 + $0x80] sm:$0xff]
    %v853 = vld [vmem:[#allocation20 + $0x88] sm:$0xff]
    %v854 = vld [vmem:[#allocation20 + $0x90] sm:$0xff]
    %v855 = vld [vmem:[#allocation20 + $0x98] sm:$0xff]
    %v856 = vld [vmem:[#allocation20 + $0xa0] sm:$0xff]
    %v857 = vld [vmem:[#allocation20 + $0xa8] sm:$0xff]
    %v858 = vld [vmem:[#allocation20 + $0xb0] sm:$0xff]
    %v859 = vld [vmem:[#allocation20 + $0xb8] sm:$0xff]
    %v860 = vld [vmem:[#allocation20 + $0xc0] sm:$0xff]
    %v861 = vld [vmem:[#allocation20 + $0xc8] sm:$0xff]
    %v862 = vld [vmem:[#allocation20 + $0xd0] sm:$0xff]
    %v863 = vld [vmem:[#allocation20 + $0xd8] sm:$0xff]
    %v864 = vld [vmem:[#allocation20 + $0xe0] sm:$0xff]
    %v865 = vld [vmem:[#allocation20 + $0xe8] sm:$0xff]
    %v866 = vld [vmem:[#allocation20 + $0xf0] sm:$0xff]
    %v867 = vld [vmem:[#allocation20 + $0xf8] sm:$0xff]
    %v868 = vld [vmem:[#allocation20 + $0x100] sm:$0xff]
    %v869 = vld [vmem:[#allocation20 + $0x108] sm:$0xff]
    %v870 = vld [vmem:[#allocation20 + $0x110] sm:$0xff]
    %v871 = vld [vmem:[#allocation20 + $0x118] sm:$0xff]
    %v872 = vld [vmem:[#allocation20 + $0x120] sm:$0xff]
    %v873 = vld [vmem:[#allocation20 + $0x128] sm:$0xff]
    %v874 = vld [vmem:[#allocation20 + $0x130] sm:$0xff]
    %v875 = vld [vmem:[#allocation20 + $0x138] sm:$0xff]
    %v876 = vld [vmem:[#allocation20 + $0x140] sm:$0xff]
    %v877 = vld [vmem:[#allocation20 + $0x148] sm:$0xff]
    %v878 = vld [vmem:[#allocation20 + $0x150] sm:$0xff]
    %v879 = vld [vmem:[#allocation20 + $0x158] sm:$0xff]
    %v880 = vld [vmem:[#allocation20 + $0x160] sm:$0xff]
    %v881 = vld [vmem:[#allocation20 + $0x168] sm:$0xff]
    %v882 = vld [vmem:[#allocation20 + $0x170] sm:$0xff]
    %v883 = vld [vmem:[#allocation20 + $0x178] sm:$0xff]
    %v884 = vld [vmem:[#allocation20 + $0x180] sm:$0xff]
    %v885 = vld [vmem:[#allocation20 + $0x188] sm:$0xff]
    %v886 = vld [vmem:[#allocation20 + $0x190] sm:$0xff]
    %v887 = vld [vmem:[#allocation20 + $0x198] sm:$0xff]
    %v888 = vld [vmem:[#allocation20 + $0x1a0] sm:$0xff]
    %v889 = vld [vmem:[#allocation20 + $0x1a8] sm:$0xff]
    %v890 = vld [vmem:[#allocation20 + $0x1b0] sm:$0xff]
    %v891 = vld [vmem:[#allocation20 + $0x1b8] sm:$0xff]
    %v892 = vld [vmem:[#allocation20 + $0x1c0] sm:$0xff]
    %v893 = vld [vmem:[#allocation20 + $0x1c8] sm:$0xff]
    %v894 = vld [vmem:[#allocation20 + $0x1d0] sm:$0xff]
    %v895 = vld [vmem:[#allocation20 + $0x1d8] sm:$0xff]
    %v896 = vld [vmem:[#allocation20 + $0x1e0] sm:$0xff]
    %v897 = vld [vmem:[#allocation20 + $0x1e8] sm:$0xff]
    %v898 = vld [vmem:[#allocation20 + $0x1f0] sm:$0xff]
    %v899 = vld [vmem:[#allocation20 + $0x1f8] sm:$0xff]
    %v900 = vld [vmem:[#allocation20 + $0x200] sm:$0xff]
    %v901 = vld [vmem:[#allocation20 + $0x208] sm:$0xff]
    %v902 = vld [vmem:[#allocation20 + $0x210] sm:$0xff]
    %v903 = vld [vmem:[#allocation20 + $0x218] sm:$0xff]
    %v904 = vld [vmem:[#allocation20 + $0x220] sm:$0xff]
    %v905 = vld [vmem:[#allocation20 + $0x228] sm:$0xff]
    %v906 = vld [vmem:[#allocation20 + $0x230] sm:$0xff]
    %v907 = vld [vmem:[#allocation20 + $0x238] sm:$0xff]
    %v908 = vld [vmem:[#allocation20 + $0x240] sm:$0xff]
    %v909 = vld [vmem:[#allocation20 + $0x248] sm:$0xff]
    %v910 = vld [vmem:[#allocation20 + $0x250] sm:$0xff]
    %v911 = vld [vmem:[#allocation20 + $0x258] sm:$0xff]
    %v912 = vld [vmem:[#allocation20 + $0x260] sm:$0xff]
    %v913 = vld [vmem:[#allocation20 + $0x268] sm:$0xff]
    %v914 = vld [vmem:[#allocation20 + $0x270] sm:$0xff]
    %v915 = vld [vmem:[#allocation20 + $0x278] sm:$0xff]
    %v916 = vld [vmem:[#allocation20 + $0x280] sm:$0xff]
    %v917 = vld [vmem:[#allocation20 + $0x288] sm:$0xff]
    %v918 = vld [vmem:[#allocation20 + $0x290] sm:$0xff]
    %v919 = vld [vmem:[#allocation20 + $0x298] sm:$0xff]
    %v920 = vld [vmem:[#allocation20 + $0x2a0] sm:$0xff]
    %v921 = vld [vmem:[#allocation20 + $0x2a8] sm:$0xff]
    %v922 = vld [vmem:[#allocation20 + $0x2b0] sm:$0xff]
    %v923 = vld [vmem:[#allocation20 + $0x2b8] sm:$0xff]
    %v924 = vld [vmem:[#allocation20 + $0x2c0] sm:$0xff]
    %v925 = vld [vmem:[#allocation20 + $0x2c8] sm:$0xff]
    %v926 = vld [vmem:[#allocation20 + $0x2d0] sm:$0xff]
    %v927 = vld [vmem:[#allocation20 + $0x2d8] sm:$0xff]
    %v928 = vld [vmem:[#allocation20 + $0x2e0] sm:$0xff]
    %v929 = vld [vmem:[#allocation20 + $0x2e8] sm:$0xff]
    %v930 = vld [vmem:[#allocation20 + $0x2f0] sm:$0xff]
    %v931 = vld [vmem:[#allocation20 + $0x2f8] sm:$0xff]
    %v932 = vld [vmem:[#allocation20 + $0x300] sm:$0xff]
    %v933 = vld [vmem:[#allocation20 + $0x308] sm:$0xff]
    %v934 = vld [vmem:[#allocation20 + $0x310] sm:$0xff]
    %v935 = vld [vmem:[#allocation20 + $0x318] sm:$0xff]
    %v936 = vld [vmem:[#allocation20 + $0x320] sm:$0xff]
    %v937 = vld [vmem:[#allocation20 + $0x328] sm:$0xff]
    %v938 = vld [vmem:[#allocation20 + $0x330] sm:$0xff]
    %v939 = vld [vmem:[#allocation20 + $0x338] sm:$0xff]
    %v940 = vld [vmem:[#allocation20 + $0x340] sm:$0xff]
    %v941 = vld [vmem:[#allocation20 + $0x348] sm:$0xff]
    %v942 = vld [vmem:[#allocation20 + $0x350] sm:$0xff]
    %v943 = vld [vmem:[#allocation20 + $0x358] sm:$0xff]
    %v944 = vld [vmem:[#allocation20 + $0x360] sm:$0xff]
    %v945 = vld [vmem:[#allocation20 + $0x368] sm:$0xff]
    %v946 = vld [vmem:[#allocation20 + $0x370] sm:$0xff]
    %v947 = vld [vmem:[#allocation20 + $0x378] sm:$0xff]
    %v948 = vld [vmem:[#allocation20 + $0x380] sm:$0xff]
    %v949 = vld [vmem:[#allocation20 + $0x388] sm:$0xff]
    %v950 = vld [vmem:[#allocation20 + $0x390] sm:$0xff]
    %v951 = vld [vmem:[#allocation20 + $0x398] sm:$0xff]
    %v952 = vld [vmem:[#allocation20 + $0x3a0] sm:$0xff]
    %v953 = vld [vmem:[#allocation20 + $0x3a8] sm:$0xff]
    %v954 = vld [vmem:[#allocation20 + $0x3b0] sm:$0xff]
    %v955 = vld [vmem:[#allocation20 + $0x3b8] sm:$0xff]
    %v956 = vld [vmem:[#allocation20 + $0x3c0] sm:$0xff]
    %v957 = vld [vmem:[#allocation20 + $0x3c8] sm:$0xff]
    %v958 = vld [vmem:[#allocation20 + $0x3d0] sm:$0xff]
    %v959 = vld [vmem:[#allocation20 + $0x3d8] sm:$0xff]
    %v960 = vld [vmem:[#allocation20 + $0x3e0] sm:$0xff]
    %v961 = vld [vmem:[#allocation20 + $0x3e8] sm:$0xff]
    %v962 = vld [vmem:[#allocation20 + $0x3f0] sm:$0xff]
    %v963 = vld [vmem:[#allocation20 + $0x3f8] sm:$0xff]
    %v964 = vld [vmem:[#allocation14] sm:$0xff]
    %v965 = vld [vmem:[#allocation14 + $0x8] sm:$0xff]
    %v966 = vld [vmem:[#allocation14 + $0x10] sm:$0xff]
    %v967 = vld [vmem:[#allocation14 + $0x18] sm:$0xff]
    %v968 = vld [vmem:[#allocation14 + $0x20] sm:$0xff]
    %v969 = vld [vmem:[#allocation14 + $0x28] sm:$0xff]
    %v970 = vld [vmem:[#allocation14 + $0x30] sm:$0xff]
    %v971 = vld [vmem:[#allocation14 + $0x38] sm:$0xff]
    %v972 = vld [vmem:[#allocation14 + $0x40] sm:$0xff]
    %v973 = vld [vmem:[#allocation14 + $0x48] sm:$0xff]
    %v974 = vld [vmem:[#allocation14 + $0x50] sm:$0xff]
    %v975 = vld [vmem:[#allocation14 + $0x58] sm:$0xff]
    %v976 = vld [vmem:[#allocation14 + $0x60] sm:$0xff]
    %v977 = vld [vmem:[#allocation14 + $0x68] sm:$0xff]
    %v978 = vld [vmem:[#allocation14 + $0x70] sm:$0xff]
    %v979 = vld [vmem:[#allocation14 + $0x78] sm:$0xff]
    %v980 = vld [vmem:[#allocation14 + $0x80] sm:$0xff]
    %v981 = vld [vmem:[#allocation14 + $0x88] sm:$0xff]
    %v982 = vld [vmem:[#allocation14 + $0x90] sm:$0xff]
    %v983 = vld [vmem:[#allocation14 + $0x98] sm:$0xff]
    %v984 = vld [vmem:[#allocation14 + $0xa0] sm:$0xff]
    %v985 = vld [vmem:[#allocation14 + $0xa8] sm:$0xff]
    %v986 = vld [vmem:[#allocation14 + $0xb0] sm:$0xff]
    %v987 = vld [vmem:[#allocation14 + $0xb8] sm:$0xff]
    %v988 = vld [vmem:[#allocation14 + $0xc0] sm:$0xff]
    %v989 = vld [vmem:[#allocation14 + $0xc8] sm:$0xff]
    %v990 = vld [vmem:[#allocation14 + $0xd0] sm:$0xff]
    %v991 = vld [vmem:[#allocation14 + $0xd8] sm:$0xff]
    %v992 = vld [vmem:[#allocation14 + $0xe0] sm:$0xff]
    %v993 = vld [vmem:[#allocation14 + $0xe8] sm:$0xff]
    %v994 = vld [vmem:[#allocation14 + $0xf0] sm:$0xff]
    %v995 = vld [vmem:[#allocation14 + $0xf8] sm:$0xff]
    %v996 = vld [vmem:[#allocation14 + $0x100] sm:$0xff]
    %v997 = vld [vmem:[#allocation14 + $0x108] sm:$0xff]
    %v998 = vld [vmem:[#allocation14 + $0x110] sm:$0xff]
    %v999 = vld [vmem:[#allocation14 + $0x118] sm:$0xff]
    %v1000 = vld [vmem:[#allocation14 + $0x120] sm:$0xff]
    %v1001 = vld [vmem:[#allocation14 + $0x128] sm:$0xff]
    %v1002 = vld [vmem:[#allocation14 + $0x130] sm:$0xff]
    %v1003 = vld [vmem:[#allocation14 + $0x138] sm:$0xff]
    %v1004 = vld [vmem:[#allocation14 + $0x140] sm:$0xff]
    %v1005 = vld [vmem:[#allocation14 + $0x148] sm:$0xff]
    %v1006 = vld [vmem:[#allocation14 + $0x150] sm:$0xff]
    %v1007 = vld [vmem:[#allocation14 + $0x158] sm:$0xff]
    %v1008 = vld [vmem:[#allocation14 + $0x160] sm:$0xff]
    %v1009 = vld [vmem:[#allocation14 + $0x168] sm:$0xff]
    %v1010 = vld [vmem:[#allocation14 + $0x170] sm:$0xff]
    %v1011 = vld [vmem:[#allocation14 + $0x178] sm:$0xff]
    %v1012 = vld [vmem:[#allocation14 + $0x180] sm:$0xff]
    %v1013 = vld [vmem:[#allocation14 + $0x188] sm:$0xff]
    %v1014 = vld [vmem:[#allocation14 + $0x190] sm:$0xff]
    %v1015 = vld [vmem:[#allocation14 + $0x198] sm:$0xff]
    %v1016 = vld [vmem:[#allocation14 + $0x1a0] sm:$0xff]
    %v1017 = vld [vmem:[#allocation14 + $0x1a8] sm:$0xff]
    %v1018 = vld [vmem:[#allocation14 + $0x1b0] sm:$0xff]
    %v1019 = vld [vmem:[#allocation14 + $0x1b8] sm:$0xff]
    %v1020 = vld [vmem:[#allocation14 + $0x1c0] sm:$0xff]
    %v1021 = vld [vmem:[#allocation14 + $0x1c8] sm:$0xff]
    %v1022 = vld [vmem:[#allocation14 + $0x1d0] sm:$0xff]
    %v1023 = vld [vmem:[#allocation14 + $0x1d8] sm:$0xff]
    %v1024 = vld [vmem:[#allocation14 + $0x1e0] sm:$0xff]
    %v1025 = vld [vmem:[#allocation14 + $0x1e8] sm:$0xff]
    %v1026 = vld [vmem:[#allocation14 + $0x1f0] sm:$0xff]
    %v1027 = vld [vmem:[#allocation14 + $0x1f8] sm:$0xff]
    %1028 = vmatpush.msra.mxu0 %v994
    %1029 = vmatpush.msra.mxu0 %v992
    %1030 = vmatpush.msra.mxu0 %v990
    %1031 = vmatpush.msra.mxu0 %v988
    %1032 = vmatpush.msra.mxu0 %v986
    %1033 = vmatpush.msra.mxu0 %v984
    %1034 = vmatpush.msra.mxu0 %v982
    %1035 = vmatpush.msra.mxu0 %v980
    %1036 = vmatpush.msra.mxu0 %v978
    %1037 = vmatpush.msra.mxu0 %v976
    %1038 = vmatpush.msra.mxu0 %v974
    %1039 = vmatpush.msra.mxu0 %v972
    %1040 = vmatpush.msra.mxu0 %v970
    %1041 = vmatpush.msra.mxu0 %v968
    %1042 = vmatpush.msra.mxu0 %v966
    %1043 = vmatpush.msra.mxu0 %v964
    %1044 = vmatmul.f32.gmra.mxu0 %v790
    %v1045 = vpop.f32.mrf.mxu0
    %v1046 = vadd.f32 0.0, %v1045
    %1047 = vdwg.mxu0
    %1048 = vmatpush.msra.mxu0 %v1026
    %1049 = vmatpush.msra.mxu0 %v1024
    %1050 = vmatpush.msra.mxu0 %v1022
    %1051 = vmatpush.msra.mxu0 %v1020
    %1052 = vmatpush.msra.mxu0 %v1018
    %1053 = vmatpush.msra.mxu0 %v1016
    %1054 = vmatpush.msra.mxu0 %v1014
    %1055 = vmatpush.msra.mxu0 %v1012
    %1056 = vmatpush.msra.mxu0 %v1010
    %1057 = vmatpush.msra.mxu0 %v1008
    %1058 = vmatpush.msra.mxu0 %v1006
    %1059 = vmatpush.msra.mxu0 %v1004
    %1060 = vmatpush.msra.mxu0 %v1002
    %1061 = vmatpush.msra.mxu0 %v1000
    %1062 = vmatpush.msra.mxu0 %v998
    %1063 = vmatpush.msra.mxu0 %v996
    %1064 = vmatmul.f32.gmra.mxu0 %v830
    %v1065 = vpop.f32.mrf.mxu0
    %v1066 = vadd.f32 %v1046, %v1065
    %1067 = vdwg.mxu0
    %1068 = vmatpush.msra.mxu0 %v995
    %1069 = vmatpush.msra.mxu0 %v993
    %1070 = vmatpush.msra.mxu0 %v991
    %1071 = vmatpush.msra.mxu0 %v989
    %1072 = vmatpush.msra.mxu0 %v987
    %1073 = vmatpush.msra.mxu0 %v985
    %1074 = vmatpush.msra.mxu0 %v983
    %1075 = vmatpush.msra.mxu0 %v981
    %1076 = vmatpush.msra.mxu0 %v979
    %1077 = vmatpush.msra.mxu0 %v977
    %1078 = vmatpush.msra.mxu0 %v975
    %1079 = vmatpush.msra.mxu0 %v973
    %1080 = vmatpush.msra.mxu0 %v971
    %1081 = vmatpush.msra.mxu0 %v969
    %1082 = vmatpush.msra.mxu0 %v967
    %1083 = vmatpush.msra.mxu0 %v965
    %1084 = vmatmul.f32.gmra.mxu0 %v790
    %v1085 = vpop.f32.mrf.mxu0
    %v1086 = vadd.f32 0.0, %v1085
    %1087 = vdwg.mxu0
    %1088 = vmatpush.msra.mxu0 %v1027
    %1089 = vmatpush.msra.mxu0 %v1025
    %1090 = vmatpush.msra.mxu0 %v1023
    %1091 = vmatpush.msra.mxu0 %v1021
    %1092 = vmatpush.msra.mxu0 %v1019
    %1093 = vmatpush.msra.mxu0 %v1017
    %1094 = vmatpush.msra.mxu0 %v1015
    %1095 = vmatpush.msra.mxu0 %v1013
    %1096 = vmatpush.msra.mxu0 %v1011
    %1097 = vmatpush.msra.mxu0 %v1009
    %1098 = vmatpush.msra.mxu0 %v1007
    %1099 = vmatpush.msra.mxu0 %v1005
    %1100 = vmatpush.msra.mxu0 %v1003
    %1101 = vmatpush.msra.mxu0 %v1001
    %1102 = vmatpush.msra.mxu0 %v999
    %1103 = vmatpush.msra.mxu0 %v997
    %1104 = vmatmul.f32.gmra.mxu0 %v830
    %v1105 = vpop.f32.mrf.mxu0
    %v1106 = vadd.f32 %v1086, %v1105
    %1107 = vdwg.mxu0
    %v1112 = vunpack.c.l.b16 %v832
    %v1113 = vunpack.c.h.b16 %v832
    %v1114 = vunpack.c.l.b16 %v833
    %v1115 = vunpack.c.h.b16 %v833
    %v1116 = vunpack.c.l.b16 %v834
    %v1117 = vunpack.c.h.b16 %v834
    %v1118 = vunpack.c.l.b16 %v835
    %v1119 = vunpack.c.h.b16 %v835
    %v1120 = vpack.c.b16 %v1112, %v1112
    %v1121 = vpack.c.b16 %v1113, %v1113
    %v1122 = vpack.c.b16 %v1114, %v1114
    %v1123 = vpack.c.b16 %v1115, %v1115
    %v1124 = vpack.c.b16 %v1116, %v1116
    %v1125 = vpack.c.b16 %v1117, %v1117
    %v1126 = vpack.c.b16 %v1118, %v1118
    %v1127 = vpack.c.b16 %v1119, %v1119
    %v1264 = vunpack.c.l.b16 %v836
    %v1265 = vunpack.c.h.b16 %v836
    %v1266 = vunpack.c.l.b16 %v837
    %v1267 = vunpack.c.h.b16 %v837
    %v1268 = vunpack.c.l.b16 %v838
    %v1269 = vunpack.c.h.b16 %v838
    %v1270 = vunpack.c.l.b16 %v839
    %v1271 = vunpack.c.h.b16 %v839
    %v1272 = vunpack.c.l.b16 %v840
    %v1273 = vunpack.c.h.b16 %v840
    %v1274 = vunpack.c.l.b16 %v841
    %v1275 = vunpack.c.h.b16 %v841
    %v1276 = vunpack.c.l.b16 %v842
    %v1277 = vunpack.c.h.b16 %v842
    %v1278 = vunpack.c.l.b16 %v843
    %v1279 = vunpack.c.h.b16 %v843
    %v1280 = vunpack.c.l.b16 %v844
    %v1281 = vunpack.c.h.b16 %v844
    %v1282 = vunpack.c.l.b16 %v845
    %v1283 = vunpack.c.h.b16 %v845
    %v1284 = vunpack.c.l.b16 %v846
    %v1285 = vunpack.c.h.b16 %v846
    %v1286 = vunpack.c.l.b16 %v847
    %v1287 = vunpack.c.h.b16 %v847
    %v1288 = vunpack.c.l.b16 %v848
    %v1289 = vunpack.c.h.b16 %v848
    %v1290 = vunpack.c.l.b16 %v849
    %v1291 = vunpack.c.h.b16 %v849
    %v1292 = vunpack.c.l.b16 %v850
    %v1293 = vunpack.c.h.b16 %v850
    %v1294 = vunpack.c.l.b16 %v851
    %v1295 = vunpack.c.h.b16 %v851
    %v1296 = vunpack.c.l.b16 %v852
    %v1297 = vunpack.c.h.b16 %v852
    %v1298 = vunpack.c.l.b16 %v853
    %v1299 = vunpack.c.h.b16 %v853
    %v1300 = vunpack.c.l.b16 %v854
    %v1301 = vunpack.c.h.b16 %v854
    %v1302 = vunpack.c.l.b16 %v855
    %v1303 = vunpack.c.h.b16 %v855
    %v1304 = vunpack.c.l.b16 %v856
    %v1305 = vunpack.c.h.b16 %v856
    %v1306 = vunpack.c.l.b16 %v857
    %v1307 = vunpack.c.h.b16 %v857
    %v1308 = vunpack.c.l.b16 %v858
    %v1309 = vunpack.c.h.b16 %v858
    %v1310 = vunpack.c.l.b16 %v859
    %v1311 = vunpack.c.h.b16 %v859
    %v1312 = vunpack.c.l.b16 %v860
    %v1313 = vunpack.c.h.b16 %v860
    %v1314 = vunpack.c.l.b16 %v861
    %v1315 = vunpack.c.h.b16 %v861
    %v1316 = vunpack.c.l.b16 %v862
    %v1317 = vunpack.c.h.b16 %v862
    %v1318 = vunpack.c.l.b16 %v863
    %v1319 = vunpack.c.h.b16 %v863
    %v1320 = vunpack.c.l.b16 %v864
    %v1321 = vunpack.c.h.b16 %v864
    %v1322 = vunpack.c.l.b16 %v865
    %v1323 = vunpack.c.h.b16 %v865
    %v1324 = vunpack.c.l.b16 %v866
    %v1325 = vunpack.c.h.b16 %v866
    %v1326 = vunpack.c.l.b16 %v867
    %v1327 = vunpack.c.h.b16 %v867
    %v1328 = vunpack.c.l.b16 %v868
    %v1329 = vunpack.c.h.b16 %v868
    %v1330 = vunpack.c.l.b16 %v869
    %v1331 = vunpack.c.h.b16 %v869
    %v1332 = vunpack.c.l.b16 %v870
    %v1333 = vunpack.c.h.b16 %v870
    %v1334 = vunpack.c.l.b16 %v871
    %v1335 = vunpack.c.h.b16 %v871
    %v1336 = vunpack.c.l.b16 %v872
    %v1337 = vunpack.c.h.b16 %v872
    %v1338 = vunpack.c.l.b16 %v873
    %v1339 = vunpack.c.h.b16 %v873
    %v1340 = vunpack.c.l.b16 %v874
    %v1341 = vunpack.c.h.b16 %v874
    %v1342 = vunpack.c.l.b16 %v875
    %v1343 = vunpack.c.h.b16 %v875
    %v1344 = vunpack.c.l.b16 %v876
    %v1345 = vunpack.c.h.b16 %v876
    %v1346 = vunpack.c.l.b16 %v877
    %v1347 = vunpack.c.h.b16 %v877
    %v1348 = vunpack.c.l.b16 %v878
    %v1349 = vunpack.c.h.b16 %v878
    %v1350 = vunpack.c.l.b16 %v879
    %v1351 = vunpack.c.h.b16 %v879
    %v1352 = vunpack.c.l.b16 %v880
    %v1353 = vunpack.c.h.b16 %v880
    %v1354 = vunpack.c.l.b16 %v881
    %v1355 = vunpack.c.h.b16 %v881
    %v1356 = vunpack.c.l.b16 %v882
    %v1357 = vunpack.c.h.b16 %v882
    %v1358 = vunpack.c.l.b16 %v883
    %v1359 = vunpack.c.h.b16 %v883
    %v1360 = vunpack.c.l.b16 %v884
    %v1361 = vunpack.c.h.b16 %v884
    %v1362 = vunpack.c.l.b16 %v885
    %v1363 = vunpack.c.h.b16 %v885
    %v1364 = vunpack.c.l.b16 %v886
    %v1365 = vunpack.c.h.b16 %v886
    %v1366 = vunpack.c.l.b16 %v887
    %v1367 = vunpack.c.h.b16 %v887
    %v1368 = vunpack.c.l.b16 %v888
    %v1369 = vunpack.c.h.b16 %v888
    %v1370 = vunpack.c.l.b16 %v889
    %v1371 = vunpack.c.h.b16 %v889
    %v1372 = vunpack.c.l.b16 %v890
    %v1373 = vunpack.c.h.b16 %v890
    %v1374 = vunpack.c.l.b16 %v891
    %v1375 = vunpack.c.h.b16 %v891
    %v1376 = vunpack.c.l.b16 %v892
    %v1377 = vunpack.c.h.b16 %v892
    %v1378 = vunpack.c.l.b16 %v893
    %v1379 = vunpack.c.h.b16 %v893
    %v1380 = vunpack.c.l.b16 %v894
    %v1381 = vunpack.c.h.b16 %v894
    %v1382 = vunpack.c.l.b16 %v895
    %v1383 = vunpack.c.h.b16 %v895
    %v1384 = vunpack.c.l.b16 %v896
    %v1385 = vunpack.c.h.b16 %v896
    %v1386 = vunpack.c.l.b16 %v897
    %v1387 = vunpack.c.h.b16 %v897
    %v1388 = vunpack.c.l.b16 %v898
    %v1389 = vunpack.c.h.b16 %v898
    %v1390 = vunpack.c.l.b16 %v899
    %v1391 = vunpack.c.h.b16 %v899
    %v1392 = vunpack.c.l.b16 %v900
    %v1393 = vunpack.c.h.b16 %v900
    %v1394 = vunpack.c.l.b16 %v901
    %v1395 = vunpack.c.h.b16 %v901
    %v1396 = vunpack.c.l.b16 %v902
    %v1397 = vunpack.c.h.b16 %v902
    %v1398 = vunpack.c.l.b16 %v903
    %v1399 = vunpack.c.h.b16 %v903
    %v1400 = vunpack.c.l.b16 %v904
    %v1401 = vunpack.c.h.b16 %v904
    %v1402 = vunpack.c.l.b16 %v905
    %v1403 = vunpack.c.h.b16 %v905
    %v1404 = vunpack.c.l.b16 %v906
    %v1405 = vunpack.c.h.b16 %v906
    %v1406 = vunpack.c.l.b16 %v907
    %v1407 = vunpack.c.h.b16 %v907
    %v1408 = vunpack.c.l.b16 %v908
    %v1409 = vunpack.c.h.b16 %v908
    %v1410 = vunpack.c.l.b16 %v909
    %v1411 = vunpack.c.h.b16 %v909
    %v1412 = vunpack.c.l.b16 %v910
    %v1413 = vunpack.c.h.b16 %v910
    %v1414 = vunpack.c.l.b16 %v911
    %v1415 = vunpack.c.h.b16 %v911
    %v1416 = vunpack.c.l.b16 %v912
    %v1417 = vunpack.c.h.b16 %v912
    %v1418 = vunpack.c.l.b16 %v913
    %v1419 = vunpack.c.h.b16 %v913
    %v1420 = vunpack.c.l.b16 %v914
    %v1421 = vunpack.c.h.b16 %v914
    %v1422 = vunpack.c.l.b16 %v915
    %v1423 = vunpack.c.h.b16 %v915
    %v1424 = vunpack.c.l.b16 %v916
    %v1425 = vunpack.c.h.b16 %v916
    %v1426 = vunpack.c.l.b16 %v917
    %v1427 = vunpack.c.h.b16 %v917
    %v1428 = vunpack.c.l.b16 %v918
    %v1429 = vunpack.c.h.b16 %v918
    %v1430 = vunpack.c.l.b16 %v919
    %v1431 = vunpack.c.h.b16 %v919
    %v1432 = vunpack.c.l.b16 %v920
    %v1433 = vunpack.c.h.b16 %v920
    %v1434 = vunpack.c.l.b16 %v921
    %v1435 = vunpack.c.h.b16 %v921
    %v1436 = vunpack.c.l.b16 %v922
    %v1437 = vunpack.c.h.b16 %v922
    %v1438 = vunpack.c.l.b16 %v923
    %v1439 = vunpack.c.h.b16 %v923
    %v1440 = vunpack.c.l.b16 %v924
    %v1441 = vunpack.c.h.b16 %v924
    %v1442 = vunpack.c.l.b16 %v925
    %v1443 = vunpack.c.h.b16 %v925
    %v1444 = vunpack.c.l.b16 %v926
    %v1445 = vunpack.c.h.b16 %v926
    %v1446 = vunpack.c.l.b16 %v927
    %v1447 = vunpack.c.h.b16 %v927
    %v1448 = vunpack.c.l.b16 %v928
    %v1449 = vunpack.c.h.b16 %v928
    %v1450 = vunpack.c.l.b16 %v929
    %v1451 = vunpack.c.h.b16 %v929
    %v1452 = vunpack.c.l.b16 %v930
    %v1453 = vunpack.c.h.b16 %v930
    %v1454 = vunpack.c.l.b16 %v931
    %v1455 = vunpack.c.h.b16 %v931
    %v1456 = vunpack.c.l.b16 %v932
    %v1457 = vunpack.c.h.b16 %v932
    %v1458 = vunpack.c.l.b16 %v933
    %v1459 = vunpack.c.h.b16 %v933
    %v1460 = vunpack.c.l.b16 %v934
    %v1461 = vunpack.c.h.b16 %v934
    %v1462 = vunpack.c.l.b16 %v935
    %v1463 = vunpack.c.h.b16 %v935
    %v1464 = vunpack.c.l.b16 %v936
    %v1465 = vunpack.c.h.b16 %v936
    %v1466 = vunpack.c.l.b16 %v937
    %v1467 = vunpack.c.h.b16 %v937
    %v1468 = vunpack.c.l.b16 %v938
    %v1469 = vunpack.c.h.b16 %v938
    %v1470 = vunpack.c.l.b16 %v939
    %v1471 = vunpack.c.h.b16 %v939
    %v1472 = vunpack.c.l.b16 %v940
    %v1473 = vunpack.c.h.b16 %v940
    %v1474 = vunpack.c.l.b16 %v941
    %v1475 = vunpack.c.h.b16 %v941
    %v1476 = vunpack.c.l.b16 %v942
    %v1477 = vunpack.c.h.b16 %v942
    %v1478 = vunpack.c.l.b16 %v943
    %v1479 = vunpack.c.h.b16 %v943
    %v1480 = vunpack.c.l.b16 %v944
    %v1481 = vunpack.c.h.b16 %v944
    %v1482 = vunpack.c.l.b16 %v945
    %v1483 = vunpack.c.h.b16 %v945
    %v1484 = vunpack.c.l.b16 %v946
    %v1485 = vunpack.c.h.b16 %v946
    %v1486 = vunpack.c.l.b16 %v947
    %v1487 = vunpack.c.h.b16 %v947
    %v1488 = vunpack.c.l.b16 %v948
    %v1489 = vunpack.c.h.b16 %v948
    %v1490 = vunpack.c.l.b16 %v949
    %v1491 = vunpack.c.h.b16 %v949
    %v1492 = vunpack.c.l.b16 %v950
    %v1493 = vunpack.c.h.b16 %v950
    %v1494 = vunpack.c.l.b16 %v951
    %v1495 = vunpack.c.h.b16 %v951
    %v1496 = vunpack.c.l.b16 %v952
    %v1497 = vunpack.c.h.b16 %v952
    %v1498 = vunpack.c.l.b16 %v953
    %v1499 = vunpack.c.h.b16 %v953
    %v1500 = vunpack.c.l.b16 %v954
    %v1501 = vunpack.c.h.b16 %v954
    %v1502 = vunpack.c.l.b16 %v955
    %v1503 = vunpack.c.h.b16 %v955
    %v1504 = vunpack.c.l.b16 %v956
    %v1505 = vunpack.c.h.b16 %v956
    %v1506 = vunpack.c.l.b16 %v957
    %v1507 = vunpack.c.h.b16 %v957
    %v1508 = vunpack.c.l.b16 %v958
    %v1509 = vunpack.c.h.b16 %v958
    %v1510 = vunpack.c.l.b16 %v959
    %v1511 = vunpack.c.h.b16 %v959
    %v1512 = vunpack.c.l.b16 %v960
    %v1513 = vunpack.c.h.b16 %v960
    %v1514 = vunpack.c.l.b16 %v961
    %v1515 = vunpack.c.h.b16 %v961
    %v1516 = vunpack.c.l.b16 %v962
    %v1517 = vunpack.c.h.b16 %v962
    %v1518 = vunpack.c.l.b16 %v963
    %v1519 = vunpack.c.h.b16 %v963
    %v1520 = vpack.c.b16 %v1266, %v1264
    %v1521 = vpack.c.b16 %v1267, %v1265
    %v1522 = vpack.c.b16 %v1270, %v1268
    %v1523 = vpack.c.b16 %v1271, %v1269
    %v1524 = vpack.c.b16 %v1274, %v1272
    %v1525 = vpack.c.b16 %v1275, %v1273
    %v1526 = vpack.c.b16 %v1278, %v1276
    %v1527 = vpack.c.b16 %v1279, %v1277
    %v1528 = vpack.c.b16 %v1282, %v1280
    %v1529 = vpack.c.b16 %v1283, %v1281
    %v1530 = vpack.c.b16 %v1286, %v1284
    %v1531 = vpack.c.b16 %v1287, %v1285
    %v1532 = vpack.c.b16 %v1290, %v1288
    %v1533 = vpack.c.b16 %v1291, %v1289
    %v1534 = vpack.c.b16 %v1294, %v1292
    %v1535 = vpack.c.b16 %v1295, %v1293
    %v1536 = vpack.c.b16 %v1298, %v1296
    %v1537 = vpack.c.b16 %v1299, %v1297
    %v1538 = vpack.c.b16 %v1302, %v1300
    %v1539 = vpack.c.b16 %v1303, %v1301
    %v1540 = vpack.c.b16 %v1306, %v1304
    %v1541 = vpack.c.b16 %v1307, %v1305
    %v1542 = vpack.c.b16 %v1310, %v1308
    %v1543 = vpack.c.b16 %v1311, %v1309
    %v1544 = vpack.c.b16 %v1314, %v1312
    %v1545 = vpack.c.b16 %v1315, %v1313
    %v1546 = vpack.c.b16 %v1318, %v1316
    %v1547 = vpack.c.b16 %v1319, %v1317
    %v1548 = vpack.c.b16 %v1322, %v1320
    %v1549 = vpack.c.b16 %v1323, %v1321
    %v1550 = vpack.c.b16 %v1326, %v1324
    %v1551 = vpack.c.b16 %v1327, %v1325
    %v1552 = vpack.c.b16 %v1330, %v1328
    %v1553 = vpack.c.b16 %v1331, %v1329
    %v1554 = vpack.c.b16 %v1334, %v1332
    %v1555 = vpack.c.b16 %v1335, %v1333
    %v1556 = vpack.c.b16 %v1338, %v1336
    %v1557 = vpack.c.b16 %v1339, %v1337
    %v1558 = vpack.c.b16 %v1342, %v1340
    %v1559 = vpack.c.b16 %v1343, %v1341
    %v1560 = vpack.c.b16 %v1346, %v1344
    %v1561 = vpack.c.b16 %v1347, %v1345
    %v1562 = vpack.c.b16 %v1350, %v1348
    %v1563 = vpack.c.b16 %v1351, %v1349
    %v1564 = vpack.c.b16 %v1354, %v1352
    %v1565 = vpack.c.b16 %v1355, %v1353
    %v1566 = vpack.c.b16 %v1358, %v1356
    %v1567 = vpack.c.b16 %v1359, %v1357
    %v1568 = vpack.c.b16 %v1362, %v1360
    %v1569 = vpack.c.b16 %v1363, %v1361
    %v1570 = vpack.c.b16 %v1366, %v1364
    %v1571 = vpack.c.b16 %v1367, %v1365
    %v1572 = vpack.c.b16 %v1370, %v1368
    %v1573 = vpack.c.b16 %v1371, %v1369
    %v1574 = vpack.c.b16 %v1374, %v1372
    %v1575 = vpack.c.b16 %v1375, %v1373
    %v1576 = vpack.c.b16 %v1378, %v1376
    %v1577 = vpack.c.b16 %v1379, %v1377
    %v1578 = vpack.c.b16 %v1382, %v1380
    %v1579 = vpack.c.b16 %v1383, %v1381
    %v1580 = vpack.c.b16 %v1386, %v1384
    %v1581 = vpack.c.b16 %v1387, %v1385
    %v1582 = vpack.c.b16 %v1390, %v1388
    %v1583 = vpack.c.b16 %v1391, %v1389
    %v1584 = vpack.c.b16 %v1394, %v1392
    %v1585 = vpack.c.b16 %v1395, %v1393
    %v1586 = vpack.c.b16 %v1398, %v1396
    %v1587 = vpack.c.b16 %v1399, %v1397
    %v1588 = vpack.c.b16 %v1402, %v1400
    %v1589 = vpack.c.b16 %v1403, %v1401
    %v1590 = vpack.c.b16 %v1406, %v1404
    %v1591 = vpack.c.b16 %v1407, %v1405
    %v1592 = vpack.c.b16 %v1410, %v1408
    %v1593 = vpack.c.b16 %v1411, %v1409
    %v1594 = vpack.c.b16 %v1414, %v1412
    %v1595 = vpack.c.b16 %v1415, %v1413
    %v1596 = vpack.c.b16 %v1418, %v1416
    %v1597 = vpack.c.b16 %v1419, %v1417
    %v1598 = vpack.c.b16 %v1422, %v1420
    %v1599 = vpack.c.b16 %v1423, %v1421
    %v1600 = vpack.c.b16 %v1426, %v1424
    %v1601 = vpack.c.b16 %v1427, %v1425
    %v1602 = vpack.c.b16 %v1430, %v1428
    %v1603 = vpack.c.b16 %v1431, %v1429
    %v1604 = vpack.c.b16 %v1434, %v1432
    %v1605 = vpack.c.b16 %v1435, %v1433
    %v1606 = vpack.c.b16 %v1438, %v1436
    %v1607 = vpack.c.b16 %v1439, %v1437
    %v1608 = vpack.c.b16 %v1442, %v1440
    %v1609 = vpack.c.b16 %v1443, %v1441
    %v1610 = vpack.c.b16 %v1446, %v1444
    %v1611 = vpack.c.b16 %v1447, %v1445
    %v1612 = vpack.c.b16 %v1450, %v1448
    %v1613 = vpack.c.b16 %v1451, %v1449
    %v1614 = vpack.c.b16 %v1454, %v1452
    %v1615 = vpack.c.b16 %v1455, %v1453
    %v1616 = vpack.c.b16 %v1458, %v1456
    %v1617 = vpack.c.b16 %v1459, %v1457
    %v1618 = vpack.c.b16 %v1462, %v1460
    %v1619 = vpack.c.b16 %v1463, %v1461
    %v1620 = vpack.c.b16 %v1466, %v1464
    %v1621 = vpack.c.b16 %v1467, %v1465
    %v1622 = vpack.c.b16 %v1470, %v1468
    %v1623 = vpack.c.b16 %v1471, %v1469
    %v1624 = vpack.c.b16 %v1474, %v1472
    %v1625 = vpack.c.b16 %v1475, %v1473
    %v1626 = vpack.c.b16 %v1478, %v1476
    %v1627 = vpack.c.b16 %v1479, %v1477
    %v1628 = vpack.c.b16 %v1482, %v1480
    %v1629 = vpack.c.b16 %v1483, %v1481
    %v1630 = vpack.c.b16 %v1486, %v1484
    %v1631 = vpack.c.b16 %v1487, %v1485
    %v1632 = vpack.c.b16 %v1490, %v1488
    %v1633 = vpack.c.b16 %v1491, %v1489
    %v1634 = vpack.c.b16 %v1494, %v1492
    %v1635 = vpack.c.b16 %v1495, %v1493
    %v1636 = vpack.c.b16 %v1498, %v1496
    %v1637 = vpack.c.b16 %v1499, %v1497
    %v1638 = vpack.c.b16 %v1502, %v1500
    %v1639 = vpack.c.b16 %v1503, %v1501
    %v1640 = vpack.c.b16 %v1506, %v1504
    %v1641 = vpack.c.b16 %v1507, %v1505
    %v1642 = vpack.c.b16 %v1510, %v1508
    %v1643 = vpack.c.b16 %v1511, %v1509
    %v1644 = vpack.c.b16 %v1514, %v1512
    %v1645 = vpack.c.b16 %v1515, %v1513
    %v1646 = vpack.c.b16 %v1518, %v1516
    %v1647 = vpack.c.b16 %v1519, %v1517
    %1776 = vmatpush.bf16.msra.mxu0 %v1534
    %1777 = vmatpush.bf16.msra.mxu0 %v1532
    %1778 = vmatpush.bf16.msra.mxu0 %v1530
    %1779 = vmatpush.bf16.msra.mxu0 %v1528
    %1780 = vmatpush.bf16.msra.mxu0 %v1526
    %1781 = vmatpush.bf16.msra.mxu0 %v1524
    %1782 = vmatpush.bf16.msra.mxu0 %v1522
    %1783 = vmatpush.bf16.msra.mxu0 %v1520
    %1784 = vmatmul.bf16.gmra.mxu0 %v1120
    %v1785 = vpop.f32.mrf.mxu0
    %v1786 = vadd.f32 %v1066, %v1785
    %v1787 = vpop.f32.mrf.mxu0
    %1788 = vdwg.mxu0
    %1789 = vmatpush.bf16.msra.mxu0 %v1550
    %1790 = vmatpush.bf16.msra.mxu0 %v1548
    %1791 = vmatpush.bf16.msra.mxu0 %v1546
    %1792 = vmatpush.bf16.msra.mxu0 %v1544
    %1793 = vmatpush.bf16.msra.mxu0 %v1542
    %1794 = vmatpush.bf16.msra.mxu0 %v1540
    %1795 = vmatpush.bf16.msra.mxu0 %v1538
    %1796 = vmatpush.bf16.msra.mxu0 %v1536
    %1797 = vmatmul.bf16.gmra.mxu0 %v1121
    %v1798 = vpop.f32.mrf.mxu0
    %v1799 = vadd.f32 %v1786, %v1798
    %v1800 = vpop.f32.mrf.mxu0
    %1801 = vdwg.mxu0
    %1802 = vmatpush.bf16.msra.mxu0 %v1566
    %1803 = vmatpush.bf16.msra.mxu0 %v1564
    %1804 = vmatpush.bf16.msra.mxu0 %v1562
    %1805 = vmatpush.bf16.msra.mxu0 %v1560
    %1806 = vmatpush.bf16.msra.mxu0 %v1558
    %1807 = vmatpush.bf16.msra.mxu0 %v1556
    %1808 = vmatpush.bf16.msra.mxu0 %v1554
    %1809 = vmatpush.bf16.msra.mxu0 %v1552
    %1810 = vmatmul.bf16.gmra.mxu0 %v1122
    %v1811 = vpop.f32.mrf.mxu0
    %v1812 = vadd.f32 %v1799, %v1811
    %v1813 = vpop.f32.mrf.mxu0
    %1814 = vdwg.mxu0
    %1815 = vmatpush.bf16.msra.mxu0 %v1582
    %1816 = vmatpush.bf16.msra.mxu0 %v1580
    %1817 = vmatpush.bf16.msra.mxu0 %v1578
    %1818 = vmatpush.bf16.msra.mxu0 %v1576
    %1819 = vmatpush.bf16.msra.mxu0 %v1574
    %1820 = vmatpush.bf16.msra.mxu0 %v1572
    %1821 = vmatpush.bf16.msra.mxu0 %v1570
    %1822 = vmatpush.bf16.msra.mxu0 %v1568
    %1823 = vmatmul.bf16.gmra.mxu0 %v1123
    %v1824 = vpop.f32.mrf.mxu0
    %v1825 = vadd.f32 %v1812, %v1824
    %v1826 = vpop.f32.mrf.mxu0
    %1827 = vdwg.mxu0
    %1828 = vmatpush.bf16.msra.mxu0 %v1598
    %1829 = vmatpush.bf16.msra.mxu0 %v1596
    %1830 = vmatpush.bf16.msra.mxu0 %v1594
    %1831 = vmatpush.bf16.msra.mxu0 %v1592
    %1832 = vmatpush.bf16.msra.mxu0 %v1590
    %1833 = vmatpush.bf16.msra.mxu0 %v1588
    %1834 = vmatpush.bf16.msra.mxu0 %v1586
    %1835 = vmatpush.bf16.msra.mxu0 %v1584
    %1836 = vmatmul.bf16.gmra.mxu0 %v1124
    %v1837 = vpop.f32.mrf.mxu0
    %v1838 = vadd.f32 %v1825, %v1837
    %v1839 = vpop.f32.mrf.mxu0
    %1840 = vdwg.mxu0
    %1841 = vmatpush.bf16.msra.mxu0 %v1614
    %1842 = vmatpush.bf16.msra.mxu0 %v1612
    %1843 = vmatpush.bf16.msra.mxu0 %v1610
    %1844 = vmatpush.bf16.msra.mxu0 %v1608
    %1845 = vmatpush.bf16.msra.mxu0 %v1606
    %1846 = vmatpush.bf16.msra.mxu0 %v1604
    %1847 = vmatpush.bf16.msra.mxu0 %v1602
    %1848 = vmatpush.bf16.msra.mxu0 %v1600
    %1849 = vmatmul.bf16.gmra.mxu0 %v1125
    %v1850 = vpop.f32.mrf.mxu0
    %v1851 = vadd.f32 %v1838, %v1850
    %v1852 = vpop.f32.mrf.mxu0
    %1853 = vdwg.mxu0
    %1854 = vmatpush.bf16.msra.mxu0 %v1630
    %1855 = vmatpush.bf16.msra.mxu0 %v1628
    %1856 = vmatpush.bf16.msra.mxu0 %v1626
    %1857 = vmatpush.bf16.msra.mxu0 %v1624
    %1858 = vmatpush.bf16.msra.mxu0 %v1622
    %1859 = vmatpush.bf16.msra.mxu0 %v1620
    %1860 = vmatpush.bf16.msra.mxu0 %v1618
    %1861 = vmatpush.bf16.msra.mxu0 %v1616
    %1862 = vmatmul.bf16.gmra.mxu0 %v1126
    %v1863 = vpop.f32.mrf.mxu0
    %v1864 = vadd.f32 %v1851, %v1863
    %v1865 = vpop.f32.mrf.mxu0
    %1866 = vdwg.mxu0
    %1867 = vmatpush.bf16.msra.mxu0 %v1646
    %1868 = vmatpush.bf16.msra.mxu0 %v1644
    %1869 = vmatpush.bf16.msra.mxu0 %v1642
    %1870 = vmatpush.bf16.msra.mxu0 %v1640
    %1871 = vmatpush.bf16.msra.mxu0 %v1638
    %1872 = vmatpush.bf16.msra.mxu0 %v1636
    %1873 = vmatpush.bf16.msra.mxu0 %v1634
    %1874 = vmatpush.bf16.msra.mxu0 %v1632
    %1875 = vmatmul.bf16.gmra.mxu0 %v1127
    %v1876 = vpop.f32.mrf.mxu0
    %v1877 = vadd.f32 %v1864, %v1876
    %v1878 = vpop.f32.mrf.mxu0
    %1879 = vdwg.mxu0
    %1880 = vmatpush.bf16.msra.mxu0 %v1535
    %1881 = vmatpush.bf16.msra.mxu0 %v1533
    %1882 = vmatpush.bf16.msra.mxu0 %v1531
    %1883 = vmatpush.bf16.msra.mxu0 %v1529
    %1884 = vmatpush.bf16.msra.mxu0 %v1527
    %1885 = vmatpush.bf16.msra.mxu0 %v1525
    %1886 = vmatpush.bf16.msra.mxu0 %v1523
    %1887 = vmatpush.bf16.msra.mxu0 %v1521
    %1888 = vmatmul.bf16.gmra.mxu0 %v1120
    %v1889 = vpop.f32.mrf.mxu0
    %v1890 = vadd.f32 %v1106, %v1889
    %v1891 = vpop.f32.mrf.mxu0
    %1892 = vdwg.mxu0
    %1893 = vmatpush.bf16.msra.mxu0 %v1551
    %1894 = vmatpush.bf16.msra.mxu0 %v1549
    %1895 = vmatpush.bf16.msra.mxu0 %v1547
    %1896 = vmatpush.bf16.msra.mxu0 %v1545
    %1897 = vmatpush.bf16.msra.mxu0 %v1543
    %1898 = vmatpush.bf16.msra.mxu0 %v1541
    %1899 = vmatpush.bf16.msra.mxu0 %v1539
    %1900 = vmatpush.bf16.msra.mxu0 %v1537
    %1901 = vmatmul.bf16.gmra.mxu0 %v1121
    %v1902 = vpop.f32.mrf.mxu0
    %v1903 = vadd.f32 %v1890, %v1902
    %v1904 = vpop.f32.mrf.mxu0
    %1905 = vdwg.mxu0
    %1906 = vmatpush.bf16.msra.mxu0 %v1567
    %1907 = vmatpush.bf16.msra.mxu0 %v1565
    %1908 = vmatpush.bf16.msra.mxu0 %v1563
    %1909 = vmatpush.bf16.msra.mxu0 %v1561
    %1910 = vmatpush.bf16.msra.mxu0 %v1559
    %1911 = vmatpush.bf16.msra.mxu0 %v1557
    %1912 = vmatpush.bf16.msra.mxu0 %v1555
    %1913 = vmatpush.bf16.msra.mxu0 %v1553
    %1914 = vmatmul.bf16.gmra.mxu0 %v1122
    %v1915 = vpop.f32.mrf.mxu0
    %v1916 = vadd.f32 %v1903, %v1915
    %v1917 = vpop.f32.mrf.mxu0
    %1918 = vdwg.mxu0
    %1919 = vmatpush.bf16.msra.mxu0 %v1583
    %1920 = vmatpush.bf16.msra.mxu0 %v1581
    %1921 = vmatpush.bf16.msra.mxu0 %v1579
    %1922 = vmatpush.bf16.msra.mxu0 %v1577
    %1923 = vmatpush.bf16.msra.mxu0 %v1575
    %1924 = vmatpush.bf16.msra.mxu0 %v1573
    %1925 = vmatpush.bf16.msra.mxu0 %v1571
    %1926 = vmatpush.bf16.msra.mxu0 %v1569
    %1927 = vmatmul.bf16.gmra.mxu0 %v1123
    %v1928 = vpop.f32.mrf.mxu0
    %v1929 = vadd.f32 %v1916, %v1928
    %v1930 = vpop.f32.mrf.mxu0
    %1931 = vdwg.mxu0
    %1932 = vmatpush.bf16.msra.mxu0 %v1599
    %1933 = vmatpush.bf16.msra.mxu0 %v1597
    %1934 = vmatpush.bf16.msra.mxu0 %v1595
    %1935 = vmatpush.bf16.msra.mxu0 %v1593
    %1936 = vmatpush.bf16.msra.mxu0 %v1591
    %1937 = vmatpush.bf16.msra.mxu0 %v1589
    %1938 = vmatpush.bf16.msra.mxu0 %v1587
    %1939 = vmatpush.bf16.msra.mxu0 %v1585
    %1940 = vmatmul.bf16.gmra.mxu0 %v1124
    %v1941 = vpop.f32.mrf.mxu0
    %v1942 = vadd.f32 %v1929, %v1941
    %v1943 = vpop.f32.mrf.mxu0
    %1944 = vdwg.mxu0
    %1945 = vmatpush.bf16.msra.mxu0 %v1615
    %1946 = vmatpush.bf16.msra.mxu0 %v1613
    %1947 = vmatpush.bf16.msra.mxu0 %v1611
    %1948 = vmatpush.bf16.msra.mxu0 %v1609
    %1949 = vmatpush.bf16.msra.mxu0 %v1607
    %1950 = vmatpush.bf16.msra.mxu0 %v1605
    %1951 = vmatpush.bf16.msra.mxu0 %v1603
    %1952 = vmatpush.bf16.msra.mxu0 %v1601
    %1953 = vmatmul.bf16.gmra.mxu0 %v1125
    %v1954 = vpop.f32.mrf.mxu0
    %v1955 = vadd.f32 %v1942, %v1954
    %v1956 = vpop.f32.mrf.mxu0
    %1957 = vdwg.mxu0
    %1958 = vmatpush.bf16.msra.mxu0 %v1631
    %1959 = vmatpush.bf16.msra.mxu0 %v1629
    %1960 = vmatpush.bf16.msra.mxu0 %v1627
    %1961 = vmatpush.bf16.msra.mxu0 %v1625
    %1962 = vmatpush.bf16.msra.mxu0 %v1623
    %1963 = vmatpush.bf16.msra.mxu0 %v1621
    %1964 = vmatpush.bf16.msra.mxu0 %v1619
    %1965 = vmatpush.bf16.msra.mxu0 %v1617
    %1966 = vmatmul.bf16.gmra.mxu0 %v1126
    %v1967 = vpop.f32.mrf.mxu0
    %v1968 = vadd.f32 %v1955, %v1967
    %v1969 = vpop.f32.mrf.mxu0
    %1970 = vdwg.mxu0
    %1971 = vmatpush.bf16.msra.mxu0 %v1647
    %1972 = vmatpush.bf16.msra.mxu0 %v1645
    %1973 = vmatpush.bf16.msra.mxu0 %v1643
    %1974 = vmatpush.bf16.msra.mxu0 %v1641
    %1975 = vmatpush.bf16.msra.mxu0 %v1639
    %1976 = vmatpush.bf16.msra.mxu0 %v1637
    %1977 = vmatpush.bf16.msra.mxu0 %v1635
    %1978 = vmatpush.bf16.msra.mxu0 %v1633
    %1979 = vmatmul.bf16.gmra.mxu0 %v1127
    %v1980 = vpop.f32.mrf.mxu0
    %v1981 = vadd.f32 %v1968, %v1980
    %v1982 = vpop.f32.mrf.mxu0
    %1983 = vdwg.mxu0
    %v1984 = vld [vmem:[#allocation16] sm:$0xff]
    %v1985 = vld [vmem:[#allocation16 + $0x8] sm:$0xff]
    %vm1986 = vcmask 64512
    %v1987 = vsel %vm1986, %v274, 0
    %1989 = vmatpush.msra.mxu0 0.0
    %1990 = vmatpush.msra.mxu0 0.0
    %1991 = vmatpush.msra.mxu0 0.0
    %1992 = vmatpush.msra.mxu0 0.0
    %1993 = vmatpush.msra.mxu0 0.0
    %1994 = vmatpush.msra.mxu0 0.0
    %1995 = vmatpush.msra.mxu0 0.0
    %1996 = vmatpush.msra.mxu0 0.0
    %1997 = vmatpush.msra.mxu0 0.0
    %1998 = vmatpush.msra.mxu0 0.0
    %1999 = vmatpush.msra.mxu0 0.0
    %2000 = vmatpush.msra.mxu0 0.0
    %2001 = vmatpush.msra.mxu0 0.0
    %2002 = vmatpush.msra.mxu0 0.0
    %2003 = vmatpush.msra.mxu0 0.0
    %2004 = vmatpush.msra.mxu0 %v1984
    %2005 = vmatmul.f32.gmra.mxu0 %v1987
    %v2006 = vpop.f32.mrf.mxu0
    %v2007 = vadd.f32 0.0, %v2006
    %2008 = vdwg.mxu0
    %2009 = vmatpush.msra.mxu0 0.0
    %2010 = vmatpush.msra.mxu0 0.0
    %2011 = vmatpush.msra.mxu0 0.0
    %2012 = vmatpush.msra.mxu0 0.0
    %2013 = vmatpush.msra.mxu0 0.0
    %2014 = vmatpush.msra.mxu0 0.0
    %2015 = vmatpush.msra.mxu0 0.0
    %2016 = vmatpush.msra.mxu0 0.0
    %2017 = vmatpush.msra.mxu0 0.0
    %2018 = vmatpush.msra.mxu0 0.0
    %2019 = vmatpush.msra.mxu0 0.0
    %2020 = vmatpush.msra.mxu0 0.0
    %2021 = vmatpush.msra.mxu0 0.0
    %2022 = vmatpush.msra.mxu0 0.0
    %2023 = vmatpush.msra.mxu0 0.0
    %2024 = vmatpush.msra.mxu0 %v1985
    %2025 = vmatmul.f32.gmra.mxu0 %v1987
    %v2026 = vpop.f32.mrf.mxu0
    %v2027 = vadd.f32 0.0, %v2026
    %2028 = vdwg.mxu0
    %v2029 = vadd.f32 %v1877, %v2007
    %v2030 = vadd.f32 %v1981, %v2027
    %v2031 = vld [vmem:[#allocation10 + $0xc] sm:$0x3]
    %v2033 = vperm.slane %v2031, 0
    %v2034 = vperm.slane %v2031, 1
    %v2037 = vadd.f32 %v2029, %v2033
    %v2038 = vadd.f32 %v2030, %v2034
    %v2039 = vld [vmem:[#allocation5] sm:$0xff]
    %v2040 = vld [vmem:[#allocation5 + $0x8] sm:$0xff]
    %v2041 = vld [vmem:[#allocation5 + $0x10] sm:$0xff]
    %v2042 = vld [vmem:[#allocation5 + $0x18] sm:$0xff]
    %v2043 = vld [vmem:[#allocation5 + $0x20] sm:$0xff]
    %v2044 = vld [vmem:[#allocation5 + $0x28] sm:$0xff]
    %v2045 = vld [vmem:[#allocation17] sm:$0xff]
    %v2046 = vld [vmem:[#allocation17 + $0x8] sm:$0xff]
    %v2047 = vld [vmem:[#allocation17 + $0x10] sm:$0xff]
    %v2048 = vld [vmem:[#allocation17 + $0x18] sm:$0xff]
    %v2049 = vld [vmem:[#allocation17 + $0x20] sm:$0xff]
    %v2050 = vld [vmem:[#allocation17 + $0x28] sm:$0xff]
    %v2051 = vld [vmem:[#allocation17 + $0x30] sm:$0xff]
    %v2052 = vld [vmem:[#allocation17 + $0x38] sm:$0xff]
    %v2053 = vld [vmem:[#allocation17 + $0x40] sm:$0xff]
    %v2054 = vld [vmem:[#allocation17 + $0x48] sm:$0xff]
    %v2055 = vld [vmem:[#allocation17 + $0x50] sm:$0xff]
    %v2056 = vld [vmem:[#allocation17 + $0x58] sm:$0xff]
    %v2057 = vld [vmem:[#allocation17 + $0x60] sm:$0xff]
    %v2058 = vld [vmem:[#allocation17 + $0x68] sm:$0xff]
    %v2059 = vld [vmem:[#allocation17 + $0x70] sm:$0xff]
    %v2060 = vld [vmem:[#allocation17 + $0x78] sm:$0xff]
    %v2061 = vld [vmem:[#allocation17 + $0x80] sm:$0xff]
    %v2062 = vld [vmem:[#allocation17 + $0x88] sm:$0xff]
    %v2063 = vld [vmem:[#allocation17 + $0x90] sm:$0xff]
    %v2064 = vld [vmem:[#allocation17 + $0x98] sm:$0xff]
    %v2065 = vld [vmem:[#allocation17 + $0xa0] sm:$0xff]
    %v2066 = vld [vmem:[#allocation17 + $0xa8] sm:$0xff]
    %v2067 = vld [vmem:[#allocation17 + $0xb0] sm:$0xff]
    %v2068 = vld [vmem:[#allocation17 + $0xb8] sm:$0xff]
    %v2069 = vld [vmem:[#allocation17 + $0xc0] sm:$0xff]
    %v2070 = vld [vmem:[#allocation17 + $0xc8] sm:$0xff]
    %v2071 = vld [vmem:[#allocation17 + $0xd0] sm:$0xff]
    %v2072 = vld [vmem:[#allocation17 + $0xd8] sm:$0xff]
    %v2073 = vld [vmem:[#allocation17 + $0xe0] sm:$0xff]
    %v2074 = vld [vmem:[#allocation17 + $0xe8] sm:$0xff]
    %v2075 = vld [vmem:[#allocation17 + $0xf0] sm:$0xff]
    %v2076 = vld [vmem:[#allocation17 + $0xf8] sm:$0xff]
    %v2077 = vld [vmem:[#allocation17 + $0x100] sm:$0xff]
    %v2078 = vld [vmem:[#allocation17 + $0x108] sm:$0xff]
    %v2079 = vld [vmem:[#allocation17 + $0x110] sm:$0xff]
    %v2080 = vld [vmem:[#allocation17 + $0x118] sm:$0xff]
    %v2081 = vld [vmem:[#allocation17 + $0x120] sm:$0xff]
    %v2082 = vld [vmem:[#allocation17 + $0x128] sm:$0xff]
    %v2083 = vld [vmem:[#allocation17 + $0x130] sm:$0xff]
    %v2084 = vld [vmem:[#allocation17 + $0x138] sm:$0xff]
    %v2085 = vld [vmem:[#allocation17 + $0x140] sm:$0xff]
    %v2086 = vld [vmem:[#allocation17 + $0x148] sm:$0xff]
    %v2087 = vld [vmem:[#allocation17 + $0x150] sm:$0xff]
    %v2088 = vld [vmem:[#allocation17 + $0x158] sm:$0xff]
    %v2089 = vld [vmem:[#allocation17 + $0x160] sm:$0xff]
    %v2090 = vld [vmem:[#allocation17 + $0x168] sm:$0xff]
    %v2091 = vld [vmem:[#allocation17 + $0x170] sm:$0xff]
    %v2092 = vld [vmem:[#allocation17 + $0x178] sm:$0xff]
    %v2093 = vld [vmem:[#allocation17 + $0x180] sm:$0xff]
    %v2094 = vld [vmem:[#allocation17 + $0x188] sm:$0xff]
    %v2095 = vld [vmem:[#allocation17 + $0x190] sm:$0xff]
    %v2096 = vld [vmem:[#allocation17 + $0x198] sm:$0xff]
    %v2097 = vld [vmem:[#allocation17 + $0x1a0] sm:$0xff]
    %v2098 = vld [vmem:[#allocation17 + $0x1a8] sm:$0xff]
    %v2099 = vld [vmem:[#allocation17 + $0x1b0] sm:$0xff]
    %v2100 = vld [vmem:[#allocation17 + $0x1b8] sm:$0xff]
    %v2101 = vld [vmem:[#allocation17 + $0x1c0] sm:$0xff]
    %v2102 = vld [vmem:[#allocation17 + $0x1c8] sm:$0xff]
    %v2103 = vld [vmem:[#allocation17 + $0x1d0] sm:$0xff]
    %v2104 = vld [vmem:[#allocation17 + $0x1d8] sm:$0xff]
    %v2105 = vld [vmem:[#allocation17 + $0x1e0] sm:$0xff]
    %v2106 = vld [vmem:[#allocation17 + $0x1e8] sm:$0xff]
    %v2107 = vld [vmem:[#allocation17 + $0x1f0] sm:$0xff]
    %v2108 = vld [vmem:[#allocation17 + $0x1f8] sm:$0xff]
    %v2109 = vld [vmem:[#allocation17 + $0x200] sm:$0xff]
    %v2110 = vld [vmem:[#allocation17 + $0x208] sm:$0xff]
    %v2111 = vld [vmem:[#allocation17 + $0x210] sm:$0xff]
    %v2112 = vld [vmem:[#allocation17 + $0x218] sm:$0xff]
    %v2113 = vld [vmem:[#allocation17 + $0x220] sm:$0xff]
    %v2114 = vld [vmem:[#allocation17 + $0x228] sm:$0xff]
    %v2115 = vld [vmem:[#allocation17 + $0x230] sm:$0xff]
    %v2116 = vld [vmem:[#allocation17 + $0x238] sm:$0xff]
    %v2117 = vld [vmem:[#allocation17 + $0x240] sm:$0xff]
    %v2118 = vld [vmem:[#allocation17 + $0x248] sm:$0xff]
    %v2119 = vld [vmem:[#allocation17 + $0x250] sm:$0xff]
    %v2120 = vld [vmem:[#allocation17 + $0x258] sm:$0xff]
    %v2121 = vld [vmem:[#allocation17 + $0x260] sm:$0xff]
    %v2122 = vld [vmem:[#allocation17 + $0x268] sm:$0xff]
    %v2123 = vld [vmem:[#allocation17 + $0x270] sm:$0xff]
    %v2124 = vld [vmem:[#allocation17 + $0x278] sm:$0xff]
    %v2125 = vld [vmem:[#allocation17 + $0x280] sm:$0xff]
    %v2126 = vld [vmem:[#allocation17 + $0x288] sm:$0xff]
    %v2127 = vld [vmem:[#allocation17 + $0x290] sm:$0xff]
    %v2128 = vld [vmem:[#allocation17 + $0x298] sm:$0xff]
    %v2129 = vld [vmem:[#allocation17 + $0x2a0] sm:$0xff]
    %v2130 = vld [vmem:[#allocation17 + $0x2a8] sm:$0xff]
    %v2131 = vld [vmem:[#allocation17 + $0x2b0] sm:$0xff]
    %v2132 = vld [vmem:[#allocation17 + $0x2b8] sm:$0xff]
    %v2133 = vld [vmem:[#allocation17 + $0x2c0] sm:$0xff]
    %v2134 = vld [vmem:[#allocation17 + $0x2c8] sm:$0xff]
    %v2135 = vld [vmem:[#allocation17 + $0x2d0] sm:$0xff]
    %v2136 = vld [vmem:[#allocation17 + $0x2d8] sm:$0xff]
    %v2137 = vld [vmem:[#allocation17 + $0x2e0] sm:$0xff]
    %v2138 = vld [vmem:[#allocation17 + $0x2e8] sm:$0xff]
    %v2139 = vld [vmem:[#allocation17 + $0x2f0] sm:$0xff]
    %v2140 = vld [vmem:[#allocation17 + $0x2f8] sm:$0xff]
    %v2141 = vld [vmem:[#allocation17 + $0x300] sm:$0xff]
    %v2142 = vld [vmem:[#allocation17 + $0x308] sm:$0xff]
    %v2143 = vld [vmem:[#allocation17 + $0x310] sm:$0xff]
    %v2144 = vld [vmem:[#allocation17 + $0x318] sm:$0xff]
    %v2145 = vld [vmem:[#allocation17 + $0x320] sm:$0xff]
    %v2146 = vld [vmem:[#allocation17 + $0x328] sm:$0xff]
    %v2147 = vld [vmem:[#allocation17 + $0x330] sm:$0xff]
    %v2148 = vld [vmem:[#allocation17 + $0x338] sm:$0xff]
    %v2149 = vld [vmem:[#allocation17 + $0x340] sm:$0xff]
    %v2150 = vld [vmem:[#allocation17 + $0x348] sm:$0xff]
    %v2151 = vld [vmem:[#allocation17 + $0x350] sm:$0xff]
    %v2152 = vld [vmem:[#allocation17 + $0x358] sm:$0xff]
    %v2153 = vld [vmem:[#allocation17 + $0x360] sm:$0xff]
    %v2154 = vld [vmem:[#allocation17 + $0x368] sm:$0xff]
    %v2155 = vld [vmem:[#allocation17 + $0x370] sm:$0xff]
    %v2156 = vld [vmem:[#allocation17 + $0x378] sm:$0xff]
    %v2157 = vld [vmem:[#allocation17 + $0x380] sm:$0xff]
    %v2158 = vld [vmem:[#allocation17 + $0x388] sm:$0xff]
    %v2159 = vld [vmem:[#allocation17 + $0x390] sm:$0xff]
    %v2160 = vld [vmem:[#allocation17 + $0x398] sm:$0xff]
    %v2161 = vld [vmem:[#allocation17 + $0x3a0] sm:$0xff]
    %v2162 = vld [vmem:[#allocation17 + $0x3a8] sm:$0xff]
    %v2163 = vld [vmem:[#allocation17 + $0x3b0] sm:$0xff]
    %v2164 = vld [vmem:[#allocation17 + $0x3b8] sm:$0xff]
    %v2165 = vld [vmem:[#allocation17 + $0x3c0] sm:$0xff]
    %v2166 = vld [vmem:[#allocation17 + $0x3c8] sm:$0xff]
    %v2167 = vld [vmem:[#allocation17 + $0x3d0] sm:$0xff]
    %v2168 = vld [vmem:[#allocation17 + $0x3d8] sm:$0xff]
    %v2169 = vld [vmem:[#allocation17 + $0x3e0] sm:$0xff]
    %v2170 = vld [vmem:[#allocation17 + $0x3e8] sm:$0xff]
    %v2171 = vld [vmem:[#allocation17 + $0x3f0] sm:$0xff]
    %v2172 = vld [vmem:[#allocation17 + $0x3f8] sm:$0xff]
    %v2173 = vld [vmem:[#allocation17 + $0x400] sm:$0xff]
    %v2174 = vld [vmem:[#allocation17 + $0x408] sm:$0xff]
    %v2175 = vld [vmem:[#allocation17 + $0x410] sm:$0xff]
    %v2176 = vld [vmem:[#allocation17 + $0x418] sm:$0xff]
    %v2177 = vld [vmem:[#allocation17 + $0x420] sm:$0xff]
    %v2178 = vld [vmem:[#allocation17 + $0x428] sm:$0xff]
    %v2179 = vld [vmem:[#allocation17 + $0x430] sm:$0xff]
    %v2180 = vld [vmem:[#allocation17 + $0x438] sm:$0xff]
    %v2181 = vld [vmem:[#allocation17 + $0x440] sm:$0xff]
    %v2182 = vld [vmem:[#allocation17 + $0x448] sm:$0xff]
    %v2183 = vld [vmem:[#allocation17 + $0x450] sm:$0xff]
    %v2184 = vld [vmem:[#allocation17 + $0x458] sm:$0xff]
    %v2185 = vld [vmem:[#allocation17 + $0x460] sm:$0xff]
    %v2186 = vld [vmem:[#allocation17 + $0x468] sm:$0xff]
    %v2187 = vld [vmem:[#allocation17 + $0x470] sm:$0xff]
    %v2188 = vld [vmem:[#allocation17 + $0x478] sm:$0xff]
    %v2189 = vld [vmem:[#allocation17 + $0x480] sm:$0xff]
    %v2190 = vld [vmem:[#allocation17 + $0x488] sm:$0xff]
    %v2191 = vld [vmem:[#allocation17 + $0x490] sm:$0xff]
    %v2192 = vld [vmem:[#allocation17 + $0x498] sm:$0xff]
    %v2193 = vld [vmem:[#allocation17 + $0x4a0] sm:$0xff]
    %v2194 = vld [vmem:[#allocation17 + $0x4a8] sm:$0xff]
    %v2195 = vld [vmem:[#allocation17 + $0x4b0] sm:$0xff]
    %v2196 = vld [vmem:[#allocation17 + $0x4b8] sm:$0xff]
    %v2197 = vld [vmem:[#allocation17 + $0x4c0] sm:$0xff]
    %v2198 = vld [vmem:[#allocation17 + $0x4c8] sm:$0xff]
    %v2199 = vld [vmem:[#allocation17 + $0x4d0] sm:$0xff]
    %v2200 = vld [vmem:[#allocation17 + $0x4d8] sm:$0xff]
    %v2201 = vld [vmem:[#allocation17 + $0x4e0] sm:$0xff]
    %v2202 = vld [vmem:[#allocation17 + $0x4e8] sm:$0xff]
    %v2203 = vld [vmem:[#allocation17 + $0x4f0] sm:$0xff]
    %v2204 = vld [vmem:[#allocation17 + $0x4f8] sm:$0xff]
    %v2205 = vld [vmem:[#allocation17 + $0x500] sm:$0xff]
    %v2206 = vld [vmem:[#allocation17 + $0x508] sm:$0xff]
    %v2207 = vld [vmem:[#allocation17 + $0x510] sm:$0xff]
    %v2208 = vld [vmem:[#allocation17 + $0x518] sm:$0xff]
    %v2209 = vld [vmem:[#allocation17 + $0x520] sm:$0xff]
    %v2210 = vld [vmem:[#allocation17 + $0x528] sm:$0xff]
    %v2211 = vld [vmem:[#allocation17 + $0x530] sm:$0xff]
    %v2212 = vld [vmem:[#allocation17 + $0x538] sm:$0xff]
    %v2213 = vld [vmem:[#allocation17 + $0x540] sm:$0xff]
    %v2214 = vld [vmem:[#allocation17 + $0x548] sm:$0xff]
    %v2215 = vld [vmem:[#allocation17 + $0x550] sm:$0xff]
    %v2216 = vld [vmem:[#allocation17 + $0x558] sm:$0xff]
    %v2217 = vld [vmem:[#allocation17 + $0x560] sm:$0xff]
    %v2218 = vld [vmem:[#allocation17 + $0x568] sm:$0xff]
    %v2219 = vld [vmem:[#allocation17 + $0x570] sm:$0xff]
    %v2220 = vld [vmem:[#allocation17 + $0x578] sm:$0xff]
    %v2221 = vld [vmem:[#allocation17 + $0x580] sm:$0xff]
    %v2222 = vld [vmem:[#allocation17 + $0x588] sm:$0xff]
    %v2223 = vld [vmem:[#allocation17 + $0x590] sm:$0xff]
    %v2224 = vld [vmem:[#allocation17 + $0x598] sm:$0xff]
    %v2225 = vld [vmem:[#allocation17 + $0x5a0] sm:$0xff]
    %v2226 = vld [vmem:[#allocation17 + $0x5a8] sm:$0xff]
    %v2227 = vld [vmem:[#allocation17 + $0x5b0] sm:$0xff]
    %v2228 = vld [vmem:[#allocation17 + $0x5b8] sm:$0xff]
    %v2229 = vld [vmem:[#allocation17 + $0x5c0] sm:$0xff]
    %v2230 = vld [vmem:[#allocation17 + $0x5c8] sm:$0xff]
    %v2231 = vld [vmem:[#allocation17 + $0x5d0] sm:$0xff]
    %v2232 = vld [vmem:[#allocation17 + $0x5d8] sm:$0xff]
    %v2233 = vld [vmem:[#allocation17 + $0x5e0] sm:$0xff]
    %v2234 = vld [vmem:[#allocation17 + $0x5e8] sm:$0xff]
    %v2235 = vld [vmem:[#allocation17 + $0x5f0] sm:$0xff]
    %v2236 = vld [vmem:[#allocation17 + $0x5f8] sm:$0xff]
    %v2237 = vld [vmem:[#allocation17 + $0x600] sm:$0xff]
    %v2238 = vld [vmem:[#allocation17 + $0x608] sm:$0xff]
    %v2239 = vld [vmem:[#allocation17 + $0x610] sm:$0xff]
    %v2240 = vld [vmem:[#allocation17 + $0x618] sm:$0xff]
    %v2241 = vld [vmem:[#allocation17 + $0x620] sm:$0xff]
    %v2242 = vld [vmem:[#allocation17 + $0x628] sm:$0xff]
    %v2243 = vld [vmem:[#allocation17 + $0x630] sm:$0xff]
    %v2244 = vld [vmem:[#allocation17 + $0x638] sm:$0xff]
    %v2245 = vld [vmem:[#allocation17 + $0x640] sm:$0xff]
    %v2246 = vld [vmem:[#allocation17 + $0x648] sm:$0xff]
    %v2247 = vld [vmem:[#allocation17 + $0x650] sm:$0xff]
    %v2248 = vld [vmem:[#allocation17 + $0x658] sm:$0xff]
    %v2249 = vld [vmem:[#allocation17 + $0x660] sm:$0xff]
    %v2250 = vld [vmem:[#allocation17 + $0x668] sm:$0xff]
    %v2251 = vld [vmem:[#allocation17 + $0x670] sm:$0xff]
    %v2252 = vld [vmem:[#allocation17 + $0x678] sm:$0xff]
    %v2253 = vld [vmem:[#allocation17 + $0x680] sm:$0xff]
    %v2254 = vld [vmem:[#allocation17 + $0x688] sm:$0xff]
    %v2255 = vld [vmem:[#allocation17 + $0x690] sm:$0xff]
    %v2256 = vld [vmem:[#allocation17 + $0x698] sm:$0xff]
    %v2257 = vld [vmem:[#allocation17 + $0x6a0] sm:$0xff]
    %v2258 = vld [vmem:[#allocation17 + $0x6a8] sm:$0xff]
    %v2259 = vld [vmem:[#allocation17 + $0x6b0] sm:$0xff]
    %v2260 = vld [vmem:[#allocation17 + $0x6b8] sm:$0xff]
    %v2261 = vld [vmem:[#allocation17 + $0x6c0] sm:$0xff]
    %v2262 = vld [vmem:[#allocation17 + $0x6c8] sm:$0xff]
    %v2263 = vld [vmem:[#allocation17 + $0x6d0] sm:$0xff]
    %v2264 = vld [vmem:[#allocation17 + $0x6d8] sm:$0xff]
    %v2265 = vld [vmem:[#allocation17 + $0x6e0] sm:$0xff]
    %v2266 = vld [vmem:[#allocation17 + $0x6e8] sm:$0xff]
    %v2267 = vld [vmem:[#allocation17 + $0x6f0] sm:$0xff]
    %v2268 = vld [vmem:[#allocation17 + $0x6f8] sm:$0xff]
    %v2269 = vld [vmem:[#allocation17 + $0x700] sm:$0xff]
    %v2270 = vld [vmem:[#allocation17 + $0x708] sm:$0xff]
    %v2271 = vld [vmem:[#allocation17 + $0x710] sm:$0xff]
    %v2272 = vld [vmem:[#allocation17 + $0x718] sm:$0xff]
    %v2273 = vld [vmem:[#allocation17 + $0x720] sm:$0xff]
    %v2274 = vld [vmem:[#allocation17 + $0x728] sm:$0xff]
    %v2275 = vld [vmem:[#allocation17 + $0x730] sm:$0xff]
    %v2276 = vld [vmem:[#allocation17 + $0x738] sm:$0xff]
    %v2277 = vld [vmem:[#allocation17 + $0x740] sm:$0xff]
    %v2278 = vld [vmem:[#allocation17 + $0x748] sm:$0xff]
    %v2279 = vld [vmem:[#allocation17 + $0x750] sm:$0xff]
    %v2280 = vld [vmem:[#allocation17 + $0x758] sm:$0xff]
    %v2281 = vld [vmem:[#allocation17 + $0x760] sm:$0xff]
    %v2282 = vld [vmem:[#allocation17 + $0x768] sm:$0xff]
    %v2283 = vld [vmem:[#allocation17 + $0x770] sm:$0xff]
    %v2284 = vld [vmem:[#allocation17 + $0x778] sm:$0xff]
    %v2285 = vld [vmem:[#allocation17 + $0x780] sm:$0xff]
    %v2286 = vld [vmem:[#allocation17 + $0x788] sm:$0xff]
    %v2287 = vld [vmem:[#allocation17 + $0x790] sm:$0xff]
    %v2288 = vld [vmem:[#allocation17 + $0x798] sm:$0xff]
    %v2289 = vld [vmem:[#allocation17 + $0x7a0] sm:$0xff]
    %v2290 = vld [vmem:[#allocation17 + $0x7a8] sm:$0xff]
    %v2291 = vld [vmem:[#allocation17 + $0x7b0] sm:$0xff]
    %v2292 = vld [vmem:[#allocation17 + $0x7b8] sm:$0xff]
    %v2293 = vld [vmem:[#allocation17 + $0x7c0] sm:$0xff]
    %v2294 = vld [vmem:[#allocation17 + $0x7c8] sm:$0xff]
    %v2295 = vld [vmem:[#allocation17 + $0x7d0] sm:$0xff]
    %v2296 = vld [vmem:[#allocation17 + $0x7d8] sm:$0xff]
    %v2297 = vld [vmem:[#allocation17 + $0x7e0] sm:$0xff]
    %v2298 = vld [vmem:[#allocation17 + $0x7e8] sm:$0xff]
    %v2299 = vld [vmem:[#allocation17 + $0x7f0] sm:$0xff]
    %v2300 = vld [vmem:[#allocation17 + $0x7f8] sm:$0xff]
    %v2301 = vld [vmem:[#allocation17 + $0x800] sm:$0xff]
    %v2302 = vld [vmem:[#allocation17 + $0x808] sm:$0xff]
    %v2303 = vld [vmem:[#allocation17 + $0x810] sm:$0xff]
    %v2304 = vld [vmem:[#allocation17 + $0x818] sm:$0xff]
    %v2305 = vld [vmem:[#allocation17 + $0x820] sm:$0xff]
    %v2306 = vld [vmem:[#allocation17 + $0x828] sm:$0xff]
    %v2307 = vld [vmem:[#allocation17 + $0x830] sm:$0xff]
    %v2308 = vld [vmem:[#allocation17 + $0x838] sm:$0xff]
    %v2309 = vld [vmem:[#allocation17 + $0x840] sm:$0xff]
    %v2310 = vld [vmem:[#allocation17 + $0x848] sm:$0xff]
    %v2311 = vld [vmem:[#allocation17 + $0x850] sm:$0xff]
    %v2312 = vld [vmem:[#allocation17 + $0x858] sm:$0xff]
    %v2313 = vld [vmem:[#allocation17 + $0x860] sm:$0xff]
    %v2314 = vld [vmem:[#allocation17 + $0x868] sm:$0xff]
    %v2315 = vld [vmem:[#allocation17 + $0x870] sm:$0xff]
    %v2316 = vld [vmem:[#allocation17 + $0x878] sm:$0xff]
    %v2317 = vld [vmem:[#allocation17 + $0x880] sm:$0xff]
    %v2318 = vld [vmem:[#allocation17 + $0x888] sm:$0xff]
    %v2319 = vld [vmem:[#allocation17 + $0x890] sm:$0xff]
    %v2320 = vld [vmem:[#allocation17 + $0x898] sm:$0xff]
    %v2321 = vld [vmem:[#allocation17 + $0x8a0] sm:$0xff]
    %v2322 = vld [vmem:[#allocation17 + $0x8a8] sm:$0xff]
    %v2323 = vld [vmem:[#allocation17 + $0x8b0] sm:$0xff]
    %v2324 = vld [vmem:[#allocation17 + $0x8b8] sm:$0xff]
    %v2325 = vld [vmem:[#allocation17 + $0x8c0] sm:$0xff]
    %v2326 = vld [vmem:[#allocation17 + $0x8c8] sm:$0xff]
    %v2327 = vld [vmem:[#allocation17 + $0x8d0] sm:$0xff]
    %v2328 = vld [vmem:[#allocation17 + $0x8d8] sm:$0xff]
    %v2329 = vld [vmem:[#allocation17 + $0x8e0] sm:$0xff]
    %v2330 = vld [vmem:[#allocation17 + $0x8e8] sm:$0xff]
    %v2331 = vld [vmem:[#allocation17 + $0x8f0] sm:$0xff]
    %v2332 = vld [vmem:[#allocation17 + $0x8f8] sm:$0xff]
    %v2333 = vld [vmem:[#allocation17 + $0x900] sm:$0xff]
    %v2334 = vld [vmem:[#allocation17 + $0x908] sm:$0xff]
    %v2335 = vld [vmem:[#allocation17 + $0x910] sm:$0xff]
    %v2336 = vld [vmem:[#allocation17 + $0x918] sm:$0xff]
    %v2337 = vld [vmem:[#allocation17 + $0x920] sm:$0xff]
    %v2338 = vld [vmem:[#allocation17 + $0x928] sm:$0xff]
    %v2339 = vld [vmem:[#allocation17 + $0x930] sm:$0xff]
    %v2340 = vld [vmem:[#allocation17 + $0x938] sm:$0xff]
    %v2341 = vld [vmem:[#allocation17 + $0x940] sm:$0xff]
    %v2342 = vld [vmem:[#allocation17 + $0x948] sm:$0xff]
    %v2343 = vld [vmem:[#allocation17 + $0x950] sm:$0xff]
    %v2344 = vld [vmem:[#allocation17 + $0x958] sm:$0xff]
    %v2345 = vld [vmem:[#allocation17 + $0x960] sm:$0xff]
    %v2346 = vld [vmem:[#allocation17 + $0x968] sm:$0xff]
    %v2347 = vld [vmem:[#allocation17 + $0x970] sm:$0xff]
    %v2348 = vld [vmem:[#allocation17 + $0x978] sm:$0xff]
    %v2349 = vld [vmem:[#allocation17 + $0x980] sm:$0xff]
    %v2350 = vld [vmem:[#allocation17 + $0x988] sm:$0xff]
    %v2351 = vld [vmem:[#allocation17 + $0x990] sm:$0xff]
    %v2352 = vld [vmem:[#allocation17 + $0x998] sm:$0xff]
    %v2353 = vld [vmem:[#allocation17 + $0x9a0] sm:$0xff]
    %v2354 = vld [vmem:[#allocation17 + $0x9a8] sm:$0xff]
    %v2355 = vld [vmem:[#allocation17 + $0x9b0] sm:$0xff]
    %v2356 = vld [vmem:[#allocation17 + $0x9b8] sm:$0xff]
    %v2357 = vld [vmem:[#allocation17 + $0x9c0] sm:$0xff]
    %v2358 = vld [vmem:[#allocation17 + $0x9c8] sm:$0xff]
    %v2359 = vld [vmem:[#allocation17 + $0x9d0] sm:$0xff]
    %v2360 = vld [vmem:[#allocation17 + $0x9d8] sm:$0xff]
    %v2361 = vld [vmem:[#allocation17 + $0x9e0] sm:$0xff]
    %v2362 = vld [vmem:[#allocation17 + $0x9e8] sm:$0xff]
    %v2363 = vld [vmem:[#allocation17 + $0x9f0] sm:$0xff]
    %v2364 = vld [vmem:[#allocation17 + $0x9f8] sm:$0xff]
    %v2365 = vld [vmem:[#allocation17 + $0xa00] sm:$0xff]
    %v2366 = vld [vmem:[#allocation17 + $0xa08] sm:$0xff]
    %v2367 = vld [vmem:[#allocation17 + $0xa10] sm:$0xff]
    %v2368 = vld [vmem:[#allocation17 + $0xa18] sm:$0xff]
    %v2369 = vld [vmem:[#allocation17 + $0xa20] sm:$0xff]
    %v2370 = vld [vmem:[#allocation17 + $0xa28] sm:$0xff]
    %v2371 = vld [vmem:[#allocation17 + $0xa30] sm:$0xff]
    %v2372 = vld [vmem:[#allocation17 + $0xa38] sm:$0xff]
    %v2373 = vld [vmem:[#allocation17 + $0xa40] sm:$0xff]
    %v2374 = vld [vmem:[#allocation17 + $0xa48] sm:$0xff]
    %v2375 = vld [vmem:[#allocation17 + $0xa50] sm:$0xff]
    %v2376 = vld [vmem:[#allocation17 + $0xa58] sm:$0xff]
    %v2377 = vld [vmem:[#allocation17 + $0xa60] sm:$0xff]
    %v2378 = vld [vmem:[#allocation17 + $0xa68] sm:$0xff]
    %v2379 = vld [vmem:[#allocation17 + $0xa70] sm:$0xff]
    %v2380 = vld [vmem:[#allocation17 + $0xa78] sm:$0xff]
    %v2381 = vld [vmem:[#allocation17 + $0xa80] sm:$0xff]
    %v2382 = vld [vmem:[#allocation17 + $0xa88] sm:$0xff]
    %v2383 = vld [vmem:[#allocation17 + $0xa90] sm:$0xff]
    %v2384 = vld [vmem:[#allocation17 + $0xa98] sm:$0xff]
    %v2385 = vld [vmem:[#allocation17 + $0xaa0] sm:$0xff]
    %v2386 = vld [vmem:[#allocation17 + $0xaa8] sm:$0xff]
    %v2387 = vld [vmem:[#allocation17 + $0xab0] sm:$0xff]
    %v2388 = vld [vmem:[#allocation17 + $0xab8] sm:$0xff]
    %v2389 = vld [vmem:[#allocation17 + $0xac0] sm:$0xff]
    %v2390 = vld [vmem:[#allocation17 + $0xac8] sm:$0xff]
    %v2391 = vld [vmem:[#allocation17 + $0xad0] sm:$0xff]
    %v2392 = vld [vmem:[#allocation17 + $0xad8] sm:$0xff]
    %v2393 = vld [vmem:[#allocation17 + $0xae0] sm:$0xff]
    %v2394 = vld [vmem:[#allocation17 + $0xae8] sm:$0xff]
    %v2395 = vld [vmem:[#allocation17 + $0xaf0] sm:$0xff]
    %v2396 = vld [vmem:[#allocation17 + $0xaf8] sm:$0xff]
    %v2397 = vld [vmem:[#allocation17 + $0xb00] sm:$0xff]
    %v2398 = vld [vmem:[#allocation17 + $0xb08] sm:$0xff]
    %v2399 = vld [vmem:[#allocation17 + $0xb10] sm:$0xff]
    %v2400 = vld [vmem:[#allocation17 + $0xb18] sm:$0xff]
    %v2401 = vld [vmem:[#allocation17 + $0xb20] sm:$0xff]
    %v2402 = vld [vmem:[#allocation17 + $0xb28] sm:$0xff]
    %v2403 = vld [vmem:[#allocation17 + $0xb30] sm:$0xff]
    %v2404 = vld [vmem:[#allocation17 + $0xb38] sm:$0xff]
    %v2405 = vld [vmem:[#allocation17 + $0xb40] sm:$0xff]
    %v2406 = vld [vmem:[#allocation17 + $0xb48] sm:$0xff]
    %v2407 = vld [vmem:[#allocation17 + $0xb50] sm:$0xff]
    %v2408 = vld [vmem:[#allocation17 + $0xb58] sm:$0xff]
    %v2409 = vld [vmem:[#allocation17 + $0xb60] sm:$0xff]
    %v2410 = vld [vmem:[#allocation17 + $0xb68] sm:$0xff]
    %v2411 = vld [vmem:[#allocation17 + $0xb70] sm:$0xff]
    %v2412 = vld [vmem:[#allocation17 + $0xb78] sm:$0xff]
    %v2413 = vld [vmem:[#allocation17 + $0xb80] sm:$0xff]
    %v2414 = vld [vmem:[#allocation17 + $0xb88] sm:$0xff]
    %v2415 = vld [vmem:[#allocation17 + $0xb90] sm:$0xff]
    %v2416 = vld [vmem:[#allocation17 + $0xb98] sm:$0xff]
    %v2417 = vld [vmem:[#allocation17 + $0xba0] sm:$0xff]
    %v2418 = vld [vmem:[#allocation17 + $0xba8] sm:$0xff]
    %v2419 = vld [vmem:[#allocation17 + $0xbb0] sm:$0xff]
    %v2420 = vld [vmem:[#allocation17 + $0xbb8] sm:$0xff]
    %v2421 = vld [vmem:[#allocation17 + $0xbc0] sm:$0xff]
    %v2422 = vld [vmem:[#allocation17 + $0xbc8] sm:$0xff]
    %v2423 = vld [vmem:[#allocation17 + $0xbd0] sm:$0xff]
    %v2424 = vld [vmem:[#allocation17 + $0xbd8] sm:$0xff]
    %v2425 = vld [vmem:[#allocation17 + $0xbe0] sm:$0xff]
    %v2426 = vld [vmem:[#allocation17 + $0xbe8] sm:$0xff]
    %v2427 = vld [vmem:[#allocation17 + $0xbf0] sm:$0xff]
    %v2428 = vld [vmem:[#allocation17 + $0xbf8] sm:$0xff]
    %v2429 = vld [vmem:[#allocation10] sm:$0xff]
    %v2431 = vperm.slane %v2429, 0
    %v2432 = vperm.slane %v2429, 1
    %v2433 = vperm.slane %v2429, 2
    %v2434 = vperm.slane %v2429, 3
    %v2435 = vperm.slane %v2429, 4
    %v2436 = vperm.slane %v2429, 5
    %v2437 = vperm.slane %v2429, 6
    %v2438 = vperm.slane %v2429, 7
    %v2453 = vunpack.c.l.b16 %v2039
    %v2454 = vunpack.c.h.b16 %v2039
    %v2455 = vunpack.c.l.b16 %v2040
    %v2456 = vunpack.c.h.b16 %v2040
    %v2457 = vunpack.c.l.b16 %v2041
    %v2458 = vunpack.c.h.b16 %v2041
    %v2459 = vunpack.c.l.b16 %v2042
    %v2460 = vunpack.c.h.b16 %v2042
    %v2461 = vunpack.c.l.b16 %v2043
    %v2462 = vunpack.c.h.b16 %v2043
    %v2463 = vunpack.c.l.b16 %v2044
    %v2464 = vunpack.c.h.b16 %v2044
    %v2465 = vpack.c.b16 %v2459, %v2453
    %v2466 = vpack.c.b16 %v2460, %v2454
    %v2467 = vpack.c.b16 %v2461, %v2455
    %v2468 = vpack.c.b16 %v2462, %v2456
    %v2469 = vpack.c.b16 %v2463, %v2457
    %v2470 = vpack.c.b16 %v2464, %v2458
    %v2861 = vunpack.c.l.b16 %v2045
    %v2862 = vunpack.c.h.b16 %v2045
    %v2863 = vunpack.c.l.b16 %v2046
    %v2864 = vunpack.c.h.b16 %v2046
    %v2865 = vunpack.c.l.b16 %v2047
    %v2866 = vunpack.c.h.b16 %v2047
    %v2867 = vunpack.c.l.b16 %v2048
    %v2868 = vunpack.c.h.b16 %v2048
    %v2869 = vunpack.c.l.b16 %v2049
    %v2870 = vunpack.c.h.b16 %v2049
    %v2871 = vunpack.c.l.b16 %v2050
    %v2872 = vunpack.c.h.b16 %v2050
    %v2873 = vunpack.c.l.b16 %v2051
    %v2874 = vunpack.c.h.b16 %v2051
    %v2875 = vunpack.c.l.b16 %v2052
    %v2876 = vunpack.c.h.b16 %v2052
    %v2877 = vunpack.c.l.b16 %v2053
    %v2878 = vunpack.c.h.b16 %v2053
    %v2879 = vunpack.c.l.b16 %v2054
    %v2880 = vunpack.c.h.b16 %v2054
    %v2881 = vunpack.c.l.b16 %v2055
    %v2882 = vunpack.c.h.b16 %v2055
    %v2883 = vunpack.c.l.b16 %v2056
    %v2884 = vunpack.c.h.b16 %v2056
    %v2885 = vunpack.c.l.b16 %v2057
    %v2886 = vunpack.c.h.b16 %v2057
    %v2887 = vunpack.c.l.b16 %v2058
    %v2888 = vunpack.c.h.b16 %v2058
    %v2889 = vunpack.c.l.b16 %v2059
    %v2890 = vunpack.c.h.b16 %v2059
    %v2891 = vunpack.c.l.b16 %v2060
    %v2892 = vunpack.c.h.b16 %v2060
    %v2893 = vunpack.c.l.b16 %v2061
    %v2894 = vunpack.c.h.b16 %v2061
    %v2895 = vunpack.c.l.b16 %v2062
    %v2896 = vunpack.c.h.b16 %v2062
    %v2897 = vunpack.c.l.b16 %v2063
    %v2898 = vunpack.c.h.b16 %v2063
    %v2899 = vunpack.c.l.b16 %v2064
    %v2900 = vunpack.c.h.b16 %v2064
    %v2901 = vunpack.c.l.b16 %v2065
    %v2902 = vunpack.c.h.b16 %v2065
    %v2903 = vunpack.c.l.b16 %v2066
    %v2904 = vunpack.c.h.b16 %v2066
    %v2905 = vunpack.c.l.b16 %v2067
    %v2906 = vunpack.c.h.b16 %v2067
    %v2907 = vunpack.c.l.b16 %v2068
    %v2908 = vunpack.c.h.b16 %v2068
    %v2909 = vunpack.c.l.b16 %v2069
    %v2910 = vunpack.c.h.b16 %v2069
    %v2911 = vunpack.c.l.b16 %v2070
    %v2912 = vunpack.c.h.b16 %v2070
    %v2913 = vunpack.c.l.b16 %v2071
    %v2914 = vunpack.c.h.b16 %v2071
    %v2915 = vunpack.c.l.b16 %v2072
    %v2916 = vunpack.c.h.b16 %v2072
    %v2917 = vunpack.c.l.b16 %v2073
    %v2918 = vunpack.c.h.b16 %v2073
    %v2919 = vunpack.c.l.b16 %v2074
    %v2920 = vunpack.c.h.b16 %v2074
    %v2921 = vunpack.c.l.b16 %v2075
    %v2922 = vunpack.c.h.b16 %v2075
    %v2923 = vunpack.c.l.b16 %v2076
    %v2924 = vunpack.c.h.b16 %v2076
    %v2925 = vunpack.c.l.b16 %v2077
    %v2926 = vunpack.c.h.b16 %v2077
    %v2927 = vunpack.c.l.b16 %v2078
    %v2928 = vunpack.c.h.b16 %v2078
    %v2929 = vunpack.c.l.b16 %v2079
    %v2930 = vunpack.c.h.b16 %v2079
    %v2931 = vunpack.c.l.b16 %v2080
    %v2932 = vunpack.c.h.b16 %v2080
    %v2933 = vunpack.c.l.b16 %v2081
    %v2934 = vunpack.c.h.b16 %v2081
    %v2935 = vunpack.c.l.b16 %v2082
    %v2936 = vunpack.c.h.b16 %v2082
    %v2937 = vunpack.c.l.b16 %v2083
    %v2938 = vunpack.c.h.b16 %v2083
    %v2939 = vunpack.c.l.b16 %v2084
    %v2940 = vunpack.c.h.b16 %v2084
    %v2941 = vunpack.c.l.b16 %v2085
    %v2942 = vunpack.c.h.b16 %v2085
    %v2943 = vunpack.c.l.b16 %v2086
    %v2944 = vunpack.c.h.b16 %v2086
    %v2945 = vunpack.c.l.b16 %v2087
    %v2946 = vunpack.c.h.b16 %v2087
    %v2947 = vunpack.c.l.b16 %v2088
    %v2948 = vunpack.c.h.b16 %v2088
    %v2949 = vunpack.c.l.b16 %v2089
    %v2950 = vunpack.c.h.b16 %v2089
    %v2951 = vunpack.c.l.b16 %v2090
    %v2952 = vunpack.c.h.b16 %v2090
    %v2953 = vunpack.c.l.b16 %v2091
    %v2954 = vunpack.c.h.b16 %v2091
    %v2955 = vunpack.c.l.b16 %v2092
    %v2956 = vunpack.c.h.b16 %v2092
    %v2957 = vunpack.c.l.b16 %v2093
    %v2958 = vunpack.c.h.b16 %v2093
    %v2959 = vunpack.c.l.b16 %v2094
    %v2960 = vunpack.c.h.b16 %v2094
    %v2961 = vunpack.c.l.b16 %v2095
    %v2962 = vunpack.c.h.b16 %v2095
    %v2963 = vunpack.c.l.b16 %v2096
    %v2964 = vunpack.c.h.b16 %v2096
    %v2965 = vunpack.c.l.b16 %v2097
    %v2966 = vunpack.c.h.b16 %v2097
    %v2967 = vunpack.c.l.b16 %v2098
    %v2968 = vunpack.c.h.b16 %v2098
    %v2969 = vunpack.c.l.b16 %v2099
    %v2970 = vunpack.c.h.b16 %v2099
    %v2971 = vunpack.c.l.b16 %v2100
    %v2972 = vunpack.c.h.b16 %v2100
    %v2973 = vunpack.c.l.b16 %v2101
    %v2974 = vunpack.c.h.b16 %v2101
    %v2975 = vunpack.c.l.b16 %v2102
    %v2976 = vunpack.c.h.b16 %v2102
    %v2977 = vunpack.c.l.b16 %v2103
    %v2978 = vunpack.c.h.b16 %v2103
    %v2979 = vunpack.c.l.b16 %v2104
    %v2980 = vunpack.c.h.b16 %v2104
    %v2981 = vunpack.c.l.b16 %v2105
    %v2982 = vunpack.c.h.b16 %v2105
    %v2983 = vunpack.c.l.b16 %v2106
    %v2984 = vunpack.c.h.b16 %v2106
    %v2985 = vunpack.c.l.b16 %v2107
    %v2986 = vunpack.c.h.b16 %v2107
    %v2987 = vunpack.c.l.b16 %v2108
    %v2988 = vunpack.c.h.b16 %v2108
    %v2989 = vunpack.c.l.b16 %v2109
    %v2990 = vunpack.c.h.b16 %v2109
    %v2991 = vunpack.c.l.b16 %v2110
    %v2992 = vunpack.c.h.b16 %v2110
    %v2993 = vunpack.c.l.b16 %v2111
    %v2994 = vunpack.c.h.b16 %v2111
    %v2995 = vunpack.c.l.b16 %v2112
    %v2996 = vunpack.c.h.b16 %v2112
    %v2997 = vunpack.c.l.b16 %v2113
    %v2998 = vunpack.c.h.b16 %v2113
    %v2999 = vunpack.c.l.b16 %v2114
    %v3000 = vunpack.c.h.b16 %v2114
    %v3001 = vunpack.c.l.b16 %v2115
    %v3002 = vunpack.c.h.b16 %v2115
    %v3003 = vunpack.c.l.b16 %v2116
    %v3004 = vunpack.c.h.b16 %v2116
    %v3005 = vunpack.c.l.b16 %v2117
    %v3006 = vunpack.c.h.b16 %v2117
    %v3007 = vunpack.c.l.b16 %v2118
    %v3008 = vunpack.c.h.b16 %v2118
    %v3009 = vunpack.c.l.b16 %v2119
    %v3010 = vunpack.c.h.b16 %v2119
    %v3011 = vunpack.c.l.b16 %v2120
    %v3012 = vunpack.c.h.b16 %v2120
    %v3013 = vunpack.c.l.b16 %v2121
    %v3014 = vunpack.c.h.b16 %v2121
    %v3015 = vunpack.c.l.b16 %v2122
    %v3016 = vunpack.c.h.b16 %v2122
    %v3017 = vunpack.c.l.b16 %v2123
    %v3018 = vunpack.c.h.b16 %v2123
    %v3019 = vunpack.c.l.b16 %v2124
    %v3020 = vunpack.c.h.b16 %v2124
    %v3021 = vunpack.c.l.b16 %v2125
    %v3022 = vunpack.c.h.b16 %v2125
    %v3023 = vunpack.c.l.b16 %v2126
    %v3024 = vunpack.c.h.b16 %v2126
    %v3025 = vunpack.c.l.b16 %v2127
    %v3026 = vunpack.c.h.b16 %v2127
    %v3027 = vunpack.c.l.b16 %v2128
    %v3028 = vunpack.c.h.b16 %v2128
    %v3029 = vunpack.c.l.b16 %v2129
    %v3030 = vunpack.c.h.b16 %v2129
    %v3031 = vunpack.c.l.b16 %v2130
    %v3032 = vunpack.c.h.b16 %v2130
    %v3033 = vunpack.c.l.b16 %v2131
    %v3034 = vunpack.c.h.b16 %v2131
    %v3035 = vunpack.c.l.b16 %v2132
    %v3036 = vunpack.c.h.b16 %v2132
    %v3037 = vunpack.c.l.b16 %v2133
    %v3038 = vunpack.c.h.b16 %v2133
    %v3039 = vunpack.c.l.b16 %v2134
    %v3040 = vunpack.c.h.b16 %v2134
    %v3041 = vunpack.c.l.b16 %v2135
    %v3042 = vunpack.c.h.b16 %v2135
    %v3043 = vunpack.c.l.b16 %v2136
    %v3044 = vunpack.c.h.b16 %v2136
    %v3045 = vunpack.c.l.b16 %v2137
    %v3046 = vunpack.c.h.b16 %v2137
    %v3047 = vunpack.c.l.b16 %v2138
    %v3048 = vunpack.c.h.b16 %v2138
    %v3049 = vunpack.c.l.b16 %v2139
    %v3050 = vunpack.c.h.b16 %v2139
    %v3051 = vunpack.c.l.b16 %v2140
    %v3052 = vunpack.c.h.b16 %v2140
    %v3053 = vunpack.c.l.b16 %v2141
    %v3054 = vunpack.c.h.b16 %v2141
    %v3055 = vunpack.c.l.b16 %v2142
    %v3056 = vunpack.c.h.b16 %v2142
    %v3057 = vunpack.c.l.b16 %v2143
    %v3058 = vunpack.c.h.b16 %v2143
    %v3059 = vunpack.c.l.b16 %v2144
    %v3060 = vunpack.c.h.b16 %v2144
    %v3061 = vunpack.c.l.b16 %v2145
    %v3062 = vunpack.c.h.b16 %v2145
    %v3063 = vunpack.c.l.b16 %v2146
    %v3064 = vunpack.c.h.b16 %v2146
    %v3065 = vunpack.c.l.b16 %v2147
    %v3066 = vunpack.c.h.b16 %v2147
    %v3067 = vunpack.c.l.b16 %v2148
    %v3068 = vunpack.c.h.b16 %v2148
    %v3069 = vunpack.c.l.b16 %v2149
    %v3070 = vunpack.c.h.b16 %v2149
    %v3071 = vunpack.c.l.b16 %v2150
    %v3072 = vunpack.c.h.b16 %v2150
    %v3073 = vunpack.c.l.b16 %v2151
    %v3074 = vunpack.c.h.b16 %v2151
    %v3075 = vunpack.c.l.b16 %v2152
    %v3076 = vunpack.c.h.b16 %v2152
    %v3077 = vunpack.c.l.b16 %v2153
    %v3078 = vunpack.c.h.b16 %v2153
    %v3079 = vunpack.c.l.b16 %v2154
    %v3080 = vunpack.c.h.b16 %v2154
    %v3081 = vunpack.c.l.b16 %v2155
    %v3082 = vunpack.c.h.b16 %v2155
    %v3083 = vunpack.c.l.b16 %v2156
    %v3084 = vunpack.c.h.b16 %v2156
    %v3085 = vunpack.c.l.b16 %v2157
    %v3086 = vunpack.c.h.b16 %v2157
    %v3087 = vunpack.c.l.b16 %v2158
    %v3088 = vunpack.c.h.b16 %v2158
    %v3089 = vunpack.c.l.b16 %v2159
    %v3090 = vunpack.c.h.b16 %v2159
    %v3091 = vunpack.c.l.b16 %v2160
    %v3092 = vunpack.c.h.b16 %v2160
    %v3093 = vunpack.c.l.b16 %v2161
    %v3094 = vunpack.c.h.b16 %v2161
    %v3095 = vunpack.c.l.b16 %v2162
    %v3096 = vunpack.c.h.b16 %v2162
    %v3097 = vunpack.c.l.b16 %v2163
    %v3098 = vunpack.c.h.b16 %v2163
    %v3099 = vunpack.c.l.b16 %v2164
    %v3100 = vunpack.c.h.b16 %v2164
    %v3101 = vunpack.c.l.b16 %v2165
    %v3102 = vunpack.c.h.b16 %v2165
    %v3103 = vunpack.c.l.b16 %v2166
    %v3104 = vunpack.c.h.b16 %v2166
    %v3105 = vunpack.c.l.b16 %v2167
    %v3106 = vunpack.c.h.b16 %v2167
    %v3107 = vunpack.c.l.b16 %v2168
    %v3108 = vunpack.c.h.b16 %v2168
    %v3109 = vunpack.c.l.b16 %v2169
    %v3110 = vunpack.c.h.b16 %v2169
    %v3111 = vunpack.c.l.b16 %v2170
    %v3112 = vunpack.c.h.b16 %v2170
    %v3113 = vunpack.c.l.b16 %v2171
    %v3114 = vunpack.c.h.b16 %v2171
    %v3115 = vunpack.c.l.b16 %v2172
    %v3116 = vunpack.c.h.b16 %v2172
    %v3117 = vunpack.c.l.b16 %v2173
    %v3118 = vunpack.c.h.b16 %v2173
    %v3119 = vunpack.c.l.b16 %v2174
    %v3120 = vunpack.c.h.b16 %v2174
    %v3121 = vunpack.c.l.b16 %v2175
    %v3122 = vunpack.c.h.b16 %v2175
    %v3123 = vunpack.c.l.b16 %v2176
    %v3124 = vunpack.c.h.b16 %v2176
    %v3125 = vunpack.c.l.b16 %v2177
    %v3126 = vunpack.c.h.b16 %v2177
    %v3127 = vunpack.c.l.b16 %v2178
    %v3128 = vunpack.c.h.b16 %v2178
    %v3129 = vunpack.c.l.b16 %v2179
    %v3130 = vunpack.c.h.b16 %v2179
    %v3131 = vunpack.c.l.b16 %v2180
    %v3132 = vunpack.c.h.b16 %v2180
    %v3133 = vunpack.c.l.b16 %v2181
    %v3134 = vunpack.c.h.b16 %v2181
    %v3135 = vunpack.c.l.b16 %v2182
    %v3136 = vunpack.c.h.b16 %v2182
    %v3137 = vunpack.c.l.b16 %v2183
    %v3138 = vunpack.c.h.b16 %v2183
    %v3139 = vunpack.c.l.b16 %v2184
    %v3140 = vunpack.c.h.b16 %v2184
    %v3141 = vunpack.c.l.b16 %v2185
    %v3142 = vunpack.c.h.b16 %v2185
    %v3143 = vunpack.c.l.b16 %v2186
    %v3144 = vunpack.c.h.b16 %v2186
    %v3145 = vunpack.c.l.b16 %v2187
    %v3146 = vunpack.c.h.b16 %v2187
    %v3147 = vunpack.c.l.b16 %v2188
    %v3148 = vunpack.c.h.b16 %v2188
    %v3149 = vunpack.c.l.b16 %v2189
    %v3150 = vunpack.c.h.b16 %v2189
    %v3151 = vunpack.c.l.b16 %v2190
    %v3152 = vunpack.c.h.b16 %v2190
    %v3153 = vunpack.c.l.b16 %v2191
    %v3154 = vunpack.c.h.b16 %v2191
    %v3155 = vunpack.c.l.b16 %v2192
    %v3156 = vunpack.c.h.b16 %v2192
    %v3157 = vunpack.c.l.b16 %v2193
    %v3158 = vunpack.c.h.b16 %v2193
    %v3159 = vunpack.c.l.b16 %v2194
    %v3160 = vunpack.c.h.b16 %v2194
    %v3161 = vunpack.c.l.b16 %v2195
    %v3162 = vunpack.c.h.b16 %v2195
    %v3163 = vunpack.c.l.b16 %v2196
    %v3164 = vunpack.c.h.b16 %v2196
    %v3165 = vunpack.c.l.b16 %v2197
    %v3166 = vunpack.c.h.b16 %v2197
    %v3167 = vunpack.c.l.b16 %v2198
    %v3168 = vunpack.c.h.b16 %v2198
    %v3169 = vunpack.c.l.b16 %v2199
    %v3170 = vunpack.c.h.b16 %v2199
    %v3171 = vunpack.c.l.b16 %v2200
    %v3172 = vunpack.c.h.b16 %v2200
    %v3173 = vunpack.c.l.b16 %v2201
    %v3174 = vunpack.c.h.b16 %v2201
    %v3175 = vunpack.c.l.b16 %v2202
    %v3176 = vunpack.c.h.b16 %v2202
    %v3177 = vunpack.c.l.b16 %v2203
    %v3178 = vunpack.c.h.b16 %v2203
    %v3179 = vunpack.c.l.b16 %v2204
    %v3180 = vunpack.c.h.b16 %v2204
    %v3181 = vunpack.c.l.b16 %v2205
    %v3182 = vunpack.c.h.b16 %v2205
    %v3183 = vunpack.c.l.b16 %v2206
    %v3184 = vunpack.c.h.b16 %v2206
    %v3185 = vunpack.c.l.b16 %v2207
    %v3186 = vunpack.c.h.b16 %v2207
    %v3187 = vunpack.c.l.b16 %v2208
    %v3188 = vunpack.c.h.b16 %v2208
    %v3189 = vunpack.c.l.b16 %v2209
    %v3190 = vunpack.c.h.b16 %v2209
    %v3191 = vunpack.c.l.b16 %v2210
    %v3192 = vunpack.c.h.b16 %v2210
    %v3193 = vunpack.c.l.b16 %v2211
    %v3194 = vunpack.c.h.b16 %v2211
    %v3195 = vunpack.c.l.b16 %v2212
    %v3196 = vunpack.c.h.b16 %v2212
    %v3197 = vunpack.c.l.b16 %v2213
    %v3198 = vunpack.c.h.b16 %v2213
    %v3199 = vunpack.c.l.b16 %v2214
    %v3200 = vunpack.c.h.b16 %v2214
    %v3201 = vunpack.c.l.b16 %v2215
    %v3202 = vunpack.c.h.b16 %v2215
    %v3203 = vunpack.c.l.b16 %v2216
    %v3204 = vunpack.c.h.b16 %v2216
    %v3205 = vunpack.c.l.b16 %v2217
    %v3206 = vunpack.c.h.b16 %v2217
    %v3207 = vunpack.c.l.b16 %v2218
    %v3208 = vunpack.c.h.b16 %v2218
    %v3209 = vunpack.c.l.b16 %v2219
    %v3210 = vunpack.c.h.b16 %v2219
    %v3211 = vunpack.c.l.b16 %v2220
    %v3212 = vunpack.c.h.b16 %v2220
    %v3213 = vunpack.c.l.b16 %v2221
    %v3214 = vunpack.c.h.b16 %v2221
    %v3215 = vunpack.c.l.b16 %v2222
    %v3216 = vunpack.c.h.b16 %v2222
    %v3217 = vunpack.c.l.b16 %v2223
    %v3218 = vunpack.c.h.b16 %v2223
    %v3219 = vunpack.c.l.b16 %v2224
    %v3220 = vunpack.c.h.b16 %v2224
    %v3221 = vunpack.c.l.b16 %v2225
    %v3222 = vunpack.c.h.b16 %v2225
    %v3223 = vunpack.c.l.b16 %v2226
    %v3224 = vunpack.c.h.b16 %v2226
    %v3225 = vunpack.c.l.b16 %v2227
    %v3226 = vunpack.c.h.b16 %v2227
    %v3227 = vunpack.c.l.b16 %v2228
    %v3228 = vunpack.c.h.b16 %v2228
    %v3229 = vunpack.c.l.b16 %v2229
    %v3230 = vunpack.c.h.b16 %v2229
    %v3231 = vunpack.c.l.b16 %v2230
    %v3232 = vunpack.c.h.b16 %v2230
    %v3233 = vunpack.c.l.b16 %v2231
    %v3234 = vunpack.c.h.b16 %v2231
    %v3235 = vunpack.c.l.b16 %v2232
    %v3236 = vunpack.c.h.b16 %v2232
    %v3237 = vunpack.c.l.b16 %v2233
    %v3238 = vunpack.c.h.b16 %v2233
    %v3239 = vunpack.c.l.b16 %v2234
    %v3240 = vunpack.c.h.b16 %v2234
    %v3241 = vunpack.c.l.b16 %v2235
    %v3242 = vunpack.c.h.b16 %v2235
    %v3243 = vunpack.c.l.b16 %v2236
    %v3244 = vunpack.c.h.b16 %v2236
    %v3245 = vunpack.c.l.b16 %v2237
    %v3246 = vunpack.c.h.b16 %v2237
    %v3247 = vunpack.c.l.b16 %v2238
    %v3248 = vunpack.c.h.b16 %v2238
    %v3249 = vunpack.c.l.b16 %v2239
    %v3250 = vunpack.c.h.b16 %v2239
    %v3251 = vunpack.c.l.b16 %v2240
    %v3252 = vunpack.c.h.b16 %v2240
    %v3253 = vunpack.c.l.b16 %v2241
    %v3254 = vunpack.c.h.b16 %v2241
    %v3255 = vunpack.c.l.b16 %v2242
    %v3256 = vunpack.c.h.b16 %v2242
    %v3257 = vunpack.c.l.b16 %v2243
    %v3258 = vunpack.c.h.b16 %v2243
    %v3259 = vunpack.c.l.b16 %v2244
    %v3260 = vunpack.c.h.b16 %v2244
    %v3261 = vunpack.c.l.b16 %v2245
    %v3262 = vunpack.c.h.b16 %v2245
    %v3263 = vunpack.c.l.b16 %v2246
    %v3264 = vunpack.c.h.b16 %v2246
    %v3265 = vunpack.c.l.b16 %v2247
    %v3266 = vunpack.c.h.b16 %v2247
    %v3267 = vunpack.c.l.b16 %v2248
    %v3268 = vunpack.c.h.b16 %v2248
    %v3269 = vunpack.c.l.b16 %v2249
    %v3270 = vunpack.c.h.b16 %v2249
    %v3271 = vunpack.c.l.b16 %v2250
    %v3272 = vunpack.c.h.b16 %v2250
    %v3273 = vunpack.c.l.b16 %v2251
    %v3274 = vunpack.c.h.b16 %v2251
    %v3275 = vunpack.c.l.b16 %v2252
    %v3276 = vunpack.c.h.b16 %v2252
    %v3277 = vunpack.c.l.b16 %v2253
    %v3278 = vunpack.c.h.b16 %v2253
    %v3279 = vunpack.c.l.b16 %v2254
    %v3280 = vunpack.c.h.b16 %v2254
    %v3281 = vunpack.c.l.b16 %v2255
    %v3282 = vunpack.c.h.b16 %v2255
    %v3283 = vunpack.c.l.b16 %v2256
    %v3284 = vunpack.c.h.b16 %v2256
    %v3285 = vunpack.c.l.b16 %v2257
    %v3286 = vunpack.c.h.b16 %v2257
    %v3287 = vunpack.c.l.b16 %v2258
    %v3288 = vunpack.c.h.b16 %v2258
    %v3289 = vunpack.c.l.b16 %v2259
    %v3290 = vunpack.c.h.b16 %v2259
    %v3291 = vunpack.c.l.b16 %v2260
    %v3292 = vunpack.c.h.b16 %v2260
    %v3293 = vunpack.c.l.b16 %v2261
    %v3294 = vunpack.c.h.b16 %v2261
    %v3295 = vunpack.c.l.b16 %v2262
    %v3296 = vunpack.c.h.b16 %v2262
    %v3297 = vunpack.c.l.b16 %v2263
    %v3298 = vunpack.c.h.b16 %v2263
    %v3299 = vunpack.c.l.b16 %v2264
    %v3300 = vunpack.c.h.b16 %v2264
    %v3301 = vunpack.c.l.b16 %v2265
    %v3302 = vunpack.c.h.b16 %v2265
    %v3303 = vunpack.c.l.b16 %v2266
    %v3304 = vunpack.c.h.b16 %v2266
    %v3305 = vunpack.c.l.b16 %v2267
    %v3306 = vunpack.c.h.b16 %v2267
    %v3307 = vunpack.c.l.b16 %v2268
    %v3308 = vunpack.c.h.b16 %v2268
    %v3309 = vunpack.c.l.b16 %v2269
    %v3310 = vunpack.c.h.b16 %v2269
    %v3311 = vunpack.c.l.b16 %v2270
    %v3312 = vunpack.c.h.b16 %v2270
    %v3313 = vunpack.c.l.b16 %v2271
    %v3314 = vunpack.c.h.b16 %v2271
    %v3315 = vunpack.c.l.b16 %v2272
    %v3316 = vunpack.c.h.b16 %v2272
    %v3317 = vunpack.c.l.b16 %v2273
    %v3318 = vunpack.c.h.b16 %v2273
    %v3319 = vunpack.c.l.b16 %v2274
    %v3320 = vunpack.c.h.b16 %v2274
    %v3321 = vunpack.c.l.b16 %v2275
    %v3322 = vunpack.c.h.b16 %v2275
    %v3323 = vunpack.c.l.b16 %v2276
    %v3324 = vunpack.c.h.b16 %v2276
    %v3325 = vunpack.c.l.b16 %v2277
    %v3326 = vunpack.c.h.b16 %v2277
    %v3327 = vunpack.c.l.b16 %v2278
    %v3328 = vunpack.c.h.b16 %v2278
    %v3329 = vunpack.c.l.b16 %v2279
    %v3330 = vunpack.c.h.b16 %v2279
    %v3331 = vunpack.c.l.b16 %v2280
    %v3332 = vunpack.c.h.b16 %v2280
    %v3333 = vunpack.c.l.b16 %v2281
    %v3334 = vunpack.c.h.b16 %v2281
    %v3335 = vunpack.c.l.b16 %v2282
    %v3336 = vunpack.c.h.b16 %v2282
    %v3337 = vunpack.c.l.b16 %v2283
    %v3338 = vunpack.c.h.b16 %v2283
    %v3339 = vunpack.c.l.b16 %v2284
    %v3340 = vunpack.c.h.b16 %v2284
    %v3341 = vunpack.c.l.b16 %v2285
    %v3342 = vunpack.c.h.b16 %v2285
    %v3343 = vunpack.c.l.b16 %v2286
    %v3344 = vunpack.c.h.b16 %v2286
    %v3345 = vunpack.c.l.b16 %v2287
    %v3346 = vunpack.c.h.b16 %v2287
    %v3347 = vunpack.c.l.b16 %v2288
    %v3348 = vunpack.c.h.b16 %v2288
    %v3349 = vunpack.c.l.b16 %v2289
    %v3350 = vunpack.c.h.b16 %v2289
    %v3351 = vunpack.c.l.b16 %v2290
    %v3352 = vunpack.c.h.b16 %v2290
    %v3353 = vunpack.c.l.b16 %v2291
    %v3354 = vunpack.c.h.b16 %v2291
    %v3355 = vunpack.c.l.b16 %v2292
    %v3356 = vunpack.c.h.b16 %v2292
    %v3357 = vunpack.c.l.b16 %v2293
    %v3358 = vunpack.c.h.b16 %v2293
    %v3359 = vunpack.c.l.b16 %v2294
    %v3360 = vunpack.c.h.b16 %v2294
    %v3361 = vunpack.c.l.b16 %v2295
    %v3362 = vunpack.c.h.b16 %v2295
    %v3363 = vunpack.c.l.b16 %v2296
    %v3364 = vunpack.c.h.b16 %v2296
    %v3365 = vunpack.c.l.b16 %v2297
    %v3366 = vunpack.c.h.b16 %v2297
    %v3367 = vunpack.c.l.b16 %v2298
    %v3368 = vunpack.c.h.b16 %v2298
    %v3369 = vunpack.c.l.b16 %v2299
    %v3370 = vunpack.c.h.b16 %v2299
    %v3371 = vunpack.c.l.b16 %v2300
    %v3372 = vunpack.c.h.b16 %v2300
    %v3373 = vunpack.c.l.b16 %v2301
    %v3374 = vunpack.c.h.b16 %v2301
    %v3375 = vunpack.c.l.b16 %v2302
    %v3376 = vunpack.c.h.b16 %v2302
    %v3377 = vunpack.c.l.b16 %v2303
    %v3378 = vunpack.c.h.b16 %v2303
    %v3379 = vunpack.c.l.b16 %v2304
    %v3380 = vunpack.c.h.b16 %v2304
    %v3381 = vunpack.c.l.b16 %v2305
    %v3382 = vunpack.c.h.b16 %v2305
    %v3383 = vunpack.c.l.b16 %v2306
    %v3384 = vunpack.c.h.b16 %v2306
    %v3385 = vunpack.c.l.b16 %v2307
    %v3386 = vunpack.c.h.b16 %v2307
    %v3387 = vunpack.c.l.b16 %v2308
    %v3388 = vunpack.c.h.b16 %v2308
    %v3389 = vunpack.c.l.b16 %v2309
    %v3390 = vunpack.c.h.b16 %v2309
    %v3391 = vunpack.c.l.b16 %v2310
    %v3392 = vunpack.c.h.b16 %v2310
    %v3393 = vunpack.c.l.b16 %v2311
    %v3394 = vunpack.c.h.b16 %v2311
    %v3395 = vunpack.c.l.b16 %v2312
    %v3396 = vunpack.c.h.b16 %v2312
    %v3397 = vunpack.c.l.b16 %v2313
    %v3398 = vunpack.c.h.b16 %v2313
    %v3399 = vunpack.c.l.b16 %v2314
    %v3400 = vunpack.c.h.b16 %v2314
    %v3401 = vunpack.c.l.b16 %v2315
    %v3402 = vunpack.c.h.b16 %v2315
    %v3403 = vunpack.c.l.b16 %v2316
    %v3404 = vunpack.c.h.b16 %v2316
    %v3405 = vunpack.c.l.b16 %v2317
    %v3406 = vunpack.c.h.b16 %v2317
    %v3407 = vunpack.c.l.b16 %v2318
    %v3408 = vunpack.c.h.b16 %v2318
    %v3409 = vunpack.c.l.b16 %v2319
    %v3410 = vunpack.c.h.b16 %v2319
    %v3411 = vunpack.c.l.b16 %v2320
    %v3412 = vunpack.c.h.b16 %v2320
    %v3413 = vunpack.c.l.b16 %v2321
    %v3414 = vunpack.c.h.b16 %v2321
    %v3415 = vunpack.c.l.b16 %v2322
    %v3416 = vunpack.c.h.b16 %v2322
    %v3417 = vunpack.c.l.b16 %v2323
    %v3418 = vunpack.c.h.b16 %v2323
    %v3419 = vunpack.c.l.b16 %v2324
    %v3420 = vunpack.c.h.b16 %v2324
    %v3421 = vunpack.c.l.b16 %v2325
    %v3422 = vunpack.c.h.b16 %v2325
    %v3423 = vunpack.c.l.b16 %v2326
    %v3424 = vunpack.c.h.b16 %v2326
    %v3425 = vunpack.c.l.b16 %v2327
    %v3426 = vunpack.c.h.b16 %v2327
    %v3427 = vunpack.c.l.b16 %v2328
    %v3428 = vunpack.c.h.b16 %v2328
    %v3429 = vunpack.c.l.b16 %v2329
    %v3430 = vunpack.c.h.b16 %v2329
    %v3431 = vunpack.c.l.b16 %v2330
    %v3432 = vunpack.c.h.b16 %v2330
    %v3433 = vunpack.c.l.b16 %v2331
    %v3434 = vunpack.c.h.b16 %v2331
    %v3435 = vunpack.c.l.b16 %v2332
    %v3436 = vunpack.c.h.b16 %v2332
    %v3437 = vunpack.c.l.b16 %v2333
    %v3438 = vunpack.c.h.b16 %v2333
    %v3439 = vunpack.c.l.b16 %v2334
    %v3440 = vunpack.c.h.b16 %v2334
    %v3441 = vunpack.c.l.b16 %v2335
    %v3442 = vunpack.c.h.b16 %v2335
    %v3443 = vunpack.c.l.b16 %v2336
    %v3444 = vunpack.c.h.b16 %v2336
    %v3445 = vunpack.c.l.b16 %v2337
    %v3446 = vunpack.c.h.b16 %v2337
    %v3447 = vunpack.c.l.b16 %v2338
    %v3448 = vunpack.c.h.b16 %v2338
    %v3449 = vunpack.c.l.b16 %v2339
    %v3450 = vunpack.c.h.b16 %v2339
    %v3451 = vunpack.c.l.b16 %v2340
    %v3452 = vunpack.c.h.b16 %v2340
    %v3453 = vunpack.c.l.b16 %v2341
    %v3454 = vunpack.c.h.b16 %v2341
    %v3455 = vunpack.c.l.b16 %v2342
    %v3456 = vunpack.c.h.b16 %v2342
    %v3457 = vunpack.c.l.b16 %v2343
    %v3458 = vunpack.c.h.b16 %v2343
    %v3459 = vunpack.c.l.b16 %v2344
    %v3460 = vunpack.c.h.b16 %v2344
    %v3461 = vunpack.c.l.b16 %v2345
    %v3462 = vunpack.c.h.b16 %v2345
    %v3463 = vunpack.c.l.b16 %v2346
    %v3464 = vunpack.c.h.b16 %v2346
    %v3465 = vunpack.c.l.b16 %v2347
    %v3466 = vunpack.c.h.b16 %v2347
    %v3467 = vunpack.c.l.b16 %v2348
    %v3468 = vunpack.c.h.b16 %v2348
    %v3469 = vunpack.c.l.b16 %v2349
    %v3470 = vunpack.c.h.b16 %v2349
    %v3471 = vunpack.c.l.b16 %v2350
    %v3472 = vunpack.c.h.b16 %v2350
    %v3473 = vunpack.c.l.b16 %v2351
    %v3474 = vunpack.c.h.b16 %v2351
    %v3475 = vunpack.c.l.b16 %v2352
    %v3476 = vunpack.c.h.b16 %v2352
    %v3477 = vunpack.c.l.b16 %v2353
    %v3478 = vunpack.c.h.b16 %v2353
    %v3479 = vunpack.c.l.b16 %v2354
    %v3480 = vunpack.c.h.b16 %v2354
    %v3481 = vunpack.c.l.b16 %v2355
    %v3482 = vunpack.c.h.b16 %v2355
    %v3483 = vunpack.c.l.b16 %v2356
    %v3484 = vunpack.c.h.b16 %v2356
    %v3485 = vunpack.c.l.b16 %v2357
    %v3486 = vunpack.c.h.b16 %v2357
    %v3487 = vunpack.c.l.b16 %v2358
    %v3488 = vunpack.c.h.b16 %v2358
    %v3489 = vunpack.c.l.b16 %v2359
    %v3490 = vunpack.c.h.b16 %v2359
    %v3491 = vunpack.c.l.b16 %v2360
    %v3492 = vunpack.c.h.b16 %v2360
    %v3493 = vunpack.c.l.b16 %v2361
    %v3494 = vunpack.c.h.b16 %v2361
    %v3495 = vunpack.c.l.b16 %v2362
    %v3496 = vunpack.c.h.b16 %v2362
    %v3497 = vunpack.c.l.b16 %v2363
    %v3498 = vunpack.c.h.b16 %v2363
    %v3499 = vunpack.c.l.b16 %v2364
    %v3500 = vunpack.c.h.b16 %v2364
    %v3501 = vunpack.c.l.b16 %v2365
    %v3502 = vunpack.c.h.b16 %v2365
    %v3503 = vunpack.c.l.b16 %v2366
    %v3504 = vunpack.c.h.b16 %v2366
    %v3505 = vunpack.c.l.b16 %v2367
    %v3506 = vunpack.c.h.b16 %v2367
    %v3507 = vunpack.c.l.b16 %v2368
    %v3508 = vunpack.c.h.b16 %v2368
    %v3509 = vunpack.c.l.b16 %v2369
    %v3510 = vunpack.c.h.b16 %v2369
    %v3511 = vunpack.c.l.b16 %v2370
    %v3512 = vunpack.c.h.b16 %v2370
    %v3513 = vunpack.c.l.b16 %v2371
    %v3514 = vunpack.c.h.b16 %v2371
    %v3515 = vunpack.c.l.b16 %v2372
    %v3516 = vunpack.c.h.b16 %v2372
    %v3517 = vunpack.c.l.b16 %v2373
    %v3518 = vunpack.c.h.b16 %v2373
    %v3519 = vunpack.c.l.b16 %v2374
    %v3520 = vunpack.c.h.b16 %v2374
    %v3521 = vunpack.c.l.b16 %v2375
    %v3522 = vunpack.c.h.b16 %v2375
    %v3523 = vunpack.c.l.b16 %v2376
    %v3524 = vunpack.c.h.b16 %v2376
    %v3525 = vunpack.c.l.b16 %v2377
    %v3526 = vunpack.c.h.b16 %v2377
    %v3527 = vunpack.c.l.b16 %v2378
    %v3528 = vunpack.c.h.b16 %v2378
    %v3529 = vunpack.c.l.b16 %v2379
    %v3530 = vunpack.c.h.b16 %v2379
    %v3531 = vunpack.c.l.b16 %v2380
    %v3532 = vunpack.c.h.b16 %v2380
    %v3533 = vunpack.c.l.b16 %v2381
    %v3534 = vunpack.c.h.b16 %v2381
    %v3535 = vunpack.c.l.b16 %v2382
    %v3536 = vunpack.c.h.b16 %v2382
    %v3537 = vunpack.c.l.b16 %v2383
    %v3538 = vunpack.c.h.b16 %v2383
    %v3539 = vunpack.c.l.b16 %v2384
    %v3540 = vunpack.c.h.b16 %v2384
    %v3541 = vunpack.c.l.b16 %v2385
    %v3542 = vunpack.c.h.b16 %v2385
    %v3543 = vunpack.c.l.b16 %v2386
    %v3544 = vunpack.c.h.b16 %v2386
    %v3545 = vunpack.c.l.b16 %v2387
    %v3546 = vunpack.c.h.b16 %v2387
    %v3547 = vunpack.c.l.b16 %v2388
    %v3548 = vunpack.c.h.b16 %v2388
    %v3549 = vunpack.c.l.b16 %v2389
    %v3550 = vunpack.c.h.b16 %v2389
    %v3551 = vunpack.c.l.b16 %v2390
    %v3552 = vunpack.c.h.b16 %v2390
    %v3553 = vunpack.c.l.b16 %v2391
    %v3554 = vunpack.c.h.b16 %v2391
    %v3555 = vunpack.c.l.b16 %v2392
    %v3556 = vunpack.c.h.b16 %v2392
    %v3557 = vunpack.c.l.b16 %v2393
    %v3558 = vunpack.c.h.b16 %v2393
    %v3559 = vunpack.c.l.b16 %v2394
    %v3560 = vunpack.c.h.b16 %v2394
    %v3561 = vunpack.c.l.b16 %v2395
    %v3562 = vunpack.c.h.b16 %v2395
    %v3563 = vunpack.c.l.b16 %v2396
    %v3564 = vunpack.c.h.b16 %v2396
    %v3565 = vunpack.c.l.b16 %v2397
    %v3566 = vunpack.c.h.b16 %v2397
    %v3567 = vunpack.c.l.b16 %v2398
    %v3568 = vunpack.c.h.b16 %v2398
    %v3569 = vunpack.c.l.b16 %v2399
    %v3570 = vunpack.c.h.b16 %v2399
    %v3571 = vunpack.c.l.b16 %v2400
    %v3572 = vunpack.c.h.b16 %v2400
    %v3573 = vunpack.c.l.b16 %v2401
    %v3574 = vunpack.c.h.b16 %v2401
    %v3575 = vunpack.c.l.b16 %v2402
    %v3576 = vunpack.c.h.b16 %v2402
    %v3577 = vunpack.c.l.b16 %v2403
    %v3578 = vunpack.c.h.b16 %v2403
    %v3579 = vunpack.c.l.b16 %v2404
    %v3580 = vunpack.c.h.b16 %v2404
    %v3581 = vunpack.c.l.b16 %v2405
    %v3582 = vunpack.c.h.b16 %v2405
    %v3583 = vunpack.c.l.b16 %v2406
    %v3584 = vunpack.c.h.b16 %v2406
    %v3585 = vunpack.c.l.b16 %v2407
    %v3586 = vunpack.c.h.b16 %v2407
    %v3587 = vunpack.c.l.b16 %v2408
    %v3588 = vunpack.c.h.b16 %v2408
    %v3589 = vunpack.c.l.b16 %v2409
    %v3590 = vunpack.c.h.b16 %v2409
    %v3591 = vunpack.c.l.b16 %v2410
    %v3592 = vunpack.c.h.b16 %v2410
    %v3593 = vunpack.c.l.b16 %v2411
    %v3594 = vunpack.c.h.b16 %v2411
    %v3595 = vunpack.c.l.b16 %v2412
    %v3596 = vunpack.c.h.b16 %v2412
    %v3597 = vunpack.c.l.b16 %v2413
    %v3598 = vunpack.c.h.b16 %v2413
    %v3599 = vunpack.c.l.b16 %v2414
    %v3600 = vunpack.c.h.b16 %v2414
    %v3601 = vunpack.c.l.b16 %v2415
    %v3602 = vunpack.c.h.b16 %v2415
    %v3603 = vunpack.c.l.b16 %v2416
    %v3604 = vunpack.c.h.b16 %v2416
    %v3605 = vunpack.c.l.b16 %v2417
    %v3606 = vunpack.c.h.b16 %v2417
    %v3607 = vunpack.c.l.b16 %v2418
    %v3608 = vunpack.c.h.b16 %v2418
    %v3609 = vunpack.c.l.b16 %v2419
    %v3610 = vunpack.c.h.b16 %v2419
    %v3611 = vunpack.c.l.b16 %v2420
    %v3612 = vunpack.c.h.b16 %v2420
    %v3613 = vunpack.c.l.b16 %v2421
    %v3614 = vunpack.c.h.b16 %v2421
    %v3615 = vunpack.c.l.b16 %v2422
    %v3616 = vunpack.c.h.b16 %v2422
    %v3617 = vunpack.c.l.b16 %v2423
    %v3618 = vunpack.c.h.b16 %v2423
    %v3619 = vunpack.c.l.b16 %v2424
    %v3620 = vunpack.c.h.b16 %v2424
    %v3621 = vunpack.c.l.b16 %v2425
    %v3622 = vunpack.c.h.b16 %v2425
    %v3623 = vunpack.c.l.b16 %v2426
    %v3624 = vunpack.c.h.b16 %v2426
    %v3625 = vunpack.c.l.b16 %v2427
    %v3626 = vunpack.c.h.b16 %v2427
    %v3627 = vunpack.c.l.b16 %v2428
    %v3628 = vunpack.c.h.b16 %v2428
    %v3629 = vpack.c.b16 %v2869, %v2861
    %v3630 = vpack.c.b16 %v2870, %v2862
    %v3631 = vpack.c.b16 %v2871, %v2863
    %v3632 = vpack.c.b16 %v2872, %v2864
    %v3633 = vpack.c.b16 %v2873, %v2865
    %v3634 = vpack.c.b16 %v2874, %v2866
    %v3635 = vpack.c.b16 %v2875, %v2867
    %v3636 = vpack.c.b16 %v2876, %v2868
    %v3637 = vpack.c.b16 %v2885, %v2877
    %v3638 = vpack.c.b16 %v2886, %v2878
    %v3639 = vpack.c.b16 %v2887, %v2879
    %v3640 = vpack.c.b16 %v2888, %v2880
    %v3641 = vpack.c.b16 %v2889, %v2881
    %v3642 = vpack.c.b16 %v2890, %v2882
    %v3643 = vpack.c.b16 %v2891, %v2883
    %v3644 = vpack.c.b16 %v2892, %v2884
    %v3645 = vpack.c.b16 %v2901, %v2893
    %v3646 = vpack.c.b16 %v2902, %v2894
    %v3647 = vpack.c.b16 %v2903, %v2895
    %v3648 = vpack.c.b16 %v2904, %v2896
    %v3649 = vpack.c.b16 %v2905, %v2897
    %v3650 = vpack.c.b16 %v2906, %v2898
    %v3651 = vpack.c.b16 %v2907, %v2899
    %v3652 = vpack.c.b16 %v2908, %v2900
    %v3653 = vpack.c.b16 %v2917, %v2909
    %v3654 = vpack.c.b16 %v2918, %v2910
    %v3655 = vpack.c.b16 %v2919, %v2911
    %v3656 = vpack.c.b16 %v2920, %v2912
    %v3657 = vpack.c.b16 %v2921, %v2913
    %v3658 = vpack.c.b16 %v2922, %v2914
    %v3659 = vpack.c.b16 %v2923, %v2915
    %v3660 = vpack.c.b16 %v2924, %v2916
    %v3661 = vpack.c.b16 %v2933, %v2925
    %v3662 = vpack.c.b16 %v2934, %v2926
    %v3663 = vpack.c.b16 %v2935, %v2927
    %v3664 = vpack.c.b16 %v2936, %v2928
    %v3665 = vpack.c.b16 %v2937, %v2929
    %v3666 = vpack.c.b16 %v2938, %v2930
    %v3667 = vpack.c.b16 %v2939, %v2931
    %v3668 = vpack.c.b16 %v2940, %v2932
    %v3669 = vpack.c.b16 %v2949, %v2941
    %v3670 = vpack.c.b16 %v2950, %v2942
    %v3671 = vpack.c.b16 %v2951, %v2943
    %v3672 = vpack.c.b16 %v2952, %v2944
    %v3673 = vpack.c.b16 %v2953, %v2945
    %v3674 = vpack.c.b16 %v2954, %v2946
    %v3675 = vpack.c.b16 %v2955, %v2947
    %v3676 = vpack.c.b16 %v2956, %v2948
    %v3677 = vpack.c.b16 %v2965, %v2957
    %v3678 = vpack.c.b16 %v2966, %v2958
    %v3679 = vpack.c.b16 %v2967, %v2959
    %v3680 = vpack.c.b16 %v2968, %v2960
    %v3681 = vpack.c.b16 %v2969, %v2961
    %v3682 = vpack.c.b16 %v2970, %v2962
    %v3683 = vpack.c.b16 %v2971, %v2963
    %v3684 = vpack.c.b16 %v2972, %v2964
    %v3685 = vpack.c.b16 %v2981, %v2973
    %v3686 = vpack.c.b16 %v2982, %v2974
    %v3687 = vpack.c.b16 %v2983, %v2975
    %v3688 = vpack.c.b16 %v2984, %v2976
    %v3689 = vpack.c.b16 %v2985, %v2977
    %v3690 = vpack.c.b16 %v2986, %v2978
    %v3691 = vpack.c.b16 %v2987, %v2979
    %v3692 = vpack.c.b16 %v2988, %v2980
    %v3693 = vpack.c.b16 %v2997, %v2989
    %v3694 = vpack.c.b16 %v2998, %v2990
    %v3695 = vpack.c.b16 %v2999, %v2991
    %v3696 = vpack.c.b16 %v3000, %v2992
    %v3697 = vpack.c.b16 %v3001, %v2993
    %v3698 = vpack.c.b16 %v3002, %v2994
    %v3699 = vpack.c.b16 %v3003, %v2995
    %v3700 = vpack.c.b16 %v3004, %v2996
    %v3701 = vpack.c.b16 %v3013, %v3005
    %v3702 = vpack.c.b16 %v3014, %v3006
    %v3703 = vpack.c.b16 %v3015, %v3007
    %v3704 = vpack.c.b16 %v3016, %v3008
    %v3705 = vpack.c.b16 %v3017, %v3009
    %v3706 = vpack.c.b16 %v3018, %v3010
    %v3707 = vpack.c.b16 %v3019, %v3011
    %v3708 = vpack.c.b16 %v3020, %v3012
    %v3709 = vpack.c.b16 %v3029, %v3021
    %v3710 = vpack.c.b16 %v3030, %v3022
    %v3711 = vpack.c.b16 %v3031, %v3023
    %v3712 = vpack.c.b16 %v3032, %v3024
    %v3713 = vpack.c.b16 %v3033, %v3025
    %v3714 = vpack.c.b16 %v3034, %v3026
    %v3715 = vpack.c.b16 %v3035, %v3027
    %v3716 = vpack.c.b16 %v3036, %v3028
    %v3717 = vpack.c.b16 %v3045, %v3037
    %v3718 = vpack.c.b16 %v3046, %v3038
    %v3719 = vpack.c.b16 %v3047, %v3039
    %v3720 = vpack.c.b16 %v3048, %v3040
    %v3721 = vpack.c.b16 %v3049, %v3041
    %v3722 = vpack.c.b16 %v3050, %v3042
    %v3723 = vpack.c.b16 %v3051, %v3043
    %v3724 = vpack.c.b16 %v3052, %v3044
    %v3725 = vpack.c.b16 %v3061, %v3053
    %v3726 = vpack.c.b16 %v3062, %v3054
    %v3727 = vpack.c.b16 %v3063, %v3055
    %v3728 = vpack.c.b16 %v3064, %v3056
    %v3729 = vpack.c.b16 %v3065, %v3057
    %v3730 = vpack.c.b16 %v3066, %v3058
    %v3731 = vpack.c.b16 %v3067, %v3059
    %v3732 = vpack.c.b16 %v3068, %v3060
    %v3733 = vpack.c.b16 %v3077, %v3069
    %v3734 = vpack.c.b16 %v3078, %v3070
    %v3735 = vpack.c.b16 %v3079, %v3071
    %v3736 = vpack.c.b16 %v3080, %v3072
    %v3737 = vpack.c.b16 %v3081, %v3073
    %v3738 = vpack.c.b16 %v3082, %v3074
    %v3739 = vpack.c.b16 %v3083, %v3075
    %v3740 = vpack.c.b16 %v3084, %v3076
    %v3741 = vpack.c.b16 %v3093, %v3085
    %v3742 = vpack.c.b16 %v3094, %v3086
    %v3743 = vpack.c.b16 %v3095, %v3087
    %v3744 = vpack.c.b16 %v3096, %v3088
    %v3745 = vpack.c.b16 %v3097, %v3089
    %v3746 = vpack.c.b16 %v3098, %v3090
    %v3747 = vpack.c.b16 %v3099, %v3091
    %v3748 = vpack.c.b16 %v3100, %v3092
    %v3749 = vpack.c.b16 %v3109, %v3101
    %v3750 = vpack.c.b16 %v3110, %v3102
    %v3751 = vpack.c.b16 %v3111, %v3103
    %v3752 = vpack.c.b16 %v3112, %v3104
    %v3753 = vpack.c.b16 %v3113, %v3105
    %v3754 = vpack.c.b16 %v3114, %v3106
    %v3755 = vpack.c.b16 %v3115, %v3107
    %v3756 = vpack.c.b16 %v3116, %v3108
    %v3757 = vpack.c.b16 %v3125, %v3117
    %v3758 = vpack.c.b16 %v3126, %v3118
    %v3759 = vpack.c.b16 %v3127, %v3119
    %v3760 = vpack.c.b16 %v3128, %v3120
    %v3761 = vpack.c.b16 %v3129, %v3121
    %v3762 = vpack.c.b16 %v3130, %v3122
    %v3763 = vpack.c.b16 %v3131, %v3123
    %v3764 = vpack.c.b16 %v3132, %v3124
    %v3765 = vpack.c.b16 %v3141, %v3133
    %v3766 = vpack.c.b16 %v3142, %v3134
    %v3767 = vpack.c.b16 %v3143, %v3135
    %v3768 = vpack.c.b16 %v3144, %v3136
    %v3769 = vpack.c.b16 %v3145, %v3137
    %v3770 = vpack.c.b16 %v3146, %v3138
    %v3771 = vpack.c.b16 %v3147, %v3139
    %v3772 = vpack.c.b16 %v3148, %v3140
    %v3773 = vpack.c.b16 %v3157, %v3149
    %v3774 = vpack.c.b16 %v3158, %v3150
    %v3775 = vpack.c.b16 %v3159, %v3151
    %v3776 = vpack.c.b16 %v3160, %v3152
    %v3777 = vpack.c.b16 %v3161, %v3153
    %v3778 = vpack.c.b16 %v3162, %v3154
    %v3779 = vpack.c.b16 %v3163, %v3155
    %v3780 = vpack.c.b16 %v3164, %v3156
    %v3781 = vpack.c.b16 %v3173, %v3165
    %v3782 = vpack.c.b16 %v3174, %v3166
    %v3783 = vpack.c.b16 %v3175, %v3167
    %v3784 = vpack.c.b16 %v3176, %v3168
    %v3785 = vpack.c.b16 %v3177, %v3169
    %v3786 = vpack.c.b16 %v3178, %v3170
    %v3787 = vpack.c.b16 %v3179, %v3171
    %v3788 = vpack.c.b16 %v3180, %v3172
    %v3789 = vpack.c.b16 %v3189, %v3181
    %v3790 = vpack.c.b16 %v3190, %v3182
    %v3791 = vpack.c.b16 %v3191, %v3183
    %v3792 = vpack.c.b16 %v3192, %v3184
    %v3793 = vpack.c.b16 %v3193, %v3185
    %v3794 = vpack.c.b16 %v3194, %v3186
    %v3795 = vpack.c.b16 %v3195, %v3187
    %v3796 = vpack.c.b16 %v3196, %v3188
    %v3797 = vpack.c.b16 %v3205, %v3197
    %v3798 = vpack.c.b16 %v3206, %v3198
    %v3799 = vpack.c.b16 %v3207, %v3199
    %v3800 = vpack.c.b16 %v3208, %v3200
    %v3801 = vpack.c.b16 %v3209, %v3201
    %v3802 = vpack.c.b16 %v3210, %v3202
    %v3803 = vpack.c.b16 %v3211, %v3203
    %v3804 = vpack.c.b16 %v3212, %v3204
    %v3805 = vpack.c.b16 %v3221, %v3213
    %v3806 = vpack.c.b16 %v3222, %v3214
    %v3807 = vpack.c.b16 %v3223, %v3215
    %v3808 = vpack.c.b16 %v3224, %v3216
    %v3809 = vpack.c.b16 %v3225, %v3217
    %v3810 = vpack.c.b16 %v3226, %v3218
    %v3811 = vpack.c.b16 %v3227, %v3219
    %v3812 = vpack.c.b16 %v3228, %v3220
    %v3813 = vpack.c.b16 %v3237, %v3229
    %v3814 = vpack.c.b16 %v3238, %v3230
    %v3815 = vpack.c.b16 %v3239, %v3231
    %v3816 = vpack.c.b16 %v3240, %v3232
    %v3817 = vpack.c.b16 %v3241, %v3233
    %v3818 = vpack.c.b16 %v3242, %v3234
    %v3819 = vpack.c.b16 %v3243, %v3235
    %v3820 = vpack.c.b16 %v3244, %v3236
    %v3821 = vpack.c.b16 %v3253, %v3245
    %v3822 = vpack.c.b16 %v3254, %v3246
    %v3823 = vpack.c.b16 %v3255, %v3247
    %v3824 = vpack.c.b16 %v3256, %v3248
    %v3825 = vpack.c.b16 %v3257, %v3249
    %v3826 = vpack.c.b16 %v3258, %v3250
    %v3827 = vpack.c.b16 %v3259, %v3251
    %v3828 = vpack.c.b16 %v3260, %v3252
    %v3829 = vpack.c.b16 %v3269, %v3261
    %v3830 = vpack.c.b16 %v3270, %v3262
    %v3831 = vpack.c.b16 %v3271, %v3263
    %v3832 = vpack.c.b16 %v3272, %v3264
    %v3833 = vpack.c.b16 %v3273, %v3265
    %v3834 = vpack.c.b16 %v3274, %v3266
    %v3835 = vpack.c.b16 %v3275, %v3267
    %v3836 = vpack.c.b16 %v3276, %v3268
    %v3837 = vpack.c.b16 %v3285, %v3277
    %v3838 = vpack.c.b16 %v3286, %v3278
    %v3839 = vpack.c.b16 %v3287, %v3279
    %v3840 = vpack.c.b16 %v3288, %v3280
    %v3841 = vpack.c.b16 %v3289, %v3281
    %v3842 = vpack.c.b16 %v3290, %v3282
    %v3843 = vpack.c.b16 %v3291, %v3283
    %v3844 = vpack.c.b16 %v3292, %v3284
    %v3845 = vpack.c.b16 %v3301, %v3293
    %v3846 = vpack.c.b16 %v3302, %v3294
    %v3847 = vpack.c.b16 %v3303, %v3295
    %v3848 = vpack.c.b16 %v3304, %v3296
    %v3849 = vpack.c.b16 %v3305, %v3297
    %v3850 = vpack.c.b16 %v3306, %v3298
    %v3851 = vpack.c.b16 %v3307, %v3299
    %v3852 = vpack.c.b16 %v3308, %v3300
    %v3853 = vpack.c.b16 %v3317, %v3309
    %v3854 = vpack.c.b16 %v3318, %v3310
    %v3855 = vpack.c.b16 %v3319, %v3311
    %v3856 = vpack.c.b16 %v3320, %v3312
    %v3857 = vpack.c.b16 %v3321, %v3313
    %v3858 = vpack.c.b16 %v3322, %v3314
    %v3859 = vpack.c.b16 %v3323, %v3315
    %v3860 = vpack.c.b16 %v3324, %v3316
    %v3861 = vpack.c.b16 %v3333, %v3325
    %v3862 = vpack.c.b16 %v3334, %v3326
    %v3863 = vpack.c.b16 %v3335, %v3327
    %v3864 = vpack.c.b16 %v3336, %v3328
    %v3865 = vpack.c.b16 %v3337, %v3329
    %v3866 = vpack.c.b16 %v3338, %v3330
    %v3867 = vpack.c.b16 %v3339, %v3331
    %v3868 = vpack.c.b16 %v3340, %v3332
    %v3869 = vpack.c.b16 %v3349, %v3341
    %v3870 = vpack.c.b16 %v3350, %v3342
    %v3871 = vpack.c.b16 %v3351, %v3343
    %v3872 = vpack.c.b16 %v3352, %v3344
    %v3873 = vpack.c.b16 %v3353, %v3345
    %v3874 = vpack.c.b16 %v3354, %v3346
    %v3875 = vpack.c.b16 %v3355, %v3347
    %v3876 = vpack.c.b16 %v3356, %v3348
    %v3877 = vpack.c.b16 %v3365, %v3357
    %v3878 = vpack.c.b16 %v3366, %v3358
    %v3879 = vpack.c.b16 %v3367, %v3359
    %v3880 = vpack.c.b16 %v3368, %v3360
    %v3881 = vpack.c.b16 %v3369, %v3361
    %v3882 = vpack.c.b16 %v3370, %v3362
    %v3883 = vpack.c.b16 %v3371, %v3363
    %v3884 = vpack.c.b16 %v3372, %v3364
    %v3885 = vpack.c.b16 %v3381, %v3373
    %v3886 = vpack.c.b16 %v3382, %v3374
    %v3887 = vpack.c.b16 %v3383, %v3375
    %v3888 = vpack.c.b16 %v3384, %v3376
    %v3889 = vpack.c.b16 %v3385, %v3377
    %v3890 = vpack.c.b16 %v3386, %v3378
    %v3891 = vpack.c.b16 %v3387, %v3379
    %v3892 = vpack.c.b16 %v3388, %v3380
    %v3893 = vpack.c.b16 %v3397, %v3389
    %v3894 = vpack.c.b16 %v3398, %v3390
    %v3895 = vpack.c.b16 %v3399, %v3391
    %v3896 = vpack.c.b16 %v3400, %v3392
    %v3897 = vpack.c.b16 %v3401, %v3393
    %v3898 = vpack.c.b16 %v3402, %v3394
    %v3899 = vpack.c.b16 %v3403, %v3395
    %v3900 = vpack.c.b16 %v3404, %v3396
    %v3901 = vpack.c.b16 %v3413, %v3405
    %v3902 = vpack.c.b16 %v3414, %v3406
    %v3903 = vpack.c.b16 %v3415, %v3407
    %v3904 = vpack.c.b16 %v3416, %v3408
    %v3905 = vpack.c.b16 %v3417, %v3409
    %v3906 = vpack.c.b16 %v3418, %v3410
    %v3907 = vpack.c.b16 %v3419, %v3411
    %v3908 = vpack.c.b16 %v3420, %v3412
    %v3909 = vpack.c.b16 %v3429, %v3421
    %v3910 = vpack.c.b16 %v3430, %v3422
    %v3911 = vpack.c.b16 %v3431, %v3423
    %v3912 = vpack.c.b16 %v3432, %v3424
    %v3913 = vpack.c.b16 %v3433, %v3425
    %v3914 = vpack.c.b16 %v3434, %v3426
    %v3915 = vpack.c.b16 %v3435, %v3427
    %v3916 = vpack.c.b16 %v3436, %v3428
    %v3917 = vpack.c.b16 %v3445, %v3437
    %v3918 = vpack.c.b16 %v3446, %v3438
    %v3919 = vpack.c.b16 %v3447, %v3439
    %v3920 = vpack.c.b16 %v3448, %v3440
    %v3921 = vpack.c.b16 %v3449, %v3441
    %v3922 = vpack.c.b16 %v3450, %v3442
    %v3923 = vpack.c.b16 %v3451, %v3443
    %v3924 = vpack.c.b16 %v3452, %v3444
    %v3925 = vpack.c.b16 %v3461, %v3453
    %v3926 = vpack.c.b16 %v3462, %v3454
    %v3927 = vpack.c.b16 %v3463, %v3455
    %v3928 = vpack.c.b16 %v3464, %v3456
    %v3929 = vpack.c.b16 %v3465, %v3457
    %v3930 = vpack.c.b16 %v3466, %v3458
    %v3931 = vpack.c.b16 %v3467, %v3459
    %v3932 = vpack.c.b16 %v3468, %v3460
    %v3933 = vpack.c.b16 %v3477, %v3469
    %v3934 = vpack.c.b16 %v3478, %v3470
    %v3935 = vpack.c.b16 %v3479, %v3471
    %v3936 = vpack.c.b16 %v3480, %v3472
    %v3937 = vpack.c.b16 %v3481, %v3473
    %v3938 = vpack.c.b16 %v3482, %v3474
    %v3939 = vpack.c.b16 %v3483, %v3475
    %v3940 = vpack.c.b16 %v3484, %v3476
    %v3941 = vpack.c.b16 %v3493, %v3485
    %v3942 = vpack.c.b16 %v3494, %v3486
    %v3943 = vpack.c.b16 %v3495, %v3487
    %v3944 = vpack.c.b16 %v3496, %v3488
    %v3945 = vpack.c.b16 %v3497, %v3489
    %v3946 = vpack.c.b16 %v3498, %v3490
    %v3947 = vpack.c.b16 %v3499, %v3491
    %v3948 = vpack.c.b16 %v3500, %v3492
    %v3949 = vpack.c.b16 %v3509, %v3501
    %v3950 = vpack.c.b16 %v3510, %v3502
    %v3951 = vpack.c.b16 %v3511, %v3503
    %v3952 = vpack.c.b16 %v3512, %v3504
    %v3953 = vpack.c.b16 %v3513, %v3505
    %v3954 = vpack.c.b16 %v3514, %v3506
    %v3955 = vpack.c.b16 %v3515, %v3507
    %v3956 = vpack.c.b16 %v3516, %v3508
    %v3957 = vpack.c.b16 %v3525, %v3517
    %v3958 = vpack.c.b16 %v3526, %v3518
    %v3959 = vpack.c.b16 %v3527, %v3519
    %v3960 = vpack.c.b16 %v3528, %v3520
    %v3961 = vpack.c.b16 %v3529, %v3521
    %v3962 = vpack.c.b16 %v3530, %v3522
    %v3963 = vpack.c.b16 %v3531, %v3523
    %v3964 = vpack.c.b16 %v3532, %v3524
    %v3965 = vpack.c.b16 %v3541, %v3533
    %v3966 = vpack.c.b16 %v3542, %v3534
    %v3967 = vpack.c.b16 %v3543, %v3535
    %v3968 = vpack.c.b16 %v3544, %v3536
    %v3969 = vpack.c.b16 %v3545, %v3537
    %v3970 = vpack.c.b16 %v3546, %v3538
    %v3971 = vpack.c.b16 %v3547, %v3539
    %v3972 = vpack.c.b16 %v3548, %v3540
    %v3973 = vpack.c.b16 %v3557, %v3549
    %v3974 = vpack.c.b16 %v3558, %v3550
    %v3975 = vpack.c.b16 %v3559, %v3551
    %v3976 = vpack.c.b16 %v3560, %v3552
    %v3977 = vpack.c.b16 %v3561, %v3553
    %v3978 = vpack.c.b16 %v3562, %v3554
    %v3979 = vpack.c.b16 %v3563, %v3555
    %v3980 = vpack.c.b16 %v3564, %v3556
    %v3981 = vpack.c.b16 %v3573, %v3565
    %v3982 = vpack.c.b16 %v3574, %v3566
    %v3983 = vpack.c.b16 %v3575, %v3567
    %v3984 = vpack.c.b16 %v3576, %v3568
    %v3985 = vpack.c.b16 %v3577, %v3569
    %v3986 = vpack.c.b16 %v3578, %v3570
    %v3987 = vpack.c.b16 %v3579, %v3571
    %v3988 = vpack.c.b16 %v3580, %v3572
    %v3989 = vpack.c.b16 %v3589, %v3581
    %v3990 = vpack.c.b16 %v3590, %v3582
    %v3991 = vpack.c.b16 %v3591, %v3583
    %v3992 = vpack.c.b16 %v3592, %v3584
    %v3993 = vpack.c.b16 %v3593, %v3585
    %v3994 = vpack.c.b16 %v3594, %v3586
    %v3995 = vpack.c.b16 %v3595, %v3587
    %v3996 = vpack.c.b16 %v3596, %v3588
    %v3997 = vpack.c.b16 %v3605, %v3597
    %v3998 = vpack.c.b16 %v3606, %v3598
    %v3999 = vpack.c.b16 %v3607, %v3599
    %v4000 = vpack.c.b16 %v3608, %v3600
    %v4001 = vpack.c.b16 %v3609, %v3601
    %v4002 = vpack.c.b16 %v3610, %v3602
    %v4003 = vpack.c.b16 %v3611, %v3603
    %v4004 = vpack.c.b16 %v3612, %v3604
    %v4005 = vpack.c.b16 %v3621, %v3613
    %v4006 = vpack.c.b16 %v3622, %v3614
    %v4007 = vpack.c.b16 %v3623, %v3615
    %v4008 = vpack.c.b16 %v3624, %v3616
    %v4009 = vpack.c.b16 %v3625, %v3617
    %v4010 = vpack.c.b16 %v3626, %v3618
    %v4011 = vpack.c.b16 %v3627, %v3619
    %v4012 = vpack.c.b16 %v3628, %v3620
    %4397 = vmatpush.bf16.msra.mxu0 %v3685
    %4398 = vmatpush.bf16.msra.mxu0 %v3677
    %4399 = vmatpush.bf16.msra.mxu0 %v3669
    %4400 = vmatpush.bf16.msra.mxu0 %v3661
    %4401 = vmatpush.bf16.msra.mxu0 %v3653
    %4402 = vmatpush.bf16.msra.mxu0 %v3645
    %4403 = vmatpush.bf16.msra.mxu0 %v3637
    %4404 = vmatpush.bf16.msra.mxu0 %v3629
    %4405 = vmatmul.bf16.gmra.mxu0 %v2465
    %v4406 = vpop.f32.mrf.mxu0
    %v4407 = vadd.f32 %v2431, %v4406
    %v4408 = vpop.f32.mrf.mxu0
    %v4409 = vadd.f32 %v2431, %v4408
    %4410 = vdwg.mxu0
    %4411 = vmatpush.bf16.msra.mxu0 %v3749
    %4412 = vmatpush.bf16.msra.mxu0 %v3741
    %4413 = vmatpush.bf16.msra.mxu0 %v3733
    %4414 = vmatpush.bf16.msra.mxu0 %v3725
    %4415 = vmatpush.bf16.msra.mxu0 %v3717
    %4416 = vmatpush.bf16.msra.mxu0 %v3709
    %4417 = vmatpush.bf16.msra.mxu0 %v3701
    %4418 = vmatpush.bf16.msra.mxu0 %v3693
    %4419 = vmatmul.bf16.gmra.mxu0 %v2466
    %v4420 = vpop.f32.mrf.mxu0
    %v4421 = vadd.f32 %v4407, %v4420
    %v4422 = vpop.f32.mrf.mxu0
    %v4423 = vadd.f32 %v4409, %v4422
    %4424 = vdwg.mxu0
    %4425 = vmatpush.bf16.msra.mxu0 %v3813
    %4426 = vmatpush.bf16.msra.mxu0 %v3805
    %4427 = vmatpush.bf16.msra.mxu0 %v3797
    %4428 = vmatpush.bf16.msra.mxu0 %v3789
    %4429 = vmatpush.bf16.msra.mxu0 %v3781
    %4430 = vmatpush.bf16.msra.mxu0 %v3773
    %4431 = vmatpush.bf16.msra.mxu0 %v3765
    %4432 = vmatpush.bf16.msra.mxu0 %v3757
    %4433 = vmatmul.bf16.gmra.mxu0 %v2467
    %v4434 = vpop.f32.mrf.mxu0
    %v4435 = vadd.f32 %v4421, %v4434
    %v4436 = vpop.f32.mrf.mxu0
    %v4437 = vadd.f32 %v4423, %v4436
    %4438 = vdwg.mxu0
    %4439 = vmatpush.bf16.msra.mxu0 %v3877
    %4440 = vmatpush.bf16.msra.mxu0 %v3869
    %4441 = vmatpush.bf16.msra.mxu0 %v3861
    %4442 = vmatpush.bf16.msra.mxu0 %v3853
    %4443 = vmatpush.bf16.msra.mxu0 %v3845
    %4444 = vmatpush.bf16.msra.mxu0 %v3837
    %4445 = vmatpush.bf16.msra.mxu0 %v3829
    %4446 = vmatpush.bf16.msra.mxu0 %v3821
    %4447 = vmatmul.bf16.gmra.mxu0 %v2468
    %v4448 = vpop.f32.mrf.mxu0
    %v4449 = vadd.f32 %v4435, %v4448
    %v4450 = vpop.f32.mrf.mxu0
    %v4451 = vadd.f32 %v4437, %v4450
    %4452 = vdwg.mxu0
    %4453 = vmatpush.bf16.msra.mxu0 %v3941
    %4454 = vmatpush.bf16.msra.mxu0 %v3933
    %4455 = vmatpush.bf16.msra.mxu0 %v3925
    %4456 = vmatpush.bf16.msra.mxu0 %v3917
    %4457 = vmatpush.bf16.msra.mxu0 %v3909
    %4458 = vmatpush.bf16.msra.mxu0 %v3901
    %4459 = vmatpush.bf16.msra.mxu0 %v3893
    %4460 = vmatpush.bf16.msra.mxu0 %v3885
    %4461 = vmatmul.bf16.gmra.mxu0 %v2469
    %v4462 = vpop.f32.mrf.mxu0
    %v4463 = vadd.f32 %v4449, %v4462
    %v4464 = vpop.f32.mrf.mxu0
    %v4465 = vadd.f32 %v4451, %v4464
    %4466 = vdwg.mxu0
    %4467 = vmatpush.bf16.msra.mxu0 %v4005
    %4468 = vmatpush.bf16.msra.mxu0 %v3997
    %4469 = vmatpush.bf16.msra.mxu0 %v3989
    %4470 = vmatpush.bf16.msra.mxu0 %v3981
    %4471 = vmatpush.bf16.msra.mxu0 %v3973
    %4472 = vmatpush.bf16.msra.mxu0 %v3965
    %4473 = vmatpush.bf16.msra.mxu0 %v3957
    %4474 = vmatpush.bf16.msra.mxu0 %v3949
    %4475 = vmatmul.bf16.gmra.mxu0 %v2470
    %v4476 = vpop.f32.mrf.mxu0
    %v4477 = vadd.f32 %v4463, %v4476
    %v4478 = vpop.f32.mrf.mxu0
    %v4479 = vadd.f32 %v4465, %v4478
    %4480 = vdwg.mxu0
    %4481 = vmatpush.bf16.msra.mxu0 %v3686
    %4482 = vmatpush.bf16.msra.mxu0 %v3678
    %4483 = vmatpush.bf16.msra.mxu0 %v3670
    %4484 = vmatpush.bf16.msra.mxu0 %v3662
    %4485 = vmatpush.bf16.msra.mxu0 %v3654
    %4486 = vmatpush.bf16.msra.mxu0 %v3646
    %4487 = vmatpush.bf16.msra.mxu0 %v3638
    %4488 = vmatpush.bf16.msra.mxu0 %v3630
    %4489 = vmatmul.bf16.gmra.mxu0 %v2465
    %v4490 = vpop.f32.mrf.mxu0
    %v4491 = vadd.f32 %v2432, %v4490
    %v4492 = vpop.f32.mrf.mxu0
    %v4493 = vadd.f32 %v2432, %v4492
    %4494 = vdwg.mxu0
    %4495 = vmatpush.bf16.msra.mxu0 %v3750
    %4496 = vmatpush.bf16.msra.mxu0 %v3742
    %4497 = vmatpush.bf16.msra.mxu0 %v3734
    %4498 = vmatpush.bf16.msra.mxu0 %v3726
    %4499 = vmatpush.bf16.msra.mxu0 %v3718
    %4500 = vmatpush.bf16.msra.mxu0 %v3710
    %4501 = vmatpush.bf16.msra.mxu0 %v3702
    %4502 = vmatpush.bf16.msra.mxu0 %v3694
    %4503 = vmatmul.bf16.gmra.mxu0 %v2466
    %v4504 = vpop.f32.mrf.mxu0
    %v4505 = vadd.f32 %v4491, %v4504
    %v4506 = vpop.f32.mrf.mxu0
    %v4507 = vadd.f32 %v4493, %v4506
    %4508 = vdwg.mxu0
    %4509 = vmatpush.bf16.msra.mxu0 %v3814
    %4510 = vmatpush.bf16.msra.mxu0 %v3806
    %4511 = vmatpush.bf16.msra.mxu0 %v3798
    %4512 = vmatpush.bf16.msra.mxu0 %v3790
    %4513 = vmatpush.bf16.msra.mxu0 %v3782
    %4514 = vmatpush.bf16.msra.mxu0 %v3774
    %4515 = vmatpush.bf16.msra.mxu0 %v3766
    %4516 = vmatpush.bf16.msra.mxu0 %v3758
    %4517 = vmatmul.bf16.gmra.mxu0 %v2467
    %v4518 = vpop.f32.mrf.mxu0
    %v4519 = vadd.f32 %v4505, %v4518
    %v4520 = vpop.f32.mrf.mxu0
    %v4521 = vadd.f32 %v4507, %v4520
    %4522 = vdwg.mxu0
    %4523 = vmatpush.bf16.msra.mxu0 %v3878
    %4524 = vmatpush.bf16.msra.mxu0 %v3870
    %4525 = vmatpush.bf16.msra.mxu0 %v3862
    %4526 = vmatpush.bf16.msra.mxu0 %v3854
    %4527 = vmatpush.bf16.msra.mxu0 %v3846
    %4528 = vmatpush.bf16.msra.mxu0 %v3838
    %4529 = vmatpush.bf16.msra.mxu0 %v3830
    %4530 = vmatpush.bf16.msra.mxu0 %v3822
    %4531 = vmatmul.bf16.gmra.mxu0 %v2468
    %v4532 = vpop.f32.mrf.mxu0
    %v4533 = vadd.f32 %v4519, %v4532
    %v4534 = vpop.f32.mrf.mxu0
    %v4535 = vadd.f32 %v4521, %v4534
    %4536 = vdwg.mxu0
    %4537 = vmatpush.bf16.msra.mxu0 %v3942
    %4538 = vmatpush.bf16.msra.mxu0 %v3934
    %4539 = vmatpush.bf16.msra.mxu0 %v3926
    %4540 = vmatpush.bf16.msra.mxu0 %v3918
    %4541 = vmatpush.bf16.msra.mxu0 %v3910
    %4542 = vmatpush.bf16.msra.mxu0 %v3902
    %4543 = vmatpush.bf16.msra.mxu0 %v3894
    %4544 = vmatpush.bf16.msra.mxu0 %v3886
    %4545 = vmatmul.bf16.gmra.mxu0 %v2469
    %v4546 = vpop.f32.mrf.mxu0
    %v4547 = vadd.f32 %v4533, %v4546
    %v4548 = vpop.f32.mrf.mxu0
    %v4549 = vadd.f32 %v4535, %v4548
    %4550 = vdwg.mxu0
    %4551 = vmatpush.bf16.msra.mxu0 %v4006
    %4552 = vmatpush.bf16.msra.mxu0 %v3998
    %4553 = vmatpush.bf16.msra.mxu0 %v3990
    %4554 = vmatpush.bf16.msra.mxu0 %v3982
    %4555 = vmatpush.bf16.msra.mxu0 %v3974
    %4556 = vmatpush.bf16.msra.mxu0 %v3966
    %4557 = vmatpush.bf16.msra.mxu0 %v3958
    %4558 = vmatpush.bf16.msra.mxu0 %v3950
    %4559 = vmatmul.bf16.gmra.mxu0 %v2470
    %v4560 = vpop.f32.mrf.mxu0
    %v4561 = vadd.f32 %v4547, %v4560
    %v4562 = vpop.f32.mrf.mxu0
    %v4563 = vadd.f32 %v4549, %v4562
    %4564 = vdwg.mxu0
    %4565 = vmatpush.bf16.msra.mxu0 %v3687
    %4566 = vmatpush.bf16.msra.mxu0 %v3679
    %4567 = vmatpush.bf16.msra.mxu0 %v3671
    %4568 = vmatpush.bf16.msra.mxu0 %v3663
    %4569 = vmatpush.bf16.msra.mxu0 %v3655
    %4570 = vmatpush.bf16.msra.mxu0 %v3647
    %4571 = vmatpush.bf16.msra.mxu0 %v3639
    %4572 = vmatpush.bf16.msra.mxu0 %v3631
    %4573 = vmatmul.bf16.gmra.mxu0 %v2465
    %v4574 = vpop.f32.mrf.mxu0
    %v4575 = vadd.f32 %v2433, %v4574
    %v4576 = vpop.f32.mrf.mxu0
    %v4577 = vadd.f32 %v2433, %v4576
    %4578 = vdwg.mxu0
    %4579 = vmatpush.bf16.msra.mxu0 %v3751
    %4580 = vmatpush.bf16.msra.mxu0 %v3743
    %4581 = vmatpush.bf16.msra.mxu0 %v3735
    %4582 = vmatpush.bf16.msra.mxu0 %v3727
    %4583 = vmatpush.bf16.msra.mxu0 %v3719
    %4584 = vmatpush.bf16.msra.mxu0 %v3711
    %4585 = vmatpush.bf16.msra.mxu0 %v3703
    %4586 = vmatpush.bf16.msra.mxu0 %v3695
    %4587 = vmatmul.bf16.gmra.mxu0 %v2466
    %v4588 = vpop.f32.mrf.mxu0
    %v4589 = vadd.f32 %v4575, %v4588
    %v4590 = vpop.f32.mrf.mxu0
    %v4591 = vadd.f32 %v4577, %v4590
    %4592 = vdwg.mxu0
    %4593 = vmatpush.bf16.msra.mxu0 %v3815
    %4594 = vmatpush.bf16.msra.mxu0 %v3807
    %4595 = vmatpush.bf16.msra.mxu0 %v3799
    %4596 = vmatpush.bf16.msra.mxu0 %v3791
    %4597 = vmatpush.bf16.msra.mxu0 %v3783
    %4598 = vmatpush.bf16.msra.mxu0 %v3775
    %4599 = vmatpush.bf16.msra.mxu0 %v3767
    %4600 = vmatpush.bf16.msra.mxu0 %v3759
    %4601 = vmatmul.bf16.gmra.mxu0 %v2467
    %v4602 = vpop.f32.mrf.mxu0
    %v4603 = vadd.f32 %v4589, %v4602
    %v4604 = vpop.f32.mrf.mxu0
    %v4605 = vadd.f32 %v4591, %v4604
    %4606 = vdwg.mxu0
    %4607 = vmatpush.bf16.msra.mxu0 %v3879
    %4608 = vmatpush.bf16.msra.mxu0 %v3871
    %4609 = vmatpush.bf16.msra.mxu0 %v3863
    %4610 = vmatpush.bf16.msra.mxu0 %v3855
    %4611 = vmatpush.bf16.msra.mxu0 %v3847
    %4612 = vmatpush.bf16.msra.mxu0 %v3839
    %4613 = vmatpush.bf16.msra.mxu0 %v3831
    %4614 = vmatpush.bf16.msra.mxu0 %v3823
    %4615 = vmatmul.bf16.gmra.mxu0 %v2468
    %v4616 = vpop.f32.mrf.mxu0
    %v4617 = vadd.f32 %v4603, %v4616
    %v4618 = vpop.f32.mrf.mxu0
    %v4619 = vadd.f32 %v4605, %v4618
    %4620 = vdwg.mxu0
    %4621 = vmatpush.bf16.msra.mxu0 %v3943
    %4622 = vmatpush.bf16.msra.mxu0 %v3935
    %4623 = vmatpush.bf16.msra.mxu0 %v3927
    %4624 = vmatpush.bf16.msra.mxu0 %v3919
    %4625 = vmatpush.bf16.msra.mxu0 %v3911
    %4626 = vmatpush.bf16.msra.mxu0 %v3903
    %4627 = vmatpush.bf16.msra.mxu0 %v3895
    %4628 = vmatpush.bf16.msra.mxu0 %v3887
    %4629 = vmatmul.bf16.gmra.mxu0 %v2469
    %v4630 = vpop.f32.mrf.mxu0
    %v4631 = vadd.f32 %v4617, %v4630
    %v4632 = vpop.f32.mrf.mxu0
    %v4633 = vadd.f32 %v4619, %v4632
    %4634 = vdwg.mxu0
    %4635 = vmatpush.bf16.msra.mxu0 %v4007
    %4636 = vmatpush.bf16.msra.mxu0 %v3999
    %4637 = vmatpush.bf16.msra.mxu0 %v3991
    %4638 = vmatpush.bf16.msra.mxu0 %v3983
    %4639 = vmatpush.bf16.msra.mxu0 %v3975
    %4640 = vmatpush.bf16.msra.mxu0 %v3967
    %4641 = vmatpush.bf16.msra.mxu0 %v3959
    %4642 = vmatpush.bf16.msra.mxu0 %v3951
    %4643 = vmatmul.bf16.gmra.mxu0 %v2470
    %v4644 = vpop.f32.mrf.mxu0
    %v4645 = vadd.f32 %v4631, %v4644
    %v4646 = vpop.f32.mrf.mxu0
    %v4647 = vadd.f32 %v4633, %v4646
    %4648 = vdwg.mxu0
    %4649 = vmatpush.bf16.msra.mxu0 %v3688
    %4650 = vmatpush.bf16.msra.mxu0 %v3680
    %4651 = vmatpush.bf16.msra.mxu0 %v3672
    %4652 = vmatpush.bf16.msra.mxu0 %v3664
    %4653 = vmatpush.bf16.msra.mxu0 %v3656
    %4654 = vmatpush.bf16.msra.mxu0 %v3648
    %4655 = vmatpush.bf16.msra.mxu0 %v3640
    %4656 = vmatpush.bf16.msra.mxu0 %v3632
    %4657 = vmatmul.bf16.gmra.mxu0 %v2465
    %v4658 = vpop.f32.mrf.mxu0
    %v4659 = vadd.f32 %v2434, %v4658
    %v4660 = vpop.f32.mrf.mxu0
    %v4661 = vadd.f32 %v2434, %v4660
    %4662 = vdwg.mxu0
    %4663 = vmatpush.bf16.msra.mxu0 %v3752
    %4664 = vmatpush.bf16.msra.mxu0 %v3744
    %4665 = vmatpush.bf16.msra.mxu0 %v3736
    %4666 = vmatpush.bf16.msra.mxu0 %v3728
    %4667 = vmatpush.bf16.msra.mxu0 %v3720
    %4668 = vmatpush.bf16.msra.mxu0 %v3712
    %4669 = vmatpush.bf16.msra.mxu0 %v3704
    %4670 = vmatpush.bf16.msra.mxu0 %v3696
    %4671 = vmatmul.bf16.gmra.mxu0 %v2466
    %v4672 = vpop.f32.mrf.mxu0
    %v4673 = vadd.f32 %v4659, %v4672
    %v4674 = vpop.f32.mrf.mxu0
    %v4675 = vadd.f32 %v4661, %v4674
    %4676 = vdwg.mxu0
    %4677 = vmatpush.bf16.msra.mxu0 %v3816
    %4678 = vmatpush.bf16.msra.mxu0 %v3808
    %4679 = vmatpush.bf16.msra.mxu0 %v3800
    %4680 = vmatpush.bf16.msra.mxu0 %v3792
    %4681 = vmatpush.bf16.msra.mxu0 %v3784
    %4682 = vmatpush.bf16.msra.mxu0 %v3776
    %4683 = vmatpush.bf16.msra.mxu0 %v3768
    %4684 = vmatpush.bf16.msra.mxu0 %v3760
    %4685 = vmatmul.bf16.gmra.mxu0 %v2467
    %v4686 = vpop.f32.mrf.mxu0
    %v4687 = vadd.f32 %v4673, %v4686
    %v4688 = vpop.f32.mrf.mxu0
    %v4689 = vadd.f32 %v4675, %v4688
    %4690 = vdwg.mxu0
    %4691 = vmatpush.bf16.msra.mxu0 %v3880
    %4692 = vmatpush.bf16.msra.mxu0 %v3872
    %4693 = vmatpush.bf16.msra.mxu0 %v3864
    %4694 = vmatpush.bf16.msra.mxu0 %v3856
    %4695 = vmatpush.bf16.msra.mxu0 %v3848
    %4696 = vmatpush.bf16.msra.mxu0 %v3840
    %4697 = vmatpush.bf16.msra.mxu0 %v3832
    %4698 = vmatpush.bf16.msra.mxu0 %v3824
    %4699 = vmatmul.bf16.gmra.mxu0 %v2468
    %v4700 = vpop.f32.mrf.mxu0
    %v4701 = vadd.f32 %v4687, %v4700
    %v4702 = vpop.f32.mrf.mxu0
    %v4703 = vadd.f32 %v4689, %v4702
    %4704 = vdwg.mxu0
    %4705 = vmatpush.bf16.msra.mxu0 %v3944
    %4706 = vmatpush.bf16.msra.mxu0 %v3936
    %4707 = vmatpush.bf16.msra.mxu0 %v3928
    %4708 = vmatpush.bf16.msra.mxu0 %v3920
    %4709 = vmatpush.bf16.msra.mxu0 %v3912
    %4710 = vmatpush.bf16.msra.mxu0 %v3904
    %4711 = vmatpush.bf16.msra.mxu0 %v3896
    %4712 = vmatpush.bf16.msra.mxu0 %v3888
    %4713 = vmatmul.bf16.gmra.mxu0 %v2469
    %v4714 = vpop.f32.mrf.mxu0
    %v4715 = vadd.f32 %v4701, %v4714
    %v4716 = vpop.f32.mrf.mxu0
    %v4717 = vadd.f32 %v4703, %v4716
    %4718 = vdwg.mxu0
    %4719 = vmatpush.bf16.msra.mxu0 %v4008
    %4720 = vmatpush.bf16.msra.mxu0 %v4000
    %4721 = vmatpush.bf16.msra.mxu0 %v3992
    %4722 = vmatpush.bf16.msra.mxu0 %v3984
    %4723 = vmatpush.bf16.msra.mxu0 %v3976
    %4724 = vmatpush.bf16.msra.mxu0 %v3968
    %4725 = vmatpush.bf16.msra.mxu0 %v3960
    %4726 = vmatpush.bf16.msra.mxu0 %v3952
    %4727 = vmatmul.bf16.gmra.mxu0 %v2470
    %v4728 = vpop.f32.mrf.mxu0
    %v4729 = vadd.f32 %v4715, %v4728
    %v4730 = vpop.f32.mrf.mxu0
    %v4731 = vadd.f32 %v4717, %v4730
    %4732 = vdwg.mxu0
    %4733 = vmatpush.bf16.msra.mxu0 %v3689
    %4734 = vmatpush.bf16.msra.mxu0 %v3681
    %4735 = vmatpush.bf16.msra.mxu0 %v3673
    %4736 = vmatpush.bf16.msra.mxu0 %v3665
    %4737 = vmatpush.bf16.msra.mxu0 %v3657
    %4738 = vmatpush.bf16.msra.mxu0 %v3649
    %4739 = vmatpush.bf16.msra.mxu0 %v3641
    %4740 = vmatpush.bf16.msra.mxu0 %v3633
    %4741 = vmatmul.bf16.gmra.mxu0 %v2465
    %v4742 = vpop.f32.mrf.mxu0
    %v4743 = vadd.f32 %v2435, %v4742
    %v4744 = vpop.f32.mrf.mxu0
    %v4745 = vadd.f32 %v2435, %v4744
    %4746 = vdwg.mxu0
    %4747 = vmatpush.bf16.msra.mxu0 %v3753
    %4748 = vmatpush.bf16.msra.mxu0 %v3745
    %4749 = vmatpush.bf16.msra.mxu0 %v3737
    %4750 = vmatpush.bf16.msra.mxu0 %v3729
    %4751 = vmatpush.bf16.msra.mxu0 %v3721
    %4752 = vmatpush.bf16.msra.mxu0 %v3713
    %4753 = vmatpush.bf16.msra.mxu0 %v3705
    %4754 = vmatpush.bf16.msra.mxu0 %v3697
    %4755 = vmatmul.bf16.gmra.mxu0 %v2466
    %v4756 = vpop.f32.mrf.mxu0
    %v4757 = vadd.f32 %v4743, %v4756
    %v4758 = vpop.f32.mrf.mxu0
    %v4759 = vadd.f32 %v4745, %v4758
    %4760 = vdwg.mxu0
    %4761 = vmatpush.bf16.msra.mxu0 %v3817
    %4762 = vmatpush.bf16.msra.mxu0 %v3809
    %4763 = vmatpush.bf16.msra.mxu0 %v3801
    %4764 = vmatpush.bf16.msra.mxu0 %v3793
    %4765 = vmatpush.bf16.msra.mxu0 %v3785
    %4766 = vmatpush.bf16.msra.mxu0 %v3777
    %4767 = vmatpush.bf16.msra.mxu0 %v3769
    %4768 = vmatpush.bf16.msra.mxu0 %v3761
    %4769 = vmatmul.bf16.gmra.mxu0 %v2467
    %v4770 = vpop.f32.mrf.mxu0
    %v4771 = vadd.f32 %v4757, %v4770
    %v4772 = vpop.f32.mrf.mxu0
    %v4773 = vadd.f32 %v4759, %v4772
    %4774 = vdwg.mxu0
    %4775 = vmatpush.bf16.msra.mxu0 %v3881
    %4776 = vmatpush.bf16.msra.mxu0 %v3873
    %4777 = vmatpush.bf16.msra.mxu0 %v3865
    %4778 = vmatpush.bf16.msra.mxu0 %v3857
    %4779 = vmatpush.bf16.msra.mxu0 %v3849
    %4780 = vmatpush.bf16.msra.mxu0 %v3841
    %4781 = vmatpush.bf16.msra.mxu0 %v3833
    %4782 = vmatpush.bf16.msra.mxu0 %v3825
    %4783 = vmatmul.bf16.gmra.mxu0 %v2468
    %v4784 = vpop.f32.mrf.mxu0
    %v4785 = vadd.f32 %v4771, %v4784
    %v4786 = vpop.f32.mrf.mxu0
    %v4787 = vadd.f32 %v4773, %v4786
    %4788 = vdwg.mxu0
    %4789 = vmatpush.bf16.msra.mxu0 %v3945
    %4790 = vmatpush.bf16.msra.mxu0 %v3937
    %4791 = vmatpush.bf16.msra.mxu0 %v3929
    %4792 = vmatpush.bf16.msra.mxu0 %v3921
    %4793 = vmatpush.bf16.msra.mxu0 %v3913
    %4794 = vmatpush.bf16.msra.mxu0 %v3905
    %4795 = vmatpush.bf16.msra.mxu0 %v3897
    %4796 = vmatpush.bf16.msra.mxu0 %v3889
    %4797 = vmatmul.bf16.gmra.mxu0 %v2469
    %v4798 = vpop.f32.mrf.mxu0
    %v4799 = vadd.f32 %v4785, %v4798
    %v4800 = vpop.f32.mrf.mxu0
    %v4801 = vadd.f32 %v4787, %v4800
    %4802 = vdwg.mxu0
    %4803 = vmatpush.bf16.msra.mxu0 %v4009
    %4804 = vmatpush.bf16.msra.mxu0 %v4001
    %4805 = vmatpush.bf16.msra.mxu0 %v3993
    %4806 = vmatpush.bf16.msra.mxu0 %v3985
    %4807 = vmatpush.bf16.msra.mxu0 %v3977
    %4808 = vmatpush.bf16.msra.mxu0 %v3969
    %4809 = vmatpush.bf16.msra.mxu0 %v3961
    %4810 = vmatpush.bf16.msra.mxu0 %v3953
    %4811 = vmatmul.bf16.gmra.mxu0 %v2470
    %v4812 = vpop.f32.mrf.mxu0
    %v4813 = vadd.f32 %v4799, %v4812
    %v4814 = vpop.f32.mrf.mxu0
    %v4815 = vadd.f32 %v4801, %v4814
    %4816 = vdwg.mxu0
    %4817 = vmatpush.bf16.msra.mxu0 %v3690
    %4818 = vmatpush.bf16.msra.mxu0 %v3682
    %4819 = vmatpush.bf16.msra.mxu0 %v3674
    %4820 = vmatpush.bf16.msra.mxu0 %v3666
    %4821 = vmatpush.bf16.msra.mxu0 %v3658
    %4822 = vmatpush.bf16.msra.mxu0 %v3650
    %4823 = vmatpush.bf16.msra.mxu0 %v3642
    %4824 = vmatpush.bf16.msra.mxu0 %v3634
    %4825 = vmatmul.bf16.gmra.mxu0 %v2465
    %v4826 = vpop.f32.mrf.mxu0
    %v4827 = vadd.f32 %v2436, %v4826
    %v4828 = vpop.f32.mrf.mxu0
    %v4829 = vadd.f32 %v2436, %v4828
    %4830 = vdwg.mxu0
    %4831 = vmatpush.bf16.msra.mxu0 %v3754
    %4832 = vmatpush.bf16.msra.mxu0 %v3746
    %4833 = vmatpush.bf16.msra.mxu0 %v3738
    %4834 = vmatpush.bf16.msra.mxu0 %v3730
    %4835 = vmatpush.bf16.msra.mxu0 %v3722
    %4836 = vmatpush.bf16.msra.mxu0 %v3714
    %4837 = vmatpush.bf16.msra.mxu0 %v3706
    %4838 = vmatpush.bf16.msra.mxu0 %v3698
    %4839 = vmatmul.bf16.gmra.mxu0 %v2466
    %v4840 = vpop.f32.mrf.mxu0
    %v4841 = vadd.f32 %v4827, %v4840
    %v4842 = vpop.f32.mrf.mxu0
    %v4843 = vadd.f32 %v4829, %v4842
    %4844 = vdwg.mxu0
    %4845 = vmatpush.bf16.msra.mxu0 %v3818
    %4846 = vmatpush.bf16.msra.mxu0 %v3810
    %4847 = vmatpush.bf16.msra.mxu0 %v3802
    %4848 = vmatpush.bf16.msra.mxu0 %v3794
    %4849 = vmatpush.bf16.msra.mxu0 %v3786
    %4850 = vmatpush.bf16.msra.mxu0 %v3778
    %4851 = vmatpush.bf16.msra.mxu0 %v3770
    %4852 = vmatpush.bf16.msra.mxu0 %v3762
    %4853 = vmatmul.bf16.gmra.mxu0 %v2467
    %v4854 = vpop.f32.mrf.mxu0
    %v4855 = vadd.f32 %v4841, %v4854
    %v4856 = vpop.f32.mrf.mxu0
    %v4857 = vadd.f32 %v4843, %v4856
    %4858 = vdwg.mxu0
    %4859 = vmatpush.bf16.msra.mxu0 %v3882
    %4860 = vmatpush.bf16.msra.mxu0 %v3874
    %4861 = vmatpush.bf16.msra.mxu0 %v3866
    %4862 = vmatpush.bf16.msra.mxu0 %v3858
    %4863 = vmatpush.bf16.msra.mxu0 %v3850
    %4864 = vmatpush.bf16.msra.mxu0 %v3842
    %4865 = vmatpush.bf16.msra.mxu0 %v3834
    %4866 = vmatpush.bf16.msra.mxu0 %v3826
    %4867 = vmatmul.bf16.gmra.mxu0 %v2468
    %v4868 = vpop.f32.mrf.mxu0
    %v4869 = vadd.f32 %v4855, %v4868
    %v4870 = vpop.f32.mrf.mxu0
    %v4871 = vadd.f32 %v4857, %v4870
    %4872 = vdwg.mxu0
    %4873 = vmatpush.bf16.msra.mxu0 %v3946
    %4874 = vmatpush.bf16.msra.mxu0 %v3938
    %4875 = vmatpush.bf16.msra.mxu0 %v3930
    %4876 = vmatpush.bf16.msra.mxu0 %v3922
    %4877 = vmatpush.bf16.msra.mxu0 %v3914
    %4878 = vmatpush.bf16.msra.mxu0 %v3906
    %4879 = vmatpush.bf16.msra.mxu0 %v3898
    %4880 = vmatpush.bf16.msra.mxu0 %v3890
    %4881 = vmatmul.bf16.gmra.mxu0 %v2469
    %v4882 = vpop.f32.mrf.mxu0
    %v4883 = vadd.f32 %v4869, %v4882
    %v4884 = vpop.f32.mrf.mxu0
    %v4885 = vadd.f32 %v4871, %v4884
    %4886 = vdwg.mxu0
    %4887 = vmatpush.bf16.msra.mxu0 %v4010
    %4888 = vmatpush.bf16.msra.mxu0 %v4002
    %4889 = vmatpush.bf16.msra.mxu0 %v3994
    %4890 = vmatpush.bf16.msra.mxu0 %v3986
    %4891 = vmatpush.bf16.msra.mxu0 %v3978
    %4892 = vmatpush.bf16.msra.mxu0 %v3970
    %4893 = vmatpush.bf16.msra.mxu0 %v3962
    %4894 = vmatpush.bf16.msra.mxu0 %v3954
    %4895 = vmatmul.bf16.gmra.mxu0 %v2470
    %v4896 = vpop.f32.mrf.mxu0
    %v4897 = vadd.f32 %v4883, %v4896
    %v4898 = vpop.f32.mrf.mxu0
    %v4899 = vadd.f32 %v4885, %v4898
    %4900 = vdwg.mxu0
    %4901 = vmatpush.bf16.msra.mxu0 %v3691
    %4902 = vmatpush.bf16.msra.mxu0 %v3683
    %4903 = vmatpush.bf16.msra.mxu0 %v3675
    %4904 = vmatpush.bf16.msra.mxu0 %v3667
    %4905 = vmatpush.bf16.msra.mxu0 %v3659
    %4906 = vmatpush.bf16.msra.mxu0 %v3651
    %4907 = vmatpush.bf16.msra.mxu0 %v3643
    %4908 = vmatpush.bf16.msra.mxu0 %v3635
    %4909 = vmatmul.bf16.gmra.mxu0 %v2465
    %v4910 = vpop.f32.mrf.mxu0
    %v4911 = vadd.f32 %v2437, %v4910
    %v4912 = vpop.f32.mrf.mxu0
    %v4913 = vadd.f32 %v2437, %v4912
    %4914 = vdwg.mxu0
    %4915 = vmatpush.bf16.msra.mxu0 %v3755
    %4916 = vmatpush.bf16.msra.mxu0 %v3747
    %4917 = vmatpush.bf16.msra.mxu0 %v3739
    %4918 = vmatpush.bf16.msra.mxu0 %v3731
    %4919 = vmatpush.bf16.msra.mxu0 %v3723
    %4920 = vmatpush.bf16.msra.mxu0 %v3715
    %4921 = vmatpush.bf16.msra.mxu0 %v3707
    %4922 = vmatpush.bf16.msra.mxu0 %v3699
    %4923 = vmatmul.bf16.gmra.mxu0 %v2466
    %v4924 = vpop.f32.mrf.mxu0
    %v4925 = vadd.f32 %v4911, %v4924
    %v4926 = vpop.f32.mrf.mxu0
    %v4927 = vadd.f32 %v4913, %v4926
    %4928 = vdwg.mxu0
    %4929 = vmatpush.bf16.msra.mxu0 %v3819
    %4930 = vmatpush.bf16.msra.mxu0 %v3811
    %4931 = vmatpush.bf16.msra.mxu0 %v3803
    %4932 = vmatpush.bf16.msra.mxu0 %v3795
    %4933 = vmatpush.bf16.msra.mxu0 %v3787
    %4934 = vmatpush.bf16.msra.mxu0 %v3779
    %4935 = vmatpush.bf16.msra.mxu0 %v3771
    %4936 = vmatpush.bf16.msra.mxu0 %v3763
    %4937 = vmatmul.bf16.gmra.mxu0 %v2467
    %v4938 = vpop.f32.mrf.mxu0
    %v4939 = vadd.f32 %v4925, %v4938
    %v4940 = vpop.f32.mrf.mxu0
    %v4941 = vadd.f32 %v4927, %v4940
    %4942 = vdwg.mxu0
    %4943 = vmatpush.bf16.msra.mxu0 %v3883
    %4944 = vmatpush.bf16.msra.mxu0 %v3875
    %4945 = vmatpush.bf16.msra.mxu0 %v3867
    %4946 = vmatpush.bf16.msra.mxu0 %v3859
    %4947 = vmatpush.bf16.msra.mxu0 %v3851
    %4948 = vmatpush.bf16.msra.mxu0 %v3843
    %4949 = vmatpush.bf16.msra.mxu0 %v3835
    %4950 = vmatpush.bf16.msra.mxu0 %v3827
    %4951 = vmatmul.bf16.gmra.mxu0 %v2468
    %v4952 = vpop.f32.mrf.mxu0
    %v4953 = vadd.f32 %v4939, %v4952
    %v4954 = vpop.f32.mrf.mxu0
    %v4955 = vadd.f32 %v4941, %v4954
    %4956 = vdwg.mxu0
    %4957 = vmatpush.bf16.msra.mxu0 %v3947
    %4958 = vmatpush.bf16.msra.mxu0 %v3939
    %4959 = vmatpush.bf16.msra.mxu0 %v3931
    %4960 = vmatpush.bf16.msra.mxu0 %v3923
    %4961 = vmatpush.bf16.msra.mxu0 %v3915
    %4962 = vmatpush.bf16.msra.mxu0 %v3907
    %4963 = vmatpush.bf16.msra.mxu0 %v3899
    %4964 = vmatpush.bf16.msra.mxu0 %v3891
    %4965 = vmatmul.bf16.gmra.mxu0 %v2469
    %v4966 = vpop.f32.mrf.mxu0
    %v4967 = vadd.f32 %v4953, %v4966
    %v4968 = vpop.f32.mrf.mxu0
    %v4969 = vadd.f32 %v4955, %v4968
    %4970 = vdwg.mxu0
    %4971 = vmatpush.bf16.msra.mxu0 %v4011
    %4972 = vmatpush.bf16.msra.mxu0 %v4003
    %4973 = vmatpush.bf16.msra.mxu0 %v3995
    %4974 = vmatpush.bf16.msra.mxu0 %v3987
    %4975 = vmatpush.bf16.msra.mxu0 %v3979
    %4976 = vmatpush.bf16.msra.mxu0 %v3971
    %4977 = vmatpush.bf16.msra.mxu0 %v3963
    %4978 = vmatpush.bf16.msra.mxu0 %v3955
    %4979 = vmatmul.bf16.gmra.mxu0 %v2470
    %v4980 = vpop.f32.mrf.mxu0
    %v4981 = vadd.f32 %v4967, %v4980
    %v4982 = vpop.f32.mrf.mxu0
    %v4983 = vadd.f32 %v4969, %v4982
    %4984 = vdwg.mxu0
    %4985 = vmatpush.bf16.msra.mxu0 %v3692
    %4986 = vmatpush.bf16.msra.mxu0 %v3684
    %4987 = vmatpush.bf16.msra.mxu0 %v3676
    %4988 = vmatpush.bf16.msra.mxu0 %v3668
    %4989 = vmatpush.bf16.msra.mxu0 %v3660
    %4990 = vmatpush.bf16.msra.mxu0 %v3652
    %4991 = vmatpush.bf16.msra.mxu0 %v3644
    %4992 = vmatpush.bf16.msra.mxu0 %v3636
    %4993 = vmatmul.bf16.gmra.mxu0 %v2465
    %v4994 = vpop.f32.mrf.mxu0
    %v4995 = vadd.f32 %v2438, %v4994
    %v4996 = vpop.f32.mrf.mxu0
    %v4997 = vadd.f32 %v2438, %v4996
    %4998 = vdwg.mxu0
    %4999 = vmatpush.bf16.msra.mxu0 %v3756
    %5000 = vmatpush.bf16.msra.mxu0 %v3748
    %5001 = vmatpush.bf16.msra.mxu0 %v3740
    %5002 = vmatpush.bf16.msra.mxu0 %v3732
    %5003 = vmatpush.bf16.msra.mxu0 %v3724
    %5004 = vmatpush.bf16.msra.mxu0 %v3716
    %5005 = vmatpush.bf16.msra.mxu0 %v3708
    %5006 = vmatpush.bf16.msra.mxu0 %v3700
    %5007 = vmatmul.bf16.gmra.mxu0 %v2466
    %v5008 = vpop.f32.mrf.mxu0
    %v5009 = vadd.f32 %v4995, %v5008
    %v5010 = vpop.f32.mrf.mxu0
    %v5011 = vadd.f32 %v4997, %v5010
    %5012 = vdwg.mxu0
    %5013 = vmatpush.bf16.msra.mxu0 %v3820
    %5014 = vmatpush.bf16.msra.mxu0 %v3812
    %5015 = vmatpush.bf16.msra.mxu0 %v3804
    %5016 = vmatpush.bf16.msra.mxu0 %v3796
    %5017 = vmatpush.bf16.msra.mxu0 %v3788
    %5018 = vmatpush.bf16.msra.mxu0 %v3780
    %5019 = vmatpush.bf16.msra.mxu0 %v3772
    %5020 = vmatpush.bf16.msra.mxu0 %v3764
    %5021 = vmatmul.bf16.gmra.mxu0 %v2467
    %v5022 = vpop.f32.mrf.mxu0
    %v5023 = vadd.f32 %v5009, %v5022
    %v5024 = vpop.f32.mrf.mxu0
    %v5025 = vadd.f32 %v5011, %v5024
    %5026 = vdwg.mxu0
    %5027 = vmatpush.bf16.msra.mxu0 %v3884
    %5028 = vmatpush.bf16.msra.mxu0 %v3876
    %5029 = vmatpush.bf16.msra.mxu0 %v3868
    %5030 = vmatpush.bf16.msra.mxu0 %v3860
    %5031 = vmatpush.bf16.msra.mxu0 %v3852
    %5032 = vmatpush.bf16.msra.mxu0 %v3844
    %5033 = vmatpush.bf16.msra.mxu0 %v3836
    %5034 = vmatpush.bf16.msra.mxu0 %v3828
    %5035 = vmatmul.bf16.gmra.mxu0 %v2468
    %v5036 = vpop.f32.mrf.mxu0
    %v5037 = vadd.f32 %v5023, %v5036
    %v5038 = vpop.f32.mrf.mxu0
    %v5039 = vadd.f32 %v5025, %v5038
    %5040 = vdwg.mxu0
    %5041 = vmatpush.bf16.msra.mxu0 %v3948
    %5042 = vmatpush.bf16.msra.mxu0 %v3940
    %5043 = vmatpush.bf16.msra.mxu0 %v3932
    %5044 = vmatpush.bf16.msra.mxu0 %v3924
    %5045 = vmatpush.bf16.msra.mxu0 %v3916
    %5046 = vmatpush.bf16.msra.mxu0 %v3908
    %5047 = vmatpush.bf16.msra.mxu0 %v3900
    %5048 = vmatpush.bf16.msra.mxu0 %v3892
    %5049 = vmatmul.bf16.gmra.mxu0 %v2469
    %v5050 = vpop.f32.mrf.mxu0
    %v5051 = vadd.f32 %v5037, %v5050
    %v5052 = vpop.f32.mrf.mxu0
    %v5053 = vadd.f32 %v5039, %v5052
    %5054 = vdwg.mxu0
    %5055 = vmatpush.bf16.msra.mxu0 %v4012
    %5056 = vmatpush.bf16.msra.mxu0 %v4004
    %5057 = vmatpush.bf16.msra.mxu0 %v3996
    %5058 = vmatpush.bf16.msra.mxu0 %v3988
    %5059 = vmatpush.bf16.msra.mxu0 %v3980
    %5060 = vmatpush.bf16.msra.mxu0 %v3972
    %5061 = vmatpush.bf16.msra.mxu0 %v3964
    %5062 = vmatpush.bf16.msra.mxu0 %v3956
    %5063 = vmatmul.bf16.gmra.mxu0 %v2470
    %v5064 = vpop.f32.mrf.mxu0
    %v5065 = vadd.f32 %v5051, %v5064
    %v5066 = vpop.f32.mrf.mxu0
    %v5067 = vadd.f32 %v5053, %v5066
    %5068 = vdwg.mxu0
    %v5069 = vpack.c.bf16 %v4561, %v4477
    %v5070 = vpack.c.bf16 %v4729, %v4645
    %v5071 = vpack.c.bf16 %v4897, %v4813
    %v5072 = vpack.c.bf16 %v5065, %v4981
    %v5073 = vpack.c.bf16 %v4563, %v4479
    %v5074 = vpack.c.bf16 %v4731, %v4647
    %v5075 = vpack.c.bf16 %v4899, %v4815
    %v5076 = vpack.c.bf16 %v5067, %v4983
    %v5077 = vld [vmem:[#allocation19] sm:$0xff]
    %v5078 = vld [vmem:[#allocation19 + $0x8] sm:$0xff]
    %v5079 = vld [vmem:[#allocation19 + $0x10] sm:$0xff]
    %v5080 = vld [vmem:[#allocation19 + $0x18] sm:$0xff]
    %v5081 = vld [vmem:[#allocation19 + $0x20] sm:$0xff]
    %v5082 = vld [vmem:[#allocation19 + $0x28] sm:$0xff]
    %v5083 = vld [vmem:[#allocation19 + $0x30] sm:$0xff]
    %v5084 = vld [vmem:[#allocation19 + $0x38] sm:$0xff]
    %v5085 = vld [vmem:[#allocation19 + $0x40] sm:$0xff]
    %v5086 = vld [vmem:[#allocation19 + $0x48] sm:$0xff]
    %v5087 = vld [vmem:[#allocation19 + $0x50] sm:$0xff]
    %v5088 = vld [vmem:[#allocation19 + $0x58] sm:$0xff]
    %v5089 = vld [vmem:[#allocation19 + $0x60] sm:$0xff]
    %v5090 = vld [vmem:[#allocation19 + $0x68] sm:$0xff]
    %v5091 = vld [vmem:[#allocation19 + $0x70] sm:$0xff]
    %v5092 = vld [vmem:[#allocation19 + $0x78] sm:$0xff]
    %v5093 = vld [vmem:[#allocation19 + $0x80] sm:$0xff]
    %v5094 = vld [vmem:[#allocation19 + $0x88] sm:$0xff]
    %v5095 = vld [vmem:[#allocation19 + $0x90] sm:$0xff]
    %v5096 = vld [vmem:[#allocation19 + $0x98] sm:$0xff]
    %v5097 = vld [vmem:[#allocation19 + $0xa0] sm:$0xff]
    %v5098 = vld [vmem:[#allocation19 + $0xa8] sm:$0xff]
    %v5099 = vld [vmem:[#allocation19 + $0xb0] sm:$0xff]
    %v5100 = vld [vmem:[#allocation19 + $0xb8] sm:$0xff]
    %v5101 = vld [vmem:[#allocation19 + $0xc0] sm:$0xff]
    %v5102 = vld [vmem:[#allocation19 + $0xc8] sm:$0xff]
    %v5103 = vld [vmem:[#allocation19 + $0xd0] sm:$0xff]
    %v5104 = vld [vmem:[#allocation19 + $0xd8] sm:$0xff]
    %v5105 = vld [vmem:[#allocation19 + $0xe0] sm:$0xff]
    %v5106 = vld [vmem:[#allocation19 + $0xe8] sm:$0xff]
    %v5107 = vld [vmem:[#allocation19 + $0xf0] sm:$0xff]
    %v5108 = vld [vmem:[#allocation19 + $0xf8] sm:$0xff]
    %v5109 = vld [vmem:[#allocation19 + $0x100] sm:$0xff]
    %v5110 = vld [vmem:[#allocation19 + $0x108] sm:$0xff]
    %v5111 = vld [vmem:[#allocation19 + $0x110] sm:$0xff]
    %v5112 = vld [vmem:[#allocation19 + $0x118] sm:$0xff]
    %v5113 = vld [vmem:[#allocation19 + $0x120] sm:$0xff]
    %v5114 = vld [vmem:[#allocation19 + $0x128] sm:$0xff]
    %v5115 = vld [vmem:[#allocation19 + $0x130] sm:$0xff]
    %v5116 = vld [vmem:[#allocation19 + $0x138] sm:$0xff]
    %v5117 = vld [vmem:[#allocation19 + $0x140] sm:$0xff]
    %v5118 = vld [vmem:[#allocation19 + $0x148] sm:$0xff]
    %v5119 = vld [vmem:[#allocation19 + $0x150] sm:$0xff]
    %v5120 = vld [vmem:[#allocation19 + $0x158] sm:$0xff]
    %v5121 = vld [vmem:[#allocation19 + $0x160] sm:$0xff]
    %v5122 = vld [vmem:[#allocation19 + $0x168] sm:$0xff]
    %v5123 = vld [vmem:[#allocation19 + $0x170] sm:$0xff]
    %v5124 = vld [vmem:[#allocation19 + $0x178] sm:$0xff]
    %v5125 = vld [vmem:[#allocation19 + $0x180] sm:$0xff]
    %v5126 = vld [vmem:[#allocation19 + $0x188] sm:$0xff]
    %v5127 = vld [vmem:[#allocation19 + $0x190] sm:$0xff]
    %v5128 = vld [vmem:[#allocation19 + $0x198] sm:$0xff]
    %v5129 = vld [vmem:[#allocation19 + $0x1a0] sm:$0xff]
    %v5130 = vld [vmem:[#allocation19 + $0x1a8] sm:$0xff]
    %v5131 = vld [vmem:[#allocation19 + $0x1b0] sm:$0xff]
    %v5132 = vld [vmem:[#allocation19 + $0x1b8] sm:$0xff]
    %v5133 = vld [vmem:[#allocation19 + $0x1c0] sm:$0xff]
    %v5134 = vld [vmem:[#allocation19 + $0x1c8] sm:$0xff]
    %v5135 = vld [vmem:[#allocation19 + $0x1d0] sm:$0xff]
    %v5136 = vld [vmem:[#allocation19 + $0x1d8] sm:$0xff]
    %v5137 = vld [vmem:[#allocation19 + $0x1e0] sm:$0xff]
    %v5138 = vld [vmem:[#allocation19 + $0x1e8] sm:$0xff]
    %v5139 = vld [vmem:[#allocation19 + $0x1f0] sm:$0xff]
    %v5140 = vld [vmem:[#allocation19 + $0x1f8] sm:$0xff]
    %v5141 = vld [vmem:[#allocation19 + $0x200] sm:$0xff]
    %v5142 = vld [vmem:[#allocation19 + $0x208] sm:$0xff]
    %v5143 = vld [vmem:[#allocation19 + $0x210] sm:$0xff]
    %v5144 = vld [vmem:[#allocation19 + $0x218] sm:$0xff]
    %v5145 = vld [vmem:[#allocation19 + $0x220] sm:$0xff]
    %v5146 = vld [vmem:[#allocation19 + $0x228] sm:$0xff]
    %v5147 = vld [vmem:[#allocation19 + $0x230] sm:$0xff]
    %v5148 = vld [vmem:[#allocation19 + $0x238] sm:$0xff]
    %v5149 = vld [vmem:[#allocation19 + $0x240] sm:$0xff]
    %v5150 = vld [vmem:[#allocation19 + $0x248] sm:$0xff]
    %v5151 = vld [vmem:[#allocation19 + $0x250] sm:$0xff]
    %v5152 = vld [vmem:[#allocation19 + $0x258] sm:$0xff]
    %v5153 = vld [vmem:[#allocation19 + $0x260] sm:$0xff]
    %v5154 = vld [vmem:[#allocation19 + $0x268] sm:$0xff]
    %v5155 = vld [vmem:[#allocation19 + $0x270] sm:$0xff]
    %v5156 = vld [vmem:[#allocation19 + $0x278] sm:$0xff]
    %v5157 = vld [vmem:[#allocation19 + $0x280] sm:$0xff]
    %v5158 = vld [vmem:[#allocation19 + $0x288] sm:$0xff]
    %v5159 = vld [vmem:[#allocation19 + $0x290] sm:$0xff]
    %v5160 = vld [vmem:[#allocation19 + $0x298] sm:$0xff]
    %v5161 = vld [vmem:[#allocation19 + $0x2a0] sm:$0xff]
    %v5162 = vld [vmem:[#allocation19 + $0x2a8] sm:$0xff]
    %v5163 = vld [vmem:[#allocation19 + $0x2b0] sm:$0xff]
    %v5164 = vld [vmem:[#allocation19 + $0x2b8] sm:$0xff]
    %v5165 = vld [vmem:[#allocation19 + $0x2c0] sm:$0xff]
    %v5166 = vld [vmem:[#allocation19 + $0x2c8] sm:$0xff]
    %v5167 = vld [vmem:[#allocation19 + $0x2d0] sm:$0xff]
    %v5168 = vld [vmem:[#allocation19 + $0x2d8] sm:$0xff]
    %v5169 = vld [vmem:[#allocation19 + $0x2e0] sm:$0xff]
    %v5170 = vld [vmem:[#allocation19 + $0x2e8] sm:$0xff]
    %v5171 = vld [vmem:[#allocation19 + $0x2f0] sm:$0xff]
    %v5172 = vld [vmem:[#allocation19 + $0x2f8] sm:$0xff]
    %v5173 = vld [vmem:[#allocation19 + $0x300] sm:$0xff]
    %v5174 = vld [vmem:[#allocation19 + $0x308] sm:$0xff]
    %v5175 = vld [vmem:[#allocation19 + $0x310] sm:$0xff]
    %v5176 = vld [vmem:[#allocation19 + $0x318] sm:$0xff]
    %v5177 = vld [vmem:[#allocation19 + $0x320] sm:$0xff]
    %v5178 = vld [vmem:[#allocation19 + $0x328] sm:$0xff]
    %v5179 = vld [vmem:[#allocation19 + $0x330] sm:$0xff]
    %v5180 = vld [vmem:[#allocation19 + $0x338] sm:$0xff]
    %v5181 = vld [vmem:[#allocation19 + $0x340] sm:$0xff]
    %v5182 = vld [vmem:[#allocation19 + $0x348] sm:$0xff]
    %v5183 = vld [vmem:[#allocation19 + $0x350] sm:$0xff]
    %v5184 = vld [vmem:[#allocation19 + $0x358] sm:$0xff]
    %v5185 = vld [vmem:[#allocation19 + $0x360] sm:$0xff]
    %v5186 = vld [vmem:[#allocation19 + $0x368] sm:$0xff]
    %v5187 = vld [vmem:[#allocation19 + $0x370] sm:$0xff]
    %v5188 = vld [vmem:[#allocation19 + $0x378] sm:$0xff]
    %v5189 = vld [vmem:[#allocation19 + $0x380] sm:$0xff]
    %v5190 = vld [vmem:[#allocation19 + $0x388] sm:$0xff]
    %v5191 = vld [vmem:[#allocation19 + $0x390] sm:$0xff]
    %v5192 = vld [vmem:[#allocation19 + $0x398] sm:$0xff]
    %v5193 = vld [vmem:[#allocation19 + $0x3a0] sm:$0xff]
    %v5194 = vld [vmem:[#allocation19 + $0x3a8] sm:$0xff]
    %v5195 = vld [vmem:[#allocation19 + $0x3b0] sm:$0xff]
    %v5196 = vld [vmem:[#allocation19 + $0x3b8] sm:$0xff]
    %v5197 = vld [vmem:[#allocation19 + $0x3c0] sm:$0xff]
    %v5198 = vld [vmem:[#allocation19 + $0x3c8] sm:$0xff]
    %v5199 = vld [vmem:[#allocation19 + $0x3d0] sm:$0xff]
    %v5200 = vld [vmem:[#allocation19 + $0x3d8] sm:$0xff]
    %v5201 = vld [vmem:[#allocation19 + $0x3e0] sm:$0xff]
    %v5202 = vld [vmem:[#allocation19 + $0x3e8] sm:$0xff]
    %v5203 = vld [vmem:[#allocation19 + $0x3f0] sm:$0xff]
    %v5204 = vld [vmem:[#allocation19 + $0x3f8] sm:$0xff]
    %v5209 = vunpack.c.l.b16 %v5069
    %v5210 = vunpack.c.h.b16 %v5069
    %v5211 = vunpack.c.l.b16 %v5070
    %v5212 = vunpack.c.h.b16 %v5070
    %v5213 = vunpack.c.l.b16 %v5071
    %v5214 = vunpack.c.h.b16 %v5071
    %v5215 = vunpack.c.l.b16 %v5072
    %v5216 = vunpack.c.h.b16 %v5072
    %v5217 = vpack.c.b16 %v5209, %v5209
    %v5218 = vpack.c.b16 %v5210, %v5210
    %v5219 = vpack.c.b16 %v5211, %v5211
    %v5220 = vpack.c.b16 %v5212, %v5212
    %v5221 = vpack.c.b16 %v5213, %v5213
    %v5222 = vpack.c.b16 %v5214, %v5214
    %v5223 = vpack.c.b16 %v5215, %v5215
    %v5224 = vpack.c.b16 %v5216, %v5216
    %v5361 = vunpack.c.l.b16 %v5077
    %v5362 = vunpack.c.h.b16 %v5077
    %v5363 = vunpack.c.l.b16 %v5078
    %v5364 = vunpack.c.h.b16 %v5078
    %v5365 = vunpack.c.l.b16 %v5079
    %v5366 = vunpack.c.h.b16 %v5079
    %v5367 = vunpack.c.l.b16 %v5080
    %v5368 = vunpack.c.h.b16 %v5080
    %v5369 = vunpack.c.l.b16 %v5081
    %v5370 = vunpack.c.h.b16 %v5081
    %v5371 = vunpack.c.l.b16 %v5082
    %v5372 = vunpack.c.h.b16 %v5082
    %v5373 = vunpack.c.l.b16 %v5083
    %v5374 = vunpack.c.h.b16 %v5083
    %v5375 = vunpack.c.l.b16 %v5084
    %v5376 = vunpack.c.h.b16 %v5084
    %v5377 = vunpack.c.l.b16 %v5085
    %v5378 = vunpack.c.h.b16 %v5085
    %v5379 = vunpack.c.l.b16 %v5086
    %v5380 = vunpack.c.h.b16 %v5086
    %v5381 = vunpack.c.l.b16 %v5087
    %v5382 = vunpack.c.h.b16 %v5087
    %v5383 = vunpack.c.l.b16 %v5088
    %v5384 = vunpack.c.h.b16 %v5088
    %v5385 = vunpack.c.l.b16 %v5089
    %v5386 = vunpack.c.h.b16 %v5089
    %v5387 = vunpack.c.l.b16 %v5090
    %v5388 = vunpack.c.h.b16 %v5090
    %v5389 = vunpack.c.l.b16 %v5091
    %v5390 = vunpack.c.h.b16 %v5091
    %v5391 = vunpack.c.l.b16 %v5092
    %v5392 = vunpack.c.h.b16 %v5092
    %v5393 = vunpack.c.l.b16 %v5093
    %v5394 = vunpack.c.h.b16 %v5093
    %v5395 = vunpack.c.l.b16 %v5094
    %v5396 = vunpack.c.h.b16 %v5094
    %v5397 = vunpack.c.l.b16 %v5095
    %v5398 = vunpack.c.h.b16 %v5095
    %v5399 = vunpack.c.l.b16 %v5096
    %v5400 = vunpack.c.h.b16 %v5096
    %v5401 = vunpack.c.l.b16 %v5097
    %v5402 = vunpack.c.h.b16 %v5097
    %v5403 = vunpack.c.l.b16 %v5098
    %v5404 = vunpack.c.h.b16 %v5098
    %v5405 = vunpack.c.l.b16 %v5099
    %v5406 = vunpack.c.h.b16 %v5099
    %v5407 = vunpack.c.l.b16 %v5100
    %v5408 = vunpack.c.h.b16 %v5100
    %v5409 = vunpack.c.l.b16 %v5101
    %v5410 = vunpack.c.h.b16 %v5101
    %v5411 = vunpack.c.l.b16 %v5102
    %v5412 = vunpack.c.h.b16 %v5102
    %v5413 = vunpack.c.l.b16 %v5103
    %v5414 = vunpack.c.h.b16 %v5103
    %v5415 = vunpack.c.l.b16 %v5104
    %v5416 = vunpack.c.h.b16 %v5104
    %v5417 = vunpack.c.l.b16 %v5105
    %v5418 = vunpack.c.h.b16 %v5105
    %v5419 = vunpack.c.l.b16 %v5106
    %v5420 = vunpack.c.h.b16 %v5106
    %v5421 = vunpack.c.l.b16 %v5107
    %v5422 = vunpack.c.h.b16 %v5107
    %v5423 = vunpack.c.l.b16 %v5108
    %v5424 = vunpack.c.h.b16 %v5108
    %v5425 = vunpack.c.l.b16 %v5109
    %v5426 = vunpack.c.h.b16 %v5109
    %v5427 = vunpack.c.l.b16 %v5110
    %v5428 = vunpack.c.h.b16 %v5110
    %v5429 = vunpack.c.l.b16 %v5111
    %v5430 = vunpack.c.h.b16 %v5111
    %v5431 = vunpack.c.l.b16 %v5112
    %v5432 = vunpack.c.h.b16 %v5112
    %v5433 = vunpack.c.l.b16 %v5113
    %v5434 = vunpack.c.h.b16 %v5113
    %v5435 = vunpack.c.l.b16 %v5114
    %v5436 = vunpack.c.h.b16 %v5114
    %v5437 = vunpack.c.l.b16 %v5115
    %v5438 = vunpack.c.h.b16 %v5115
    %v5439 = vunpack.c.l.b16 %v5116
    %v5440 = vunpack.c.h.b16 %v5116
    %v5441 = vunpack.c.l.b16 %v5117
    %v5442 = vunpack.c.h.b16 %v5117
    %v5443 = vunpack.c.l.b16 %v5118
    %v5444 = vunpack.c.h.b16 %v5118
    %v5445 = vunpack.c.l.b16 %v5119
    %v5446 = vunpack.c.h.b16 %v5119
    %v5447 = vunpack.c.l.b16 %v5120
    %v5448 = vunpack.c.h.b16 %v5120
    %v5449 = vunpack.c.l.b16 %v5121
    %v5450 = vunpack.c.h.b16 %v5121
    %v5451 = vunpack.c.l.b16 %v5122
    %v5452 = vunpack.c.h.b16 %v5122
    %v5453 = vunpack.c.l.b16 %v5123
    %v5454 = vunpack.c.h.b16 %v5123
    %v5455 = vunpack.c.l.b16 %v5124
    %v5456 = vunpack.c.h.b16 %v5124
    %v5457 = vunpack.c.l.b16 %v5125
    %v5458 = vunpack.c.h.b16 %v5125
    %v5459 = vunpack.c.l.b16 %v5126
    %v5460 = vunpack.c.h.b16 %v5126
    %v5461 = vunpack.c.l.b16 %v5127
    %v5462 = vunpack.c.h.b16 %v5127
    %v5463 = vunpack.c.l.b16 %v5128
    %v5464 = vunpack.c.h.b16 %v5128
    %v5465 = vunpack.c.l.b16 %v5129
    %v5466 = vunpack.c.h.b16 %v5129
    %v5467 = vunpack.c.l.b16 %v5130
    %v5468 = vunpack.c.h.b16 %v5130
    %v5469 = vunpack.c.l.b16 %v5131
    %v5470 = vunpack.c.h.b16 %v5131
    %v5471 = vunpack.c.l.b16 %v5132
    %v5472 = vunpack.c.h.b16 %v5132
    %v5473 = vunpack.c.l.b16 %v5133
    %v5474 = vunpack.c.h.b16 %v5133
    %v5475 = vunpack.c.l.b16 %v5134
    %v5476 = vunpack.c.h.b16 %v5134
    %v5477 = vunpack.c.l.b16 %v5135
    %v5478 = vunpack.c.h.b16 %v5135
    %v5479 = vunpack.c.l.b16 %v5136
    %v5480 = vunpack.c.h.b16 %v5136
    %v5481 = vunpack.c.l.b16 %v5137
    %v5482 = vunpack.c.h.b16 %v5137
    %v5483 = vunpack.c.l.b16 %v5138
    %v5484 = vunpack.c.h.b16 %v5138
    %v5485 = vunpack.c.l.b16 %v5139
    %v5486 = vunpack.c.h.b16 %v5139
    %v5487 = vunpack.c.l.b16 %v5140
    %v5488 = vunpack.c.h.b16 %v5140
    %v5489 = vunpack.c.l.b16 %v5141
    %v5490 = vunpack.c.h.b16 %v5141
    %v5491 = vunpack.c.l.b16 %v5142
    %v5492 = vunpack.c.h.b16 %v5142
    %v5493 = vunpack.c.l.b16 %v5143
    %v5494 = vunpack.c.h.b16 %v5143
    %v5495 = vunpack.c.l.b16 %v5144
    %v5496 = vunpack.c.h.b16 %v5144
    %v5497 = vunpack.c.l.b16 %v5145
    %v5498 = vunpack.c.h.b16 %v5145
    %v5499 = vunpack.c.l.b16 %v5146
    %v5500 = vunpack.c.h.b16 %v5146
    %v5501 = vunpack.c.l.b16 %v5147
    %v5502 = vunpack.c.h.b16 %v5147
    %v5503 = vunpack.c.l.b16 %v5148
    %v5504 = vunpack.c.h.b16 %v5148
    %v5505 = vunpack.c.l.b16 %v5149
    %v5506 = vunpack.c.h.b16 %v5149
    %v5507 = vunpack.c.l.b16 %v5150
    %v5508 = vunpack.c.h.b16 %v5150
    %v5509 = vunpack.c.l.b16 %v5151
    %v5510 = vunpack.c.h.b16 %v5151
    %v5511 = vunpack.c.l.b16 %v5152
    %v5512 = vunpack.c.h.b16 %v5152
    %v5513 = vunpack.c.l.b16 %v5153
    %v5514 = vunpack.c.h.b16 %v5153
    %v5515 = vunpack.c.l.b16 %v5154
    %v5516 = vunpack.c.h.b16 %v5154
    %v5517 = vunpack.c.l.b16 %v5155
    %v5518 = vunpack.c.h.b16 %v5155
    %v5519 = vunpack.c.l.b16 %v5156
    %v5520 = vunpack.c.h.b16 %v5156
    %v5521 = vunpack.c.l.b16 %v5157
    %v5522 = vunpack.c.h.b16 %v5157
    %v5523 = vunpack.c.l.b16 %v5158
    %v5524 = vunpack.c.h.b16 %v5158
    %v5525 = vunpack.c.l.b16 %v5159
    %v5526 = vunpack.c.h.b16 %v5159
    %v5527 = vunpack.c.l.b16 %v5160
    %v5528 = vunpack.c.h.b16 %v5160
    %v5529 = vunpack.c.l.b16 %v5161
    %v5530 = vunpack.c.h.b16 %v5161
    %v5531 = vunpack.c.l.b16 %v5162
    %v5532 = vunpack.c.h.b16 %v5162
    %v5533 = vunpack.c.l.b16 %v5163
    %v5534 = vunpack.c.h.b16 %v5163
    %v5535 = vunpack.c.l.b16 %v5164
    %v5536 = vunpack.c.h.b16 %v5164
    %v5537 = vunpack.c.l.b16 %v5165
    %v5538 = vunpack.c.h.b16 %v5165
    %v5539 = vunpack.c.l.b16 %v5166
    %v5540 = vunpack.c.h.b16 %v5166
    %v5541 = vunpack.c.l.b16 %v5167
    %v5542 = vunpack.c.h.b16 %v5167
    %v5543 = vunpack.c.l.b16 %v5168
    %v5544 = vunpack.c.h.b16 %v5168
    %v5545 = vunpack.c.l.b16 %v5169
    %v5546 = vunpack.c.h.b16 %v5169
    %v5547 = vunpack.c.l.b16 %v5170
    %v5548 = vunpack.c.h.b16 %v5170
    %v5549 = vunpack.c.l.b16 %v5171
    %v5550 = vunpack.c.h.b16 %v5171
    %v5551 = vunpack.c.l.b16 %v5172
    %v5552 = vunpack.c.h.b16 %v5172
    %v5553 = vunpack.c.l.b16 %v5173
    %v5554 = vunpack.c.h.b16 %v5173
    %v5555 = vunpack.c.l.b16 %v5174
    %v5556 = vunpack.c.h.b16 %v5174
    %v5557 = vunpack.c.l.b16 %v5175
    %v5558 = vunpack.c.h.b16 %v5175
    %v5559 = vunpack.c.l.b16 %v5176
    %v5560 = vunpack.c.h.b16 %v5176
    %v5561 = vunpack.c.l.b16 %v5177
    %v5562 = vunpack.c.h.b16 %v5177
    %v5563 = vunpack.c.l.b16 %v5178
    %v5564 = vunpack.c.h.b16 %v5178
    %v5565 = vunpack.c.l.b16 %v5179
    %v5566 = vunpack.c.h.b16 %v5179
    %v5567 = vunpack.c.l.b16 %v5180
    %v5568 = vunpack.c.h.b16 %v5180
    %v5569 = vunpack.c.l.b16 %v5181
    %v5570 = vunpack.c.h.b16 %v5181
    %v5571 = vunpack.c.l.b16 %v5182
    %v5572 = vunpack.c.h.b16 %v5182
    %v5573 = vunpack.c.l.b16 %v5183
    %v5574 = vunpack.c.h.b16 %v5183
    %v5575 = vunpack.c.l.b16 %v5184
    %v5576 = vunpack.c.h.b16 %v5184
    %v5577 = vunpack.c.l.b16 %v5185
    %v5578 = vunpack.c.h.b16 %v5185
    %v5579 = vunpack.c.l.b16 %v5186
    %v5580 = vunpack.c.h.b16 %v5186
    %v5581 = vunpack.c.l.b16 %v5187
    %v5582 = vunpack.c.h.b16 %v5187
    %v5583 = vunpack.c.l.b16 %v5188
    %v5584 = vunpack.c.h.b16 %v5188
    %v5585 = vunpack.c.l.b16 %v5189
    %v5586 = vunpack.c.h.b16 %v5189
    %v5587 = vunpack.c.l.b16 %v5190
    %v5588 = vunpack.c.h.b16 %v5190
    %v5589 = vunpack.c.l.b16 %v5191
    %v5590 = vunpack.c.h.b16 %v5191
    %v5591 = vunpack.c.l.b16 %v5192
    %v5592 = vunpack.c.h.b16 %v5192
    %v5593 = vunpack.c.l.b16 %v5193
    %v5594 = vunpack.c.h.b16 %v5193
    %v5595 = vunpack.c.l.b16 %v5194
    %v5596 = vunpack.c.h.b16 %v5194
    %v5597 = vunpack.c.l.b16 %v5195
    %v5598 = vunpack.c.h.b16 %v5195
    %v5599 = vunpack.c.l.b16 %v5196
    %v5600 = vunpack.c.h.b16 %v5196
    %v5601 = vunpack.c.l.b16 %v5197
    %v5602 = vunpack.c.h.b16 %v5197
    %v5603 = vunpack.c.l.b16 %v5198
    %v5604 = vunpack.c.h.b16 %v5198
    %v5605 = vunpack.c.l.b16 %v5199
    %v5606 = vunpack.c.h.b16 %v5199
    %v5607 = vunpack.c.l.b16 %v5200
    %v5608 = vunpack.c.h.b16 %v5200
    %v5609 = vunpack.c.l.b16 %v5201
    %v5610 = vunpack.c.h.b16 %v5201
    %v5611 = vunpack.c.l.b16 %v5202
    %v5612 = vunpack.c.h.b16 %v5202
    %v5613 = vunpack.c.l.b16 %v5203
    %v5614 = vunpack.c.h.b16 %v5203
    %v5615 = vunpack.c.l.b16 %v5204
    %v5616 = vunpack.c.h.b16 %v5204
    %v5617 = vpack.c.b16 %v5363, %v5361
    %v5618 = vpack.c.b16 %v5364, %v5362
    %v5619 = vpack.c.b16 %v5367, %v5365
    %v5620 = vpack.c.b16 %v5368, %v5366
    %v5621 = vpack.c.b16 %v5371, %v5369
    %v5622 = vpack.c.b16 %v5372, %v5370
    %v5623 = vpack.c.b16 %v5375, %v5373
    %v5624 = vpack.c.b16 %v5376, %v5374
    %v5625 = vpack.c.b16 %v5379, %v5377
    %v5626 = vpack.c.b16 %v5380, %v5378
    %v5627 = vpack.c.b16 %v5383, %v5381
    %v5628 = vpack.c.b16 %v5384, %v5382
    %v5629 = vpack.c.b16 %v5387, %v5385
    %v5630 = vpack.c.b16 %v5388, %v5386
    %v5631 = vpack.c.b16 %v5391, %v5389
    %v5632 = vpack.c.b16 %v5392, %v5390
    %v5633 = vpack.c.b16 %v5395, %v5393
    %v5634 = vpack.c.b16 %v5396, %v5394
    %v5635 = vpack.c.b16 %v5399, %v5397
    %v5636 = vpack.c.b16 %v5400, %v5398
    %v5637 = vpack.c.b16 %v5403, %v5401
    %v5638 = vpack.c.b16 %v5404, %v5402
    %v5639 = vpack.c.b16 %v5407, %v5405
    %v5640 = vpack.c.b16 %v5408, %v5406
    %v5641 = vpack.c.b16 %v5411, %v5409
    %v5642 = vpack.c.b16 %v5412, %v5410
    %v5643 = vpack.c.b16 %v5415, %v5413
    %v5644 = vpack.c.b16 %v5416, %v5414
    %v5645 = vpack.c.b16 %v5419, %v5417
    %v5646 = vpack.c.b16 %v5420, %v5418
    %v5647 = vpack.c.b16 %v5423, %v5421
    %v5648 = vpack.c.b16 %v5424, %v5422
    %v5649 = vpack.c.b16 %v5427, %v5425
    %v5650 = vpack.c.b16 %v5428, %v5426
    %v5651 = vpack.c.b16 %v5431, %v5429
    %v5652 = vpack.c.b16 %v5432, %v5430
    %v5653 = vpack.c.b16 %v5435, %v5433
    %v5654 = vpack.c.b16 %v5436, %v5434
    %v5655 = vpack.c.b16 %v5439, %v5437
    %v5656 = vpack.c.b16 %v5440, %v5438
    %v5657 = vpack.c.b16 %v5443, %v5441
    %v5658 = vpack.c.b16 %v5444, %v5442
    %v5659 = vpack.c.b16 %v5447, %v5445
    %v5660 = vpack.c.b16 %v5448, %v5446
    %v5661 = vpack.c.b16 %v5451, %v5449
    %v5662 = vpack.c.b16 %v5452, %v5450
    %v5663 = vpack.c.b16 %v5455, %v5453
    %v5664 = vpack.c.b16 %v5456, %v5454
    %v5665 = vpack.c.b16 %v5459, %v5457
    %v5666 = vpack.c.b16 %v5460, %v5458
    %v5667 = vpack.c.b16 %v5463, %v5461
    %v5668 = vpack.c.b16 %v5464, %v5462
    %v5669 = vpack.c.b16 %v5467, %v5465
    %v5670 = vpack.c.b16 %v5468, %v5466
    %v5671 = vpack.c.b16 %v5471, %v5469
    %v5672 = vpack.c.b16 %v5472, %v5470
    %v5673 = vpack.c.b16 %v5475, %v5473
    %v5674 = vpack.c.b16 %v5476, %v5474
    %v5675 = vpack.c.b16 %v5479, %v5477
    %v5676 = vpack.c.b16 %v5480, %v5478
    %v5677 = vpack.c.b16 %v5483, %v5481
    %v5678 = vpack.c.b16 %v5484, %v5482
    %v5679 = vpack.c.b16 %v5487, %v5485
    %v5680 = vpack.c.b16 %v5488, %v5486
    %v5681 = vpack.c.b16 %v5491, %v5489
    %v5682 = vpack.c.b16 %v5492, %v5490
    %v5683 = vpack.c.b16 %v5495, %v5493
    %v5684 = vpack.c.b16 %v5496, %v5494
    %v5685 = vpack.c.b16 %v5499, %v5497
    %v5686 = vpack.c.b16 %v5500, %v5498
    %v5687 = vpack.c.b16 %v5503, %v5501
    %v5688 = vpack.c.b16 %v5504, %v5502
    %v5689 = vpack.c.b16 %v5507, %v5505
    %v5690 = vpack.c.b16 %v5508, %v5506
    %v5691 = vpack.c.b16 %v5511, %v5509
    %v5692 = vpack.c.b16 %v5512, %v5510
    %v5693 = vpack.c.b16 %v5515, %v5513
    %v5694 = vpack.c.b16 %v5516, %v5514
    %v5695 = vpack.c.b16 %v5519, %v5517
    %v5696 = vpack.c.b16 %v5520, %v5518
    %v5697 = vpack.c.b16 %v5523, %v5521
    %v5698 = vpack.c.b16 %v5524, %v5522
    %v5699 = vpack.c.b16 %v5527, %v5525
    %v5700 = vpack.c.b16 %v5528, %v5526
    %v5701 = vpack.c.b16 %v5531, %v5529
    %v5702 = vpack.c.b16 %v5532, %v5530
    %v5703 = vpack.c.b16 %v5535, %v5533
    %v5704 = vpack.c.b16 %v5536, %v5534
    %v5705 = vpack.c.b16 %v5539, %v5537
    %v5706 = vpack.c.b16 %v5540, %v5538
    %v5707 = vpack.c.b16 %v5543, %v5541
    %v5708 = vpack.c.b16 %v5544, %v5542
    %v5709 = vpack.c.b16 %v5547, %v5545
    %v5710 = vpack.c.b16 %v5548, %v5546
    %v5711 = vpack.c.b16 %v5551, %v5549
    %v5712 = vpack.c.b16 %v5552, %v5550
    %v5713 = vpack.c.b16 %v5555, %v5553
    %v5714 = vpack.c.b16 %v5556, %v5554
    %v5715 = vpack.c.b16 %v5559, %v5557
    %v5716 = vpack.c.b16 %v5560, %v5558
    %v5717 = vpack.c.b16 %v5563, %v5561
    %v5718 = vpack.c.b16 %v5564, %v5562
    %v5719 = vpack.c.b16 %v5567, %v5565
    %v5720 = vpack.c.b16 %v5568, %v5566
    %v5721 = vpack.c.b16 %v5571, %v5569
    %v5722 = vpack.c.b16 %v5572, %v5570
    %v5723 = vpack.c.b16 %v5575, %v5573
    %v5724 = vpack.c.b16 %v5576, %v5574
    %v5725 = vpack.c.b16 %v5579, %v5577
    %v5726 = vpack.c.b16 %v5580, %v5578
    %v5727 = vpack.c.b16 %v5583, %v5581
    %v5728 = vpack.c.b16 %v5584, %v5582
    %v5729 = vpack.c.b16 %v5587, %v5585
    %v5730 = vpack.c.b16 %v5588, %v5586
    %v5731 = vpack.c.b16 %v5591, %v5589
    %v5732 = vpack.c.b16 %v5592, %v5590
    %v5733 = vpack.c.b16 %v5595, %v5593
    %v5734 = vpack.c.b16 %v5596, %v5594
    %v5735 = vpack.c.b16 %v5599, %v5597
    %v5736 = vpack.c.b16 %v5600, %v5598
    %v5737 = vpack.c.b16 %v5603, %v5601
    %v5738 = vpack.c.b16 %v5604, %v5602
    %v5739 = vpack.c.b16 %v5607, %v5605
    %v5740 = vpack.c.b16 %v5608, %v5606
    %v5741 = vpack.c.b16 %v5611, %v5609
    %v5742 = vpack.c.b16 %v5612, %v5610
    %v5743 = vpack.c.b16 %v5615, %v5613
    %v5744 = vpack.c.b16 %v5616, %v5614
    %5873 = vmatpush.bf16.msra.mxu0 %v5631
    %5874 = vmatpush.bf16.msra.mxu0 %v5629
    %5875 = vmatpush.bf16.msra.mxu0 %v5627
    %5876 = vmatpush.bf16.msra.mxu0 %v5625
    %5877 = vmatpush.bf16.msra.mxu0 %v5623
    %5878 = vmatpush.bf16.msra.mxu0 %v5621
    %5879 = vmatpush.bf16.msra.mxu0 %v5619
    %5880 = vmatpush.bf16.msra.mxu0 %v5617
    %5881 = vmatmul.bf16.gmra.mxu0 %v5217
    %v5882 = vpop.f32.mrf.mxu0
    %v5883 = vadd.f32 0.0, %v5882
    %v5884 = vpop.f32.mrf.mxu0
    %5885 = vdwg.mxu0
    %5886 = vmatpush.bf16.msra.mxu0 %v5647
    %5887 = vmatpush.bf16.msra.mxu0 %v5645
    %5888 = vmatpush.bf16.msra.mxu0 %v5643
    %5889 = vmatpush.bf16.msra.mxu0 %v5641
    %5890 = vmatpush.bf16.msra.mxu0 %v5639
    %5891 = vmatpush.bf16.msra.mxu0 %v5637
    %5892 = vmatpush.bf16.msra.mxu0 %v5635
    %5893 = vmatpush.bf16.msra.mxu0 %v5633
    %5894 = vmatmul.bf16.gmra.mxu0 %v5218
    %v5895 = vpop.f32.mrf.mxu0
    %v5896 = vadd.f32 %v5883, %v5895
    %v5897 = vpop.f32.mrf.mxu0
    %5898 = vdwg.mxu0
    %5899 = vmatpush.bf16.msra.mxu0 %v5663
    %5900 = vmatpush.bf16.msra.mxu0 %v5661
    %5901 = vmatpush.bf16.msra.mxu0 %v5659
    %5902 = vmatpush.bf16.msra.mxu0 %v5657
    %5903 = vmatpush.bf16.msra.mxu0 %v5655
    %5904 = vmatpush.bf16.msra.mxu0 %v5653
    %5905 = vmatpush.bf16.msra.mxu0 %v5651
    %5906 = vmatpush.bf16.msra.mxu0 %v5649
    %5907 = vmatmul.bf16.gmra.mxu0 %v5219
    %v5908 = vpop.f32.mrf.mxu0
    %v5909 = vadd.f32 %v5896, %v5908
    %v5910 = vpop.f32.mrf.mxu0
    %5911 = vdwg.mxu0
    %5912 = vmatpush.bf16.msra.mxu0 %v5679
    %5913 = vmatpush.bf16.msra.mxu0 %v5677
    %5914 = vmatpush.bf16.msra.mxu0 %v5675
    %5915 = vmatpush.bf16.msra.mxu0 %v5673
    %5916 = vmatpush.bf16.msra.mxu0 %v5671
    %5917 = vmatpush.bf16.msra.mxu0 %v5669
    %5918 = vmatpush.bf16.msra.mxu0 %v5667
    %5919 = vmatpush.bf16.msra.mxu0 %v5665
    %5920 = vmatmul.bf16.gmra.mxu0 %v5220
    %v5921 = vpop.f32.mrf.mxu0
    %v5922 = vadd.f32 %v5909, %v5921
    %v5923 = vpop.f32.mrf.mxu0
    %5924 = vdwg.mxu0
    %5925 = vmatpush.bf16.msra.mxu0 %v5695
    %5926 = vmatpush.bf16.msra.mxu0 %v5693
    %5927 = vmatpush.bf16.msra.mxu0 %v5691
    %5928 = vmatpush.bf16.msra.mxu0 %v5689
    %5929 = vmatpush.bf16.msra.mxu0 %v5687
    %5930 = vmatpush.bf16.msra.mxu0 %v5685
    %5931 = vmatpush.bf16.msra.mxu0 %v5683
    %5932 = vmatpush.bf16.msra.mxu0 %v5681
    %5933 = vmatmul.bf16.gmra.mxu0 %v5221
    %v5934 = vpop.f32.mrf.mxu0
    %v5935 = vadd.f32 %v5922, %v5934
    %v5936 = vpop.f32.mrf.mxu0
    %5937 = vdwg.mxu0
    %5938 = vmatpush.bf16.msra.mxu0 %v5711
    %5939 = vmatpush.bf16.msra.mxu0 %v5709
    %5940 = vmatpush.bf16.msra.mxu0 %v5707
    %5941 = vmatpush.bf16.msra.mxu0 %v5705
    %5942 = vmatpush.bf16.msra.mxu0 %v5703
    %5943 = vmatpush.bf16.msra.mxu0 %v5701
    %5944 = vmatpush.bf16.msra.mxu0 %v5699
    %5945 = vmatpush.bf16.msra.mxu0 %v5697
    %5946 = vmatmul.bf16.gmra.mxu0 %v5222
    %v5947 = vpop.f32.mrf.mxu0
    %v5948 = vadd.f32 %v5935, %v5947
    %v5949 = vpop.f32.mrf.mxu0
    %5950 = vdwg.mxu0
    %5951 = vmatpush.bf16.msra.mxu0 %v5727
    %5952 = vmatpush.bf16.msra.mxu0 %v5725
    %5953 = vmatpush.bf16.msra.mxu0 %v5723
    %5954 = vmatpush.bf16.msra.mxu0 %v5721
    %5955 = vmatpush.bf16.msra.mxu0 %v5719
    %5956 = vmatpush.bf16.msra.mxu0 %v5717
    %5957 = vmatpush.bf16.msra.mxu0 %v5715
    %5958 = vmatpush.bf16.msra.mxu0 %v5713
    %5959 = vmatmul.bf16.gmra.mxu0 %v5223
    %v5960 = vpop.f32.mrf.mxu0
    %v5961 = vadd.f32 %v5948, %v5960
    %v5962 = vpop.f32.mrf.mxu0
    %5963 = vdwg.mxu0
    %5964 = vmatpush.bf16.msra.mxu0 %v5743
    %5965 = vmatpush.bf16.msra.mxu0 %v5741
    %5966 = vmatpush.bf16.msra.mxu0 %v5739
    %5967 = vmatpush.bf16.msra.mxu0 %v5737
    %5968 = vmatpush.bf16.msra.mxu0 %v5735
    %5969 = vmatpush.bf16.msra.mxu0 %v5733
    %5970 = vmatpush.bf16.msra.mxu0 %v5731
    %5971 = vmatpush.bf16.msra.mxu0 %v5729
    %5972 = vmatmul.bf16.gmra.mxu0 %v5224
    %v5973 = vpop.f32.mrf.mxu0
    %v5974 = vadd.f32 %v5961, %v5973
    %v5975 = vpop.f32.mrf.mxu0
    %5976 = vdwg.mxu0
    %5977 = vmatpush.bf16.msra.mxu0 %v5632
    %5978 = vmatpush.bf16.msra.mxu0 %v5630
    %5979 = vmatpush.bf16.msra.mxu0 %v5628
    %5980 = vmatpush.bf16.msra.mxu0 %v5626
    %5981 = vmatpush.bf16.msra.mxu0 %v5624
    %5982 = vmatpush.bf16.msra.mxu0 %v5622
    %5983 = vmatpush.bf16.msra.mxu0 %v5620
    %5984 = vmatpush.bf16.msra.mxu0 %v5618
    %5985 = vmatmul.bf16.gmra.mxu0 %v5217
    %v5986 = vpop.f32.mrf.mxu0
    %v5987 = vadd.f32 0.0, %v5986
    %v5988 = vpop.f32.mrf.mxu0
    %5989 = vdwg.mxu0
    %5990 = vmatpush.bf16.msra.mxu0 %v5648
    %5991 = vmatpush.bf16.msra.mxu0 %v5646
    %5992 = vmatpush.bf16.msra.mxu0 %v5644
    %5993 = vmatpush.bf16.msra.mxu0 %v5642
    %5994 = vmatpush.bf16.msra.mxu0 %v5640
    %5995 = vmatpush.bf16.msra.mxu0 %v5638
    %5996 = vmatpush.bf16.msra.mxu0 %v5636
    %5997 = vmatpush.bf16.msra.mxu0 %v5634
    %5998 = vmatmul.bf16.gmra.mxu0 %v5218
    %v5999 = vpop.f32.mrf.mxu0
    %v6000 = vadd.f32 %v5987, %v5999
    %v6001 = vpop.f32.mrf.mxu0
    %6002 = vdwg.mxu0
    %6003 = vmatpush.bf16.msra.mxu0 %v5664
    %6004 = vmatpush.bf16.msra.mxu0 %v5662
    %6005 = vmatpush.bf16.msra.mxu0 %v5660
    %6006 = vmatpush.bf16.msra.mxu0 %v5658
    %6007 = vmatpush.bf16.msra.mxu0 %v5656
    %6008 = vmatpush.bf16.msra.mxu0 %v5654
    %6009 = vmatpush.bf16.msra.mxu0 %v5652
    %6010 = vmatpush.bf16.msra.mxu0 %v5650
    %6011 = vmatmul.bf16.gmra.mxu0 %v5219
    %v6012 = vpop.f32.mrf.mxu0
    %v6013 = vadd.f32 %v6000, %v6012
    %v6014 = vpop.f32.mrf.mxu0
    %6015 = vdwg.mxu0
    %6016 = vmatpush.bf16.msra.mxu0 %v5680
    %6017 = vmatpush.bf16.msra.mxu0 %v5678
    %6018 = vmatpush.bf16.msra.mxu0 %v5676
    %6019 = vmatpush.bf16.msra.mxu0 %v5674
    %6020 = vmatpush.bf16.msra.mxu0 %v5672
    %6021 = vmatpush.bf16.msra.mxu0 %v5670
    %6022 = vmatpush.bf16.msra.mxu0 %v5668
    %6023 = vmatpush.bf16.msra.mxu0 %v5666
    %6024 = vmatmul.bf16.gmra.mxu0 %v5220
    %v6025 = vpop.f32.mrf.mxu0
    %v6026 = vadd.f32 %v6013, %v6025
    %v6027 = vpop.f32.mrf.mxu0
    %6028 = vdwg.mxu0
    %6029 = vmatpush.bf16.msra.mxu0 %v5696
    %6030 = vmatpush.bf16.msra.mxu0 %v5694
    %6031 = vmatpush.bf16.msra.mxu0 %v5692
    %6032 = vmatpush.bf16.msra.mxu0 %v5690
    %6033 = vmatpush.bf16.msra.mxu0 %v5688
    %6034 = vmatpush.bf16.msra.mxu0 %v5686
    %6035 = vmatpush.bf16.msra.mxu0 %v5684
    %6036 = vmatpush.bf16.msra.mxu0 %v5682
    %6037 = vmatmul.bf16.gmra.mxu0 %v5221
    %v6038 = vpop.f32.mrf.mxu0
    %v6039 = vadd.f32 %v6026, %v6038
    %v6040 = vpop.f32.mrf.mxu0
    %6041 = vdwg.mxu0
    %6042 = vmatpush.bf16.msra.mxu0 %v5712
    %6043 = vmatpush.bf16.msra.mxu0 %v5710
    %6044 = vmatpush.bf16.msra.mxu0 %v5708
    %6045 = vmatpush.bf16.msra.mxu0 %v5706
    %6046 = vmatpush.bf16.msra.mxu0 %v5704
    %6047 = vmatpush.bf16.msra.mxu0 %v5702
    %6048 = vmatpush.bf16.msra.mxu0 %v5700
    %6049 = vmatpush.bf16.msra.mxu0 %v5698
    %6050 = vmatmul.bf16.gmra.mxu0 %v5222
    %v6051 = vpop.f32.mrf.mxu0
    %v6052 = vadd.f32 %v6039, %v6051
    %v6053 = vpop.f32.mrf.mxu0
    %6054 = vdwg.mxu0
    %6055 = vmatpush.bf16.msra.mxu0 %v5728
    %6056 = vmatpush.bf16.msra.mxu0 %v5726
    %6057 = vmatpush.bf16.msra.mxu0 %v5724
    %6058 = vmatpush.bf16.msra.mxu0 %v5722
    %6059 = vmatpush.bf16.msra.mxu0 %v5720
    %6060 = vmatpush.bf16.msra.mxu0 %v5718
    %6061 = vmatpush.bf16.msra.mxu0 %v5716
    %6062 = vmatpush.bf16.msra.mxu0 %v5714
    %6063 = vmatmul.bf16.gmra.mxu0 %v5223
    %v6064 = vpop.f32.mrf.mxu0
    %v6065 = vadd.f32 %v6052, %v6064
    %v6066 = vpop.f32.mrf.mxu0
    %6067 = vdwg.mxu0
    %6068 = vmatpush.bf16.msra.mxu0 %v5744
    %6069 = vmatpush.bf16.msra.mxu0 %v5742
    %6070 = vmatpush.bf16.msra.mxu0 %v5740
    %6071 = vmatpush.bf16.msra.mxu0 %v5738
    %6072 = vmatpush.bf16.msra.mxu0 %v5736
    %6073 = vmatpush.bf16.msra.mxu0 %v5734
    %6074 = vmatpush.bf16.msra.mxu0 %v5732
    %6075 = vmatpush.bf16.msra.mxu0 %v5730
    %6076 = vmatmul.bf16.gmra.mxu0 %v5224
    %v6077 = vpop.f32.mrf.mxu0
    %v6078 = vadd.f32 %v6065, %v6077
    %v6079 = vpop.f32.mrf.mxu0
    %6080 = vdwg.mxu0
    %v6081 = vadd.f32 %v2037, %v5974
    %v6082 = vadd.f32 %v2038, %v6078
    %v6083 = vld [vmem:[#allocation19 + $0x400] sm:$0xff]
    %v6084 = vld [vmem:[#allocation19 + $0x408] sm:$0xff]
    %v6085 = vld [vmem:[#allocation19 + $0x410] sm:$0xff]
    %v6086 = vld [vmem:[#allocation19 + $0x418] sm:$0xff]
    %v6087 = vld [vmem:[#allocation19 + $0x420] sm:$0xff]
    %v6088 = vld [vmem:[#allocation19 + $0x428] sm:$0xff]
    %v6089 = vld [vmem:[#allocation19 + $0x430] sm:$0xff]
    %v6090 = vld [vmem:[#allocation19 + $0x438] sm:$0xff]
    %v6091 = vld [vmem:[#allocation19 + $0x440] sm:$0xff]
    %v6092 = vld [vmem:[#allocation19 + $0x448] sm:$0xff]
    %v6093 = vld [vmem:[#allocation19 + $0x450] sm:$0xff]
    %v6094 = vld [vmem:[#allocation19 + $0x458] sm:$0xff]
    %v6095 = vld [vmem:[#allocation19 + $0x460] sm:$0xff]
    %v6096 = vld [vmem:[#allocation19 + $0x468] sm:$0xff]
    %v6097 = vld [vmem:[#allocation19 + $0x470] sm:$0xff]
    %v6098 = vld [vmem:[#allocation19 + $0x478] sm:$0xff]
    %v6099 = vld [vmem:[#allocation19 + $0x480] sm:$0xff]
    %v6100 = vld [vmem:[#allocation19 + $0x488] sm:$0xff]
    %v6101 = vld [vmem:[#allocation19 + $0x490] sm:$0xff]
    %v6102 = vld [vmem:[#allocation19 + $0x498] sm:$0xff]
    %v6103 = vld [vmem:[#allocation19 + $0x4a0] sm:$0xff]
    %v6104 = vld [vmem:[#allocation19 + $0x4a8] sm:$0xff]
    %v6105 = vld [vmem:[#allocation19 + $0x4b0] sm:$0xff]
    %v6106 = vld [vmem:[#allocation19 + $0x4b8] sm:$0xff]
    %v6107 = vld [vmem:[#allocation19 + $0x4c0] sm:$0xff]
    %v6108 = vld [vmem:[#allocation19 + $0x4c8] sm:$0xff]
    %v6109 = vld [vmem:[#allocation19 + $0x4d0] sm:$0xff]
    %v6110 = vld [vmem:[#allocation19 + $0x4d8] sm:$0xff]
    %v6111 = vld [vmem:[#allocation19 + $0x4e0] sm:$0xff]
    %v6112 = vld [vmem:[#allocation19 + $0x4e8] sm:$0xff]
    %v6113 = vld [vmem:[#allocation19 + $0x4f0] sm:$0xff]
    %v6114 = vld [vmem:[#allocation19 + $0x4f8] sm:$0xff]
    %v6115 = vld [vmem:[#allocation19 + $0x500] sm:$0xff]
    %v6116 = vld [vmem:[#allocation19 + $0x508] sm:$0xff]
    %v6117 = vld [vmem:[#allocation19 + $0x510] sm:$0xff]
    %v6118 = vld [vmem:[#allocation19 + $0x518] sm:$0xff]
    %v6119 = vld [vmem:[#allocation19 + $0x520] sm:$0xff]
    %v6120 = vld [vmem:[#allocation19 + $0x528] sm:$0xff]
    %v6121 = vld [vmem:[#allocation19 + $0x530] sm:$0xff]
    %v6122 = vld [vmem:[#allocation19 + $0x538] sm:$0xff]
    %v6123 = vld [vmem:[#allocation19 + $0x540] sm:$0xff]
    %v6124 = vld [vmem:[#allocation19 + $0x548] sm:$0xff]
    %v6125 = vld [vmem:[#allocation19 + $0x550] sm:$0xff]
    %v6126 = vld [vmem:[#allocation19 + $0x558] sm:$0xff]
    %v6127 = vld [vmem:[#allocation19 + $0x560] sm:$0xff]
    %v6128 = vld [vmem:[#allocation19 + $0x568] sm:$0xff]
    %v6129 = vld [vmem:[#allocation19 + $0x570] sm:$0xff]
    %v6130 = vld [vmem:[#allocation19 + $0x578] sm:$0xff]
    %v6131 = vld [vmem:[#allocation19 + $0x580] sm:$0xff]
    %v6132 = vld [vmem:[#allocation19 + $0x588] sm:$0xff]
    %v6133 = vld [vmem:[#allocation19 + $0x590] sm:$0xff]
    %v6134 = vld [vmem:[#allocation19 + $0x598] sm:$0xff]
    %v6135 = vld [vmem:[#allocation19 + $0x5a0] sm:$0xff]
    %v6136 = vld [vmem:[#allocation19 + $0x5a8] sm:$0xff]
    %v6137 = vld [vmem:[#allocation19 + $0x5b0] sm:$0xff]
    %v6138 = vld [vmem:[#allocation19 + $0x5b8] sm:$0xff]
    %v6139 = vld [vmem:[#allocation19 + $0x5c0] sm:$0xff]
    %v6140 = vld [vmem:[#allocation19 + $0x5c8] sm:$0xff]
    %v6141 = vld [vmem:[#allocation19 + $0x5d0] sm:$0xff]
    %v6142 = vld [vmem:[#allocation19 + $0x5d8] sm:$0xff]
    %v6143 = vld [vmem:[#allocation19 + $0x5e0] sm:$0xff]
    %v6144 = vld [vmem:[#allocation19 + $0x5e8] sm:$0xff]
    %v6145 = vld [vmem:[#allocation19 + $0x5f0] sm:$0xff]
    %v6146 = vld [vmem:[#allocation19 + $0x5f8] sm:$0xff]
    %v6147 = vld [vmem:[#allocation19 + $0x600] sm:$0xff]
    %v6148 = vld [vmem:[#allocation19 + $0x608] sm:$0xff]
    %v6149 = vld [vmem:[#allocation19 + $0x610] sm:$0xff]
    %v6150 = vld [vmem:[#allocation19 + $0x618] sm:$0xff]
    %v6151 = vld [vmem:[#allocation19 + $0x620] sm:$0xff]
    %v6152 = vld [vmem:[#allocation19 + $0x628] sm:$0xff]
    %v6153 = vld [vmem:[#allocation19 + $0x630] sm:$0xff]
    %v6154 = vld [vmem:[#allocation19 + $0x638] sm:$0xff]
    %v6155 = vld [vmem:[#allocation19 + $0x640] sm:$0xff]
    %v6156 = vld [vmem:[#allocation19 + $0x648] sm:$0xff]
    %v6157 = vld [vmem:[#allocation19 + $0x650] sm:$0xff]
    %v6158 = vld [vmem:[#allocation19 + $0x658] sm:$0xff]
    %v6159 = vld [vmem:[#allocation19 + $0x660] sm:$0xff]
    %v6160 = vld [vmem:[#allocation19 + $0x668] sm:$0xff]
    %v6161 = vld [vmem:[#allocation19 + $0x670] sm:$0xff]
    %v6162 = vld [vmem:[#allocation19 + $0x678] sm:$0xff]
    %v6163 = vld [vmem:[#allocation19 + $0x680] sm:$0xff]
    %v6164 = vld [vmem:[#allocation19 + $0x688] sm:$0xff]
    %v6165 = vld [vmem:[#allocation19 + $0x690] sm:$0xff]
    %v6166 = vld [vmem:[#allocation19 + $0x698] sm:$0xff]
    %v6167 = vld [vmem:[#allocation19 + $0x6a0] sm:$0xff]
    %v6168 = vld [vmem:[#allocation19 + $0x6a8] sm:$0xff]
    %v6169 = vld [vmem:[#allocation19 + $0x6b0] sm:$0xff]
    %v6170 = vld [vmem:[#allocation19 + $0x6b8] sm:$0xff]
    %v6171 = vld [vmem:[#allocation19 + $0x6c0] sm:$0xff]
    %v6172 = vld [vmem:[#allocation19 + $0x6c8] sm:$0xff]
    %v6173 = vld [vmem:[#allocation19 + $0x6d0] sm:$0xff]
    %v6174 = vld [vmem:[#allocation19 + $0x6d8] sm:$0xff]
    %v6175 = vld [vmem:[#allocation19 + $0x6e0] sm:$0xff]
    %v6176 = vld [vmem:[#allocation19 + $0x6e8] sm:$0xff]
    %v6177 = vld [vmem:[#allocation19 + $0x6f0] sm:$0xff]
    %v6178 = vld [vmem:[#allocation19 + $0x6f8] sm:$0xff]
    %v6179 = vld [vmem:[#allocation19 + $0x700] sm:$0xff]
    %v6180 = vld [vmem:[#allocation19 + $0x708] sm:$0xff]
    %v6181 = vld [vmem:[#allocation19 + $0x710] sm:$0xff]
    %v6182 = vld [vmem:[#allocation19 + $0x718] sm:$0xff]
    %v6183 = vld [vmem:[#allocation19 + $0x720] sm:$0xff]
    %v6184 = vld [vmem:[#allocation19 + $0x728] sm:$0xff]
    %v6185 = vld [vmem:[#allocation19 + $0x730] sm:$0xff]
    %v6186 = vld [vmem:[#allocation19 + $0x738] sm:$0xff]
    %v6187 = vld [vmem:[#allocation19 + $0x740] sm:$0xff]
    %v6188 = vld [vmem:[#allocation19 + $0x748] sm:$0xff]
    %v6189 = vld [vmem:[#allocation19 + $0x750] sm:$0xff]
    %v6190 = vld [vmem:[#allocation19 + $0x758] sm:$0xff]
    %v6191 = vld [vmem:[#allocation19 + $0x760] sm:$0xff]
    %v6192 = vld [vmem:[#allocation19 + $0x768] sm:$0xff]
    %v6193 = vld [vmem:[#allocation19 + $0x770] sm:$0xff]
    %v6194 = vld [vmem:[#allocation19 + $0x778] sm:$0xff]
    %v6195 = vld [vmem:[#allocation19 + $0x780] sm:$0xff]
    %v6196 = vld [vmem:[#allocation19 + $0x788] sm:$0xff]
    %v6197 = vld [vmem:[#allocation19 + $0x790] sm:$0xff]
    %v6198 = vld [vmem:[#allocation19 + $0x798] sm:$0xff]
    %v6199 = vld [vmem:[#allocation19 + $0x7a0] sm:$0xff]
    %v6200 = vld [vmem:[#allocation19 + $0x7a8] sm:$0xff]
    %v6201 = vld [vmem:[#allocation19 + $0x7b0] sm:$0xff]
    %v6202 = vld [vmem:[#allocation19 + $0x7b8] sm:$0xff]
    %v6203 = vld [vmem:[#allocation19 + $0x7c0] sm:$0xff]
    %v6204 = vld [vmem:[#allocation19 + $0x7c8] sm:$0xff]
    %v6205 = vld [vmem:[#allocation19 + $0x7d0] sm:$0xff]
    %v6206 = vld [vmem:[#allocation19 + $0x7d8] sm:$0xff]
    %v6207 = vld [vmem:[#allocation19 + $0x7e0] sm:$0xff]
    %v6208 = vld [vmem:[#allocation19 + $0x7e8] sm:$0xff]
    %v6209 = vld [vmem:[#allocation19 + $0x7f0] sm:$0xff]
    %v6210 = vld [vmem:[#allocation19 + $0x7f8] sm:$0xff]
    %v6215 = vunpack.c.l.b16 %v5073
    %v6216 = vunpack.c.h.b16 %v5073
    %v6217 = vunpack.c.l.b16 %v5074
    %v6218 = vunpack.c.h.b16 %v5074
    %v6219 = vunpack.c.l.b16 %v5075
    %v6220 = vunpack.c.h.b16 %v5075
    %v6221 = vunpack.c.l.b16 %v5076
    %v6222 = vunpack.c.h.b16 %v5076
    %v6223 = vpack.c.b16 %v6215, %v6215
    %v6224 = vpack.c.b16 %v6216, %v6216
    %v6225 = vpack.c.b16 %v6217, %v6217
    %v6226 = vpack.c.b16 %v6218, %v6218
    %v6227 = vpack.c.b16 %v6219, %v6219
    %v6228 = vpack.c.b16 %v6220, %v6220
    %v6229 = vpack.c.b16 %v6221, %v6221
    %v6230 = vpack.c.b16 %v6222, %v6222
    %v6367 = vunpack.c.l.b16 %v6083
    %v6368 = vunpack.c.h.b16 %v6083
    %v6369 = vunpack.c.l.b16 %v6084
    %v6370 = vunpack.c.h.b16 %v6084
    %v6371 = vunpack.c.l.b16 %v6085
    %v6372 = vunpack.c.h.b16 %v6085
    %v6373 = vunpack.c.l.b16 %v6086
    %v6374 = vunpack.c.h.b16 %v6086
    %v6375 = vunpack.c.l.b16 %v6087
    %v6376 = vunpack.c.h.b16 %v6087
    %v6377 = vunpack.c.l.b16 %v6088
    %v6378 = vunpack.c.h.b16 %v6088
    %v6379 = vunpack.c.l.b16 %v6089
    %v6380 = vunpack.c.h.b16 %v6089
    %v6381 = vunpack.c.l.b16 %v6090
    %v6382 = vunpack.c.h.b16 %v6090
    %v6383 = vunpack.c.l.b16 %v6091
    %v6384 = vunpack.c.h.b16 %v6091
    %v6385 = vunpack.c.l.b16 %v6092
    %v6386 = vunpack.c.h.b16 %v6092
    %v6387 = vunpack.c.l.b16 %v6093
    %v6388 = vunpack.c.h.b16 %v6093
    %v6389 = vunpack.c.l.b16 %v6094
    %v6390 = vunpack.c.h.b16 %v6094
    %v6391 = vunpack.c.l.b16 %v6095
    %v6392 = vunpack.c.h.b16 %v6095
    %v6393 = vunpack.c.l.b16 %v6096
    %v6394 = vunpack.c.h.b16 %v6096
    %v6395 = vunpack.c.l.b16 %v6097
    %v6396 = vunpack.c.h.b16 %v6097
    %v6397 = vunpack.c.l.b16 %v6098
    %v6398 = vunpack.c.h.b16 %v6098
    %v6399 = vunpack.c.l.b16 %v6099
    %v6400 = vunpack.c.h.b16 %v6099
    %v6401 = vunpack.c.l.b16 %v6100
    %v6402 = vunpack.c.h.b16 %v6100
    %v6403 = vunpack.c.l.b16 %v6101
    %v6404 = vunpack.c.h.b16 %v6101
    %v6405 = vunpack.c.l.b16 %v6102
    %v6406 = vunpack.c.h.b16 %v6102
    %v6407 = vunpack.c.l.b16 %v6103
    %v6408 = vunpack.c.h.b16 %v6103
    %v6409 = vunpack.c.l.b16 %v6104
    %v6410 = vunpack.c.h.b16 %v6104
    %v6411 = vunpack.c.l.b16 %v6105
    %v6412 = vunpack.c.h.b16 %v6105
    %v6413 = vunpack.c.l.b16 %v6106
    %v6414 = vunpack.c.h.b16 %v6106
    %v6415 = vunpack.c.l.b16 %v6107
    %v6416 = vunpack.c.h.b16 %v6107
    %v6417 = vunpack.c.l.b16 %v6108
    %v6418 = vunpack.c.h.b16 %v6108
    %v6419 = vunpack.c.l.b16 %v6109
    %v6420 = vunpack.c.h.b16 %v6109
    %v6421 = vunpack.c.l.b16 %v6110
    %v6422 = vunpack.c.h.b16 %v6110
    %v6423 = vunpack.c.l.b16 %v6111
    %v6424 = vunpack.c.h.b16 %v6111
    %v6425 = vunpack.c.l.b16 %v6112
    %v6426 = vunpack.c.h.b16 %v6112
    %v6427 = vunpack.c.l.b16 %v6113
    %v6428 = vunpack.c.h.b16 %v6113
    %v6429 = vunpack.c.l.b16 %v6114
    %v6430 = vunpack.c.h.b16 %v6114
    %v6431 = vunpack.c.l.b16 %v6115
    %v6432 = vunpack.c.h.b16 %v6115
    %v6433 = vunpack.c.l.b16 %v6116
    %v6434 = vunpack.c.h.b16 %v6116
    %v6435 = vunpack.c.l.b16 %v6117
    %v6436 = vunpack.c.h.b16 %v6117
    %v6437 = vunpack.c.l.b16 %v6118
    %v6438 = vunpack.c.h.b16 %v6118
    %v6439 = vunpack.c.l.b16 %v6119
    %v6440 = vunpack.c.h.b16 %v6119
    %v6441 = vunpack.c.l.b16 %v6120
    %v6442 = vunpack.c.h.b16 %v6120
    %v6443 = vunpack.c.l.b16 %v6121
    %v6444 = vunpack.c.h.b16 %v6121
    %v6445 = vunpack.c.l.b16 %v6122
    %v6446 = vunpack.c.h.b16 %v6122
    %v6447 = vunpack.c.l.b16 %v6123
    %v6448 = vunpack.c.h.b16 %v6123
    %v6449 = vunpack.c.l.b16 %v6124
    %v6450 = vunpack.c.h.b16 %v6124
    %v6451 = vunpack.c.l.b16 %v6125
    %v6452 = vunpack.c.h.b16 %v6125
    %v6453 = vunpack.c.l.b16 %v6126
    %v6454 = vunpack.c.h.b16 %v6126
    %v6455 = vunpack.c.l.b16 %v6127
    %v6456 = vunpack.c.h.b16 %v6127
    %v6457 = vunpack.c.l.b16 %v6128
    %v6458 = vunpack.c.h.b16 %v6128
    %v6459 = vunpack.c.l.b16 %v6129
    %v6460 = vunpack.c.h.b16 %v6129
    %v6461 = vunpack.c.l.b16 %v6130
    %v6462 = vunpack.c.h.b16 %v6130
    %v6463 = vunpack.c.l.b16 %v6131
    %v6464 = vunpack.c.h.b16 %v6131
    %v6465 = vunpack.c.l.b16 %v6132
    %v6466 = vunpack.c.h.b16 %v6132
    %v6467 = vunpack.c.l.b16 %v6133
    %v6468 = vunpack.c.h.b16 %v6133
    %v6469 = vunpack.c.l.b16 %v6134
    %v6470 = vunpack.c.h.b16 %v6134
    %v6471 = vunpack.c.l.b16 %v6135
    %v6472 = vunpack.c.h.b16 %v6135
    %v6473 = vunpack.c.l.b16 %v6136
    %v6474 = vunpack.c.h.b16 %v6136
    %v6475 = vunpack.c.l.b16 %v6137
    %v6476 = vunpack.c.h.b16 %v6137
    %v6477 = vunpack.c.l.b16 %v6138
    %v6478 = vunpack.c.h.b16 %v6138
    %v6479 = vunpack.c.l.b16 %v6139
    %v6480 = vunpack.c.h.b16 %v6139
    %v6481 = vunpack.c.l.b16 %v6140
    %v6482 = vunpack.c.h.b16 %v6140
    %v6483 = vunpack.c.l.b16 %v6141
    %v6484 = vunpack.c.h.b16 %v6141
    %v6485 = vunpack.c.l.b16 %v6142
    %v6486 = vunpack.c.h.b16 %v6142
    %v6487 = vunpack.c.l.b16 %v6143
    %v6488 = vunpack.c.h.b16 %v6143
    %v6489 = vunpack.c.l.b16 %v6144
    %v6490 = vunpack.c.h.b16 %v6144
    %v6491 = vunpack.c.l.b16 %v6145
    %v6492 = vunpack.c.h.b16 %v6145
    %v6493 = vunpack.c.l.b16 %v6146
    %v6494 = vunpack.c.h.b16 %v6146
    %v6495 = vunpack.c.l.b16 %v6147
    %v6496 = vunpack.c.h.b16 %v6147
    %v6497 = vunpack.c.l.b16 %v6148
    %v6498 = vunpack.c.h.b16 %v6148
    %v6499 = vunpack.c.l.b16 %v6149
    %v6500 = vunpack.c.h.b16 %v6149
    %v6501 = vunpack.c.l.b16 %v6150
    %v6502 = vunpack.c.h.b16 %v6150
    %v6503 = vunpack.c.l.b16 %v6151
    %v6504 = vunpack.c.h.b16 %v6151
    %v6505 = vunpack.c.l.b16 %v6152
    %v6506 = vunpack.c.h.b16 %v6152
    %v6507 = vunpack.c.l.b16 %v6153
    %v6508 = vunpack.c.h.b16 %v6153
    %v6509 = vunpack.c.l.b16 %v6154
    %v6510 = vunpack.c.h.b16 %v6154
    %v6511 = vunpack.c.l.b16 %v6155
    %v6512 = vunpack.c.h.b16 %v6155
    %v6513 = vunpack.c.l.b16 %v6156
    %v6514 = vunpack.c.h.b16 %v6156
    %v6515 = vunpack.c.l.b16 %v6157
    %v6516 = vunpack.c.h.b16 %v6157
    %v6517 = vunpack.c.l.b16 %v6158
    %v6518 = vunpack.c.h.b16 %v6158
    %v6519 = vunpack.c.l.b16 %v6159
    %v6520 = vunpack.c.h.b16 %v6159
    %v6521 = vunpack.c.l.b16 %v6160
    %v6522 = vunpack.c.h.b16 %v6160
    %v6523 = vunpack.c.l.b16 %v6161
    %v6524 = vunpack.c.h.b16 %v6161
    %v6525 = vunpack.c.l.b16 %v6162
    %v6526 = vunpack.c.h.b16 %v6162
    %v6527 = vunpack.c.l.b16 %v6163
    %v6528 = vunpack.c.h.b16 %v6163
    %v6529 = vunpack.c.l.b16 %v6164
    %v6530 = vunpack.c.h.b16 %v6164
    %v6531 = vunpack.c.l.b16 %v6165
    %v6532 = vunpack.c.h.b16 %v6165
    %v6533 = vunpack.c.l.b16 %v6166
    %v6534 = vunpack.c.h.b16 %v6166
    %v6535 = vunpack.c.l.b16 %v6167
    %v6536 = vunpack.c.h.b16 %v6167
    %v6537 = vunpack.c.l.b16 %v6168
    %v6538 = vunpack.c.h.b16 %v6168
    %v6539 = vunpack.c.l.b16 %v6169
    %v6540 = vunpack.c.h.b16 %v6169
    %v6541 = vunpack.c.l.b16 %v6170
    %v6542 = vunpack.c.h.b16 %v6170
    %v6543 = vunpack.c.l.b16 %v6171
    %v6544 = vunpack.c.h.b16 %v6171
    %v6545 = vunpack.c.l.b16 %v6172
    %v6546 = vunpack.c.h.b16 %v6172
    %v6547 = vunpack.c.l.b16 %v6173
    %v6548 = vunpack.c.h.b16 %v6173
    %v6549 = vunpack.c.l.b16 %v6174
    %v6550 = vunpack.c.h.b16 %v6174
    %v6551 = vunpack.c.l.b16 %v6175
    %v6552 = vunpack.c.h.b16 %v6175
    %v6553 = vunpack.c.l.b16 %v6176
    %v6554 = vunpack.c.h.b16 %v6176
    %v6555 = vunpack.c.l.b16 %v6177
    %v6556 = vunpack.c.h.b16 %v6177
    %v6557 = vunpack.c.l.b16 %v6178
    %v6558 = vunpack.c.h.b16 %v6178
    %v6559 = vunpack.c.l.b16 %v6179
    %v6560 = vunpack.c.h.b16 %v6179
    %v6561 = vunpack.c.l.b16 %v6180
    %v6562 = vunpack.c.h.b16 %v6180
    %v6563 = vunpack.c.l.b16 %v6181
    %v6564 = vunpack.c.h.b16 %v6181
    %v6565 = vunpack.c.l.b16 %v6182
    %v6566 = vunpack.c.h.b16 %v6182
    %v6567 = vunpack.c.l.b16 %v6183
    %v6568 = vunpack.c.h.b16 %v6183
    %v6569 = vunpack.c.l.b16 %v6184
    %v6570 = vunpack.c.h.b16 %v6184
    %v6571 = vunpack.c.l.b16 %v6185
    %v6572 = vunpack.c.h.b16 %v6185
    %v6573 = vunpack.c.l.b16 %v6186
    %v6574 = vunpack.c.h.b16 %v6186
    %v6575 = vunpack.c.l.b16 %v6187
    %v6576 = vunpack.c.h.b16 %v6187
    %v6577 = vunpack.c.l.b16 %v6188
    %v6578 = vunpack.c.h.b16 %v6188
    %v6579 = vunpack.c.l.b16 %v6189
    %v6580 = vunpack.c.h.b16 %v6189
    %v6581 = vunpack.c.l.b16 %v6190
    %v6582 = vunpack.c.h.b16 %v6190
    %v6583 = vunpack.c.l.b16 %v6191
    %v6584 = vunpack.c.h.b16 %v6191
    %v6585 = vunpack.c.l.b16 %v6192
    %v6586 = vunpack.c.h.b16 %v6192
    %v6587 = vunpack.c.l.b16 %v6193
    %v6588 = vunpack.c.h.b16 %v6193
    %v6589 = vunpack.c.l.b16 %v6194
    %v6590 = vunpack.c.h.b16 %v6194
    %v6591 = vunpack.c.l.b16 %v6195
    %v6592 = vunpack.c.h.b16 %v6195
    %v6593 = vunpack.c.l.b16 %v6196
    %v6594 = vunpack.c.h.b16 %v6196
    %v6595 = vunpack.c.l.b16 %v6197
    %v6596 = vunpack.c.h.b16 %v6197
    %v6597 = vunpack.c.l.b16 %v6198
    %v6598 = vunpack.c.h.b16 %v6198
    %v6599 = vunpack.c.l.b16 %v6199
    %v6600 = vunpack.c.h.b16 %v6199
    %v6601 = vunpack.c.l.b16 %v6200
    %v6602 = vunpack.c.h.b16 %v6200
    %v6603 = vunpack.c.l.b16 %v6201
    %v6604 = vunpack.c.h.b16 %v6201
    %v6605 = vunpack.c.l.b16 %v6202
    %v6606 = vunpack.c.h.b16 %v6202
    %v6607 = vunpack.c.l.b16 %v6203
    %v6608 = vunpack.c.h.b16 %v6203
    %v6609 = vunpack.c.l.b16 %v6204
    %v6610 = vunpack.c.h.b16 %v6204
    %v6611 = vunpack.c.l.b16 %v6205
    %v6612 = vunpack.c.h.b16 %v6205
    %v6613 = vunpack.c.l.b16 %v6206
    %v6614 = vunpack.c.h.b16 %v6206
    %v6615 = vunpack.c.l.b16 %v6207
    %v6616 = vunpack.c.h.b16 %v6207
    %v6617 = vunpack.c.l.b16 %v6208
    %v6618 = vunpack.c.h.b16 %v6208
    %v6619 = vunpack.c.l.b16 %v6209
    %v6620 = vunpack.c.h.b16 %v6209
    %v6621 = vunpack.c.l.b16 %v6210
    %v6622 = vunpack.c.h.b16 %v6210
    %v6623 = vpack.c.b16 %v6369, %v6367
    %v6624 = vpack.c.b16 %v6370, %v6368
    %v6625 = vpack.c.b16 %v6373, %v6371
    %v6626 = vpack.c.b16 %v6374, %v6372
    %v6627 = vpack.c.b16 %v6377, %v6375
    %v6628 = vpack.c.b16 %v6378, %v6376
    %v6629 = vpack.c.b16 %v6381, %v6379
    %v6630 = vpack.c.b16 %v6382, %v6380
    %v6631 = vpack.c.b16 %v6385, %v6383
    %v6632 = vpack.c.b16 %v6386, %v6384
    %v6633 = vpack.c.b16 %v6389, %v6387
    %v6634 = vpack.c.b16 %v6390, %v6388
    %v6635 = vpack.c.b16 %v6393, %v6391
    %v6636 = vpack.c.b16 %v6394, %v6392
    %v6637 = vpack.c.b16 %v6397, %v6395
    %v6638 = vpack.c.b16 %v6398, %v6396
    %v6639 = vpack.c.b16 %v6401, %v6399
    %v6640 = vpack.c.b16 %v6402, %v6400
    %v6641 = vpack.c.b16 %v6405, %v6403
    %v6642 = vpack.c.b16 %v6406, %v6404
    %v6643 = vpack.c.b16 %v6409, %v6407
    %v6644 = vpack.c.b16 %v6410, %v6408
    %v6645 = vpack.c.b16 %v6413, %v6411
    %v6646 = vpack.c.b16 %v6414, %v6412
    %v6647 = vpack.c.b16 %v6417, %v6415
    %v6648 = vpack.c.b16 %v6418, %v6416
    %v6649 = vpack.c.b16 %v6421, %v6419
    %v6650 = vpack.c.b16 %v6422, %v6420
    %v6651 = vpack.c.b16 %v6425, %v6423
    %v6652 = vpack.c.b16 %v6426, %v6424
    %v6653 = vpack.c.b16 %v6429, %v6427
    %v6654 = vpack.c.b16 %v6430, %v6428
    %v6655 = vpack.c.b16 %v6433, %v6431
    %v6656 = vpack.c.b16 %v6434, %v6432
    %v6657 = vpack.c.b16 %v6437, %v6435
    %v6658 = vpack.c.b16 %v6438, %v6436
    %v6659 = vpack.c.b16 %v6441, %v6439
    %v6660 = vpack.c.b16 %v6442, %v6440
    %v6661 = vpack.c.b16 %v6445, %v6443
    %v6662 = vpack.c.b16 %v6446, %v6444
    %v6663 = vpack.c.b16 %v6449, %v6447
    %v6664 = vpack.c.b16 %v6450, %v6448
    %v6665 = vpack.c.b16 %v6453, %v6451
    %v6666 = vpack.c.b16 %v6454, %v6452
    %v6667 = vpack.c.b16 %v6457, %v6455
    %v6668 = vpack.c.b16 %v6458, %v6456
    %v6669 = vpack.c.b16 %v6461, %v6459
    %v6670 = vpack.c.b16 %v6462, %v6460
    %v6671 = vpack.c.b16 %v6465, %v6463
    %v6672 = vpack.c.b16 %v6466, %v6464
    %v6673 = vpack.c.b16 %v6469, %v6467
    %v6674 = vpack.c.b16 %v6470, %v6468
    %v6675 = vpack.c.b16 %v6473, %v6471
    %v6676 = vpack.c.b16 %v6474, %v6472
    %v6677 = vpack.c.b16 %v6477, %v6475
    %v6678 = vpack.c.b16 %v6478, %v6476
    %v6679 = vpack.c.b16 %v6481, %v6479
    %v6680 = vpack.c.b16 %v6482, %v6480
    %v6681 = vpack.c.b16 %v6485, %v6483
    %v6682 = vpack.c.b16 %v6486, %v6484
    %v6683 = vpack.c.b16 %v6489, %v6487
    %v6684 = vpack.c.b16 %v6490, %v6488
    %v6685 = vpack.c.b16 %v6493, %v6491
    %v6686 = vpack.c.b16 %v6494, %v6492
    %v6687 = vpack.c.b16 %v6497, %v6495
    %v6688 = vpack.c.b16 %v6498, %v6496
    %v6689 = vpack.c.b16 %v6501, %v6499
    %v6690 = vpack.c.b16 %v6502, %v6500
    %v6691 = vpack.c.b16 %v6505, %v6503
    %v6692 = vpack.c.b16 %v6506, %v6504
    %v6693 = vpack.c.b16 %v6509, %v6507
    %v6694 = vpack.c.b16 %v6510, %v6508
    %v6695 = vpack.c.b16 %v6513, %v6511
    %v6696 = vpack.c.b16 %v6514, %v6512
    %v6697 = vpack.c.b16 %v6517, %v6515
    %v6698 = vpack.c.b16 %v6518, %v6516
    %v6699 = vpack.c.b16 %v6521, %v6519
    %v6700 = vpack.c.b16 %v6522, %v6520
    %v6701 = vpack.c.b16 %v6525, %v6523
    %v6702 = vpack.c.b16 %v6526, %v6524
    %v6703 = vpack.c.b16 %v6529, %v6527
    %v6704 = vpack.c.b16 %v6530, %v6528
    %v6705 = vpack.c.b16 %v6533, %v6531
    %v6706 = vpack.c.b16 %v6534, %v6532
    %v6707 = vpack.c.b16 %v6537, %v6535
    %v6708 = vpack.c.b16 %v6538, %v6536
    %v6709 = vpack.c.b16 %v6541, %v6539
    %v6710 = vpack.c.b16 %v6542, %v6540
    %v6711 = vpack.c.b16 %v6545, %v6543
    %v6712 = vpack.c.b16 %v6546, %v6544
    %v6713 = vpack.c.b16 %v6549, %v6547
    %v6714 = vpack.c.b16 %v6550, %v6548
    %v6715 = vpack.c.b16 %v6553, %v6551
    %v6716 = vpack.c.b16 %v6554, %v6552
    %v6717 = vpack.c.b16 %v6557, %v6555
    %v6718 = vpack.c.b16 %v6558, %v6556
    %v6719 = vpack.c.b16 %v6561, %v6559
    %v6720 = vpack.c.b16 %v6562, %v6560
    %v6721 = vpack.c.b16 %v6565, %v6563
    %v6722 = vpack.c.b16 %v6566, %v6564
    %v6723 = vpack.c.b16 %v6569, %v6567
    %v6724 = vpack.c.b16 %v6570, %v6568
    %v6725 = vpack.c.b16 %v6573, %v6571
    %v6726 = vpack.c.b16 %v6574, %v6572
    %v6727 = vpack.c.b16 %v6577, %v6575
    %v6728 = vpack.c.b16 %v6578, %v6576
    %v6729 = vpack.c.b16 %v6581, %v6579
    %v6730 = vpack.c.b16 %v6582, %v6580
    %v6731 = vpack.c.b16 %v6585, %v6583
    %v6732 = vpack.c.b16 %v6586, %v6584
    %v6733 = vpack.c.b16 %v6589, %v6587
    %v6734 = vpack.c.b16 %v6590, %v6588
    %v6735 = vpack.c.b16 %v6593, %v6591
    %v6736 = vpack.c.b16 %v6594, %v6592
    %v6737 = vpack.c.b16 %v6597, %v6595
    %v6738 = vpack.c.b16 %v6598, %v6596
    %v6739 = vpack.c.b16 %v6601, %v6599
    %v6740 = vpack.c.b16 %v6602, %v6600
    %v6741 = vpack.c.b16 %v6605, %v6603
    %v6742 = vpack.c.b16 %v6606, %v6604
    %v6743 = vpack.c.b16 %v6609, %v6607
    %v6744 = vpack.c.b16 %v6610, %v6608
    %v6745 = vpack.c.b16 %v6613, %v6611
    %v6746 = vpack.c.b16 %v6614, %v6612
    %v6747 = vpack.c.b16 %v6617, %v6615
    %v6748 = vpack.c.b16 %v6618, %v6616
    %v6749 = vpack.c.b16 %v6621, %v6619
    %v6750 = vpack.c.b16 %v6622, %v6620
    %6879 = vmatpush.bf16.msra.mxu0 %v6637
    %6880 = vmatpush.bf16.msra.mxu0 %v6635
    %6881 = vmatpush.bf16.msra.mxu0 %v6633
    %6882 = vmatpush.bf16.msra.mxu0 %v6631
    %6883 = vmatpush.bf16.msra.mxu0 %v6629
    %6884 = vmatpush.bf16.msra.mxu0 %v6627
    %6885 = vmatpush.bf16.msra.mxu0 %v6625
    %6886 = vmatpush.bf16.msra.mxu0 %v6623
    %6887 = vmatmul.bf16.gmra.mxu0 %v6223
    %v6888 = vpop.f32.mrf.mxu0
    %v6889 = vadd.f32 0.0, %v6888
    %v6890 = vpop.f32.mrf.mxu0
    %6891 = vdwg.mxu0
    %6892 = vmatpush.bf16.msra.mxu0 %v6653
    %6893 = vmatpush.bf16.msra.mxu0 %v6651
    %6894 = vmatpush.bf16.msra.mxu0 %v6649
    %6895 = vmatpush.bf16.msra.mxu0 %v6647
    %6896 = vmatpush.bf16.msra.mxu0 %v6645
    %6897 = vmatpush.bf16.msra.mxu0 %v6643
    %6898 = vmatpush.bf16.msra.mxu0 %v6641
    %6899 = vmatpush.bf16.msra.mxu0 %v6639
    %6900 = vmatmul.bf16.gmra.mxu0 %v6224
    %v6901 = vpop.f32.mrf.mxu0
    %v6902 = vadd.f32 %v6889, %v6901
    %v6903 = vpop.f32.mrf.mxu0
    %6904 = vdwg.mxu0
    %6905 = vmatpush.bf16.msra.mxu0 %v6669
    %6906 = vmatpush.bf16.msra.mxu0 %v6667
    %6907 = vmatpush.bf16.msra.mxu0 %v6665
    %6908 = vmatpush.bf16.msra.mxu0 %v6663
    %6909 = vmatpush.bf16.msra.mxu0 %v6661
    %6910 = vmatpush.bf16.msra.mxu0 %v6659
    %6911 = vmatpush.bf16.msra.mxu0 %v6657
    %6912 = vmatpush.bf16.msra.mxu0 %v6655
    %6913 = vmatmul.bf16.gmra.mxu0 %v6225
    %v6914 = vpop.f32.mrf.mxu0
    %v6915 = vadd.f32 %v6902, %v6914
    %v6916 = vpop.f32.mrf.mxu0
    %6917 = vdwg.mxu0
    %6918 = vmatpush.bf16.msra.mxu0 %v6685
    %6919 = vmatpush.bf16.msra.mxu0 %v6683
    %6920 = vmatpush.bf16.msra.mxu0 %v6681
    %6921 = vmatpush.bf16.msra.mxu0 %v6679
    %6922 = vmatpush.bf16.msra.mxu0 %v6677
    %6923 = vmatpush.bf16.msra.mxu0 %v6675
    %6924 = vmatpush.bf16.msra.mxu0 %v6673
    %6925 = vmatpush.bf16.msra.mxu0 %v6671
    %6926 = vmatmul.bf16.gmra.mxu0 %v6226
    %v6927 = vpop.f32.mrf.mxu0
    %v6928 = vadd.f32 %v6915, %v6927
    %v6929 = vpop.f32.mrf.mxu0
    %6930 = vdwg.mxu0
    %6931 = vmatpush.bf16.msra.mxu0 %v6701
    %6932 = vmatpush.bf16.msra.mxu0 %v6699
    %6933 = vmatpush.bf16.msra.mxu0 %v6697
    %6934 = vmatpush.bf16.msra.mxu0 %v6695
    %6935 = vmatpush.bf16.msra.mxu0 %v6693
    %6936 = vmatpush.bf16.msra.mxu0 %v6691
    %6937 = vmatpush.bf16.msra.mxu0 %v6689
    %6938 = vmatpush.bf16.msra.mxu0 %v6687
    %6939 = vmatmul.bf16.gmra.mxu0 %v6227
    %v6940 = vpop.f32.mrf.mxu0
    %v6941 = vadd.f32 %v6928, %v6940
    %v6942 = vpop.f32.mrf.mxu0
    %6943 = vdwg.mxu0
    %6944 = vmatpush.bf16.msra.mxu0 %v6717
    %6945 = vmatpush.bf16.msra.mxu0 %v6715
    %6946 = vmatpush.bf16.msra.mxu0 %v6713
    %6947 = vmatpush.bf16.msra.mxu0 %v6711
    %6948 = vmatpush.bf16.msra.mxu0 %v6709
    %6949 = vmatpush.bf16.msra.mxu0 %v6707
    %6950 = vmatpush.bf16.msra.mxu0 %v6705
    %6951 = vmatpush.bf16.msra.mxu0 %v6703
    %6952 = vmatmul.bf16.gmra.mxu0 %v6228
    %v6953 = vpop.f32.mrf.mxu0
    %v6954 = vadd.f32 %v6941, %v6953
    %v6955 = vpop.f32.mrf.mxu0
    %6956 = vdwg.mxu0
    %6957 = vmatpush.bf16.msra.mxu0 %v6733
    %6958 = vmatpush.bf16.msra.mxu0 %v6731
    %6959 = vmatpush.bf16.msra.mxu0 %v6729
    %6960 = vmatpush.bf16.msra.mxu0 %v6727
    %6961 = vmatpush.bf16.msra.mxu0 %v6725
    %6962 = vmatpush.bf16.msra.mxu0 %v6723
    %6963 = vmatpush.bf16.msra.mxu0 %v6721
    %6964 = vmatpush.bf16.msra.mxu0 %v6719
    %6965 = vmatmul.bf16.gmra.mxu0 %v6229
    %v6966 = vpop.f32.mrf.mxu0
    %v6967 = vadd.f32 %v6954, %v6966
    %v6968 = vpop.f32.mrf.mxu0
    %6969 = vdwg.mxu0
    %6970 = vmatpush.bf16.msra.mxu0 %v6749
    %6971 = vmatpush.bf16.msra.mxu0 %v6747
    %6972 = vmatpush.bf16.msra.mxu0 %v6745
    %6973 = vmatpush.bf16.msra.mxu0 %v6743
    %6974 = vmatpush.bf16.msra.mxu0 %v6741
    %6975 = vmatpush.bf16.msra.mxu0 %v6739
    %6976 = vmatpush.bf16.msra.mxu0 %v6737
    %6977 = vmatpush.bf16.msra.mxu0 %v6735
    %6978 = vmatmul.bf16.gmra.mxu0 %v6230
    %v6979 = vpop.f32.mrf.mxu0
    %v6980 = vadd.f32 %v6967, %v6979
    %v6981 = vpop.f32.mrf.mxu0
    %6982 = vdwg.mxu0
    %6983 = vmatpush.bf16.msra.mxu0 %v6638
    %6984 = vmatpush.bf16.msra.mxu0 %v6636
    %6985 = vmatpush.bf16.msra.mxu0 %v6634
    %6986 = vmatpush.bf16.msra.mxu0 %v6632
    %6987 = vmatpush.bf16.msra.mxu0 %v6630
    %6988 = vmatpush.bf16.msra.mxu0 %v6628
    %6989 = vmatpush.bf16.msra.mxu0 %v6626
    %6990 = vmatpush.bf16.msra.mxu0 %v6624
    %6991 = vmatmul.bf16.gmra.mxu0 %v6223
    %v6992 = vpop.f32.mrf.mxu0
    %v6993 = vadd.f32 0.0, %v6992
    %v6994 = vpop.f32.mrf.mxu0
    %6995 = vdwg.mxu0
    %6996 = vmatpush.bf16.msra.mxu0 %v6654
    %6997 = vmatpush.bf16.msra.mxu0 %v6652
    %6998 = vmatpush.bf16.msra.mxu0 %v6650
    %6999 = vmatpush.bf16.msra.mxu0 %v6648
    %7000 = vmatpush.bf16.msra.mxu0 %v6646
    %7001 = vmatpush.bf16.msra.mxu0 %v6644
    %7002 = vmatpush.bf16.msra.mxu0 %v6642
    %7003 = vmatpush.bf16.msra.mxu0 %v6640
    %7004 = vmatmul.bf16.gmra.mxu0 %v6224
    %v7005 = vpop.f32.mrf.mxu0
    %v7006 = vadd.f32 %v6993, %v7005
    %v7007 = vpop.f32.mrf.mxu0
    %7008 = vdwg.mxu0
    %7009 = vmatpush.bf16.msra.mxu0 %v6670
    %7010 = vmatpush.bf16.msra.mxu0 %v6668
    %7011 = vmatpush.bf16.msra.mxu0 %v6666
    %7012 = vmatpush.bf16.msra.mxu0 %v6664
    %7013 = vmatpush.bf16.msra.mxu0 %v6662
    %7014 = vmatpush.bf16.msra.mxu0 %v6660
    %7015 = vmatpush.bf16.msra.mxu0 %v6658
    %7016 = vmatpush.bf16.msra.mxu0 %v6656
    %7017 = vmatmul.bf16.gmra.mxu0 %v6225
    %v7018 = vpop.f32.mrf.mxu0
    %v7019 = vadd.f32 %v7006, %v7018
    %v7020 = vpop.f32.mrf.mxu0
    %7021 = vdwg.mxu0
    %7022 = vmatpush.bf16.msra.mxu0 %v6686
    %7023 = vmatpush.bf16.msra.mxu0 %v6684
    %7024 = vmatpush.bf16.msra.mxu0 %v6682
    %7025 = vmatpush.bf16.msra.mxu0 %v6680
    %7026 = vmatpush.bf16.msra.mxu0 %v6678
    %7027 = vmatpush.bf16.msra.mxu0 %v6676
    %7028 = vmatpush.bf16.msra.mxu0 %v6674
    %7029 = vmatpush.bf16.msra.mxu0 %v6672
    %7030 = vmatmul.bf16.gmra.mxu0 %v6226
    %v7031 = vpop.f32.mrf.mxu0
    %v7032 = vadd.f32 %v7019, %v7031
    %v7033 = vpop.f32.mrf.mxu0
    %7034 = vdwg.mxu0
    %7035 = vmatpush.bf16.msra.mxu0 %v6702
    %7036 = vmatpush.bf16.msra.mxu0 %v6700
    %7037 = vmatpush.bf16.msra.mxu0 %v6698
    %7038 = vmatpush.bf16.msra.mxu0 %v6696
    %7039 = vmatpush.bf16.msra.mxu0 %v6694
    %7040 = vmatpush.bf16.msra.mxu0 %v6692
    %7041 = vmatpush.bf16.msra.mxu0 %v6690
    %7042 = vmatpush.bf16.msra.mxu0 %v6688
    %7043 = vmatmul.bf16.gmra.mxu0 %v6227
    %v7044 = vpop.f32.mrf.mxu0
    %v7045 = vadd.f32 %v7032, %v7044
    %v7046 = vpop.f32.mrf.mxu0
    %7047 = vdwg.mxu0
    %7048 = vmatpush.bf16.msra.mxu0 %v6718
    %7049 = vmatpush.bf16.msra.mxu0 %v6716
    %7050 = vmatpush.bf16.msra.mxu0 %v6714
    %7051 = vmatpush.bf16.msra.mxu0 %v6712
    %7052 = vmatpush.bf16.msra.mxu0 %v6710
    %7053 = vmatpush.bf16.msra.mxu0 %v6708
    %7054 = vmatpush.bf16.msra.mxu0 %v6706
    %7055 = vmatpush.bf16.msra.mxu0 %v6704
    %7056 = vmatmul.bf16.gmra.mxu0 %v6228
    %v7057 = vpop.f32.mrf.mxu0
    %v7058 = vadd.f32 %v7045, %v7057
    %v7059 = vpop.f32.mrf.mxu0
    %7060 = vdwg.mxu0
    %7061 = vmatpush.bf16.msra.mxu0 %v6734
    %7062 = vmatpush.bf16.msra.mxu0 %v6732
    %7063 = vmatpush.bf16.msra.mxu0 %v6730
    %7064 = vmatpush.bf16.msra.mxu0 %v6728
    %7065 = vmatpush.bf16.msra.mxu0 %v6726
    %7066 = vmatpush.bf16.msra.mxu0 %v6724
    %7067 = vmatpush.bf16.msra.mxu0 %v6722
    %7068 = vmatpush.bf16.msra.mxu0 %v6720
    %7069 = vmatmul.bf16.gmra.mxu0 %v6229
    %v7070 = vpop.f32.mrf.mxu0
    %v7071 = vadd.f32 %v7058, %v7070
    %v7072 = vpop.f32.mrf.mxu0
    %7073 = vdwg.mxu0
    %7074 = vmatpush.bf16.msra.mxu0 %v6750
    %7075 = vmatpush.bf16.msra.mxu0 %v6748
    %7076 = vmatpush.bf16.msra.mxu0 %v6746
    %7077 = vmatpush.bf16.msra.mxu0 %v6744
    %7078 = vmatpush.bf16.msra.mxu0 %v6742
    %7079 = vmatpush.bf16.msra.mxu0 %v6740
    %7080 = vmatpush.bf16.msra.mxu0 %v6738
    %7081 = vmatpush.bf16.msra.mxu0 %v6736
    %7082 = vmatmul.bf16.gmra.mxu0 %v6230
    %v7083 = vpop.f32.mrf.mxu0
    %v7084 = vadd.f32 %v7071, %v7083
    %v7085 = vpop.f32.mrf.mxu0
    %7086 = vdwg.mxu0
    %v7087 = vadd.f32 %v6081, %v6980
    %v7088 = vadd.f32 %v6082, %v7084
    %v7089 = vld [vmem:[#allocation10 + $0xf] sm:$0x3]
    %v7090 = vld [vmem:[#allocation10 + $0x11] sm:$0x3]
    %v7091 = vadd.f32 %v7087, %v7088
    %7092 = vadd.xlane.f32.xlu0 %v7091
    %v7093 = vpop.xlane.xlu0 %7092
    %v7094 = vrcp.pop 256.0
    %v7095 = vmul.f32 256.0, %v7094
    %v7096 = vsub.f32 1.0, %v7095
    %v7097 = vmul.f32 %v7094, %v7096
    %v7098 = vadd.f32 %v7094, %v7097
    %vm7099 = vweird.f32 %v7094
    %v7100 = vsel %vm7099, %v7094, %v7098
    %v7101 = vmul.f32 %v7093, %v7100
    %v7102 = vsub.f32 %v7087, %v7101
    %v7103 = vsub.f32 %v7088, %v7101
    %v7104 = vmul.f32 %v7102, %v7102
    %v7105 = vmul.f32 %v7103, %v7103
    %v7106 = vadd.f32 %v7104, %v7105
    %7107 = vadd.xlane.f32.xlu0 %v7106
    %v7108 = vpop.xlane.xlu0 %7107
    %v7109 = vmul.f32 %v7108, %v7100
    %v7110 = vadd.f32 %v7109, 1e-05
    %v7111 = vrsqrt.pop %v7110
    %v7112 = vmul.f32 %v7111, %v7110
    %v7113 = vmul.f32 %v7112, %v7111
    %v7114 = vmul.f32 0.5, %v7113
    %v7115 = vsub.f32 1.5, %v7114
    %v7116 = vmul.f32 %v7111, %v7115
    %vm7117 = vweird.f32 %v7110
    %vm7118 = vweird.f32 %v7111
    %vm7119 = vmor %vm7117, %vm7118
    %v7120 = vsel %vm7119, %v7111, %v7116
    %v7121 = vmul.f32 %v7102, %v7120
    %v7122 = vmul.f32 %v7103, %v7120
    %v7124 = vperm.slane %v7089, 0
    %v7125 = vperm.slane %v7089, 1
    %v7128 = vmul.f32 %v7121, %v7124
    %v7129 = vmul.f32 %v7122, %v7125
    %v7131 = vperm.slane %v7090, 0
    %v7132 = vperm.slane %v7090, 1
    %v7135 = vadd.f32 %v7128, %v7131
    %v7136 = vadd.f32 %v7129, %v7132
    %v7137 = vpack.c.bf16 %v7135, %v7135
    %v7138 = vpack.c.bf16 %v7136, %v7136
    %v7139 = vld [vmem:[#allocation22] sm:$0xff]
    %v7140 = vld [vmem:[#allocation22 + $0x8] sm:$0xff]
    %v7141 = vld [vmem:[#allocation22 + $0x10] sm:$0xff]
    %v7142 = vld [vmem:[#allocation22 + $0x18] sm:$0xff]
    %v7143 = vld [vmem:[#allocation22 + $0x20] sm:$0xff]
    %v7144 = vld [vmem:[#allocation22 + $0x28] sm:$0xff]
    %v7145 = vld [vmem:[#allocation22 + $0x30] sm:$0xff]
    %v7146 = vld [vmem:[#allocation22 + $0x38] sm:$0xff]
    %v7147 = vld [vmem:[#allocation22 + $0x40] sm:$0xff]
    %v7148 = vld [vmem:[#allocation22 + $0x48] sm:$0xff]
    %v7149 = vld [vmem:[#allocation22 + $0x50] sm:$0xff]
    %v7150 = vld [vmem:[#allocation22 + $0x58] sm:$0xff]
    %v7151 = vld [vmem:[#allocation22 + $0x60] sm:$0xff]
    %v7152 = vld [vmem:[#allocation22 + $0x68] sm:$0xff]
    %v7153 = vld [vmem:[#allocation22 + $0x70] sm:$0xff]
    %v7154 = vld [vmem:[#allocation22 + $0x78] sm:$0xff]
    %v7155 = vld [vmem:[#allocation22 + $0x80] sm:$0xff]
    %v7156 = vld [vmem:[#allocation22 + $0x88] sm:$0xff]
    %v7157 = vld [vmem:[#allocation22 + $0x90] sm:$0xff]
    %v7158 = vld [vmem:[#allocation22 + $0x98] sm:$0xff]
    %v7159 = vld [vmem:[#allocation22 + $0xa0] sm:$0xff]
    %v7160 = vld [vmem:[#allocation22 + $0xa8] sm:$0xff]
    %v7161 = vld [vmem:[#allocation22 + $0xb0] sm:$0xff]
    %v7162 = vld [vmem:[#allocation22 + $0xb8] sm:$0xff]
    %v7163 = vld [vmem:[#allocation22 + $0xc0] sm:$0xff]
    %v7164 = vld [vmem:[#allocation22 + $0xc8] sm:$0xff]
    %v7165 = vld [vmem:[#allocation22 + $0xd0] sm:$0xff]
    %v7166 = vld [vmem:[#allocation22 + $0xd8] sm:$0xff]
    %v7167 = vld [vmem:[#allocation22 + $0xe0] sm:$0xff]
    %v7168 = vld [vmem:[#allocation22 + $0xe8] sm:$0xff]
    %v7169 = vld [vmem:[#allocation22 + $0xf0] sm:$0xff]
    %v7170 = vld [vmem:[#allocation22 + $0xf8] sm:$0xff]
    %v7171 = vld [vmem:[#allocation22 + $0x100] sm:$0xff]
    %v7172 = vld [vmem:[#allocation22 + $0x108] sm:$0xff]
    %v7173 = vld [vmem:[#allocation22 + $0x110] sm:$0xff]
    %v7174 = vld [vmem:[#allocation22 + $0x118] sm:$0xff]
    %v7175 = vld [vmem:[#allocation22 + $0x120] sm:$0xff]
    %v7176 = vld [vmem:[#allocation22 + $0x128] sm:$0xff]
    %v7177 = vld [vmem:[#allocation22 + $0x130] sm:$0xff]
    %v7178 = vld [vmem:[#allocation22 + $0x138] sm:$0xff]
    %v7179 = vld [vmem:[#allocation22 + $0x140] sm:$0xff]
    %v7180 = vld [vmem:[#allocation22 + $0x148] sm:$0xff]
    %v7181 = vld [vmem:[#allocation22 + $0x150] sm:$0xff]
    %v7182 = vld [vmem:[#allocation22 + $0x158] sm:$0xff]
    %v7183 = vld [vmem:[#allocation22 + $0x160] sm:$0xff]
    %v7184 = vld [vmem:[#allocation22 + $0x168] sm:$0xff]
    %v7185 = vld [vmem:[#allocation22 + $0x170] sm:$0xff]
    %v7186 = vld [vmem:[#allocation22 + $0x178] sm:$0xff]
    %v7187 = vld [vmem:[#allocation22 + $0x180] sm:$0xff]
    %v7188 = vld [vmem:[#allocation22 + $0x188] sm:$0xff]
    %v7189 = vld [vmem:[#allocation22 + $0x190] sm:$0xff]
    %v7190 = vld [vmem:[#allocation22 + $0x198] sm:$0xff]
    %v7191 = vld [vmem:[#allocation22 + $0x1a0] sm:$0xff]
    %v7192 = vld [vmem:[#allocation22 + $0x1a8] sm:$0xff]
    %v7193 = vld [vmem:[#allocation22 + $0x1b0] sm:$0xff]
    %v7194 = vld [vmem:[#allocation22 + $0x1b8] sm:$0xff]
    %v7195 = vld [vmem:[#allocation22 + $0x1c0] sm:$0xff]
    %v7196 = vld [vmem:[#allocation22 + $0x1c8] sm:$0xff]
    %v7197 = vld [vmem:[#allocation22 + $0x1d0] sm:$0xff]
    %v7198 = vld [vmem:[#allocation22 + $0x1d8] sm:$0xff]
    %v7199 = vld [vmem:[#allocation22 + $0x1e0] sm:$0xff]
    %v7200 = vld [vmem:[#allocation22 + $0x1e8] sm:$0xff]
    %v7201 = vld [vmem:[#allocation22 + $0x1f0] sm:$0xff]
    %v7202 = vld [vmem:[#allocation22 + $0x1f8] sm:$0xff]
    %v7203 = vld [vmem:[#allocation22 + $0x200] sm:$0xff]
    %v7204 = vld [vmem:[#allocation22 + $0x208] sm:$0xff]
    %v7205 = vld [vmem:[#allocation22 + $0x210] sm:$0xff]
    %v7206 = vld [vmem:[#allocation22 + $0x218] sm:$0xff]
    %v7207 = vld [vmem:[#allocation22 + $0x220] sm:$0xff]
    %v7208 = vld [vmem:[#allocation22 + $0x228] sm:$0xff]
    %v7209 = vld [vmem:[#allocation22 + $0x230] sm:$0xff]
    %v7210 = vld [vmem:[#allocation22 + $0x238] sm:$0xff]
    %v7211 = vld [vmem:[#allocation22 + $0x240] sm:$0xff]
    %v7212 = vld [vmem:[#allocation22 + $0x248] sm:$0xff]
    %v7213 = vld [vmem:[#allocation22 + $0x250] sm:$0xff]
    %v7214 = vld [vmem:[#allocation22 + $0x258] sm:$0xff]
    %v7215 = vld [vmem:[#allocation22 + $0x260] sm:$0xff]
    %v7216 = vld [vmem:[#allocation22 + $0x268] sm:$0xff]
    %v7217 = vld [vmem:[#allocation22 + $0x270] sm:$0xff]
    %v7218 = vld [vmem:[#allocation22 + $0x278] sm:$0xff]
    %v7219 = vld [vmem:[#allocation22 + $0x280] sm:$0xff]
    %v7220 = vld [vmem:[#allocation22 + $0x288] sm:$0xff]
    %v7221 = vld [vmem:[#allocation22 + $0x290] sm:$0xff]
    %v7222 = vld [vmem:[#allocation22 + $0x298] sm:$0xff]
    %v7223 = vld [vmem:[#allocation22 + $0x2a0] sm:$0xff]
    %v7224 = vld [vmem:[#allocation22 + $0x2a8] sm:$0xff]
    %v7225 = vld [vmem:[#allocation22 + $0x2b0] sm:$0xff]
    %v7226 = vld [vmem:[#allocation22 + $0x2b8] sm:$0xff]
    %v7227 = vld [vmem:[#allocation22 + $0x2c0] sm:$0xff]
    %v7228 = vld [vmem:[#allocation22 + $0x2c8] sm:$0xff]
    %v7229 = vld [vmem:[#allocation22 + $0x2d0] sm:$0xff]
    %v7230 = vld [vmem:[#allocation22 + $0x2d8] sm:$0xff]
    %v7231 = vld [vmem:[#allocation22 + $0x2e0] sm:$0xff]
    %v7232 = vld [vmem:[#allocation22 + $0x2e8] sm:$0xff]
    %v7233 = vld [vmem:[#allocation22 + $0x2f0] sm:$0xff]
    %v7234 = vld [vmem:[#allocation22 + $0x2f8] sm:$0xff]
    %v7235 = vld [vmem:[#allocation22 + $0x300] sm:$0xff]
    %v7236 = vld [vmem:[#allocation22 + $0x308] sm:$0xff]
    %v7237 = vld [vmem:[#allocation22 + $0x310] sm:$0xff]
    %v7238 = vld [vmem:[#allocation22 + $0x318] sm:$0xff]
    %v7239 = vld [vmem:[#allocation22 + $0x320] sm:$0xff]
    %v7240 = vld [vmem:[#allocation22 + $0x328] sm:$0xff]
    %v7241 = vld [vmem:[#allocation22 + $0x330] sm:$0xff]
    %v7242 = vld [vmem:[#allocation22 + $0x338] sm:$0xff]
    %v7243 = vld [vmem:[#allocation22 + $0x340] sm:$0xff]
    %v7244 = vld [vmem:[#allocation22 + $0x348] sm:$0xff]
    %v7245 = vld [vmem:[#allocation22 + $0x350] sm:$0xff]
    %v7246 = vld [vmem:[#allocation22 + $0x358] sm:$0xff]
    %v7247 = vld [vmem:[#allocation22 + $0x360] sm:$0xff]
    %v7248 = vld [vmem:[#allocation22 + $0x368] sm:$0xff]
    %v7249 = vld [vmem:[#allocation22 + $0x370] sm:$0xff]
    %v7250 = vld [vmem:[#allocation22 + $0x378] sm:$0xff]
    %v7251 = vld [vmem:[#allocation22 + $0x380] sm:$0xff]
    %v7252 = vld [vmem:[#allocation22 + $0x388] sm:$0xff]
    %v7253 = vld [vmem:[#allocation22 + $0x390] sm:$0xff]
    %v7254 = vld [vmem:[#allocation22 + $0x398] sm:$0xff]
    %v7255 = vld [vmem:[#allocation22 + $0x3a0] sm:$0xff]
    %v7256 = vld [vmem:[#allocation22 + $0x3a8] sm:$0xff]
    %v7257 = vld [vmem:[#allocation22 + $0x3b0] sm:$0xff]
    %v7258 = vld [vmem:[#allocation22 + $0x3b8] sm:$0xff]
    %v7259 = vld [vmem:[#allocation22 + $0x3c0] sm:$0xff]
    %v7260 = vld [vmem:[#allocation22 + $0x3c8] sm:$0xff]
    %v7261 = vld [vmem:[#allocation22 + $0x3d0] sm:$0xff]
    %v7262 = vld [vmem:[#allocation22 + $0x3d8] sm:$0xff]
    %v7263 = vld [vmem:[#allocation22 + $0x3e0] sm:$0xff]
    %v7264 = vld [vmem:[#allocation22 + $0x3e8] sm:$0xff]
    %v7265 = vld [vmem:[#allocation22 + $0x3f0] sm:$0xff]
    %v7266 = vld [vmem:[#allocation22 + $0x3f8] sm:$0xff]
    %v7267 = vld [vmem:[#allocation10 + $0x13] sm:$0xff]
    %v7269 = vperm.slane %v7267, 0
    %v7270 = vperm.slane %v7267, 1
    %v7271 = vperm.slane %v7267, 2
    %v7272 = vperm.slane %v7267, 3
    %v7273 = vperm.slane %v7267, 4
    %v7274 = vperm.slane %v7267, 5
    %v7275 = vperm.slane %v7267, 6
    %v7276 = vperm.slane %v7267, 7
    %v7413 = vunpack.c.l.b16 %v7139
    %v7414 = vunpack.c.h.b16 %v7139
    %v7415 = vunpack.c.l.b16 %v7140
    %v7416 = vunpack.c.h.b16 %v7140
    %v7417 = vunpack.c.l.b16 %v7141
    %v7418 = vunpack.c.h.b16 %v7141
    %v7419 = vunpack.c.l.b16 %v7142
    %v7420 = vunpack.c.h.b16 %v7142
    %v7421 = vunpack.c.l.b16 %v7143
    %v7422 = vunpack.c.h.b16 %v7143
    %v7423 = vunpack.c.l.b16 %v7144
    %v7424 = vunpack.c.h.b16 %v7144
    %v7425 = vunpack.c.l.b16 %v7145
    %v7426 = vunpack.c.h.b16 %v7145
    %v7427 = vunpack.c.l.b16 %v7146
    %v7428 = vunpack.c.h.b16 %v7146
    %v7429 = vunpack.c.l.b16 %v7147
    %v7430 = vunpack.c.h.b16 %v7147
    %v7431 = vunpack.c.l.b16 %v7148
    %v7432 = vunpack.c.h.b16 %v7148
    %v7433 = vunpack.c.l.b16 %v7149
    %v7434 = vunpack.c.h.b16 %v7149
    %v7435 = vunpack.c.l.b16 %v7150
    %v7436 = vunpack.c.h.b16 %v7150
    %v7437 = vunpack.c.l.b16 %v7151
    %v7438 = vunpack.c.h.b16 %v7151
    %v7439 = vunpack.c.l.b16 %v7152
    %v7440 = vunpack.c.h.b16 %v7152
    %v7441 = vunpack.c.l.b16 %v7153
    %v7442 = vunpack.c.h.b16 %v7153
    %v7443 = vunpack.c.l.b16 %v7154
    %v7444 = vunpack.c.h.b16 %v7154
    %v7445 = vunpack.c.l.b16 %v7155
    %v7446 = vunpack.c.h.b16 %v7155
    %v7447 = vunpack.c.l.b16 %v7156
    %v7448 = vunpack.c.h.b16 %v7156
    %v7449 = vunpack.c.l.b16 %v7157
    %v7450 = vunpack.c.h.b16 %v7157
    %v7451 = vunpack.c.l.b16 %v7158
    %v7452 = vunpack.c.h.b16 %v7158
    %v7453 = vunpack.c.l.b16 %v7159
    %v7454 = vunpack.c.h.b16 %v7159
    %v7455 = vunpack.c.l.b16 %v7160
    %v7456 = vunpack.c.h.b16 %v7160
    %v7457 = vunpack.c.l.b16 %v7161
    %v7458 = vunpack.c.h.b16 %v7161
    %v7459 = vunpack.c.l.b16 %v7162
    %v7460 = vunpack.c.h.b16 %v7162
    %v7461 = vunpack.c.l.b16 %v7163
    %v7462 = vunpack.c.h.b16 %v7163
    %v7463 = vunpack.c.l.b16 %v7164
    %v7464 = vunpack.c.h.b16 %v7164
    %v7465 = vunpack.c.l.b16 %v7165
    %v7466 = vunpack.c.h.b16 %v7165
    %v7467 = vunpack.c.l.b16 %v7166
    %v7468 = vunpack.c.h.b16 %v7166
    %v7469 = vunpack.c.l.b16 %v7167
    %v7470 = vunpack.c.h.b16 %v7167
    %v7471 = vunpack.c.l.b16 %v7168
    %v7472 = vunpack.c.h.b16 %v7168
    %v7473 = vunpack.c.l.b16 %v7169
    %v7474 = vunpack.c.h.b16 %v7169
    %v7475 = vunpack.c.l.b16 %v7170
    %v7476 = vunpack.c.h.b16 %v7170
    %v7477 = vunpack.c.l.b16 %v7171
    %v7478 = vunpack.c.h.b16 %v7171
    %v7479 = vunpack.c.l.b16 %v7172
    %v7480 = vunpack.c.h.b16 %v7172
    %v7481 = vunpack.c.l.b16 %v7173
    %v7482 = vunpack.c.h.b16 %v7173
    %v7483 = vunpack.c.l.b16 %v7174
    %v7484 = vunpack.c.h.b16 %v7174
    %v7485 = vunpack.c.l.b16 %v7175
    %v7486 = vunpack.c.h.b16 %v7175
    %v7487 = vunpack.c.l.b16 %v7176
    %v7488 = vunpack.c.h.b16 %v7176
    %v7489 = vunpack.c.l.b16 %v7177
    %v7490 = vunpack.c.h.b16 %v7177
    %v7491 = vunpack.c.l.b16 %v7178
    %v7492 = vunpack.c.h.b16 %v7178
    %v7493 = vunpack.c.l.b16 %v7179
    %v7494 = vunpack.c.h.b16 %v7179
    %v7495 = vunpack.c.l.b16 %v7180
    %v7496 = vunpack.c.h.b16 %v7180
    %v7497 = vunpack.c.l.b16 %v7181
    %v7498 = vunpack.c.h.b16 %v7181
    %v7499 = vunpack.c.l.b16 %v7182
    %v7500 = vunpack.c.h.b16 %v7182
    %v7501 = vunpack.c.l.b16 %v7183
    %v7502 = vunpack.c.h.b16 %v7183
    %v7503 = vunpack.c.l.b16 %v7184
    %v7504 = vunpack.c.h.b16 %v7184
    %v7505 = vunpack.c.l.b16 %v7185
    %v7506 = vunpack.c.h.b16 %v7185
    %v7507 = vunpack.c.l.b16 %v7186
    %v7508 = vunpack.c.h.b16 %v7186
    %v7509 = vunpack.c.l.b16 %v7187
    %v7510 = vunpack.c.h.b16 %v7187
    %v7511 = vunpack.c.l.b16 %v7188
    %v7512 = vunpack.c.h.b16 %v7188
    %v7513 = vunpack.c.l.b16 %v7189
    %v7514 = vunpack.c.h.b16 %v7189
    %v7515 = vunpack.c.l.b16 %v7190
    %v7516 = vunpack.c.h.b16 %v7190
    %v7517 = vunpack.c.l.b16 %v7191
    %v7518 = vunpack.c.h.b16 %v7191
    %v7519 = vunpack.c.l.b16 %v7192
    %v7520 = vunpack.c.h.b16 %v7192
    %v7521 = vunpack.c.l.b16 %v7193
    %v7522 = vunpack.c.h.b16 %v7193
    %v7523 = vunpack.c.l.b16 %v7194
    %v7524 = vunpack.c.h.b16 %v7194
    %v7525 = vunpack.c.l.b16 %v7195
    %v7526 = vunpack.c.h.b16 %v7195
    %v7527 = vunpack.c.l.b16 %v7196
    %v7528 = vunpack.c.h.b16 %v7196
    %v7529 = vunpack.c.l.b16 %v7197
    %v7530 = vunpack.c.h.b16 %v7197
    %v7531 = vunpack.c.l.b16 %v7198
    %v7532 = vunpack.c.h.b16 %v7198
    %v7533 = vunpack.c.l.b16 %v7199
    %v7534 = vunpack.c.h.b16 %v7199
    %v7535 = vunpack.c.l.b16 %v7200
    %v7536 = vunpack.c.h.b16 %v7200
    %v7537 = vunpack.c.l.b16 %v7201
    %v7538 = vunpack.c.h.b16 %v7201
    %v7539 = vunpack.c.l.b16 %v7202
    %v7540 = vunpack.c.h.b16 %v7202
    %v7541 = vunpack.c.l.b16 %v7203
    %v7542 = vunpack.c.h.b16 %v7203
    %v7543 = vunpack.c.l.b16 %v7204
    %v7544 = vunpack.c.h.b16 %v7204
    %v7545 = vunpack.c.l.b16 %v7205
    %v7546 = vunpack.c.h.b16 %v7205
    %v7547 = vunpack.c.l.b16 %v7206
    %v7548 = vunpack.c.h.b16 %v7206
    %v7549 = vunpack.c.l.b16 %v7207
    %v7550 = vunpack.c.h.b16 %v7207
    %v7551 = vunpack.c.l.b16 %v7208
    %v7552 = vunpack.c.h.b16 %v7208
    %v7553 = vunpack.c.l.b16 %v7209
    %v7554 = vunpack.c.h.b16 %v7209
    %v7555 = vunpack.c.l.b16 %v7210
    %v7556 = vunpack.c.h.b16 %v7210
    %v7557 = vunpack.c.l.b16 %v7211
    %v7558 = vunpack.c.h.b16 %v7211
    %v7559 = vunpack.c.l.b16 %v7212
    %v7560 = vunpack.c.h.b16 %v7212
    %v7561 = vunpack.c.l.b16 %v7213
    %v7562 = vunpack.c.h.b16 %v7213
    %v7563 = vunpack.c.l.b16 %v7214
    %v7564 = vunpack.c.h.b16 %v7214
    %v7565 = vunpack.c.l.b16 %v7215
    %v7566 = vunpack.c.h.b16 %v7215
    %v7567 = vunpack.c.l.b16 %v7216
    %v7568 = vunpack.c.h.b16 %v7216
    %v7569 = vunpack.c.l.b16 %v7217
    %v7570 = vunpack.c.h.b16 %v7217
    %v7571 = vunpack.c.l.b16 %v7218
    %v7572 = vunpack.c.h.b16 %v7218
    %v7573 = vunpack.c.l.b16 %v7219
    %v7574 = vunpack.c.h.b16 %v7219
    %v7575 = vunpack.c.l.b16 %v7220
    %v7576 = vunpack.c.h.b16 %v7220
    %v7577 = vunpack.c.l.b16 %v7221
    %v7578 = vunpack.c.h.b16 %v7221
    %v7579 = vunpack.c.l.b16 %v7222
    %v7580 = vunpack.c.h.b16 %v7222
    %v7581 = vunpack.c.l.b16 %v7223
    %v7582 = vunpack.c.h.b16 %v7223
    %v7583 = vunpack.c.l.b16 %v7224
    %v7584 = vunpack.c.h.b16 %v7224
    %v7585 = vunpack.c.l.b16 %v7225
    %v7586 = vunpack.c.h.b16 %v7225
    %v7587 = vunpack.c.l.b16 %v7226
    %v7588 = vunpack.c.h.b16 %v7226
    %v7589 = vunpack.c.l.b16 %v7227
    %v7590 = vunpack.c.h.b16 %v7227
    %v7591 = vunpack.c.l.b16 %v7228
    %v7592 = vunpack.c.h.b16 %v7228
    %v7593 = vunpack.c.l.b16 %v7229
    %v7594 = vunpack.c.h.b16 %v7229
    %v7595 = vunpack.c.l.b16 %v7230
    %v7596 = vunpack.c.h.b16 %v7230
    %v7597 = vunpack.c.l.b16 %v7231
    %v7598 = vunpack.c.h.b16 %v7231
    %v7599 = vunpack.c.l.b16 %v7232
    %v7600 = vunpack.c.h.b16 %v7232
    %v7601 = vunpack.c.l.b16 %v7233
    %v7602 = vunpack.c.h.b16 %v7233
    %v7603 = vunpack.c.l.b16 %v7234
    %v7604 = vunpack.c.h.b16 %v7234
    %v7605 = vunpack.c.l.b16 %v7235
    %v7606 = vunpack.c.h.b16 %v7235
    %v7607 = vunpack.c.l.b16 %v7236
    %v7608 = vunpack.c.h.b16 %v7236
    %v7609 = vunpack.c.l.b16 %v7237
    %v7610 = vunpack.c.h.b16 %v7237
    %v7611 = vunpack.c.l.b16 %v7238
    %v7612 = vunpack.c.h.b16 %v7238
    %v7613 = vunpack.c.l.b16 %v7239
    %v7614 = vunpack.c.h.b16 %v7239
    %v7615 = vunpack.c.l.b16 %v7240
    %v7616 = vunpack.c.h.b16 %v7240
    %v7617 = vunpack.c.l.b16 %v7241
    %v7618 = vunpack.c.h.b16 %v7241
    %v7619 = vunpack.c.l.b16 %v7242
    %v7620 = vunpack.c.h.b16 %v7242
    %v7621 = vunpack.c.l.b16 %v7243
    %v7622 = vunpack.c.h.b16 %v7243
    %v7623 = vunpack.c.l.b16 %v7244
    %v7624 = vunpack.c.h.b16 %v7244
    %v7625 = vunpack.c.l.b16 %v7245
    %v7626 = vunpack.c.h.b16 %v7245
    %v7627 = vunpack.c.l.b16 %v7246
    %v7628 = vunpack.c.h.b16 %v7246
    %v7629 = vunpack.c.l.b16 %v7247
    %v7630 = vunpack.c.h.b16 %v7247
    %v7631 = vunpack.c.l.b16 %v7248
    %v7632 = vunpack.c.h.b16 %v7248
    %v7633 = vunpack.c.l.b16 %v7249
    %v7634 = vunpack.c.h.b16 %v7249
    %v7635 = vunpack.c.l.b16 %v7250
    %v7636 = vunpack.c.h.b16 %v7250
    %v7637 = vunpack.c.l.b16 %v7251
    %v7638 = vunpack.c.h.b16 %v7251
    %v7639 = vunpack.c.l.b16 %v7252
    %v7640 = vunpack.c.h.b16 %v7252
    %v7641 = vunpack.c.l.b16 %v7253
    %v7642 = vunpack.c.h.b16 %v7253
    %v7643 = vunpack.c.l.b16 %v7254
    %v7644 = vunpack.c.h.b16 %v7254
    %v7645 = vunpack.c.l.b16 %v7255
    %v7646 = vunpack.c.h.b16 %v7255
    %v7647 = vunpack.c.l.b16 %v7256
    %v7648 = vunpack.c.h.b16 %v7256
    %v7649 = vunpack.c.l.b16 %v7257
    %v7650 = vunpack.c.h.b16 %v7257
    %v7651 = vunpack.c.l.b16 %v7258
    %v7652 = vunpack.c.h.b16 %v7258
    %v7653 = vunpack.c.l.b16 %v7259
    %v7654 = vunpack.c.h.b16 %v7259
    %v7655 = vunpack.c.l.b16 %v7260
    %v7656 = vunpack.c.h.b16 %v7260
    %v7657 = vunpack.c.l.b16 %v7261
    %v7658 = vunpack.c.h.b16 %v7261
    %v7659 = vunpack.c.l.b16 %v7262
    %v7660 = vunpack.c.h.b16 %v7262
    %v7661 = vunpack.c.l.b16 %v7263
    %v7662 = vunpack.c.h.b16 %v7263
    %v7663 = vunpack.c.l.b16 %v7264
    %v7664 = vunpack.c.h.b16 %v7264
    %v7665 = vunpack.c.l.b16 %v7265
    %v7666 = vunpack.c.h.b16 %v7265
    %v7667 = vunpack.c.l.b16 %v7266
    %v7668 = vunpack.c.h.b16 %v7266
    %v7669 = vpack.c.b16 %v7421, %v7413
    %v7670 = vpack.c.b16 %v7422, %v7414
    %v7671 = vpack.c.b16 %v7423, %v7415
    %v7672 = vpack.c.b16 %v7424, %v7416
    %v7673 = vpack.c.b16 %v7425, %v7417
    %v7674 = vpack.c.b16 %v7426, %v7418
    %v7675 = vpack.c.b16 %v7427, %v7419
    %v7676 = vpack.c.b16 %v7428, %v7420
    %v7677 = vpack.c.b16 %v7437, %v7429
    %v7678 = vpack.c.b16 %v7438, %v7430
    %v7679 = vpack.c.b16 %v7439, %v7431
    %v7680 = vpack.c.b16 %v7440, %v7432
    %v7681 = vpack.c.b16 %v7441, %v7433
    %v7682 = vpack.c.b16 %v7442, %v7434
    %v7683 = vpack.c.b16 %v7443, %v7435
    %v7684 = vpack.c.b16 %v7444, %v7436
    %v7685 = vpack.c.b16 %v7453, %v7445
    %v7686 = vpack.c.b16 %v7454, %v7446
    %v7687 = vpack.c.b16 %v7455, %v7447
    %v7688 = vpack.c.b16 %v7456, %v7448
    %v7689 = vpack.c.b16 %v7457, %v7449
    %v7690 = vpack.c.b16 %v7458, %v7450
    %v7691 = vpack.c.b16 %v7459, %v7451
    %v7692 = vpack.c.b16 %v7460, %v7452
    %v7693 = vpack.c.b16 %v7469, %v7461
    %v7694 = vpack.c.b16 %v7470, %v7462
    %v7695 = vpack.c.b16 %v7471, %v7463
    %v7696 = vpack.c.b16 %v7472, %v7464
    %v7697 = vpack.c.b16 %v7473, %v7465
    %v7698 = vpack.c.b16 %v7474, %v7466
    %v7699 = vpack.c.b16 %v7475, %v7467
    %v7700 = vpack.c.b16 %v7476, %v7468
    %v7701 = vpack.c.b16 %v7485, %v7477
    %v7702 = vpack.c.b16 %v7486, %v7478
    %v7703 = vpack.c.b16 %v7487, %v7479
    %v7704 = vpack.c.b16 %v7488, %v7480
    %v7705 = vpack.c.b16 %v7489, %v7481
    %v7706 = vpack.c.b16 %v7490, %v7482
    %v7707 = vpack.c.b16 %v7491, %v7483
    %v7708 = vpack.c.b16 %v7492, %v7484
    %v7709 = vpack.c.b16 %v7501, %v7493
    %v7710 = vpack.c.b16 %v7502, %v7494
    %v7711 = vpack.c.b16 %v7503, %v7495
    %v7712 = vpack.c.b16 %v7504, %v7496
    %v7713 = vpack.c.b16 %v7505, %v7497
    %v7714 = vpack.c.b16 %v7506, %v7498
    %v7715 = vpack.c.b16 %v7507, %v7499
    %v7716 = vpack.c.b16 %v7508, %v7500
    %v7717 = vpack.c.b16 %v7517, %v7509
    %v7718 = vpack.c.b16 %v7518, %v7510
    %v7719 = vpack.c.b16 %v7519, %v7511
    %v7720 = vpack.c.b16 %v7520, %v7512
    %v7721 = vpack.c.b16 %v7521, %v7513
    %v7722 = vpack.c.b16 %v7522, %v7514
    %v7723 = vpack.c.b16 %v7523, %v7515
    %v7724 = vpack.c.b16 %v7524, %v7516
    %v7725 = vpack.c.b16 %v7533, %v7525
    %v7726 = vpack.c.b16 %v7534, %v7526
    %v7727 = vpack.c.b16 %v7535, %v7527
    %v7728 = vpack.c.b16 %v7536, %v7528
    %v7729 = vpack.c.b16 %v7537, %v7529
    %v7730 = vpack.c.b16 %v7538, %v7530
    %v7731 = vpack.c.b16 %v7539, %v7531
    %v7732 = vpack.c.b16 %v7540, %v7532
    %v7733 = vpack.c.b16 %v7549, %v7541
    %v7734 = vpack.c.b16 %v7550, %v7542
    %v7735 = vpack.c.b16 %v7551, %v7543
    %v7736 = vpack.c.b16 %v7552, %v7544
    %v7737 = vpack.c.b16 %v7553, %v7545
    %v7738 = vpack.c.b16 %v7554, %v7546
    %v7739 = vpack.c.b16 %v7555, %v7547
    %v7740 = vpack.c.b16 %v7556, %v7548
    %v7741 = vpack.c.b16 %v7565, %v7557
    %v7742 = vpack.c.b16 %v7566, %v7558
    %v7743 = vpack.c.b16 %v7567, %v7559
    %v7744 = vpack.c.b16 %v7568, %v7560
    %v7745 = vpack.c.b16 %v7569, %v7561
    %v7746 = vpack.c.b16 %v7570, %v7562
    %v7747 = vpack.c.b16 %v7571, %v7563
    %v7748 = vpack.c.b16 %v7572, %v7564
    %v7749 = vpack.c.b16 %v7581, %v7573
    %v7750 = vpack.c.b16 %v7582, %v7574
    %v7751 = vpack.c.b16 %v7583, %v7575
    %v7752 = vpack.c.b16 %v7584, %v7576
    %v7753 = vpack.c.b16 %v7585, %v7577
    %v7754 = vpack.c.b16 %v7586, %v7578
    %v7755 = vpack.c.b16 %v7587, %v7579
    %v7756 = vpack.c.b16 %v7588, %v7580
    %v7757 = vpack.c.b16 %v7597, %v7589
    %v7758 = vpack.c.b16 %v7598, %v7590
    %v7759 = vpack.c.b16 %v7599, %v7591
    %v7760 = vpack.c.b16 %v7600, %v7592
    %v7761 = vpack.c.b16 %v7601, %v7593
    %v7762 = vpack.c.b16 %v7602, %v7594
    %v7763 = vpack.c.b16 %v7603, %v7595
    %v7764 = vpack.c.b16 %v7604, %v7596
    %v7765 = vpack.c.b16 %v7613, %v7605
    %v7766 = vpack.c.b16 %v7614, %v7606
    %v7767 = vpack.c.b16 %v7615, %v7607
    %v7768 = vpack.c.b16 %v7616, %v7608
    %v7769 = vpack.c.b16 %v7617, %v7609
    %v7770 = vpack.c.b16 %v7618, %v7610
    %v7771 = vpack.c.b16 %v7619, %v7611
    %v7772 = vpack.c.b16 %v7620, %v7612
    %v7773 = vpack.c.b16 %v7629, %v7621
    %v7774 = vpack.c.b16 %v7630, %v7622
    %v7775 = vpack.c.b16 %v7631, %v7623
    %v7776 = vpack.c.b16 %v7632, %v7624
    %v7777 = vpack.c.b16 %v7633, %v7625
    %v7778 = vpack.c.b16 %v7634, %v7626
    %v7779 = vpack.c.b16 %v7635, %v7627
    %v7780 = vpack.c.b16 %v7636, %v7628
    %v7781 = vpack.c.b16 %v7645, %v7637
    %v7782 = vpack.c.b16 %v7646, %v7638
    %v7783 = vpack.c.b16 %v7647, %v7639
    %v7784 = vpack.c.b16 %v7648, %v7640
    %v7785 = vpack.c.b16 %v7649, %v7641
    %v7786 = vpack.c.b16 %v7650, %v7642
    %v7787 = vpack.c.b16 %v7651, %v7643
    %v7788 = vpack.c.b16 %v7652, %v7644
    %v7789 = vpack.c.b16 %v7661, %v7653
    %v7790 = vpack.c.b16 %v7662, %v7654
    %v7791 = vpack.c.b16 %v7663, %v7655
    %v7792 = vpack.c.b16 %v7664, %v7656
    %v7793 = vpack.c.b16 %v7665, %v7657
    %v7794 = vpack.c.b16 %v7666, %v7658
    %v7795 = vpack.c.b16 %v7667, %v7659
    %v7796 = vpack.c.b16 %v7668, %v7660
    %7925 = vmatpush.bf16.msra.mxu0 %v7725
    %7926 = vmatpush.bf16.msra.mxu0 %v7717
    %7927 = vmatpush.bf16.msra.mxu0 %v7709
    %7928 = vmatpush.bf16.msra.mxu0 %v7701
    %7929 = vmatpush.bf16.msra.mxu0 %v7693
    %7930 = vmatpush.bf16.msra.mxu0 %v7685
    %7931 = vmatpush.bf16.msra.mxu0 %v7677
    %7932 = vmatpush.bf16.msra.mxu0 %v7669
    %7933 = vmatmul.bf16.gmra.mxu0 %v7137
    %v7934 = vpop.f32.mrf.mxu0
    %v7935 = vadd.f32 %v7269, %v7934
    %v7936 = vpop.f32.mrf.mxu0
    %7937 = vdwg.mxu0
    %7938 = vmatpush.bf16.msra.mxu0 %v7789
    %7939 = vmatpush.bf16.msra.mxu0 %v7781
    %7940 = vmatpush.bf16.msra.mxu0 %v7773
    %7941 = vmatpush.bf16.msra.mxu0 %v7765
    %7942 = vmatpush.bf16.msra.mxu0 %v7757
    %7943 = vmatpush.bf16.msra.mxu0 %v7749
    %7944 = vmatpush.bf16.msra.mxu0 %v7741
    %7945 = vmatpush.bf16.msra.mxu0 %v7733
    %7946 = vmatmul.bf16.gmra.mxu0 %v7138
    %v7947 = vpop.f32.mrf.mxu0
    %v7948 = vadd.f32 %v7935, %v7947
    %v7949 = vpop.f32.mrf.mxu0
    %7950 = vdwg.mxu0
    %7951 = vmatpush.bf16.msra.mxu0 %v7726
    %7952 = vmatpush.bf16.msra.mxu0 %v7718
    %7953 = vmatpush.bf16.msra.mxu0 %v7710
    %7954 = vmatpush.bf16.msra.mxu0 %v7702
    %7955 = vmatpush.bf16.msra.mxu0 %v7694
    %7956 = vmatpush.bf16.msra.mxu0 %v7686
    %7957 = vmatpush.bf16.msra.mxu0 %v7678
    %7958 = vmatpush.bf16.msra.mxu0 %v7670
    %7959 = vmatmul.bf16.gmra.mxu0 %v7137
    %v7960 = vpop.f32.mrf.mxu0
    %v7961 = vadd.f32 %v7270, %v7960
    %v7962 = vpop.f32.mrf.mxu0
    %7963 = vdwg.mxu0
    %7964 = vmatpush.bf16.msra.mxu0 %v7790
    %7965 = vmatpush.bf16.msra.mxu0 %v7782
    %7966 = vmatpush.bf16.msra.mxu0 %v7774
    %7967 = vmatpush.bf16.msra.mxu0 %v7766
    %7968 = vmatpush.bf16.msra.mxu0 %v7758
    %7969 = vmatpush.bf16.msra.mxu0 %v7750
    %7970 = vmatpush.bf16.msra.mxu0 %v7742
    %7971 = vmatpush.bf16.msra.mxu0 %v7734
    %7972 = vmatmul.bf16.gmra.mxu0 %v7138
    %v7973 = vpop.f32.mrf.mxu0
    %v7974 = vadd.f32 %v7961, %v7973
    %v7975 = vpop.f32.mrf.mxu0
    %7976 = vdwg.mxu0
    %7977 = vmatpush.bf16.msra.mxu0 %v7727
    %7978 = vmatpush.bf16.msra.mxu0 %v7719
    %7979 = vmatpush.bf16.msra.mxu0 %v7711
    %7980 = vmatpush.bf16.msra.mxu0 %v7703
    %7981 = vmatpush.bf16.msra.mxu0 %v7695
    %7982 = vmatpush.bf16.msra.mxu0 %v7687
    %7983 = vmatpush.bf16.msra.mxu0 %v7679
    %7984 = vmatpush.bf16.msra.mxu0 %v7671
    %7985 = vmatmul.bf16.gmra.mxu0 %v7137
    %v7986 = vpop.f32.mrf.mxu0
    %v7987 = vadd.f32 %v7271, %v7986
    %v7988 = vpop.f32.mrf.mxu0
    %7989 = vdwg.mxu0
    %7990 = vmatpush.bf16.msra.mxu0 %v7791
    %7991 = vmatpush.bf16.msra.mxu0 %v7783
    %7992 = vmatpush.bf16.msra.mxu0 %v7775
    %7993 = vmatpush.bf16.msra.mxu0 %v7767
    %7994 = vmatpush.bf16.msra.mxu0 %v7759
    %7995 = vmatpush.bf16.msra.mxu0 %v7751
    %7996 = vmatpush.bf16.msra.mxu0 %v7743
    %7997 = vmatpush.bf16.msra.mxu0 %v7735
    %7998 = vmatmul.bf16.gmra.mxu0 %v7138
    %v7999 = vpop.f32.mrf.mxu0
    %v8000 = vadd.f32 %v7987, %v7999
    %v8001 = vpop.f32.mrf.mxu0
    %8002 = vdwg.mxu0
    %8003 = vmatpush.bf16.msra.mxu0 %v7728
    %8004 = vmatpush.bf16.msra.mxu0 %v7720
    %8005 = vmatpush.bf16.msra.mxu0 %v7712
    %8006 = vmatpush.bf16.msra.mxu0 %v7704
    %8007 = vmatpush.bf16.msra.mxu0 %v7696
    %8008 = vmatpush.bf16.msra.mxu0 %v7688
    %8009 = vmatpush.bf16.msra.mxu0 %v7680
    %8010 = vmatpush.bf16.msra.mxu0 %v7672
    %8011 = vmatmul.bf16.gmra.mxu0 %v7137
    %v8012 = vpop.f32.mrf.mxu0
    %v8013 = vadd.f32 %v7272, %v8012
    %v8014 = vpop.f32.mrf.mxu0
    %8015 = vdwg.mxu0
    %8016 = vmatpush.bf16.msra.mxu0 %v7792
    %8017 = vmatpush.bf16.msra.mxu0 %v7784
    %8018 = vmatpush.bf16.msra.mxu0 %v7776
    %8019 = vmatpush.bf16.msra.mxu0 %v7768
    %8020 = vmatpush.bf16.msra.mxu0 %v7760
    %8021 = vmatpush.bf16.msra.mxu0 %v7752
    %8022 = vmatpush.bf16.msra.mxu0 %v7744
    %8023 = vmatpush.bf16.msra.mxu0 %v7736
    %8024 = vmatmul.bf16.gmra.mxu0 %v7138
    %v8025 = vpop.f32.mrf.mxu0
    %v8026 = vadd.f32 %v8013, %v8025
    %v8027 = vpop.f32.mrf.mxu0
    %8028 = vdwg.mxu0
    %8029 = vmatpush.bf16.msra.mxu0 %v7729
    %8030 = vmatpush.bf16.msra.mxu0 %v7721
    %8031 = vmatpush.bf16.msra.mxu0 %v7713
    %8032 = vmatpush.bf16.msra.mxu0 %v7705
    %8033 = vmatpush.bf16.msra.mxu0 %v7697
    %8034 = vmatpush.bf16.msra.mxu0 %v7689
    %8035 = vmatpush.bf16.msra.mxu0 %v7681
    %8036 = vmatpush.bf16.msra.mxu0 %v7673
    %8037 = vmatmul.bf16.gmra.mxu0 %v7137
    %v8038 = vpop.f32.mrf.mxu0
    %v8039 = vadd.f32 %v7273, %v8038
    %v8040 = vpop.f32.mrf.mxu0
    %8041 = vdwg.mxu0
    %8042 = vmatpush.bf16.msra.mxu0 %v7793
    %8043 = vmatpush.bf16.msra.mxu0 %v7785
    %8044 = vmatpush.bf16.msra.mxu0 %v7777
    %8045 = vmatpush.bf16.msra.mxu0 %v7769
    %8046 = vmatpush.bf16.msra.mxu0 %v7761
    %8047 = vmatpush.bf16.msra.mxu0 %v7753
    %8048 = vmatpush.bf16.msra.mxu0 %v7745
    %8049 = vmatpush.bf16.msra.mxu0 %v7737
    %8050 = vmatmul.bf16.gmra.mxu0 %v7138
    %v8051 = vpop.f32.mrf.mxu0
    %v8052 = vadd.f32 %v8039, %v8051
    %v8053 = vpop.f32.mrf.mxu0
    %8054 = vdwg.mxu0
    %8055 = vmatpush.bf16.msra.mxu0 %v7730
    %8056 = vmatpush.bf16.msra.mxu0 %v7722
    %8057 = vmatpush.bf16.msra.mxu0 %v7714
    %8058 = vmatpush.bf16.msra.mxu0 %v7706
    %8059 = vmatpush.bf16.msra.mxu0 %v7698
    %8060 = vmatpush.bf16.msra.mxu0 %v7690
    %8061 = vmatpush.bf16.msra.mxu0 %v7682
    %8062 = vmatpush.bf16.msra.mxu0 %v7674
    %8063 = vmatmul.bf16.gmra.mxu0 %v7137
    %v8064 = vpop.f32.mrf.mxu0
    %v8065 = vadd.f32 %v7274, %v8064
    %v8066 = vpop.f32.mrf.mxu0
    %8067 = vdwg.mxu0
    %8068 = vmatpush.bf16.msra.mxu0 %v7794
    %8069 = vmatpush.bf16.msra.mxu0 %v7786
    %8070 = vmatpush.bf16.msra.mxu0 %v7778
    %8071 = vmatpush.bf16.msra.mxu0 %v7770
    %8072 = vmatpush.bf16.msra.mxu0 %v7762
    %8073 = vmatpush.bf16.msra.mxu0 %v7754
    %8074 = vmatpush.bf16.msra.mxu0 %v7746
    %8075 = vmatpush.bf16.msra.mxu0 %v7738
    %8076 = vmatmul.bf16.gmra.mxu0 %v7138
    %v8077 = vpop.f32.mrf.mxu0
    %v8078 = vadd.f32 %v8065, %v8077
    %v8079 = vpop.f32.mrf.mxu0
    %8080 = vdwg.mxu0
    %8081 = vmatpush.bf16.msra.mxu0 %v7731
    %8082 = vmatpush.bf16.msra.mxu0 %v7723
    %8083 = vmatpush.bf16.msra.mxu0 %v7715
    %8084 = vmatpush.bf16.msra.mxu0 %v7707
    %8085 = vmatpush.bf16.msra.mxu0 %v7699
    %8086 = vmatpush.bf16.msra.mxu0 %v7691
    %8087 = vmatpush.bf16.msra.mxu0 %v7683
    %8088 = vmatpush.bf16.msra.mxu0 %v7675
    %8089 = vmatmul.bf16.gmra.mxu0 %v7137
    %v8090 = vpop.f32.mrf.mxu0
    %v8091 = vadd.f32 %v7275, %v8090
    %v8092 = vpop.f32.mrf.mxu0
    %8093 = vdwg.mxu0
    %8094 = vmatpush.bf16.msra.mxu0 %v7795
    %8095 = vmatpush.bf16.msra.mxu0 %v7787
    %8096 = vmatpush.bf16.msra.mxu0 %v7779
    %8097 = vmatpush.bf16.msra.mxu0 %v7771
    %8098 = vmatpush.bf16.msra.mxu0 %v7763
    %8099 = vmatpush.bf16.msra.mxu0 %v7755
    %8100 = vmatpush.bf16.msra.mxu0 %v7747
    %8101 = vmatpush.bf16.msra.mxu0 %v7739
    %8102 = vmatmul.bf16.gmra.mxu0 %v7138
    %v8103 = vpop.f32.mrf.mxu0
    %v8104 = vadd.f32 %v8091, %v8103
    %v8105 = vpop.f32.mrf.mxu0
    %8106 = vdwg.mxu0
    %8107 = vmatpush.bf16.msra.mxu0 %v7732
    %8108 = vmatpush.bf16.msra.mxu0 %v7724
    %8109 = vmatpush.bf16.msra.mxu0 %v7716
    %8110 = vmatpush.bf16.msra.mxu0 %v7708
    %8111 = vmatpush.bf16.msra.mxu0 %v7700
    %8112 = vmatpush.bf16.msra.mxu0 %v7692
    %8113 = vmatpush.bf16.msra.mxu0 %v7684
    %8114 = vmatpush.bf16.msra.mxu0 %v7676
    %8115 = vmatmul.bf16.gmra.mxu0 %v7137
    %v8116 = vpop.f32.mrf.mxu0
    %v8117 = vadd.f32 %v7276, %v8116
    %v8118 = vpop.f32.mrf.mxu0
    %8119 = vdwg.mxu0
    %8120 = vmatpush.bf16.msra.mxu0 %v7796
    %8121 = vmatpush.bf16.msra.mxu0 %v7788
    %8122 = vmatpush.bf16.msra.mxu0 %v7780
    %8123 = vmatpush.bf16.msra.mxu0 %v7772
    %8124 = vmatpush.bf16.msra.mxu0 %v7764
    %8125 = vmatpush.bf16.msra.mxu0 %v7756
    %8126 = vmatpush.bf16.msra.mxu0 %v7748
    %8127 = vmatpush.bf16.msra.mxu0 %v7740
    %8128 = vmatmul.bf16.gmra.mxu0 %v7138
    %v8129 = vpop.f32.mrf.mxu0
    %v8130 = vadd.f32 %v8117, %v8129
    %v8131 = vpop.f32.mrf.mxu0
    %8132 = vdwg.mxu0
    %v8133 = vmin.f32 %v7948, 20.0
    %v8134 = vmin.f32 %v7974, 20.0
    %v8135 = vmin.f32 %v8000, 20.0
    %v8136 = vmin.f32 %v8026, 20.0
    %v8137 = vmin.f32 %v8052, 20.0
    %v8138 = vmin.f32 %v8078, 20.0
    %v8139 = vmin.f32 %v8104, 20.0
    %v8140 = vmin.f32 %v8130, 20.0
    %v8141 = vmul.f32 %v8133, 1.442695
    %v8142 = vpow.pop %v8141
    %v8143 = vmul.f32 %v8134, 1.442695
    %v8144 = vpow.pop %v8143
    %v8145 = vmul.f32 %v8135, 1.442695
    %v8146 = vpow.pop %v8145
    %v8147 = vmul.f32 %v8136, 1.442695
    %v8148 = vpow.pop %v8147
    %v8149 = vmul.f32 %v8137, 1.442695
    %v8150 = vpow.pop %v8149
    %v8151 = vmul.f32 %v8138, 1.442695
    %v8152 = vpow.pop %v8151
    %v8153 = vmul.f32 %v8139, 1.442695
    %v8154 = vpow.pop %v8153
    %v8155 = vmul.f32 %v8140, 1.442695
    %v8156 = vpow.pop %v8155
    %v8157 = vadd.f32 %v8142, 1.0
    %v8158 = vadd.f32 %v8144, 1.0
    %v8159 = vadd.f32 %v8146, 1.0
    %v8160 = vadd.f32 %v8148, 1.0
    %v8161 = vadd.f32 %v8150, 1.0
    %v8162 = vadd.f32 %v8152, 1.0
    %v8163 = vadd.f32 %v8154, 1.0
    %v8164 = vadd.f32 %v8156, 1.0
    %v8165 = vmul.f32 %v8157, %v8157
    %v8166 = vmul.f32 %v8158, %v8158
    %v8167 = vmul.f32 %v8159, %v8159
    %v8168 = vmul.f32 %v8160, %v8160
    %v8169 = vmul.f32 %v8161, %v8161
    %v8170 = vmul.f32 %v8162, %v8162
    %v8171 = vmul.f32 %v8163, %v8163
    %v8172 = vmul.f32 %v8164, %v8164
    %v8173 = vsub.f32 %v8165, 1.0
    %v8174 = vsub.f32 %v8166, 1.0
    %v8175 = vsub.f32 %v8167, 1.0
    %v8176 = vsub.f32 %v8168, 1.0
    %v8177 = vsub.f32 %v8169, 1.0
    %v8178 = vsub.f32 %v8170, 1.0
    %v8179 = vsub.f32 %v8171, 1.0
    %v8180 = vsub.f32 %v8172, 1.0
    %v8181 = vmul.f32 %v7948, %v8173
    %v8182 = vmul.f32 %v7974, %v8174
    %v8183 = vmul.f32 %v8000, %v8175
    %v8184 = vmul.f32 %v8026, %v8176
    %v8185 = vmul.f32 %v8052, %v8177
    %v8186 = vmul.f32 %v8078, %v8178
    %v8187 = vmul.f32 %v8104, %v8179
    %v8188 = vmul.f32 %v8130, %v8180
    %v8189 = vadd.f32 %v8165, 1.0
    %v8190 = vadd.f32 %v8166, 1.0
    %v8191 = vadd.f32 %v8167, 1.0
    %v8192 = vadd.f32 %v8168, 1.0
    %v8193 = vadd.f32 %v8169, 1.0
    %v8194 = vadd.f32 %v8170, 1.0
    %v8195 = vadd.f32 %v8171, 1.0
    %v8196 = vadd.f32 %v8172, 1.0
    %v8197 = vrcp.pop %v8189
    %v8198 = vrcp.pop %v8190
    %v8199 = vrcp.pop %v8191
    %v8200 = vrcp.pop %v8192
    %v8201 = vrcp.pop %v8193
    %v8202 = vrcp.pop %v8194
    %v8203 = vrcp.pop %v8195
    %v8204 = vrcp.pop %v8196
    %v8205 = vmul.f32 %v8181, %v8197
    %v8206 = vmul.f32 %v8182, %v8198
    %v8207 = vmul.f32 %v8183, %v8199
    %v8208 = vmul.f32 %v8184, %v8200
    %v8209 = vmul.f32 %v8185, %v8201
    %v8210 = vmul.f32 %v8186, %v8202
    %v8211 = vmul.f32 %v8187, %v8203
    %v8212 = vmul.f32 %v8188, %v8204
    %vm8213 = vcmp.gt.f32.partialorder %v7948, 20.0
    %vm8214 = vcmp.gt.f32.partialorder %v7974, 20.0
    %vm8215 = vcmp.gt.f32.partialorder %v8000, 20.0
    %vm8216 = vcmp.gt.f32.partialorder %v8026, 20.0
    %vm8217 = vcmp.gt.f32.partialorder %v8052, 20.0
    %vm8218 = vcmp.gt.f32.partialorder %v8078, 20.0
    %vm8219 = vcmp.gt.f32.partialorder %v8104, 20.0
    %vm8220 = vcmp.gt.f32.partialorder %v8130, 20.0
    %v8221 = vsel %vm8213, %v7948, %v8205
    %v8222 = vsel %vm8214, %v7974, %v8206
    %v8223 = vsel %vm8215, %v8000, %v8207
    %v8224 = vsel %vm8216, %v8026, %v8208
    %v8225 = vsel %vm8217, %v8052, %v8209
    %v8226 = vsel %vm8218, %v8078, %v8210
    %v8227 = vsel %vm8219, %v8104, %v8211
    %v8228 = vsel %vm8220, %v8130, %v8212
    %v8229 = vpack.c.bf16 %v8221, %v8221
    %v8230 = vpack.c.bf16 %v8222, %v8222
    %v8231 = vpack.c.bf16 %v8223, %v8223
    %v8232 = vpack.c.bf16 %v8224, %v8224
    %v8233 = vpack.c.bf16 %v8225, %v8225
    %v8234 = vpack.c.bf16 %v8226, %v8226
    %v8235 = vpack.c.bf16 %v8227, %v8227
    %v8236 = vpack.c.bf16 %v8228, %v8228
    %v8237 = vld [vmem:[#allocation23] sm:$0xff]
    %v8238 = vld [vmem:[#allocation23 + $0x8] sm:$0xff]
    %v8239 = vld [vmem:[#allocation23 + $0x10] sm:$0xff]
    %v8240 = vld [vmem:[#allocation23 + $0x18] sm:$0xff]
    %v8241 = vld [vmem:[#allocation23 + $0x20] sm:$0xff]
    %v8242 = vld [vmem:[#allocation23 + $0x28] sm:$0xff]
    %v8243 = vld [vmem:[#allocation23 + $0x30] sm:$0xff]
    %v8244 = vld [vmem:[#allocation23 + $0x38] sm:$0xff]
    %v8245 = vld [vmem:[#allocation23 + $0x40] sm:$0xff]
    %v8246 = vld [vmem:[#allocation23 + $0x48] sm:$0xff]
    %v8247 = vld [vmem:[#allocation23 + $0x50] sm:$0xff]
    %v8248 = vld [vmem:[#allocation23 + $0x58] sm:$0xff]
    %v8249 = vld [vmem:[#allocation23 + $0x60] sm:$0xff]
    %v8250 = vld [vmem:[#allocation23 + $0x68] sm:$0xff]
    %v8251 = vld [vmem:[#allocation23 + $0x70] sm:$0xff]
    %v8252 = vld [vmem:[#allocation23 + $0x78] sm:$0xff]
    %v8253 = vld [vmem:[#allocation23 + $0x80] sm:$0xff]
    %v8254 = vld [vmem:[#allocation23 + $0x88] sm:$0xff]
    %v8255 = vld [vmem:[#allocation23 + $0x90] sm:$0xff]
    %v8256 = vld [vmem:[#allocation23 + $0x98] sm:$0xff]
    %v8257 = vld [vmem:[#allocation23 + $0xa0] sm:$0xff]
    %v8258 = vld [vmem:[#allocation23 + $0xa8] sm:$0xff]
    %v8259 = vld [vmem:[#allocation23 + $0xb0] sm:$0xff]
    %v8260 = vld [vmem:[#allocation23 + $0xb8] sm:$0xff]
    %v8261 = vld [vmem:[#allocation23 + $0xc0] sm:$0xff]
    %v8262 = vld [vmem:[#allocation23 + $0xc8] sm:$0xff]
    %v8263 = vld [vmem:[#allocation23 + $0xd0] sm:$0xff]
    %v8264 = vld [vmem:[#allocation23 + $0xd8] sm:$0xff]
    %v8265 = vld [vmem:[#allocation23 + $0xe0] sm:$0xff]
    %v8266 = vld [vmem:[#allocation23 + $0xe8] sm:$0xff]
    %v8267 = vld [vmem:[#allocation23 + $0xf0] sm:$0xff]
    %v8268 = vld [vmem:[#allocation23 + $0xf8] sm:$0xff]
    %v8269 = vld [vmem:[#allocation23 + $0x100] sm:$0xff]
    %v8270 = vld [vmem:[#allocation23 + $0x108] sm:$0xff]
    %v8271 = vld [vmem:[#allocation23 + $0x110] sm:$0xff]
    %v8272 = vld [vmem:[#allocation23 + $0x118] sm:$0xff]
    %v8273 = vld [vmem:[#allocation23 + $0x120] sm:$0xff]
    %v8274 = vld [vmem:[#allocation23 + $0x128] sm:$0xff]
    %v8275 = vld [vmem:[#allocation23 + $0x130] sm:$0xff]
    %v8276 = vld [vmem:[#allocation23 + $0x138] sm:$0xff]
    %v8277 = vld [vmem:[#allocation23 + $0x140] sm:$0xff]
    %v8278 = vld [vmem:[#allocation23 + $0x148] sm:$0xff]
    %v8279 = vld [vmem:[#allocation23 + $0x150] sm:$0xff]
    %v8280 = vld [vmem:[#allocation23 + $0x158] sm:$0xff]
    %v8281 = vld [vmem:[#allocation23 + $0x160] sm:$0xff]
    %v8282 = vld [vmem:[#allocation23 + $0x168] sm:$0xff]
    %v8283 = vld [vmem:[#allocation23 + $0x170] sm:$0xff]
    %v8284 = vld [vmem:[#allocation23 + $0x178] sm:$0xff]
    %v8285 = vld [vmem:[#allocation23 + $0x180] sm:$0xff]
    %v8286 = vld [vmem:[#allocation23 + $0x188] sm:$0xff]
    %v8287 = vld [vmem:[#allocation23 + $0x190] sm:$0xff]
    %v8288 = vld [vmem:[#allocation23 + $0x198] sm:$0xff]
    %v8289 = vld [vmem:[#allocation23 + $0x1a0] sm:$0xff]
    %v8290 = vld [vmem:[#allocation23 + $0x1a8] sm:$0xff]
    %v8291 = vld [vmem:[#allocation23 + $0x1b0] sm:$0xff]
    %v8292 = vld [vmem:[#allocation23 + $0x1b8] sm:$0xff]
    %v8293 = vld [vmem:[#allocation23 + $0x1c0] sm:$0xff]
    %v8294 = vld [vmem:[#allocation23 + $0x1c8] sm:$0xff]
    %v8295 = vld [vmem:[#allocation23 + $0x1d0] sm:$0xff]
    %v8296 = vld [vmem:[#allocation23 + $0x1d8] sm:$0xff]
    %v8297 = vld [vmem:[#allocation23 + $0x1e0] sm:$0xff]
    %v8298 = vld [vmem:[#allocation23 + $0x1e8] sm:$0xff]
    %v8299 = vld [vmem:[#allocation23 + $0x1f0] sm:$0xff]
    %v8300 = vld [vmem:[#allocation23 + $0x1f8] sm:$0xff]
    %v8301 = vld [vmem:[#allocation23 + $0x200] sm:$0xff]
    %v8302 = vld [vmem:[#allocation23 + $0x208] sm:$0xff]
    %v8303 = vld [vmem:[#allocation23 + $0x210] sm:$0xff]
    %v8304 = vld [vmem:[#allocation23 + $0x218] sm:$0xff]
    %v8305 = vld [vmem:[#allocation23 + $0x220] sm:$0xff]
    %v8306 = vld [vmem:[#allocation23 + $0x228] sm:$0xff]
    %v8307 = vld [vmem:[#allocation23 + $0x230] sm:$0xff]
    %v8308 = vld [vmem:[#allocation23 + $0x238] sm:$0xff]
    %v8309 = vld [vmem:[#allocation23 + $0x240] sm:$0xff]
    %v8310 = vld [vmem:[#allocation23 + $0x248] sm:$0xff]
    %v8311 = vld [vmem:[#allocation23 + $0x250] sm:$0xff]
    %v8312 = vld [vmem:[#allocation23 + $0x258] sm:$0xff]
    %v8313 = vld [vmem:[#allocation23 + $0x260] sm:$0xff]
    %v8314 = vld [vmem:[#allocation23 + $0x268] sm:$0xff]
    %v8315 = vld [vmem:[#allocation23 + $0x270] sm:$0xff]
    %v8316 = vld [vmem:[#allocation23 + $0x278] sm:$0xff]
    %v8317 = vld [vmem:[#allocation23 + $0x280] sm:$0xff]
    %v8318 = vld [vmem:[#allocation23 + $0x288] sm:$0xff]
    %v8319 = vld [vmem:[#allocation23 + $0x290] sm:$0xff]
    %v8320 = vld [vmem:[#allocation23 + $0x298] sm:$0xff]
    %v8321 = vld [vmem:[#allocation23 + $0x2a0] sm:$0xff]
    %v8322 = vld [vmem:[#allocation23 + $0x2a8] sm:$0xff]
    %v8323 = vld [vmem:[#allocation23 + $0x2b0] sm:$0xff]
    %v8324 = vld [vmem:[#allocation23 + $0x2b8] sm:$0xff]
    %v8325 = vld [vmem:[#allocation23 + $0x2c0] sm:$0xff]
    %v8326 = vld [vmem:[#allocation23 + $0x2c8] sm:$0xff]
    %v8327 = vld [vmem:[#allocation23 + $0x2d0] sm:$0xff]
    %v8328 = vld [vmem:[#allocation23 + $0x2d8] sm:$0xff]
    %v8329 = vld [vmem:[#allocation23 + $0x2e0] sm:$0xff]
    %v8330 = vld [vmem:[#allocation23 + $0x2e8] sm:$0xff]
    %v8331 = vld [vmem:[#allocation23 + $0x2f0] sm:$0xff]
    %v8332 = vld [vmem:[#allocation23 + $0x2f8] sm:$0xff]
    %v8333 = vld [vmem:[#allocation23 + $0x300] sm:$0xff]
    %v8334 = vld [vmem:[#allocation23 + $0x308] sm:$0xff]
    %v8335 = vld [vmem:[#allocation23 + $0x310] sm:$0xff]
    %v8336 = vld [vmem:[#allocation23 + $0x318] sm:$0xff]
    %v8337 = vld [vmem:[#allocation23 + $0x320] sm:$0xff]
    %v8338 = vld [vmem:[#allocation23 + $0x328] sm:$0xff]
    %v8339 = vld [vmem:[#allocation23 + $0x330] sm:$0xff]
    %v8340 = vld [vmem:[#allocation23 + $0x338] sm:$0xff]
    %v8341 = vld [vmem:[#allocation23 + $0x340] sm:$0xff]
    %v8342 = vld [vmem:[#allocation23 + $0x348] sm:$0xff]
    %v8343 = vld [vmem:[#allocation23 + $0x350] sm:$0xff]
    %v8344 = vld [vmem:[#allocation23 + $0x358] sm:$0xff]
    %v8345 = vld [vmem:[#allocation23 + $0x360] sm:$0xff]
    %v8346 = vld [vmem:[#allocation23 + $0x368] sm:$0xff]
    %v8347 = vld [vmem:[#allocation23 + $0x370] sm:$0xff]
    %v8348 = vld [vmem:[#allocation23 + $0x378] sm:$0xff]
    %v8349 = vld [vmem:[#allocation23 + $0x380] sm:$0xff]
    %v8350 = vld [vmem:[#allocation23 + $0x388] sm:$0xff]
    %v8351 = vld [vmem:[#allocation23 + $0x390] sm:$0xff]
    %v8352 = vld [vmem:[#allocation23 + $0x398] sm:$0xff]
    %v8353 = vld [vmem:[#allocation23 + $0x3a0] sm:$0xff]
    %v8354 = vld [vmem:[#allocation23 + $0x3a8] sm:$0xff]
    %v8355 = vld [vmem:[#allocation23 + $0x3b0] sm:$0xff]
    %v8356 = vld [vmem:[#allocation23 + $0x3b8] sm:$0xff]
    %v8357 = vld [vmem:[#allocation23 + $0x3c0] sm:$0xff]
    %v8358 = vld [vmem:[#allocation23 + $0x3c8] sm:$0xff]
    %v8359 = vld [vmem:[#allocation23 + $0x3d0] sm:$0xff]
    %v8360 = vld [vmem:[#allocation23 + $0x3d8] sm:$0xff]
    %v8361 = vld [vmem:[#allocation23 + $0x3e0] sm:$0xff]
    %v8362 = vld [vmem:[#allocation23 + $0x3e8] sm:$0xff]
    %v8363 = vld [vmem:[#allocation23 + $0x3f0] sm:$0xff]
    %v8364 = vld [vmem:[#allocation23 + $0x3f8] sm:$0xff]
    %v8365 = vld [vmem:[#allocation10 + $0x1b] sm:$0x3]
    %v8367 = vperm.slane %v8365, 0
    %v8368 = vperm.slane %v8365, 1
    %v8499 = vunpack.c.l.b16 %v8237
    %v8500 = vunpack.c.h.b16 %v8237
    %v8501 = vunpack.c.l.b16 %v8238
    %v8502 = vunpack.c.h.b16 %v8238
    %v8503 = vunpack.c.l.b16 %v8239
    %v8504 = vunpack.c.h.b16 %v8239
    %v8505 = vunpack.c.l.b16 %v8240
    %v8506 = vunpack.c.h.b16 %v8240
    %v8507 = vunpack.c.l.b16 %v8241
    %v8508 = vunpack.c.h.b16 %v8241
    %v8509 = vunpack.c.l.b16 %v8242
    %v8510 = vunpack.c.h.b16 %v8242
    %v8511 = vunpack.c.l.b16 %v8243
    %v8512 = vunpack.c.h.b16 %v8243
    %v8513 = vunpack.c.l.b16 %v8244
    %v8514 = vunpack.c.h.b16 %v8244
    %v8515 = vunpack.c.l.b16 %v8245
    %v8516 = vunpack.c.h.b16 %v8245
    %v8517 = vunpack.c.l.b16 %v8246
    %v8518 = vunpack.c.h.b16 %v8246
    %v8519 = vunpack.c.l.b16 %v8247
    %v8520 = vunpack.c.h.b16 %v8247
    %v8521 = vunpack.c.l.b16 %v8248
    %v8522 = vunpack.c.h.b16 %v8248
    %v8523 = vunpack.c.l.b16 %v8249
    %v8524 = vunpack.c.h.b16 %v8249
    %v8525 = vunpack.c.l.b16 %v8250
    %v8526 = vunpack.c.h.b16 %v8250
    %v8527 = vunpack.c.l.b16 %v8251
    %v8528 = vunpack.c.h.b16 %v8251
    %v8529 = vunpack.c.l.b16 %v8252
    %v8530 = vunpack.c.h.b16 %v8252
    %v8531 = vunpack.c.l.b16 %v8253
    %v8532 = vunpack.c.h.b16 %v8253
    %v8533 = vunpack.c.l.b16 %v8254
    %v8534 = vunpack.c.h.b16 %v8254
    %v8535 = vunpack.c.l.b16 %v8255
    %v8536 = vunpack.c.h.b16 %v8255
    %v8537 = vunpack.c.l.b16 %v8256
    %v8538 = vunpack.c.h.b16 %v8256
    %v8539 = vunpack.c.l.b16 %v8257
    %v8540 = vunpack.c.h.b16 %v8257
    %v8541 = vunpack.c.l.b16 %v8258
    %v8542 = vunpack.c.h.b16 %v8258
    %v8543 = vunpack.c.l.b16 %v8259
    %v8544 = vunpack.c.h.b16 %v8259
    %v8545 = vunpack.c.l.b16 %v8260
    %v8546 = vunpack.c.h.b16 %v8260
    %v8547 = vunpack.c.l.b16 %v8261
    %v8548 = vunpack.c.h.b16 %v8261
    %v8549 = vunpack.c.l.b16 %v8262
    %v8550 = vunpack.c.h.b16 %v8262
    %v8551 = vunpack.c.l.b16 %v8263
    %v8552 = vunpack.c.h.b16 %v8263
    %v8553 = vunpack.c.l.b16 %v8264
    %v8554 = vunpack.c.h.b16 %v8264
    %v8555 = vunpack.c.l.b16 %v8265
    %v8556 = vunpack.c.h.b16 %v8265
    %v8557 = vunpack.c.l.b16 %v8266
    %v8558 = vunpack.c.h.b16 %v8266
    %v8559 = vunpack.c.l.b16 %v8267
    %v8560 = vunpack.c.h.b16 %v8267
    %v8561 = vunpack.c.l.b16 %v8268
    %v8562 = vunpack.c.h.b16 %v8268
    %v8563 = vunpack.c.l.b16 %v8269
    %v8564 = vunpack.c.h.b16 %v8269
    %v8565 = vunpack.c.l.b16 %v8270
    %v8566 = vunpack.c.h.b16 %v8270
    %v8567 = vunpack.c.l.b16 %v8271
    %v8568 = vunpack.c.h.b16 %v8271
    %v8569 = vunpack.c.l.b16 %v8272
    %v8570 = vunpack.c.h.b16 %v8272
    %v8571 = vunpack.c.l.b16 %v8273
    %v8572 = vunpack.c.h.b16 %v8273
    %v8573 = vunpack.c.l.b16 %v8274
    %v8574 = vunpack.c.h.b16 %v8274
    %v8575 = vunpack.c.l.b16 %v8275
    %v8576 = vunpack.c.h.b16 %v8275
    %v8577 = vunpack.c.l.b16 %v8276
    %v8578 = vunpack.c.h.b16 %v8276
    %v8579 = vunpack.c.l.b16 %v8277
    %v8580 = vunpack.c.h.b16 %v8277
    %v8581 = vunpack.c.l.b16 %v8278
    %v8582 = vunpack.c.h.b16 %v8278
    %v8583 = vunpack.c.l.b16 %v8279
    %v8584 = vunpack.c.h.b16 %v8279
    %v8585 = vunpack.c.l.b16 %v8280
    %v8586 = vunpack.c.h.b16 %v8280
    %v8587 = vunpack.c.l.b16 %v8281
    %v8588 = vunpack.c.h.b16 %v8281
    %v8589 = vunpack.c.l.b16 %v8282
    %v8590 = vunpack.c.h.b16 %v8282
    %v8591 = vunpack.c.l.b16 %v8283
    %v8592 = vunpack.c.h.b16 %v8283
    %v8593 = vunpack.c.l.b16 %v8284
    %v8594 = vunpack.c.h.b16 %v8284
    %v8595 = vunpack.c.l.b16 %v8285
    %v8596 = vunpack.c.h.b16 %v8285
    %v8597 = vunpack.c.l.b16 %v8286
    %v8598 = vunpack.c.h.b16 %v8286
    %v8599 = vunpack.c.l.b16 %v8287
    %v8600 = vunpack.c.h.b16 %v8287
    %v8601 = vunpack.c.l.b16 %v8288
    %v8602 = vunpack.c.h.b16 %v8288
    %v8603 = vunpack.c.l.b16 %v8289
    %v8604 = vunpack.c.h.b16 %v8289
    %v8605 = vunpack.c.l.b16 %v8290
    %v8606 = vunpack.c.h.b16 %v8290
    %v8607 = vunpack.c.l.b16 %v8291
    %v8608 = vunpack.c.h.b16 %v8291
    %v8609 = vunpack.c.l.b16 %v8292
    %v8610 = vunpack.c.h.b16 %v8292
    %v8611 = vunpack.c.l.b16 %v8293
    %v8612 = vunpack.c.h.b16 %v8293
    %v8613 = vunpack.c.l.b16 %v8294
    %v8614 = vunpack.c.h.b16 %v8294
    %v8615 = vunpack.c.l.b16 %v8295
    %v8616 = vunpack.c.h.b16 %v8295
    %v8617 = vunpack.c.l.b16 %v8296
    %v8618 = vunpack.c.h.b16 %v8296
    %v8619 = vunpack.c.l.b16 %v8297
    %v8620 = vunpack.c.h.b16 %v8297
    %v8621 = vunpack.c.l.b16 %v8298
    %v8622 = vunpack.c.h.b16 %v8298
    %v8623 = vunpack.c.l.b16 %v8299
    %v8624 = vunpack.c.h.b16 %v8299
    %v8625 = vunpack.c.l.b16 %v8300
    %v8626 = vunpack.c.h.b16 %v8300
    %v8627 = vunpack.c.l.b16 %v8301
    %v8628 = vunpack.c.h.b16 %v8301
    %v8629 = vunpack.c.l.b16 %v8302
    %v8630 = vunpack.c.h.b16 %v8302
    %v8631 = vunpack.c.l.b16 %v8303
    %v8632 = vunpack.c.h.b16 %v8303
    %v8633 = vunpack.c.l.b16 %v8304
    %v8634 = vunpack.c.h.b16 %v8304
    %v8635 = vunpack.c.l.b16 %v8305
    %v8636 = vunpack.c.h.b16 %v8305
    %v8637 = vunpack.c.l.b16 %v8306
    %v8638 = vunpack.c.h.b16 %v8306
    %v8639 = vunpack.c.l.b16 %v8307
    %v8640 = vunpack.c.h.b16 %v8307
    %v8641 = vunpack.c.l.b16 %v8308
    %v8642 = vunpack.c.h.b16 %v8308
    %v8643 = vunpack.c.l.b16 %v8309
    %v8644 = vunpack.c.h.b16 %v8309
    %v8645 = vunpack.c.l.b16 %v8310
    %v8646 = vunpack.c.h.b16 %v8310
    %v8647 = vunpack.c.l.b16 %v8311
    %v8648 = vunpack.c.h.b16 %v8311
    %v8649 = vunpack.c.l.b16 %v8312
    %v8650 = vunpack.c.h.b16 %v8312
    %v8651 = vunpack.c.l.b16 %v8313
    %v8652 = vunpack.c.h.b16 %v8313
    %v8653 = vunpack.c.l.b16 %v8314
    %v8654 = vunpack.c.h.b16 %v8314
    %v8655 = vunpack.c.l.b16 %v8315
    %v8656 = vunpack.c.h.b16 %v8315
    %v8657 = vunpack.c.l.b16 %v8316
    %v8658 = vunpack.c.h.b16 %v8316
    %v8659 = vunpack.c.l.b16 %v8317
    %v8660 = vunpack.c.h.b16 %v8317
    %v8661 = vunpack.c.l.b16 %v8318
    %v8662 = vunpack.c.h.b16 %v8318
    %v8663 = vunpack.c.l.b16 %v8319
    %v8664 = vunpack.c.h.b16 %v8319
    %v8665 = vunpack.c.l.b16 %v8320
    %v8666 = vunpack.c.h.b16 %v8320
    %v8667 = vunpack.c.l.b16 %v8321
    %v8668 = vunpack.c.h.b16 %v8321
    %v8669 = vunpack.c.l.b16 %v8322
    %v8670 = vunpack.c.h.b16 %v8322
    %v8671 = vunpack.c.l.b16 %v8323
    %v8672 = vunpack.c.h.b16 %v8323
    %v8673 = vunpack.c.l.b16 %v8324
    %v8674 = vunpack.c.h.b16 %v8324
    %v8675 = vunpack.c.l.b16 %v8325
    %v8676 = vunpack.c.h.b16 %v8325
    %v8677 = vunpack.c.l.b16 %v8326
    %v8678 = vunpack.c.h.b16 %v8326
    %v8679 = vunpack.c.l.b16 %v8327
    %v8680 = vunpack.c.h.b16 %v8327
    %v8681 = vunpack.c.l.b16 %v8328
    %v8682 = vunpack.c.h.b16 %v8328
    %v8683 = vunpack.c.l.b16 %v8329
    %v8684 = vunpack.c.h.b16 %v8329
    %v8685 = vunpack.c.l.b16 %v8330
    %v8686 = vunpack.c.h.b16 %v8330
    %v8687 = vunpack.c.l.b16 %v8331
    %v8688 = vunpack.c.h.b16 %v8331
    %v8689 = vunpack.c.l.b16 %v8332
    %v8690 = vunpack.c.h.b16 %v8332
    %v8691 = vunpack.c.l.b16 %v8333
    %v8692 = vunpack.c.h.b16 %v8333
    %v8693 = vunpack.c.l.b16 %v8334
    %v8694 = vunpack.c.h.b16 %v8334
    %v8695 = vunpack.c.l.b16 %v8335
    %v8696 = vunpack.c.h.b16 %v8335
    %v8697 = vunpack.c.l.b16 %v8336
    %v8698 = vunpack.c.h.b16 %v8336
    %v8699 = vunpack.c.l.b16 %v8337
    %v8700 = vunpack.c.h.b16 %v8337
    %v8701 = vunpack.c.l.b16 %v8338
    %v8702 = vunpack.c.h.b16 %v8338
    %v8703 = vunpack.c.l.b16 %v8339
    %v8704 = vunpack.c.h.b16 %v8339
    %v8705 = vunpack.c.l.b16 %v8340
    %v8706 = vunpack.c.h.b16 %v8340
    %v8707 = vunpack.c.l.b16 %v8341
    %v8708 = vunpack.c.h.b16 %v8341
    %v8709 = vunpack.c.l.b16 %v8342
    %v8710 = vunpack.c.h.b16 %v8342
    %v8711 = vunpack.c.l.b16 %v8343
    %v8712 = vunpack.c.h.b16 %v8343
    %v8713 = vunpack.c.l.b16 %v8344
    %v8714 = vunpack.c.h.b16 %v8344
    %v8715 = vunpack.c.l.b16 %v8345
    %v8716 = vunpack.c.h.b16 %v8345
    %v8717 = vunpack.c.l.b16 %v8346
    %v8718 = vunpack.c.h.b16 %v8346
    %v8719 = vunpack.c.l.b16 %v8347
    %v8720 = vunpack.c.h.b16 %v8347
    %v8721 = vunpack.c.l.b16 %v8348
    %v8722 = vunpack.c.h.b16 %v8348
    %v8723 = vunpack.c.l.b16 %v8349
    %v8724 = vunpack.c.h.b16 %v8349
    %v8725 = vunpack.c.l.b16 %v8350
    %v8726 = vunpack.c.h.b16 %v8350
    %v8727 = vunpack.c.l.b16 %v8351
    %v8728 = vunpack.c.h.b16 %v8351
    %v8729 = vunpack.c.l.b16 %v8352
    %v8730 = vunpack.c.h.b16 %v8352
    %v8731 = vunpack.c.l.b16 %v8353
    %v8732 = vunpack.c.h.b16 %v8353
    %v8733 = vunpack.c.l.b16 %v8354
    %v8734 = vunpack.c.h.b16 %v8354
    %v8735 = vunpack.c.l.b16 %v8355
    %v8736 = vunpack.c.h.b16 %v8355
    %v8737 = vunpack.c.l.b16 %v8356
    %v8738 = vunpack.c.h.b16 %v8356
    %v8739 = vunpack.c.l.b16 %v8357
    %v8740 = vunpack.c.h.b16 %v8357
    %v8741 = vunpack.c.l.b16 %v8358
    %v8742 = vunpack.c.h.b16 %v8358
    %v8743 = vunpack.c.l.b16 %v8359
    %v8744 = vunpack.c.h.b16 %v8359
    %v8745 = vunpack.c.l.b16 %v8360
    %v8746 = vunpack.c.h.b16 %v8360
    %v8747 = vunpack.c.l.b16 %v8361
    %v8748 = vunpack.c.h.b16 %v8361
    %v8749 = vunpack.c.l.b16 %v8362
    %v8750 = vunpack.c.h.b16 %v8362
    %v8751 = vunpack.c.l.b16 %v8363
    %v8752 = vunpack.c.h.b16 %v8363
    %v8753 = vunpack.c.l.b16 %v8364
    %v8754 = vunpack.c.h.b16 %v8364
    %v8755 = vpack.c.b16 %v8501, %v8499
    %v8756 = vpack.c.b16 %v8502, %v8500
    %v8757 = vpack.c.b16 %v8505, %v8503
    %v8758 = vpack.c.b16 %v8506, %v8504
    %v8759 = vpack.c.b16 %v8509, %v8507
    %v8760 = vpack.c.b16 %v8510, %v8508
    %v8761 = vpack.c.b16 %v8513, %v8511
    %v8762 = vpack.c.b16 %v8514, %v8512
    %v8763 = vpack.c.b16 %v8517, %v8515
    %v8764 = vpack.c.b16 %v8518, %v8516
    %v8765 = vpack.c.b16 %v8521, %v8519
    %v8766 = vpack.c.b16 %v8522, %v8520
    %v8767 = vpack.c.b16 %v8525, %v8523
    %v8768 = vpack.c.b16 %v8526, %v8524
    %v8769 = vpack.c.b16 %v8529, %v8527
    %v8770 = vpack.c.b16 %v8530, %v8528
    %v8771 = vpack.c.b16 %v8533, %v8531
    %v8772 = vpack.c.b16 %v8534, %v8532
    %v8773 = vpack.c.b16 %v8537, %v8535
    %v8774 = vpack.c.b16 %v8538, %v8536
    %v8775 = vpack.c.b16 %v8541, %v8539
    %v8776 = vpack.c.b16 %v8542, %v8540
    %v8777 = vpack.c.b16 %v8545, %v8543
    %v8778 = vpack.c.b16 %v8546, %v8544
    %v8779 = vpack.c.b16 %v8549, %v8547
    %v8780 = vpack.c.b16 %v8550, %v8548
    %v8781 = vpack.c.b16 %v8553, %v8551
    %v8782 = vpack.c.b16 %v8554, %v8552
    %v8783 = vpack.c.b16 %v8557, %v8555
    %v8784 = vpack.c.b16 %v8558, %v8556
    %v8785 = vpack.c.b16 %v8561, %v8559
    %v8786 = vpack.c.b16 %v8562, %v8560
    %v8787 = vpack.c.b16 %v8565, %v8563
    %v8788 = vpack.c.b16 %v8566, %v8564
    %v8789 = vpack.c.b16 %v8569, %v8567
    %v8790 = vpack.c.b16 %v8570, %v8568
    %v8791 = vpack.c.b16 %v8573, %v8571
    %v8792 = vpack.c.b16 %v8574, %v8572
    %v8793 = vpack.c.b16 %v8577, %v8575
    %v8794 = vpack.c.b16 %v8578, %v8576
    %v8795 = vpack.c.b16 %v8581, %v8579
    %v8796 = vpack.c.b16 %v8582, %v8580
    %v8797 = vpack.c.b16 %v8585, %v8583
    %v8798 = vpack.c.b16 %v8586, %v8584
    %v8799 = vpack.c.b16 %v8589, %v8587
    %v8800 = vpack.c.b16 %v8590, %v8588
    %v8801 = vpack.c.b16 %v8593, %v8591
    %v8802 = vpack.c.b16 %v8594, %v8592
    %v8803 = vpack.c.b16 %v8597, %v8595
    %v8804 = vpack.c.b16 %v8598, %v8596
    %v8805 = vpack.c.b16 %v8601, %v8599
    %v8806 = vpack.c.b16 %v8602, %v8600
    %v8807 = vpack.c.b16 %v8605, %v8603
    %v8808 = vpack.c.b16 %v8606, %v8604
    %v8809 = vpack.c.b16 %v8609, %v8607
    %v8810 = vpack.c.b16 %v8610, %v8608
    %v8811 = vpack.c.b16 %v8613, %v8611
    %v8812 = vpack.c.b16 %v8614, %v8612
    %v8813 = vpack.c.b16 %v8617, %v8615
    %v8814 = vpack.c.b16 %v8618, %v8616
    %v8815 = vpack.c.b16 %v8621, %v8619
    %v8816 = vpack.c.b16 %v8622, %v8620
    %v8817 = vpack.c.b16 %v8625, %v8623
    %v8818 = vpack.c.b16 %v8626, %v8624
    %v8819 = vpack.c.b16 %v8629, %v8627
    %v8820 = vpack.c.b16 %v8630, %v8628
    %v8821 = vpack.c.b16 %v8633, %v8631
    %v8822 = vpack.c.b16 %v8634, %v8632
    %v8823 = vpack.c.b16 %v8637, %v8635
    %v8824 = vpack.c.b16 %v8638, %v8636
    %v8825 = vpack.c.b16 %v8641, %v8639
    %v8826 = vpack.c.b16 %v8642, %v8640
    %v8827 = vpack.c.b16 %v8645, %v8643
    %v8828 = vpack.c.b16 %v8646, %v8644
    %v8829 = vpack.c.b16 %v8649, %v8647
    %v8830 = vpack.c.b16 %v8650, %v8648
    %v8831 = vpack.c.b16 %v8653, %v8651
    %v8832 = vpack.c.b16 %v8654, %v8652
    %v8833 = vpack.c.b16 %v8657, %v8655
    %v8834 = vpack.c.b16 %v8658, %v8656
    %v8835 = vpack.c.b16 %v8661, %v8659
    %v8836 = vpack.c.b16 %v8662, %v8660
    %v8837 = vpack.c.b16 %v8665, %v8663
    %v8838 = vpack.c.b16 %v8666, %v8664
    %v8839 = vpack.c.b16 %v8669, %v8667
    %v8840 = vpack.c.b16 %v8670, %v8668
    %v8841 = vpack.c.b16 %v8673, %v8671
    %v8842 = vpack.c.b16 %v8674, %v8672
    %v8843 = vpack.c.b16 %v8677, %v8675
    %v8844 = vpack.c.b16 %v8678, %v8676
    %v8845 = vpack.c.b16 %v8681, %v8679
    %v8846 = vpack.c.b16 %v8682, %v8680
    %v8847 = vpack.c.b16 %v8685, %v8683
    %v8848 = vpack.c.b16 %v8686, %v8684
    %v8849 = vpack.c.b16 %v8689, %v8687
    %v8850 = vpack.c.b16 %v8690, %v8688
    %v8851 = vpack.c.b16 %v8693, %v8691
    %v8852 = vpack.c.b16 %v8694, %v8692
    %v8853 = vpack.c.b16 %v8697, %v8695
    %v8854 = vpack.c.b16 %v8698, %v8696
    %v8855 = vpack.c.b16 %v8701, %v8699
    %v8856 = vpack.c.b16 %v8702, %v8700
    %v8857 = vpack.c.b16 %v8705, %v8703
    %v8858 = vpack.c.b16 %v8706, %v8704
    %v8859 = vpack.c.b16 %v8709, %v8707
    %v8860 = vpack.c.b16 %v8710, %v8708
    %v8861 = vpack.c.b16 %v8713, %v8711
    %v8862 = vpack.c.b16 %v8714, %v8712
    %v8863 = vpack.c.b16 %v8717, %v8715
    %v8864 = vpack.c.b16 %v8718, %v8716
    %v8865 = vpack.c.b16 %v8721, %v8719
    %v8866 = vpack.c.b16 %v8722, %v8720
    %v8867 = vpack.c.b16 %v8725, %v8723
    %v8868 = vpack.c.b16 %v8726, %v8724
    %v8869 = vpack.c.b16 %v8729, %v8727
    %v8870 = vpack.c.b16 %v8730, %v8728
    %v8871 = vpack.c.b16 %v8733, %v8731
    %v8872 = vpack.c.b16 %v8734, %v8732
    %v8873 = vpack.c.b16 %v8737, %v8735
    %v8874 = vpack.c.b16 %v8738, %v8736
    %v8875 = vpack.c.b16 %v8741, %v8739
    %v8876 = vpack.c.b16 %v8742, %v8740
    %v8877 = vpack.c.b16 %v8745, %v8743
    %v8878 = vpack.c.b16 %v8746, %v8744
    %v8879 = vpack.c.b16 %v8749, %v8747
    %v8880 = vpack.c.b16 %v8750, %v8748
    %v8881 = vpack.c.b16 %v8753, %v8751
    %v8882 = vpack.c.b16 %v8754, %v8752
    %9011 = vmatpush.bf16.msra.mxu0 %v8769
    %9012 = vmatpush.bf16.msra.mxu0 %v8767
    %9013 = vmatpush.bf16.msra.mxu0 %v8765
    %9014 = vmatpush.bf16.msra.mxu0 %v8763
    %9015 = vmatpush.bf16.msra.mxu0 %v8761
    %9016 = vmatpush.bf16.msra.mxu0 %v8759
    %9017 = vmatpush.bf16.msra.mxu0 %v8757
    %9018 = vmatpush.bf16.msra.mxu0 %v8755
    %9019 = vmatmul.bf16.gmra.mxu0 %v8229
    %v9020 = vpop.f32.mrf.mxu0
    %v9021 = vadd.f32 %v8367, %v9020
    %v9022 = vpop.f32.mrf.mxu0
    %9023 = vdwg.mxu0
    %9024 = vmatpush.bf16.msra.mxu0 %v8785
    %9025 = vmatpush.bf16.msra.mxu0 %v8783
    %9026 = vmatpush.bf16.msra.mxu0 %v8781
    %9027 = vmatpush.bf16.msra.mxu0 %v8779
    %9028 = vmatpush.bf16.msra.mxu0 %v8777
    %9029 = vmatpush.bf16.msra.mxu0 %v8775
    %9030 = vmatpush.bf16.msra.mxu0 %v8773
    %9031 = vmatpush.bf16.msra.mxu0 %v8771
    %9032 = vmatmul.bf16.gmra.mxu0 %v8230
    %v9033 = vpop.f32.mrf.mxu0
    %v9034 = vadd.f32 %v9021, %v9033
    %v9035 = vpop.f32.mrf.mxu0
    %9036 = vdwg.mxu0
    %9037 = vmatpush.bf16.msra.mxu0 %v8801
    %9038 = vmatpush.bf16.msra.mxu0 %v8799
    %9039 = vmatpush.bf16.msra.mxu0 %v8797
    %9040 = vmatpush.bf16.msra.mxu0 %v8795
    %9041 = vmatpush.bf16.msra.mxu0 %v8793
    %9042 = vmatpush.bf16.msra.mxu0 %v8791
    %9043 = vmatpush.bf16.msra.mxu0 %v8789
    %9044 = vmatpush.bf16.msra.mxu0 %v8787
    %9045 = vmatmul.bf16.gmra.mxu0 %v8231
    %v9046 = vpop.f32.mrf.mxu0
    %v9047 = vadd.f32 %v9034, %v9046
    %v9048 = vpop.f32.mrf.mxu0
    %9049 = vdwg.mxu0
    %9050 = vmatpush.bf16.msra.mxu0 %v8817
    %9051 = vmatpush.bf16.msra.mxu0 %v8815
    %9052 = vmatpush.bf16.msra.mxu0 %v8813
    %9053 = vmatpush.bf16.msra.mxu0 %v8811
    %9054 = vmatpush.bf16.msra.mxu0 %v8809
    %9055 = vmatpush.bf16.msra.mxu0 %v8807
    %9056 = vmatpush.bf16.msra.mxu0 %v8805
    %9057 = vmatpush.bf16.msra.mxu0 %v8803
    %9058 = vmatmul.bf16.gmra.mxu0 %v8232
    %v9059 = vpop.f32.mrf.mxu0
    %v9060 = vadd.f32 %v9047, %v9059
    %v9061 = vpop.f32.mrf.mxu0
    %9062 = vdwg.mxu0
    %9063 = vmatpush.bf16.msra.mxu0 %v8833
    %9064 = vmatpush.bf16.msra.mxu0 %v8831
    %9065 = vmatpush.bf16.msra.mxu0 %v8829
    %9066 = vmatpush.bf16.msra.mxu0 %v8827
    %9067 = vmatpush.bf16.msra.mxu0 %v8825
    %9068 = vmatpush.bf16.msra.mxu0 %v8823
    %9069 = vmatpush.bf16.msra.mxu0 %v8821
    %9070 = vmatpush.bf16.msra.mxu0 %v8819
    %9071 = vmatmul.bf16.gmra.mxu0 %v8233
    %v9072 = vpop.f32.mrf.mxu0
    %v9073 = vadd.f32 %v9060, %v9072
    %v9074 = vpop.f32.mrf.mxu0
    %9075 = vdwg.mxu0
    %9076 = vmatpush.bf16.msra.mxu0 %v8849
    %9077 = vmatpush.bf16.msra.mxu0 %v8847
    %9078 = vmatpush.bf16.msra.mxu0 %v8845
    %9079 = vmatpush.bf16.msra.mxu0 %v8843
    %9080 = vmatpush.bf16.msra.mxu0 %v8841
    %9081 = vmatpush.bf16.msra.mxu0 %v8839
    %9082 = vmatpush.bf16.msra.mxu0 %v8837
    %9083 = vmatpush.bf16.msra.mxu0 %v8835
    %9084 = vmatmul.bf16.gmra.mxu0 %v8234
    %v9085 = vpop.f32.mrf.mxu0
    %v9086 = vadd.f32 %v9073, %v9085
    %v9087 = vpop.f32.mrf.mxu0
    %9088 = vdwg.mxu0
    %9089 = vmatpush.bf16.msra.mxu0 %v8865
    %9090 = vmatpush.bf16.msra.mxu0 %v8863
    %9091 = vmatpush.bf16.msra.mxu0 %v8861
    %9092 = vmatpush.bf16.msra.mxu0 %v8859
    %9093 = vmatpush.bf16.msra.mxu0 %v8857
    %9094 = vmatpush.bf16.msra.mxu0 %v8855
    %9095 = vmatpush.bf16.msra.mxu0 %v8853
    %9096 = vmatpush.bf16.msra.mxu0 %v8851
    %9097 = vmatmul.bf16.gmra.mxu0 %v8235
    %v9098 = vpop.f32.mrf.mxu0
    %v9099 = vadd.f32 %v9086, %v9098
    %v9100 = vpop.f32.mrf.mxu0
    %9101 = vdwg.mxu0
    %9102 = vmatpush.bf16.msra.mxu0 %v8881
    %9103 = vmatpush.bf16.msra.mxu0 %v8879
    %9104 = vmatpush.bf16.msra.mxu0 %v8877
    %9105 = vmatpush.bf16.msra.mxu0 %v8875
    %9106 = vmatpush.bf16.msra.mxu0 %v8873
    %9107 = vmatpush.bf16.msra.mxu0 %v8871
    %9108 = vmatpush.bf16.msra.mxu0 %v8869
    %9109 = vmatpush.bf16.msra.mxu0 %v8867
    %9110 = vmatmul.bf16.gmra.mxu0 %v8236
    %v9111 = vpop.f32.mrf.mxu0
    %v9112 = vadd.f32 %v9099, %v9111
    %v9113 = vpop.f32.mrf.mxu0
    %9114 = vdwg.mxu0
    %9115 = vmatpush.bf16.msra.mxu0 %v8770
    %9116 = vmatpush.bf16.msra.mxu0 %v8768
    %9117 = vmatpush.bf16.msra.mxu0 %v8766
    %9118 = vmatpush.bf16.msra.mxu0 %v8764
    %9119 = vmatpush.bf16.msra.mxu0 %v8762
    %9120 = vmatpush.bf16.msra.mxu0 %v8760
    %9121 = vmatpush.bf16.msra.mxu0 %v8758
    %9122 = vmatpush.bf16.msra.mxu0 %v8756
    %9123 = vmatmul.bf16.gmra.mxu0 %v8229
    %v9124 = vpop.f32.mrf.mxu0
    %v9125 = vadd.f32 %v8368, %v9124
    %v9126 = vpop.f32.mrf.mxu0
    %9127 = vdwg.mxu0
    %9128 = vmatpush.bf16.msra.mxu0 %v8786
    %9129 = vmatpush.bf16.msra.mxu0 %v8784
    %9130 = vmatpush.bf16.msra.mxu0 %v8782
    %9131 = vmatpush.bf16.msra.mxu0 %v8780
    %9132 = vmatpush.bf16.msra.mxu0 %v8778
    %9133 = vmatpush.bf16.msra.mxu0 %v8776
    %9134 = vmatpush.bf16.msra.mxu0 %v8774
    %9135 = vmatpush.bf16.msra.mxu0 %v8772
    %9136 = vmatmul.bf16.gmra.mxu0 %v8230
    %v9137 = vpop.f32.mrf.mxu0
    %v9138 = vadd.f32 %v9125, %v9137
    %v9139 = vpop.f32.mrf.mxu0
    %9140 = vdwg.mxu0
    %9141 = vmatpush.bf16.msra.mxu0 %v8802
    %9142 = vmatpush.bf16.msra.mxu0 %v8800
    %9143 = vmatpush.bf16.msra.mxu0 %v8798
    %9144 = vmatpush.bf16.msra.mxu0 %v8796
    %9145 = vmatpush.bf16.msra.mxu0 %v8794
    %9146 = vmatpush.bf16.msra.mxu0 %v8792
    %9147 = vmatpush.bf16.msra.mxu0 %v8790
    %9148 = vmatpush.bf16.msra.mxu0 %v8788
    %9149 = vmatmul.bf16.gmra.mxu0 %v8231
    %v9150 = vpop.f32.mrf.mxu0
    %v9151 = vadd.f32 %v9138, %v9150
    %v9152 = vpop.f32.mrf.mxu0
    %9153 = vdwg.mxu0
    %9154 = vmatpush.bf16.msra.mxu0 %v8818
    %9155 = vmatpush.bf16.msra.mxu0 %v8816
    %9156 = vmatpush.bf16.msra.mxu0 %v8814
    %9157 = vmatpush.bf16.msra.mxu0 %v8812
    %9158 = vmatpush.bf16.msra.mxu0 %v8810
    %9159 = vmatpush.bf16.msra.mxu0 %v8808
    %9160 = vmatpush.bf16.msra.mxu0 %v8806
    %9161 = vmatpush.bf16.msra.mxu0 %v8804
    %9162 = vmatmul.bf16.gmra.mxu0 %v8232
    %v9163 = vpop.f32.mrf.mxu0
    %v9164 = vadd.f32 %v9151, %v9163
    %v9165 = vpop.f32.mrf.mxu0
    %9166 = vdwg.mxu0
    %9167 = vmatpush.bf16.msra.mxu0 %v8834
    %9168 = vmatpush.bf16.msra.mxu0 %v8832
    %9169 = vmatpush.bf16.msra.mxu0 %v8830
    %9170 = vmatpush.bf16.msra.mxu0 %v8828
    %9171 = vmatpush.bf16.msra.mxu0 %v8826
    %9172 = vmatpush.bf16.msra.mxu0 %v8824
    %9173 = vmatpush.bf16.msra.mxu0 %v8822
    %9174 = vmatpush.bf16.msra.mxu0 %v8820
    %9175 = vmatmul.bf16.gmra.mxu0 %v8233
    %v9176 = vpop.f32.mrf.mxu0
    %v9177 = vadd.f32 %v9164, %v9176
    %v9178 = vpop.f32.mrf.mxu0
    %9179 = vdwg.mxu0
    %9180 = vmatpush.bf16.msra.mxu0 %v8850
    %9181 = vmatpush.bf16.msra.mxu0 %v8848
    %9182 = vmatpush.bf16.msra.mxu0 %v8846
    %9183 = vmatpush.bf16.msra.mxu0 %v8844
    %9184 = vmatpush.bf16.msra.mxu0 %v8842
    %9185 = vmatpush.bf16.msra.mxu0 %v8840
    %9186 = vmatpush.bf16.msra.mxu0 %v8838
    %9187 = vmatpush.bf16.msra.mxu0 %v8836
    %9188 = vmatmul.bf16.gmra.mxu0 %v8234
    %v9189 = vpop.f32.mrf.mxu0
    %v9190 = vadd.f32 %v9177, %v9189
    %v9191 = vpop.f32.mrf.mxu0
    %9192 = vdwg.mxu0
    %9193 = vmatpush.bf16.msra.mxu0 %v8866
    %9194 = vmatpush.bf16.msra.mxu0 %v8864
    %9195 = vmatpush.bf16.msra.mxu0 %v8862
    %9196 = vmatpush.bf16.msra.mxu0 %v8860
    %9197 = vmatpush.bf16.msra.mxu0 %v8858
    %9198 = vmatpush.bf16.msra.mxu0 %v8856
    %9199 = vmatpush.bf16.msra.mxu0 %v8854
    %9200 = vmatpush.bf16.msra.mxu0 %v8852
    %9201 = vmatmul.bf16.gmra.mxu0 %v8235
    %v9202 = vpop.f32.mrf.mxu0
    %v9203 = vadd.f32 %v9190, %v9202
    %v9204 = vpop.f32.mrf.mxu0
    %9205 = vdwg.mxu0
    %9206 = vmatpush.bf16.msra.mxu0 %v8882
    %9207 = vmatpush.bf16.msra.mxu0 %v8880
    %9208 = vmatpush.bf16.msra.mxu0 %v8878
    %9209 = vmatpush.bf16.msra.mxu0 %v8876
    %9210 = vmatpush.bf16.msra.mxu0 %v8874
    %9211 = vmatpush.bf16.msra.mxu0 %v8872
    %9212 = vmatpush.bf16.msra.mxu0 %v8870
    %9213 = vmatpush.bf16.msra.mxu0 %v8868
    %9214 = vmatmul.bf16.gmra.mxu0 %v8236
    %v9215 = vpop.f32.mrf.mxu0
    %v9216 = vadd.f32 %v9203, %v9215
    %v9217 = vpop.f32.mrf.mxu0
    %9218 = vdwg.mxu0
    %v9219 = vadd.f32 %v7087, %v9112
    %v9220 = vadd.f32 %v7088, %v9216
    %v9221 = vld [vmem:[#allocation10 + $0x1d] sm:$0x3]
    %v9222 = vld [vmem:[#allocation10 + $0x1f] sm:$0x3]
    %v9223 = vadd.f32 %v9219, %v9220
    %9224 = vadd.xlane.f32.xlu0 %v9223
    %v9225 = vpop.xlane.xlu0 %9224
    %v9226 = vmul.f32 %v9225, %v7100
    %v9227 = vsub.f32 %v9219, %v9226
    %v9228 = vsub.f32 %v9220, %v9226
    %v9229 = vmul.f32 %v9227, %v9227
    %v9230 = vmul.f32 %v9228, %v9228
    %v9231 = vadd.f32 %v9229, %v9230
    %9232 = vadd.xlane.f32.xlu0 %v9231
    %v9233 = vpop.xlane.xlu0 %9232
    %v9234 = vmul.f32 %v9233, %v7100
    %v9235 = vadd.f32 %v9234, 1e-05
    %v9236 = vrsqrt.pop %v9235
    %v9237 = vmul.f32 %v9236, %v9235
    %v9238 = vmul.f32 %v9237, %v9236
    %v9239 = vmul.f32 0.5, %v9238
    %v9240 = vsub.f32 1.5, %v9239
    %v9241 = vmul.f32 %v9236, %v9240
    %vm9242 = vweird.f32 %v9235
    %vm9243 = vweird.f32 %v9236
    %vm9244 = vmor %vm9242, %vm9243
    %v9245 = vsel %vm9244, %v9236, %v9241
    %v9246 = vmul.f32 %v9227, %v9245
    %v9247 = vmul.f32 %v9228, %v9245
    %v9249 = vperm.slane %v9221, 0
    %v9250 = vperm.slane %v9221, 1
    %v9253 = vmul.f32 %v9246, %v9249
    %v9254 = vmul.f32 %v9247, %v9250
    %v9256 = vperm.slane %v9222, 0
    %v9257 = vperm.slane %v9222, 1
    %v9260 = vadd.f32 %v9253, %v9256
    %v9261 = vadd.f32 %v9254, %v9257
    %v9262 = vpack.c.bf16 %v9260, %v9260
    %v9263 = vpack.c.bf16 %v9261, %v9261
    %s9264 = scalar_lea.vmem [#allocation22], 1024
    %v9265 = vld [vmem:[%s9264] sm:$0xff]
    %v9266 = vld [vmem:[%s9264 + $0x8] sm:$0xff]
    %v9267 = vld [vmem:[%s9264 + $0x10] sm:$0xff]
    %v9268 = vld [vmem:[%s9264 + $0x18] sm:$0xff]
    %v9269 = vld [vmem:[%s9264 + $0x20] sm:$0xff]
    %v9270 = vld [vmem:[%s9264 + $0x28] sm:$0xff]
    %v9271 = vld [vmem:[%s9264 + $0x30] sm:$0xff]
    %v9272 = vld [vmem:[%s9264 + $0x38] sm:$0xff]
    %v9273 = vld [vmem:[%s9264 + $0x40] sm:$0xff]
    %v9274 = vld [vmem:[%s9264 + $0x48] sm:$0xff]
    %v9275 = vld [vmem:[%s9264 + $0x50] sm:$0xff]
    %v9276 = vld [vmem:[%s9264 + $0x58] sm:$0xff]
    %v9277 = vld [vmem:[%s9264 + $0x60] sm:$0xff]
    %v9278 = vld [vmem:[%s9264 + $0x68] sm:$0xff]
    %v9279 = vld [vmem:[%s9264 + $0x70] sm:$0xff]
    %v9280 = vld [vmem:[%s9264 + $0x78] sm:$0xff]
    %v9281 = vld [vmem:[%s9264 + $0x80] sm:$0xff]
    %v9282 = vld [vmem:[%s9264 + $0x88] sm:$0xff]
    %v9283 = vld [vmem:[%s9264 + $0x90] sm:$0xff]
    %v9284 = vld [vmem:[%s9264 + $0x98] sm:$0xff]
    %v9285 = vld [vmem:[%s9264 + $0xa0] sm:$0xff]
    %v9286 = vld [vmem:[%s9264 + $0xa8] sm:$0xff]
    %v9287 = vld [vmem:[%s9264 + $0xb0] sm:$0xff]
    %v9288 = vld [vmem:[%s9264 + $0xb8] sm:$0xff]
    %v9289 = vld [vmem:[%s9264 + $0xc0] sm:$0xff]
    %v9290 = vld [vmem:[%s9264 + $0xc8] sm:$0xff]
    %v9291 = vld [vmem:[%s9264 + $0xd0] sm:$0xff]
    %v9292 = vld [vmem:[%s9264 + $0xd8] sm:$0xff]
    %v9293 = vld [vmem:[%s9264 + $0xe0] sm:$0xff]
    %v9294 = vld [vmem:[%s9264 + $0xe8] sm:$0xff]
    %v9295 = vld [vmem:[%s9264 + $0xf0] sm:$0xff]
    %v9296 = vld [vmem:[%s9264 + $0xf8] sm:$0xff]
    %v9297 = vld [vmem:[%s9264 + $0x100] sm:$0xff]
    %v9298 = vld [vmem:[%s9264 + $0x108] sm:$0xff]
    %v9299 = vld [vmem:[%s9264 + $0x110] sm:$0xff]
    %v9300 = vld [vmem:[%s9264 + $0x118] sm:$0xff]
    %v9301 = vld [vmem:[%s9264 + $0x120] sm:$0xff]
    %v9302 = vld [vmem:[%s9264 + $0x128] sm:$0xff]
    %v9303 = vld [vmem:[%s9264 + $0x130] sm:$0xff]
    %v9304 = vld [vmem:[%s9264 + $0x138] sm:$0xff]
    %v9305 = vld [vmem:[%s9264 + $0x140] sm:$0xff]
    %v9306 = vld [vmem:[%s9264 + $0x148] sm:$0xff]
    %v9307 = vld [vmem:[%s9264 + $0x150] sm:$0xff]
    %v9308 = vld [vmem:[%s9264 + $0x158] sm:$0xff]
    %v9309 = vld [vmem:[%s9264 + $0x160] sm:$0xff]
    %v9310 = vld [vmem:[%s9264 + $0x168] sm:$0xff]
    %v9311 = vld [vmem:[%s9264 + $0x170] sm:$0xff]
    %v9312 = vld [vmem:[%s9264 + $0x178] sm:$0xff]
    %v9313 = vld [vmem:[%s9264 + $0x180] sm:$0xff]
    %v9314 = vld [vmem:[%s9264 + $0x188] sm:$0xff]
    %v9315 = vld [vmem:[%s9264 + $0x190] sm:$0xff]
    %v9316 = vld [vmem:[%s9264 + $0x198] sm:$0xff]
    %v9317 = vld [vmem:[%s9264 + $0x1a0] sm:$0xff]
    %v9318 = vld [vmem:[%s9264 + $0x1a8] sm:$0xff]
    %v9319 = vld [vmem:[%s9264 + $0x1b0] sm:$0xff]
    %v9320 = vld [vmem:[%s9264 + $0x1b8] sm:$0xff]
    %v9321 = vld [vmem:[%s9264 + $0x1c0] sm:$0xff]
    %v9322 = vld [vmem:[%s9264 + $0x1c8] sm:$0xff]
    %v9323 = vld [vmem:[%s9264 + $0x1d0] sm:$0xff]
    %v9324 = vld [vmem:[%s9264 + $0x1d8] sm:$0xff]
    %v9325 = vld [vmem:[%s9264 + $0x1e0] sm:$0xff]
    %v9326 = vld [vmem:[%s9264 + $0x1e8] sm:$0xff]
    %v9327 = vld [vmem:[%s9264 + $0x1f0] sm:$0xff]
    %v9328 = vld [vmem:[%s9264 + $0x1f8] sm:$0xff]
    %v9329 = vld [vmem:[%s9264 + $0x200] sm:$0xff]
    %v9330 = vld [vmem:[%s9264 + $0x208] sm:$0xff]
    %v9331 = vld [vmem:[%s9264 + $0x210] sm:$0xff]
    %v9332 = vld [vmem:[%s9264 + $0x218] sm:$0xff]
    %v9333 = vld [vmem:[%s9264 + $0x220] sm:$0xff]
    %v9334 = vld [vmem:[%s9264 + $0x228] sm:$0xff]
    %v9335 = vld [vmem:[%s9264 + $0x230] sm:$0xff]
    %v9336 = vld [vmem:[%s9264 + $0x238] sm:$0xff]
    %v9337 = vld [vmem:[%s9264 + $0x240] sm:$0xff]
    %v9338 = vld [vmem:[%s9264 + $0x248] sm:$0xff]
    %v9339 = vld [vmem:[%s9264 + $0x250] sm:$0xff]
    %v9340 = vld [vmem:[%s9264 + $0x258] sm:$0xff]
    %v9341 = vld [vmem:[%s9264 + $0x260] sm:$0xff]
    %v9342 = vld [vmem:[%s9264 + $0x268] sm:$0xff]
    %v9343 = vld [vmem:[%s9264 + $0x270] sm:$0xff]
    %v9344 = vld [vmem:[%s9264 + $0x278] sm:$0xff]
    %v9345 = vld [vmem:[%s9264 + $0x280] sm:$0xff]
    %v9346 = vld [vmem:[%s9264 + $0x288] sm:$0xff]
    %v9347 = vld [vmem:[%s9264 + $0x290] sm:$0xff]
    %v9348 = vld [vmem:[%s9264 + $0x298] sm:$0xff]
    %v9349 = vld [vmem:[%s9264 + $0x2a0] sm:$0xff]
    %v9350 = vld [vmem:[%s9264 + $0x2a8] sm:$0xff]
    %v9351 = vld [vmem:[%s9264 + $0x2b0] sm:$0xff]
    %v9352 = vld [vmem:[%s9264 + $0x2b8] sm:$0xff]
    %v9353 = vld [vmem:[%s9264 + $0x2c0] sm:$0xff]
    %v9354 = vld [vmem:[%s9264 + $0x2c8] sm:$0xff]
    %v9355 = vld [vmem:[%s9264 + $0x2d0] sm:$0xff]
    %v9356 = vld [vmem:[%s9264 + $0x2d8] sm:$0xff]
    %v9357 = vld [vmem:[%s9264 + $0x2e0] sm:$0xff]
    %v9358 = vld [vmem:[%s9264 + $0x2e8] sm:$0xff]
    %v9359 = vld [vmem:[%s9264 + $0x2f0] sm:$0xff]
    %v9360 = vld [vmem:[%s9264 + $0x2f8] sm:$0xff]
    %v9361 = vld [vmem:[%s9264 + $0x300] sm:$0xff]
    %v9362 = vld [vmem:[%s9264 + $0x308] sm:$0xff]
    %v9363 = vld [vmem:[%s9264 + $0x310] sm:$0xff]
    %v9364 = vld [vmem:[%s9264 + $0x318] sm:$0xff]
    %v9365 = vld [vmem:[%s9264 + $0x320] sm:$0xff]
    %v9366 = vld [vmem:[%s9264 + $0x328] sm:$0xff]
    %v9367 = vld [vmem:[%s9264 + $0x330] sm:$0xff]
    %v9368 = vld [vmem:[%s9264 + $0x338] sm:$0xff]
    %v9369 = vld [vmem:[%s9264 + $0x340] sm:$0xff]
    %v9370 = vld [vmem:[%s9264 + $0x348] sm:$0xff]
    %v9371 = vld [vmem:[%s9264 + $0x350] sm:$0xff]
    %v9372 = vld [vmem:[%s9264 + $0x358] sm:$0xff]
    %v9373 = vld [vmem:[%s9264 + $0x360] sm:$0xff]
    %v9374 = vld [vmem:[%s9264 + $0x368] sm:$0xff]
    %v9375 = vld [vmem:[%s9264 + $0x370] sm:$0xff]
    %v9376 = vld [vmem:[%s9264 + $0x378] sm:$0xff]
    %v9377 = vld [vmem:[%s9264 + $0x380] sm:$0xff]
    %v9378 = vld [vmem:[%s9264 + $0x388] sm:$0xff]
    %v9379 = vld [vmem:[%s9264 + $0x390] sm:$0xff]
    %v9380 = vld [vmem:[%s9264 + $0x398] sm:$0xff]
    %v9381 = vld [vmem:[%s9264 + $0x3a0] sm:$0xff]
    %v9382 = vld [vmem:[%s9264 + $0x3a8] sm:$0xff]
    %v9383 = vld [vmem:[%s9264 + $0x3b0] sm:$0xff]
    %v9384 = vld [vmem:[%s9264 + $0x3b8] sm:$0xff]
    %v9385 = vld [vmem:[%s9264 + $0x3c0] sm:$0xff]
    %v9386 = vld [vmem:[%s9264 + $0x3c8] sm:$0xff]
    %v9387 = vld [vmem:[%s9264 + $0x3d0] sm:$0xff]
    %v9388 = vld [vmem:[%s9264 + $0x3d8] sm:$0xff]
    %v9389 = vld [vmem:[%s9264 + $0x3e0] sm:$0xff]
    %v9390 = vld [vmem:[%s9264 + $0x3e8] sm:$0xff]
    %v9391 = vld [vmem:[%s9264 + $0x3f0] sm:$0xff]
    %v9392 = vld [vmem:[%s9264 + $0x3f8] sm:$0xff]
    %v9393 = vld [vmem:[#allocation10 + $0x21] sm:$0xff]
    %v9395 = vperm.slane %v9393, 0
    %v9396 = vperm.slane %v9393, 1
    %v9397 = vperm.slane %v9393, 2
    %v9398 = vperm.slane %v9393, 3
    %v9399 = vperm.slane %v9393, 4
    %v9400 = vperm.slane %v9393, 5
    %v9401 = vperm.slane %v9393, 6
    %v9402 = vperm.slane %v9393, 7
    %v9539 = vunpack.c.l.b16 %v9265
    %v9540 = vunpack.c.h.b16 %v9265
    %v9541 = vunpack.c.l.b16 %v9266
    %v9542 = vunpack.c.h.b16 %v9266
    %v9543 = vunpack.c.l.b16 %v9267
    %v9544 = vunpack.c.h.b16 %v9267
    %v9545 = vunpack.c.l.b16 %v9268
    %v9546 = vunpack.c.h.b16 %v9268
    %v9547 = vunpack.c.l.b16 %v9269
    %v9548 = vunpack.c.h.b16 %v9269
    %v9549 = vunpack.c.l.b16 %v9270
    %v9550 = vunpack.c.h.b16 %v9270
    %v9551 = vunpack.c.l.b16 %v9271
    %v9552 = vunpack.c.h.b16 %v9271
    %v9553 = vunpack.c.l.b16 %v9272
    %v9554 = vunpack.c.h.b16 %v9272
    %v9555 = vunpack.c.l.b16 %v9273
    %v9556 = vunpack.c.h.b16 %v9273
    %v9557 = vunpack.c.l.b16 %v9274
    %v9558 = vunpack.c.h.b16 %v9274
    %v9559 = vunpack.c.l.b16 %v9275
    %v9560 = vunpack.c.h.b16 %v9275
    %v9561 = vunpack.c.l.b16 %v9276
    %v9562 = vunpack.c.h.b16 %v9276
    %v9563 = vunpack.c.l.b16 %v9277
    %v9564 = vunpack.c.h.b16 %v9277
    %v9565 = vunpack.c.l.b16 %v9278
    %v9566 = vunpack.c.h.b16 %v9278
    %v9567 = vunpack.c.l.b16 %v9279
    %v9568 = vunpack.c.h.b16 %v9279
    %v9569 = vunpack.c.l.b16 %v9280
    %v9570 = vunpack.c.h.b16 %v9280
    %v9571 = vunpack.c.l.b16 %v9281
    %v9572 = vunpack.c.h.b16 %v9281
    %v9573 = vunpack.c.l.b16 %v9282
    %v9574 = vunpack.c.h.b16 %v9282
    %v9575 = vunpack.c.l.b16 %v9283
    %v9576 = vunpack.c.h.b16 %v9283
    %v9577 = vunpack.c.l.b16 %v9284
    %v9578 = vunpack.c.h.b16 %v9284
    %v9579 = vunpack.c.l.b16 %v9285
    %v9580 = vunpack.c.h.b16 %v9285
    %v9581 = vunpack.c.l.b16 %v9286
    %v9582 = vunpack.c.h.b16 %v9286
    %v9583 = vunpack.c.l.b16 %v9287
    %v9584 = vunpack.c.h.b16 %v9287
    %v9585 = vunpack.c.l.b16 %v9288
    %v9586 = vunpack.c.h.b16 %v9288
    %v9587 = vunpack.c.l.b16 %v9289
    %v9588 = vunpack.c.h.b16 %v9289
    %v9589 = vunpack.c.l.b16 %v9290
    %v9590 = vunpack.c.h.b16 %v9290
    %v9591 = vunpack.c.l.b16 %v9291
    %v9592 = vunpack.c.h.b16 %v9291
    %v9593 = vunpack.c.l.b16 %v9292
    %v9594 = vunpack.c.h.b16 %v9292
    %v9595 = vunpack.c.l.b16 %v9293
    %v9596 = vunpack.c.h.b16 %v9293
    %v9597 = vunpack.c.l.b16 %v9294
    %v9598 = vunpack.c.h.b16 %v9294
    %v9599 = vunpack.c.l.b16 %v9295
    %v9600 = vunpack.c.h.b16 %v9295
    %v9601 = vunpack.c.l.b16 %v9296
    %v9602 = vunpack.c.h.b16 %v9296
    %v9603 = vunpack.c.l.b16 %v9297
    %v9604 = vunpack.c.h.b16 %v9297
    %v9605 = vunpack.c.l.b16 %v9298
    %v9606 = vunpack.c.h.b16 %v9298
    %v9607 = vunpack.c.l.b16 %v9299
    %v9608 = vunpack.c.h.b16 %v9299
    %v9609 = vunpack.c.l.b16 %v9300
    %v9610 = vunpack.c.h.b16 %v9300
    %v9611 = vunpack.c.l.b16 %v9301
    %v9612 = vunpack.c.h.b16 %v9301
    %v9613 = vunpack.c.l.b16 %v9302
    %v9614 = vunpack.c.h.b16 %v9302
    %v9615 = vunpack.c.l.b16 %v9303
    %v9616 = vunpack.c.h.b16 %v9303
    %v9617 = vunpack.c.l.b16 %v9304
    %v9618 = vunpack.c.h.b16 %v9304
    %v9619 = vunpack.c.l.b16 %v9305
    %v9620 = vunpack.c.h.b16 %v9305
    %v9621 = vunpack.c.l.b16 %v9306
    %v9622 = vunpack.c.h.b16 %v9306
    %v9623 = vunpack.c.l.b16 %v9307
    %v9624 = vunpack.c.h.b16 %v9307
    %v9625 = vunpack.c.l.b16 %v9308
    %v9626 = vunpack.c.h.b16 %v9308
    %v9627 = vunpack.c.l.b16 %v9309
    %v9628 = vunpack.c.h.b16 %v9309
    %v9629 = vunpack.c.l.b16 %v9310
    %v9630 = vunpack.c.h.b16 %v9310
    %v9631 = vunpack.c.l.b16 %v9311
    %v9632 = vunpack.c.h.b16 %v9311
    %v9633 = vunpack.c.l.b16 %v9312
    %v9634 = vunpack.c.h.b16 %v9312
    %v9635 = vunpack.c.l.b16 %v9313
    %v9636 = vunpack.c.h.b16 %v9313
    %v9637 = vunpack.c.l.b16 %v9314
    %v9638 = vunpack.c.h.b16 %v9314
    %v9639 = vunpack.c.l.b16 %v9315
    %v9640 = vunpack.c.h.b16 %v9315
    %v9641 = vunpack.c.l.b16 %v9316
    %v9642 = vunpack.c.h.b16 %v9316
    %v9643 = vunpack.c.l.b16 %v9317
    %v9644 = vunpack.c.h.b16 %v9317
    %v9645 = vunpack.c.l.b16 %v9318
    %v9646 = vunpack.c.h.b16 %v9318
    %v9647 = vunpack.c.l.b16 %v9319
    %v9648 = vunpack.c.h.b16 %v9319
    %v9649 = vunpack.c.l.b16 %v9320
    %v9650 = vunpack.c.h.b16 %v9320
    %v9651 = vunpack.c.l.b16 %v9321
    %v9652 = vunpack.c.h.b16 %v9321
    %v9653 = vunpack.c.l.b16 %v9322
    %v9654 = vunpack.c.h.b16 %v9322
    %v9655 = vunpack.c.l.b16 %v9323
    %v9656 = vunpack.c.h.b16 %v9323
    %v9657 = vunpack.c.l.b16 %v9324
    %v9658 = vunpack.c.h.b16 %v9324
    %v9659 = vunpack.c.l.b16 %v9325
    %v9660 = vunpack.c.h.b16 %v9325
    %v9661 = vunpack.c.l.b16 %v9326
    %v9662 = vunpack.c.h.b16 %v9326
    %v9663 = vunpack.c.l.b16 %v9327
    %v9664 = vunpack.c.h.b16 %v9327
    %v9665 = vunpack.c.l.b16 %v9328
    %v9666 = vunpack.c.h.b16 %v9328
    %v9667 = vunpack.c.l.b16 %v9329
    %v9668 = vunpack.c.h.b16 %v9329
    %v9669 = vunpack.c.l.b16 %v9330
    %v9670 = vunpack.c.h.b16 %v9330
    %v9671 = vunpack.c.l.b16 %v9331
    %v9672 = vunpack.c.h.b16 %v9331
    %v9673 = vunpack.c.l.b16 %v9332
    %v9674 = vunpack.c.h.b16 %v9332
    %v9675 = vunpack.c.l.b16 %v9333
    %v9676 = vunpack.c.h.b16 %v9333
    %v9677 = vunpack.c.l.b16 %v9334
    %v9678 = vunpack.c.h.b16 %v9334
    %v9679 = vunpack.c.l.b16 %v9335
    %v9680 = vunpack.c.h.b16 %v9335
    %v9681 = vunpack.c.l.b16 %v9336
    %v9682 = vunpack.c.h.b16 %v9336
    %v9683 = vunpack.c.l.b16 %v9337
    %v9684 = vunpack.c.h.b16 %v9337
    %v9685 = vunpack.c.l.b16 %v9338
    %v9686 = vunpack.c.h.b16 %v9338
    %v9687 = vunpack.c.l.b16 %v9339
    %v9688 = vunpack.c.h.b16 %v9339
    %v9689 = vunpack.c.l.b16 %v9340
    %v9690 = vunpack.c.h.b16 %v9340
    %v9691 = vunpack.c.l.b16 %v9341
    %v9692 = vunpack.c.h.b16 %v9341
    %v9693 = vunpack.c.l.b16 %v9342
    %v9694 = vunpack.c.h.b16 %v9342
    %v9695 = vunpack.c.l.b16 %v9343
    %v9696 = vunpack.c.h.b16 %v9343
    %v9697 = vunpack.c.l.b16 %v9344
    %v9698 = vunpack.c.h.b16 %v9344
    %v9699 = vunpack.c.l.b16 %v9345
    %v9700 = vunpack.c.h.b16 %v9345
    %v9701 = vunpack.c.l.b16 %v9346
    %v9702 = vunpack.c.h.b16 %v9346
    %v9703 = vunpack.c.l.b16 %v9347
    %v9704 = vunpack.c.h.b16 %v9347
    %v9705 = vunpack.c.l.b16 %v9348
    %v9706 = vunpack.c.h.b16 %v9348
    %v9707 = vunpack.c.l.b16 %v9349
    %v9708 = vunpack.c.h.b16 %v9349
    %v9709 = vunpack.c.l.b16 %v9350
    %v9710 = vunpack.c.h.b16 %v9350
    %v9711 = vunpack.c.l.b16 %v9351
    %v9712 = vunpack.c.h.b16 %v9351
    %v9713 = vunpack.c.l.b16 %v9352
    %v9714 = vunpack.c.h.b16 %v9352
    %v9715 = vunpack.c.l.b16 %v9353
    %v9716 = vunpack.c.h.b16 %v9353
    %v9717 = vunpack.c.l.b16 %v9354
    %v9718 = vunpack.c.h.b16 %v9354
    %v9719 = vunpack.c.l.b16 %v9355
    %v9720 = vunpack.c.h.b16 %v9355
    %v9721 = vunpack.c.l.b16 %v9356
    %v9722 = vunpack.c.h.b16 %v9356
    %v9723 = vunpack.c.l.b16 %v9357
    %v9724 = vunpack.c.h.b16 %v9357
    %v9725 = vunpack.c.l.b16 %v9358
    %v9726 = vunpack.c.h.b16 %v9358
    %v9727 = vunpack.c.l.b16 %v9359
    %v9728 = vunpack.c.h.b16 %v9359
    %v9729 = vunpack.c.l.b16 %v9360
    %v9730 = vunpack.c.h.b16 %v9360
    %v9731 = vunpack.c.l.b16 %v9361
    %v9732 = vunpack.c.h.b16 %v9361
    %v9733 = vunpack.c.l.b16 %v9362
    %v9734 = vunpack.c.h.b16 %v9362
    %v9735 = vunpack.c.l.b16 %v9363
    %v9736 = vunpack.c.h.b16 %v9363
    %v9737 = vunpack.c.l.b16 %v9364
    %v9738 = vunpack.c.h.b16 %v9364
    %v9739 = vunpack.c.l.b16 %v9365
    %v9740 = vunpack.c.h.b16 %v9365
    %v9741 = vunpack.c.l.b16 %v9366
    %v9742 = vunpack.c.h.b16 %v9366
    %v9743 = vunpack.c.l.b16 %v9367
    %v9744 = vunpack.c.h.b16 %v9367
    %v9745 = vunpack.c.l.b16 %v9368
    %v9746 = vunpack.c.h.b16 %v9368
    %v9747 = vunpack.c.l.b16 %v9369
    %v9748 = vunpack.c.h.b16 %v9369
    %v9749 = vunpack.c.l.b16 %v9370
    %v9750 = vunpack.c.h.b16 %v9370
    %v9751 = vunpack.c.l.b16 %v9371
    %v9752 = vunpack.c.h.b16 %v9371
    %v9753 = vunpack.c.l.b16 %v9372
    %v9754 = vunpack.c.h.b16 %v9372
    %v9755 = vunpack.c.l.b16 %v9373
    %v9756 = vunpack.c.h.b16 %v9373
    %v9757 = vunpack.c.l.b16 %v9374
    %v9758 = vunpack.c.h.b16 %v9374
    %v9759 = vunpack.c.l.b16 %v9375
    %v9760 = vunpack.c.h.b16 %v9375
    %v9761 = vunpack.c.l.b16 %v9376
    %v9762 = vunpack.c.h.b16 %v9376
    %v9763 = vunpack.c.l.b16 %v9377
    %v9764 = vunpack.c.h.b16 %v9377
    %v9765 = vunpack.c.l.b16 %v9378
    %v9766 = vunpack.c.h.b16 %v9378
    %v9767 = vunpack.c.l.b16 %v9379
    %v9768 = vunpack.c.h.b16 %v9379
    %v9769 = vunpack.c.l.b16 %v9380
    %v9770 = vunpack.c.h.b16 %v9380
    %v9771 = vunpack.c.l.b16 %v9381
    %v9772 = vunpack.c.h.b16 %v9381
    %v9773 = vunpack.c.l.b16 %v9382
    %v9774 = vunpack.c.h.b16 %v9382
    %v9775 = vunpack.c.l.b16 %v9383
    %v9776 = vunpack.c.h.b16 %v9383
    %v9777 = vunpack.c.l.b16 %v9384
    %v9778 = vunpack.c.h.b16 %v9384
    %v9779 = vunpack.c.l.b16 %v9385
    %v9780 = vunpack.c.h.b16 %v9385
    %v9781 = vunpack.c.l.b16 %v9386
    %v9782 = vunpack.c.h.b16 %v9386
    %v9783 = vunpack.c.l.b16 %v9387
    %v9784 = vunpack.c.h.b16 %v9387
    %v9785 = vunpack.c.l.b16 %v9388
    %v9786 = vunpack.c.h.b16 %v9388
    %v9787 = vunpack.c.l.b16 %v9389
    %v9788 = vunpack.c.h.b16 %v9389
    %v9789 = vunpack.c.l.b16 %v9390
    %v9790 = vunpack.c.h.b16 %v9390
    %v9791 = vunpack.c.l.b16 %v9391
    %v9792 = vunpack.c.h.b16 %v9391
    %v9793 = vunpack.c.l.b16 %v9392
    %v9794 = vunpack.c.h.b16 %v9392
    %v9795 = vpack.c.b16 %v9547, %v9539
    %v9796 = vpack.c.b16 %v9548, %v9540
    %v9797 = vpack.c.b16 %v9549, %v9541
    %v9798 = vpack.c.b16 %v9550, %v9542
    %v9799 = vpack.c.b16 %v9551, %v9543
    %v9800 = vpack.c.b16 %v9552, %v9544
    %v9801 = vpack.c.b16 %v9553, %v9545
    %v9802 = vpack.c.b16 %v9554, %v9546
    %v9803 = vpack.c.b16 %v9563, %v9555
    %v9804 = vpack.c.b16 %v9564, %v9556
    %v9805 = vpack.c.b16 %v9565, %v9557
    %v9806 = vpack.c.b16 %v9566, %v9558
    %v9807 = vpack.c.b16 %v9567, %v9559
    %v9808 = vpack.c.b16 %v9568, %v9560
    %v9809 = vpack.c.b16 %v9569, %v9561
    %v9810 = vpack.c.b16 %v9570, %v9562
    %v9811 = vpack.c.b16 %v9579, %v9571
    %v9812 = vpack.c.b16 %v9580, %v9572
    %v9813 = vpack.c.b16 %v9581, %v9573
    %v9814 = vpack.c.b16 %v9582, %v9574
    %v9815 = vpack.c.b16 %v9583, %v9575
    %v9816 = vpack.c.b16 %v9584, %v9576
    %v9817 = vpack.c.b16 %v9585, %v9577
    %v9818 = vpack.c.b16 %v9586, %v9578
    %v9819 = vpack.c.b16 %v9595, %v9587
    %v9820 = vpack.c.b16 %v9596, %v9588
    %v9821 = vpack.c.b16 %v9597, %v9589
    %v9822 = vpack.c.b16 %v9598, %v9590
    %v9823 = vpack.c.b16 %v9599, %v9591
    %v9824 = vpack.c.b16 %v9600, %v9592
    %v9825 = vpack.c.b16 %v9601, %v9593
    %v9826 = vpack.c.b16 %v9602, %v9594
    %v9827 = vpack.c.b16 %v9611, %v9603
    %v9828 = vpack.c.b16 %v9612, %v9604
    %v9829 = vpack.c.b16 %v9613, %v9605
    %v9830 = vpack.c.b16 %v9614, %v9606
    %v9831 = vpack.c.b16 %v9615, %v9607
    %v9832 = vpack.c.b16 %v9616, %v9608
    %v9833 = vpack.c.b16 %v9617, %v9609
    %v9834 = vpack.c.b16 %v9618, %v9610
    %v9835 = vpack.c.b16 %v9627, %v9619
    %v9836 = vpack.c.b16 %v9628, %v9620
    %v9837 = vpack.c.b16 %v9629, %v9621
    %v9838 = vpack.c.b16 %v9630, %v9622
    %v9839 = vpack.c.b16 %v9631, %v9623
    %v9840 = vpack.c.b16 %v9632, %v9624
    %v9841 = vpack.c.b16 %v9633, %v9625
    %v9842 = vpack.c.b16 %v9634, %v9626
    %v9843 = vpack.c.b16 %v9643, %v9635
    %v9844 = vpack.c.b16 %v9644, %v9636
    %v9845 = vpack.c.b16 %v9645, %v9637
    %v9846 = vpack.c.b16 %v9646, %v9638
    %v9847 = vpack.c.b16 %v9647, %v9639
    %v9848 = vpack.c.b16 %v9648, %v9640
    %v9849 = vpack.c.b16 %v9649, %v9641
    %v9850 = vpack.c.b16 %v9650, %v9642
    %v9851 = vpack.c.b16 %v9659, %v9651
    %v9852 = vpack.c.b16 %v9660, %v9652
    %v9853 = vpack.c.b16 %v9661, %v9653
    %v9854 = vpack.c.b16 %v9662, %v9654
    %v9855 = vpack.c.b16 %v9663, %v9655
    %v9856 = vpack.c.b16 %v9664, %v9656
    %v9857 = vpack.c.b16 %v9665, %v9657
    %v9858 = vpack.c.b16 %v9666, %v9658
    %v9859 = vpack.c.b16 %v9675, %v9667
    %v9860 = vpack.c.b16 %v9676, %v9668
    %v9861 = vpack.c.b16 %v9677, %v9669
    %v9862 = vpack.c.b16 %v9678, %v9670
    %v9863 = vpack.c.b16 %v9679, %v9671
    %v9864 = vpack.c.b16 %v9680, %v9672
    %v9865 = vpack.c.b16 %v9681, %v9673
    %v9866 = vpack.c.b16 %v9682, %v9674
    %v9867 = vpack.c.b16 %v9691, %v9683
    %v9868 = vpack.c.b16 %v9692, %v9684
    %v9869 = vpack.c.b16 %v9693, %v9685
    %v9870 = vpack.c.b16 %v9694, %v9686
    %v9871 = vpack.c.b16 %v9695, %v9687
    %v9872 = vpack.c.b16 %v9696, %v9688
    %v9873 = vpack.c.b16 %v9697, %v9689
    %v9874 = vpack.c.b16 %v9698, %v9690
    %v9875 = vpack.c.b16 %v9707, %v9699
    %v9876 = vpack.c.b16 %v9708, %v9700
    %v9877 = vpack.c.b16 %v9709, %v9701
    %v9878 = vpack.c.b16 %v9710, %v9702
    %v9879 = vpack.c.b16 %v9711, %v9703
    %v9880 = vpack.c.b16 %v9712, %v9704
    %v9881 = vpack.c.b16 %v9713, %v9705
    %v9882 = vpack.c.b16 %v9714, %v9706
    %v9883 = vpack.c.b16 %v9723, %v9715
    %v9884 = vpack.c.b16 %v9724, %v9716
    %v9885 = vpack.c.b16 %v9725, %v9717
    %v9886 = vpack.c.b16 %v9726, %v9718
    %v9887 = vpack.c.b16 %v9727, %v9719
    %v9888 = vpack.c.b16 %v9728, %v9720
    %v9889 = vpack.c.b16 %v9729, %v9721
    %v9890 = vpack.c.b16 %v9730, %v9722
    %v9891 = vpack.c.b16 %v9739, %v9731
    %v9892 = vpack.c.b16 %v9740, %v9732
    %v9893 = vpack.c.b16 %v9741, %v9733
    %v9894 = vpack.c.b16 %v9742, %v9734
    %v9895 = vpack.c.b16 %v9743, %v9735
    %v9896 = vpack.c.b16 %v9744, %v9736
    %v9897 = vpack.c.b16 %v9745, %v9737
    %v9898 = vpack.c.b16 %v9746, %v9738
    %v9899 = vpack.c.b16 %v9755, %v9747
    %v9900 = vpack.c.b16 %v9756, %v9748
    %v9901 = vpack.c.b16 %v9757, %v9749
    %v9902 = vpack.c.b16 %v9758, %v9750
    %v9903 = vpack.c.b16 %v9759, %v9751
    %v9904 = vpack.c.b16 %v9760, %v9752
    %v9905 = vpack.c.b16 %v9761, %v9753
    %v9906 = vpack.c.b16 %v9762, %v9754
    %v9907 = vpack.c.b16 %v9771, %v9763
    %v9908 = vpack.c.b16 %v9772, %v9764
    %v9909 = vpack.c.b16 %v9773, %v9765
    %v9910 = vpack.c.b16 %v9774, %v9766
    %v9911 = vpack.c.b16 %v9775, %v9767
    %v9912 = vpack.c.b16 %v9776, %v9768
    %v9913 = vpack.c.b16 %v9777, %v9769
    %v9914 = vpack.c.b16 %v9778, %v9770
    %v9915 = vpack.c.b16 %v9787, %v9779
    %v9916 = vpack.c.b16 %v9788, %v9780
    %v9917 = vpack.c.b16 %v9789, %v9781
    %v9918 = vpack.c.b16 %v9790, %v9782
    %v9919 = vpack.c.b16 %v9791, %v9783
    %v9920 = vpack.c.b16 %v9792, %v9784
    %v9921 = vpack.c.b16 %v9793, %v9785
    %v9922 = vpack.c.b16 %v9794, %v9786
    %10051 = vmatpush.bf16.msra.mxu0 %v9851
    %10052 = vmatpush.bf16.msra.mxu0 %v9843
    %10053 = vmatpush.bf16.msra.mxu0 %v9835
    %10054 = vmatpush.bf16.msra.mxu0 %v9827
    %10055 = vmatpush.bf16.msra.mxu0 %v9819
    %10056 = vmatpush.bf16.msra.mxu0 %v9811
    %10057 = vmatpush.bf16.msra.mxu0 %v9803
    %10058 = vmatpush.bf16.msra.mxu0 %v9795
    %10059 = vmatmul.bf16.gmra.mxu0 %v9262
    %v10060 = vpop.f32.mrf.mxu0
    %v10061 = vadd.f32 %v9395, %v10060
    %v10062 = vpop.f32.mrf.mxu0
    %10063 = vdwg.mxu0
    %10064 = vmatpush.bf16.msra.mxu0 %v9915
    %10065 = vmatpush.bf16.msra.mxu0 %v9907
    %10066 = vmatpush.bf16.msra.mxu0 %v9899
    %10067 = vmatpush.bf16.msra.mxu0 %v9891
    %10068 = vmatpush.bf16.msra.mxu0 %v9883
    %10069 = vmatpush.bf16.msra.mxu0 %v9875
    %10070 = vmatpush.bf16.msra.mxu0 %v9867
    %10071 = vmatpush.bf16.msra.mxu0 %v9859
    %10072 = vmatmul.bf16.gmra.mxu0 %v9263
    %v10073 = vpop.f32.mrf.mxu0
    %v10074 = vadd.f32 %v10061, %v10073
    %v10075 = vpop.f32.mrf.mxu0
    %10076 = vdwg.mxu0
    %10077 = vmatpush.bf16.msra.mxu0 %v9852
    %10078 = vmatpush.bf16.msra.mxu0 %v9844
    %10079 = vmatpush.bf16.msra.mxu0 %v9836
    %10080 = vmatpush.bf16.msra.mxu0 %v9828
    %10081 = vmatpush.bf16.msra.mxu0 %v9820
    %10082 = vmatpush.bf16.msra.mxu0 %v9812
    %10083 = vmatpush.bf16.msra.mxu0 %v9804
    %10084 = vmatpush.bf16.msra.mxu0 %v9796
    %10085 = vmatmul.bf16.gmra.mxu0 %v9262
    %v10086 = vpop.f32.mrf.mxu0
    %v10087 = vadd.f32 %v9396, %v10086
    %v10088 = vpop.f32.mrf.mxu0
    %10089 = vdwg.mxu0
    %10090 = vmatpush.bf16.msra.mxu0 %v9916
    %10091 = vmatpush.bf16.msra.mxu0 %v9908
    %10092 = vmatpush.bf16.msra.mxu0 %v9900
    %10093 = vmatpush.bf16.msra.mxu0 %v9892
    %10094 = vmatpush.bf16.msra.mxu0 %v9884
    %10095 = vmatpush.bf16.msra.mxu0 %v9876
    %10096 = vmatpush.bf16.msra.mxu0 %v9868
    %10097 = vmatpush.bf16.msra.mxu0 %v9860
    %10098 = vmatmul.bf16.gmra.mxu0 %v9263
    %v10099 = vpop.f32.mrf.mxu0
    %v10100 = vadd.f32 %v10087, %v10099
    %v10101 = vpop.f32.mrf.mxu0
    %10102 = vdwg.mxu0
    %10103 = vmatpush.bf16.msra.mxu0 %v9853
    %10104 = vmatpush.bf16.msra.mxu0 %v9845
    %10105 = vmatpush.bf16.msra.mxu0 %v9837
    %10106 = vmatpush.bf16.msra.mxu0 %v9829
    %10107 = vmatpush.bf16.msra.mxu0 %v9821
    %10108 = vmatpush.bf16.msra.mxu0 %v9813
    %10109 = vmatpush.bf16.msra.mxu0 %v9805
    %10110 = vmatpush.bf16.msra.mxu0 %v9797
    %10111 = vmatmul.bf16.gmra.mxu0 %v9262
    %v10112 = vpop.f32.mrf.mxu0
    %v10113 = vadd.f32 %v9397, %v10112
    %v10114 = vpop.f32.mrf.mxu0
    %10115 = vdwg.mxu0
    %10116 = vmatpush.bf16.msra.mxu0 %v9917
    %10117 = vmatpush.bf16.msra.mxu0 %v9909
    %10118 = vmatpush.bf16.msra.mxu0 %v9901
    %10119 = vmatpush.bf16.msra.mxu0 %v9893
    %10120 = vmatpush.bf16.msra.mxu0 %v9885
    %10121 = vmatpush.bf16.msra.mxu0 %v9877
    %10122 = vmatpush.bf16.msra.mxu0 %v9869
    %10123 = vmatpush.bf16.msra.mxu0 %v9861
    %10124 = vmatmul.bf16.gmra.mxu0 %v9263
    %v10125 = vpop.f32.mrf.mxu0
    %v10126 = vadd.f32 %v10113, %v10125
    %v10127 = vpop.f32.mrf.mxu0
    %10128 = vdwg.mxu0
    %10129 = vmatpush.bf16.msra.mxu0 %v9854
    %10130 = vmatpush.bf16.msra.mxu0 %v9846
    %10131 = vmatpush.bf16.msra.mxu0 %v9838
    %10132 = vmatpush.bf16.msra.mxu0 %v9830
    %10133 = vmatpush.bf16.msra.mxu0 %v9822
    %10134 = vmatpush.bf16.msra.mxu0 %v9814
    %10135 = vmatpush.bf16.msra.mxu0 %v9806
    %10136 = vmatpush.bf16.msra.mxu0 %v9798
    %10137 = vmatmul.bf16.gmra.mxu0 %v9262
    %v10138 = vpop.f32.mrf.mxu0
    %v10139 = vadd.f32 %v9398, %v10138
    %v10140 = vpop.f32.mrf.mxu0
    %10141 = vdwg.mxu0
    %10142 = vmatpush.bf16.msra.mxu0 %v9918
    %10143 = vmatpush.bf16.msra.mxu0 %v9910
    %10144 = vmatpush.bf16.msra.mxu0 %v9902
    %10145 = vmatpush.bf16.msra.mxu0 %v9894
    %10146 = vmatpush.bf16.msra.mxu0 %v9886
    %10147 = vmatpush.bf16.msra.mxu0 %v9878
    %10148 = vmatpush.bf16.msra.mxu0 %v9870
    %10149 = vmatpush.bf16.msra.mxu0 %v9862
    %10150 = vmatmul.bf16.gmra.mxu0 %v9263
    %v10151 = vpop.f32.mrf.mxu0
    %v10152 = vadd.f32 %v10139, %v10151
    %v10153 = vpop.f32.mrf.mxu0
    %10154 = vdwg.mxu0
    %10155 = vmatpush.bf16.msra.mxu0 %v9855
    %10156 = vmatpush.bf16.msra.mxu0 %v9847
    %10157 = vmatpush.bf16.msra.mxu0 %v9839
    %10158 = vmatpush.bf16.msra.mxu0 %v9831
    %10159 = vmatpush.bf16.msra.mxu0 %v9823
    %10160 = vmatpush.bf16.msra.mxu0 %v9815
    %10161 = vmatpush.bf16.msra.mxu0 %v9807
    %10162 = vmatpush.bf16.msra.mxu0 %v9799
    %10163 = vmatmul.bf16.gmra.mxu0 %v9262
    %v10164 = vpop.f32.mrf.mxu0
    %v10165 = vadd.f32 %v9399, %v10164
    %v10166 = vpop.f32.mrf.mxu0
    %10167 = vdwg.mxu0
    %10168 = vmatpush.bf16.msra.mxu0 %v9919
    %10169 = vmatpush.bf16.msra.mxu0 %v9911
    %10170 = vmatpush.bf16.msra.mxu0 %v9903
    %10171 = vmatpush.bf16.msra.mxu0 %v9895
    %10172 = vmatpush.bf16.msra.mxu0 %v9887
    %10173 = vmatpush.bf16.msra.mxu0 %v9879
    %10174 = vmatpush.bf16.msra.mxu0 %v9871
    %10175 = vmatpush.bf16.msra.mxu0 %v9863
    %10176 = vmatmul.bf16.gmra.mxu0 %v9263
    %v10177 = vpop.f32.mrf.mxu0
    %v10178 = vadd.f32 %v10165, %v10177
    %v10179 = vpop.f32.mrf.mxu0
    %10180 = vdwg.mxu0
    %10181 = vmatpush.bf16.msra.mxu0 %v9856
    %10182 = vmatpush.bf16.msra.mxu0 %v9848
    %10183 = vmatpush.bf16.msra.mxu0 %v9840
    %10184 = vmatpush.bf16.msra.mxu0 %v9832
    %10185 = vmatpush.bf16.msra.mxu0 %v9824
    %10186 = vmatpush.bf16.msra.mxu0 %v9816
    %10187 = vmatpush.bf16.msra.mxu0 %v9808
    %10188 = vmatpush.bf16.msra.mxu0 %v9800
    %10189 = vmatmul.bf16.gmra.mxu0 %v9262
    %v10190 = vpop.f32.mrf.mxu0
    %v10191 = vadd.f32 %v9400, %v10190
    %v10192 = vpop.f32.mrf.mxu0
    %10193 = vdwg.mxu0
    %10194 = vmatpush.bf16.msra.mxu0 %v9920
    %10195 = vmatpush.bf16.msra.mxu0 %v9912
    %10196 = vmatpush.bf16.msra.mxu0 %v9904
    %10197 = vmatpush.bf16.msra.mxu0 %v9896
    %10198 = vmatpush.bf16.msra.mxu0 %v9888
    %10199 = vmatpush.bf16.msra.mxu0 %v9880
    %10200 = vmatpush.bf16.msra.mxu0 %v9872
    %10201 = vmatpush.bf16.msra.mxu0 %v9864
    %10202 = vmatmul.bf16.gmra.mxu0 %v9263
    %v10203 = vpop.f32.mrf.mxu0
    %v10204 = vadd.f32 %v10191, %v10203
    %v10205 = vpop.f32.mrf.mxu0
    %10206 = vdwg.mxu0
    %10207 = vmatpush.bf16.msra.mxu0 %v9857
    %10208 = vmatpush.bf16.msra.mxu0 %v9849
    %10209 = vmatpush.bf16.msra.mxu0 %v9841
    %10210 = vmatpush.bf16.msra.mxu0 %v9833
    %10211 = vmatpush.bf16.msra.mxu0 %v9825
    %10212 = vmatpush.bf16.msra.mxu0 %v9817
    %10213 = vmatpush.bf16.msra.mxu0 %v9809
    %10214 = vmatpush.bf16.msra.mxu0 %v9801
    %10215 = vmatmul.bf16.gmra.mxu0 %v9262
    %v10216 = vpop.f32.mrf.mxu0
    %v10217 = vadd.f32 %v9401, %v10216
    %v10218 = vpop.f32.mrf.mxu0
    %10219 = vdwg.mxu0
    %10220 = vmatpush.bf16.msra.mxu0 %v9921
    %10221 = vmatpush.bf16.msra.mxu0 %v9913
    %10222 = vmatpush.bf16.msra.mxu0 %v9905
    %10223 = vmatpush.bf16.msra.mxu0 %v9897
    %10224 = vmatpush.bf16.msra.mxu0 %v9889
    %10225 = vmatpush.bf16.msra.mxu0 %v9881
    %10226 = vmatpush.bf16.msra.mxu0 %v9873
    %10227 = vmatpush.bf16.msra.mxu0 %v9865
    %10228 = vmatmul.bf16.gmra.mxu0 %v9263
    %v10229 = vpop.f32.mrf.mxu0
    %v10230 = vadd.f32 %v10217, %v10229
    %v10231 = vpop.f32.mrf.mxu0
    %10232 = vdwg.mxu0
    %10233 = vmatpush.bf16.msra.mxu0 %v9858
    %10234 = vmatpush.bf16.msra.mxu0 %v9850
    %10235 = vmatpush.bf16.msra.mxu0 %v9842
    %10236 = vmatpush.bf16.msra.mxu0 %v9834
    %10237 = vmatpush.bf16.msra.mxu0 %v9826
    %10238 = vmatpush.bf16.msra.mxu0 %v9818
    %10239 = vmatpush.bf16.msra.mxu0 %v9810
    %10240 = vmatpush.bf16.msra.mxu0 %v9802
    %10241 = vmatmul.bf16.gmra.mxu0 %v9262
    %v10242 = vpop.f32.mrf.mxu0
    %v10243 = vadd.f32 %v9402, %v10242
    %v10244 = vpop.f32.mrf.mxu0
    %10245 = vdwg.mxu0
    %10246 = vmatpush.bf16.msra.mxu0 %v9922
    %10247 = vmatpush.bf16.msra.mxu0 %v9914
    %10248 = vmatpush.bf16.msra.mxu0 %v9906
    %10249 = vmatpush.bf16.msra.mxu0 %v9898
    %10250 = vmatpush.bf16.msra.mxu0 %v9890
    %10251 = vmatpush.bf16.msra.mxu0 %v9882
    %10252 = vmatpush.bf16.msra.mxu0 %v9874
    %10253 = vmatpush.bf16.msra.mxu0 %v9866
    %10254 = vmatmul.bf16.gmra.mxu0 %v9263
    %v10255 = vpop.f32.mrf.mxu0
    %v10256 = vadd.f32 %v10243, %v10255
    %v10257 = vpop.f32.mrf.mxu0
    %10258 = vdwg.mxu0
    %v10259 = vmin.f32 %v10074, 20.0
    %v10260 = vmin.f32 %v10100, 20.0
    %v10261 = vmin.f32 %v10126, 20.0
    %v10262 = vmin.f32 %v10152, 20.0
    %v10263 = vmin.f32 %v10178, 20.0
    %v10264 = vmin.f32 %v10204, 20.0
    %v10265 = vmin.f32 %v10230, 20.0
    %v10266 = vmin.f32 %v10256, 20.0
    %v10267 = vmul.f32 %v10259, 1.442695
    %v10268 = vpow.pop %v10267
    %v10269 = vmul.f32 %v10260, 1.442695
    %v10270 = vpow.pop %v10269
    %v10271 = vmul.f32 %v10261, 1.442695
    %v10272 = vpow.pop %v10271
    %v10273 = vmul.f32 %v10262, 1.442695
    %v10274 = vpow.pop %v10273
    %v10275 = vmul.f32 %v10263, 1.442695
    %v10276 = vpow.pop %v10275
    %v10277 = vmul.f32 %v10264, 1.442695
    %v10278 = vpow.pop %v10277
    %v10279 = vmul.f32 %v10265, 1.442695
    %v10280 = vpow.pop %v10279
    %v10281 = vmul.f32 %v10266, 1.442695
    %v10282 = vpow.pop %v10281
    %v10283 = vadd.f32 %v10268, 1.0
    %v10284 = vadd.f32 %v10270, 1.0
    %v10285 = vadd.f32 %v10272, 1.0
    %v10286 = vadd.f32 %v10274, 1.0
    %v10287 = vadd.f32 %v10276, 1.0
    %v10288 = vadd.f32 %v10278, 1.0
    %v10289 = vadd.f32 %v10280, 1.0
    %v10290 = vadd.f32 %v10282, 1.0
    %v10291 = vmul.f32 %v10283, %v10283
    %v10292 = vmul.f32 %v10284, %v10284
    %v10293 = vmul.f32 %v10285, %v10285
    %v10294 = vmul.f32 %v10286, %v10286
    %v10295 = vmul.f32 %v10287, %v10287
    %v10296 = vmul.f32 %v10288, %v10288
    %v10297 = vmul.f32 %v10289, %v10289
    %v10298 = vmul.f32 %v10290, %v10290
    %v10299 = vsub.f32 %v10291, 1.0
    %v10300 = vsub.f32 %v10292, 1.0
    %v10301 = vsub.f32 %v10293, 1.0
    %v10302 = vsub.f32 %v10294, 1.0
    %v10303 = vsub.f32 %v10295, 1.0
    %v10304 = vsub.f32 %v10296, 1.0
    %v10305 = vsub.f32 %v10297, 1.0
    %v10306 = vsub.f32 %v10298, 1.0
    %v10307 = vmul.f32 %v10074, %v10299
    %v10308 = vmul.f32 %v10100, %v10300
    %v10309 = vmul.f32 %v10126, %v10301
    %v10310 = vmul.f32 %v10152, %v10302
    %v10311 = vmul.f32 %v10178, %v10303
    %v10312 = vmul.f32 %v10204, %v10304
    %v10313 = vmul.f32 %v10230, %v10305
    %v10314 = vmul.f32 %v10256, %v10306
    %v10315 = vadd.f32 %v10291, 1.0
    %v10316 = vadd.f32 %v10292, 1.0
    %v10317 = vadd.f32 %v10293, 1.0
    %v10318 = vadd.f32 %v10294, 1.0
    %v10319 = vadd.f32 %v10295, 1.0
    %v10320 = vadd.f32 %v10296, 1.0
    %v10321 = vadd.f32 %v10297, 1.0
    %v10322 = vadd.f32 %v10298, 1.0
    %v10323 = vrcp.pop %v10315
    %v10324 = vrcp.pop %v10316
    %v10325 = vrcp.pop %v10317
    %v10326 = vrcp.pop %v10318
    %v10327 = vrcp.pop %v10319
    %v10328 = vrcp.pop %v10320
    %v10329 = vrcp.pop %v10321
    %v10330 = vrcp.pop %v10322
    %v10331 = vmul.f32 %v10307, %v10323
    %v10332 = vmul.f32 %v10308, %v10324
    %v10333 = vmul.f32 %v10309, %v10325
    %v10334 = vmul.f32 %v10310, %v10326
    %v10335 = vmul.f32 %v10311, %v10327
    %v10336 = vmul.f32 %v10312, %v10328
    %v10337 = vmul.f32 %v10313, %v10329
    %v10338 = vmul.f32 %v10314, %v10330
    %vm10339 = vcmp.gt.f32.partialorder %v10074, 20.0
    %vm10340 = vcmp.gt.f32.partialorder %v10100, 20.0
    %vm10341 = vcmp.gt.f32.partialorder %v10126, 20.0
    %vm10342 = vcmp.gt.f32.partialorder %v10152, 20.0
    %vm10343 = vcmp.gt.f32.partialorder %v10178, 20.0
    %vm10344 = vcmp.gt.f32.partialorder %v10204, 20.0
    %vm10345 = vcmp.gt.f32.partialorder %v10230, 20.0
    %vm10346 = vcmp.gt.f32.partialorder %v10256, 20.0
    %v10347 = vsel %vm10339, %v10074, %v10331
    %v10348 = vsel %vm10340, %v10100, %v10332
    %v10349 = vsel %vm10341, %v10126, %v10333
    %v10350 = vsel %vm10342, %v10152, %v10334
    %v10351 = vsel %vm10343, %v10178, %v10335
    %v10352 = vsel %vm10344, %v10204, %v10336
    %v10353 = vsel %vm10345, %v10230, %v10337
    %v10354 = vsel %vm10346, %v10256, %v10338
    %v10355 = vpack.c.bf16 %v10347, %v10347
    %v10356 = vpack.c.bf16 %v10348, %v10348
    %v10357 = vpack.c.bf16 %v10349, %v10349
    %v10358 = vpack.c.bf16 %v10350, %v10350
    %v10359 = vpack.c.bf16 %v10351, %v10351
    %v10360 = vpack.c.bf16 %v10352, %v10352
    %v10361 = vpack.c.bf16 %v10353, %v10353
    %v10362 = vpack.c.bf16 %v10354, %v10354
    %s10363 = scalar_lea.vmem [#allocation23], 1024
    %v10364 = vld [vmem:[%s10363] sm:$0xff]
    %v10365 = vld [vmem:[%s10363 + $0x8] sm:$0xff]
    %v10366 = vld [vmem:[%s10363 + $0x10] sm:$0xff]
    %v10367 = vld [vmem:[%s10363 + $0x18] sm:$0xff]
    %v10368 = vld [vmem:[%s10363 + $0x20] sm:$0xff]
    %v10369 = vld [vmem:[%s10363 + $0x28] sm:$0xff]
    %v10370 = vld [vmem:[%s10363 + $0x30] sm:$0xff]
    %v10371 = vld [vmem:[%s10363 + $0x38] sm:$0xff]
    %v10372 = vld [vmem:[%s10363 + $0x40] sm:$0xff]
    %v10373 = vld [vmem:[%s10363 + $0x48] sm:$0xff]
    %v10374 = vld [vmem:[%s10363 + $0x50] sm:$0xff]
    %v10375 = vld [vmem:[%s10363 + $0x58] sm:$0xff]
    %v10376 = vld [vmem:[%s10363 + $0x60] sm:$0xff]
    %v10377 = vld [vmem:[%s10363 + $0x68] sm:$0xff]
    %v10378 = vld [vmem:[%s10363 + $0x70] sm:$0xff]
    %v10379 = vld [vmem:[%s10363 + $0x78] sm:$0xff]
    %v10380 = vld [vmem:[%s10363 + $0x80] sm:$0xff]
    %v10381 = vld [vmem:[%s10363 + $0x88] sm:$0xff]
    %v10382 = vld [vmem:[%s10363 + $0x90] sm:$0xff]
    %v10383 = vld [vmem:[%s10363 + $0x98] sm:$0xff]
    %v10384 = vld [vmem:[%s10363 + $0xa0] sm:$0xff]
    %v10385 = vld [vmem:[%s10363 + $0xa8] sm:$0xff]
    %v10386 = vld [vmem:[%s10363 + $0xb0] sm:$0xff]
    %v10387 = vld [vmem:[%s10363 + $0xb8] sm:$0xff]
    %v10388 = vld [vmem:[%s10363 + $0xc0] sm:$0xff]
    %v10389 = vld [vmem:[%s10363 + $0xc8] sm:$0xff]
    %v10390 = vld [vmem:[%s10363 + $0xd0] sm:$0xff]
    %v10391 = vld [vmem:[%s10363 + $0xd8] sm:$0xff]
    %v10392 = vld [vmem:[%s10363 + $0xe0] sm:$0xff]
    %v10393 = vld [vmem:[%s10363 + $0xe8] sm:$0xff]
    %v10394 = vld [vmem:[%s10363 + $0xf0] sm:$0xff]
    %v10395 = vld [vmem:[%s10363 + $0xf8] sm:$0xff]
    %v10396 = vld [vmem:[%s10363 + $0x100] sm:$0xff]
    %v10397 = vld [vmem:[%s10363 + $0x108] sm:$0xff]
    %v10398 = vld [vmem:[%s10363 + $0x110] sm:$0xff]
    %v10399 = vld [vmem:[%s10363 + $0x118] sm:$0xff]
    %v10400 = vld [vmem:[%s10363 + $0x120] sm:$0xff]
    %v10401 = vld [vmem:[%s10363 + $0x128] sm:$0xff]
    %v10402 = vld [vmem:[%s10363 + $0x130] sm:$0xff]
    %v10403 = vld [vmem:[%s10363 + $0x138] sm:$0xff]
    %v10404 = vld [vmem:[%s10363 + $0x140] sm:$0xff]
    %v10405 = vld [vmem:[%s10363 + $0x148] sm:$0xff]
    %v10406 = vld [vmem:[%s10363 + $0x150] sm:$0xff]
    %v10407 = vld [vmem:[%s10363 + $0x158] sm:$0xff]
    %v10408 = vld [vmem:[%s10363 + $0x160] sm:$0xff]
    %v10409 = vld [vmem:[%s10363 + $0x168] sm:$0xff]
    %v10410 = vld [vmem:[%s10363 + $0x170] sm:$0xff]
    %v10411 = vld [vmem:[%s10363 + $0x178] sm:$0xff]
    %v10412 = vld [vmem:[%s10363 + $0x180] sm:$0xff]
    %v10413 = vld [vmem:[%s10363 + $0x188] sm:$0xff]
    %v10414 = vld [vmem:[%s10363 + $0x190] sm:$0xff]
    %v10415 = vld [vmem:[%s10363 + $0x198] sm:$0xff]
    %v10416 = vld [vmem:[%s10363 + $0x1a0] sm:$0xff]
    %v10417 = vld [vmem:[%s10363 + $0x1a8] sm:$0xff]
    %v10418 = vld [vmem:[%s10363 + $0x1b0] sm:$0xff]
    %v10419 = vld [vmem:[%s10363 + $0x1b8] sm:$0xff]
    %v10420 = vld [vmem:[%s10363 + $0x1c0] sm:$0xff]
    %v10421 = vld [vmem:[%s10363 + $0x1c8] sm:$0xff]
    %v10422 = vld [vmem:[%s10363 + $0x1d0] sm:$0xff]
    %v10423 = vld [vmem:[%s10363 + $0x1d8] sm:$0xff]
    %v10424 = vld [vmem:[%s10363 + $0x1e0] sm:$0xff]
    %v10425 = vld [vmem:[%s10363 + $0x1e8] sm:$0xff]
    %v10426 = vld [vmem:[%s10363 + $0x1f0] sm:$0xff]
    %v10427 = vld [vmem:[%s10363 + $0x1f8] sm:$0xff]
    %v10428 = vld [vmem:[%s10363 + $0x200] sm:$0xff]
    %v10429 = vld [vmem:[%s10363 + $0x208] sm:$0xff]
    %v10430 = vld [vmem:[%s10363 + $0x210] sm:$0xff]
    %v10431 = vld [vmem:[%s10363 + $0x218] sm:$0xff]
    %v10432 = vld [vmem:[%s10363 + $0x220] sm:$0xff]
    %v10433 = vld [vmem:[%s10363 + $0x228] sm:$0xff]
    %v10434 = vld [vmem:[%s10363 + $0x230] sm:$0xff]
    %v10435 = vld [vmem:[%s10363 + $0x238] sm:$0xff]
    %v10436 = vld [vmem:[%s10363 + $0x240] sm:$0xff]
    %v10437 = vld [vmem:[%s10363 + $0x248] sm:$0xff]
    %v10438 = vld [vmem:[%s10363 + $0x250] sm:$0xff]
    %v10439 = vld [vmem:[%s10363 + $0x258] sm:$0xff]
    %v10440 = vld [vmem:[%s10363 + $0x260] sm:$0xff]
    %v10441 = vld [vmem:[%s10363 + $0x268] sm:$0xff]
    %v10442 = vld [vmem:[%s10363 + $0x270] sm:$0xff]
    %v10443 = vld [vmem:[%s10363 + $0x278] sm:$0xff]
    %v10444 = vld [vmem:[%s10363 + $0x280] sm:$0xff]
    %v10445 = vld [vmem:[%s10363 + $0x288] sm:$0xff]
    %v10446 = vld [vmem:[%s10363 + $0x290] sm:$0xff]
    %v10447 = vld [vmem:[%s10363 + $0x298] sm:$0xff]
    %v10448 = vld [vmem:[%s10363 + $0x2a0] sm:$0xff]
    %v10449 = vld [vmem:[%s10363 + $0x2a8] sm:$0xff]
    %v10450 = vld [vmem:[%s10363 + $0x2b0] sm:$0xff]
    %v10451 = vld [vmem:[%s10363 + $0x2b8] sm:$0xff]
    %v10452 = vld [vmem:[%s10363 + $0x2c0] sm:$0xff]
    %v10453 = vld [vmem:[%s10363 + $0x2c8] sm:$0xff]
    %v10454 = vld [vmem:[%s10363 + $0x2d0] sm:$0xff]
    %v10455 = vld [vmem:[%s10363 + $0x2d8] sm:$0xff]
    %v10456 = vld [vmem:[%s10363 + $0x2e0] sm:$0xff]
    %v10457 = vld [vmem:[%s10363 + $0x2e8] sm:$0xff]
    %v10458 = vld [vmem:[%s10363 + $0x2f0] sm:$0xff]
    %v10459 = vld [vmem:[%s10363 + $0x2f8] sm:$0xff]
    %v10460 = vld [vmem:[%s10363 + $0x300] sm:$0xff]
    %v10461 = vld [vmem:[%s10363 + $0x308] sm:$0xff]
    %v10462 = vld [vmem:[%s10363 + $0x310] sm:$0xff]
    %v10463 = vld [vmem:[%s10363 + $0x318] sm:$0xff]
    %v10464 = vld [vmem:[%s10363 + $0x320] sm:$0xff]
    %v10465 = vld [vmem:[%s10363 + $0x328] sm:$0xff]
    %v10466 = vld [vmem:[%s10363 + $0x330] sm:$0xff]
    %v10467 = vld [vmem:[%s10363 + $0x338] sm:$0xff]
    %v10468 = vld [vmem:[%s10363 + $0x340] sm:$0xff]
    %v10469 = vld [vmem:[%s10363 + $0x348] sm:$0xff]
    %v10470 = vld [vmem:[%s10363 + $0x350] sm:$0xff]
    %v10471 = vld [vmem:[%s10363 + $0x358] sm:$0xff]
    %v10472 = vld [vmem:[%s10363 + $0x360] sm:$0xff]
    %v10473 = vld [vmem:[%s10363 + $0x368] sm:$0xff]
    %v10474 = vld [vmem:[%s10363 + $0x370] sm:$0xff]
    %v10475 = vld [vmem:[%s10363 + $0x378] sm:$0xff]
    %v10476 = vld [vmem:[%s10363 + $0x380] sm:$0xff]
    %v10477 = vld [vmem:[%s10363 + $0x388] sm:$0xff]
    %v10478 = vld [vmem:[%s10363 + $0x390] sm:$0xff]
    %v10479 = vld [vmem:[%s10363 + $0x398] sm:$0xff]
    %v10480 = vld [vmem:[%s10363 + $0x3a0] sm:$0xff]
    %v10481 = vld [vmem:[%s10363 + $0x3a8] sm:$0xff]
    %v10482 = vld [vmem:[%s10363 + $0x3b0] sm:$0xff]
    %v10483 = vld [vmem:[%s10363 + $0x3b8] sm:$0xff]
    %v10484 = vld [vmem:[%s10363 + $0x3c0] sm:$0xff]
    %v10485 = vld [vmem:[%s10363 + $0x3c8] sm:$0xff]
    %v10486 = vld [vmem:[%s10363 + $0x3d0] sm:$0xff]
    %v10487 = vld [vmem:[%s10363 + $0x3d8] sm:$0xff]
    %v10488 = vld [vmem:[%s10363 + $0x3e0] sm:$0xff]
    %v10489 = vld [vmem:[%s10363 + $0x3e8] sm:$0xff]
    %v10490 = vld [vmem:[%s10363 + $0x3f0] sm:$0xff]
    %v10491 = vld [vmem:[%s10363 + $0x3f8] sm:$0xff]
    %v10492 = vld [vmem:[#allocation10 + $0x29] sm:$0x3]
    %v10494 = vperm.slane %v10492, 0
    %v10495 = vperm.slane %v10492, 1
    %v10626 = vunpack.c.l.b16 %v10364
    %v10627 = vunpack.c.h.b16 %v10364
    %v10628 = vunpack.c.l.b16 %v10365
    %v10629 = vunpack.c.h.b16 %v10365
    %v10630 = vunpack.c.l.b16 %v10366
    %v10631 = vunpack.c.h.b16 %v10366
    %v10632 = vunpack.c.l.b16 %v10367
    %v10633 = vunpack.c.h.b16 %v10367
    %v10634 = vunpack.c.l.b16 %v10368
    %v10635 = vunpack.c.h.b16 %v10368
    %v10636 = vunpack.c.l.b16 %v10369
    %v10637 = vunpack.c.h.b16 %v10369
    %v10638 = vunpack.c.l.b16 %v10370
    %v10639 = vunpack.c.h.b16 %v10370
    %v10640 = vunpack.c.l.b16 %v10371
    %v10641 = vunpack.c.h.b16 %v10371
    %v10642 = vunpack.c.l.b16 %v10372
    %v10643 = vunpack.c.h.b16 %v10372
    %v10644 = vunpack.c.l.b16 %v10373
    %v10645 = vunpack.c.h.b16 %v10373
    %v10646 = vunpack.c.l.b16 %v10374
    %v10647 = vunpack.c.h.b16 %v10374
    %v10648 = vunpack.c.l.b16 %v10375
    %v10649 = vunpack.c.h.b16 %v10375
    %v10650 = vunpack.c.l.b16 %v10376
    %v10651 = vunpack.c.h.b16 %v10376
    %v10652 = vunpack.c.l.b16 %v10377
    %v10653 = vunpack.c.h.b16 %v10377
    %v10654 = vunpack.c.l.b16 %v10378
    %v10655 = vunpack.c.h.b16 %v10378
    %v10656 = vunpack.c.l.b16 %v10379
    %v10657 = vunpack.c.h.b16 %v10379
    %v10658 = vunpack.c.l.b16 %v10380
    %v10659 = vunpack.c.h.b16 %v10380
    %v10660 = vunpack.c.l.b16 %v10381
    %v10661 = vunpack.c.h.b16 %v10381
    %v10662 = vunpack.c.l.b16 %v10382
    %v10663 = vunpack.c.h.b16 %v10382
    %v10664 = vunpack.c.l.b16 %v10383
    %v10665 = vunpack.c.h.b16 %v10383
    %v10666 = vunpack.c.l.b16 %v10384
    %v10667 = vunpack.c.h.b16 %v10384
    %v10668 = vunpack.c.l.b16 %v10385
    %v10669 = vunpack.c.h.b16 %v10385
    %v10670 = vunpack.c.l.b16 %v10386
    %v10671 = vunpack.c.h.b16 %v10386
    %v10672 = vunpack.c.l.b16 %v10387
    %v10673 = vunpack.c.h.b16 %v10387
    %v10674 = vunpack.c.l.b16 %v10388
    %v10675 = vunpack.c.h.b16 %v10388
    %v10676 = vunpack.c.l.b16 %v10389
    %v10677 = vunpack.c.h.b16 %v10389
    %v10678 = vunpack.c.l.b16 %v10390
    %v10679 = vunpack.c.h.b16 %v10390
    %v10680 = vunpack.c.l.b16 %v10391
    %v10681 = vunpack.c.h.b16 %v10391
    %v10682 = vunpack.c.l.b16 %v10392
    %v10683 = vunpack.c.h.b16 %v10392
    %v10684 = vunpack.c.l.b16 %v10393
    %v10685 = vunpack.c.h.b16 %v10393
    %v10686 = vunpack.c.l.b16 %v10394
    %v10687 = vunpack.c.h.b16 %v10394
    %v10688 = vunpack.c.l.b16 %v10395
    %v10689 = vunpack.c.h.b16 %v10395
    %v10690 = vunpack.c.l.b16 %v10396
    %v10691 = vunpack.c.h.b16 %v10396
    %v10692 = vunpack.c.l.b16 %v10397
    %v10693 = vunpack.c.h.b16 %v10397
    %v10694 = vunpack.c.l.b16 %v10398
    %v10695 = vunpack.c.h.b16 %v10398
    %v10696 = vunpack.c.l.b16 %v10399
    %v10697 = vunpack.c.h.b16 %v10399
    %v10698 = vunpack.c.l.b16 %v10400
    %v10699 = vunpack.c.h.b16 %v10400
    %v10700 = vunpack.c.l.b16 %v10401
    %v10701 = vunpack.c.h.b16 %v10401
    %v10702 = vunpack.c.l.b16 %v10402
    %v10703 = vunpack.c.h.b16 %v10402
    %v10704 = vunpack.c.l.b16 %v10403
    %v10705 = vunpack.c.h.b16 %v10403
    %v10706 = vunpack.c.l.b16 %v10404
    %v10707 = vunpack.c.h.b16 %v10404
    %v10708 = vunpack.c.l.b16 %v10405
    %v10709 = vunpack.c.h.b16 %v10405
    %v10710 = vunpack.c.l.b16 %v10406
    %v10711 = vunpack.c.h.b16 %v10406
    %v10712 = vunpack.c.l.b16 %v10407
    %v10713 = vunpack.c.h.b16 %v10407
    %v10714 = vunpack.c.l.b16 %v10408
    %v10715 = vunpack.c.h.b16 %v10408
    %v10716 = vunpack.c.l.b16 %v10409
    %v10717 = vunpack.c.h.b16 %v10409
    %v10718 = vunpack.c.l.b16 %v10410
    %v10719 = vunpack.c.h.b16 %v10410
    %v10720 = vunpack.c.l.b16 %v10411
    %v10721 = vunpack.c.h.b16 %v10411
    %v10722 = vunpack.c.l.b16 %v10412
    %v10723 = vunpack.c.h.b16 %v10412
    %v10724 = vunpack.c.l.b16 %v10413
    %v10725 = vunpack.c.h.b16 %v10413
    %v10726 = vunpack.c.l.b16 %v10414
    %v10727 = vunpack.c.h.b16 %v10414
    %v10728 = vunpack.c.l.b16 %v10415
    %v10729 = vunpack.c.h.b16 %v10415
    %v10730 = vunpack.c.l.b16 %v10416
    %v10731 = vunpack.c.h.b16 %v10416
    %v10732 = vunpack.c.l.b16 %v10417
    %v10733 = vunpack.c.h.b16 %v10417
    %v10734 = vunpack.c.l.b16 %v10418
    %v10735 = vunpack.c.h.b16 %v10418
    %v10736 = vunpack.c.l.b16 %v10419
    %v10737 = vunpack.c.h.b16 %v10419
    %v10738 = vunpack.c.l.b16 %v10420
    %v10739 = vunpack.c.h.b16 %v10420
    %v10740 = vunpack.c.l.b16 %v10421
    %v10741 = vunpack.c.h.b16 %v10421
    %v10742 = vunpack.c.l.b16 %v10422
    %v10743 = vunpack.c.h.b16 %v10422
    %v10744 = vunpack.c.l.b16 %v10423
    %v10745 = vunpack.c.h.b16 %v10423
    %v10746 = vunpack.c.l.b16 %v10424
    %v10747 = vunpack.c.h.b16 %v10424
    %v10748 = vunpack.c.l.b16 %v10425
    %v10749 = vunpack.c.h.b16 %v10425
    %v10750 = vunpack.c.l.b16 %v10426
    %v10751 = vunpack.c.h.b16 %v10426
    %v10752 = vunpack.c.l.b16 %v10427
    %v10753 = vunpack.c.h.b16 %v10427
    %v10754 = vunpack.c.l.b16 %v10428
    %v10755 = vunpack.c.h.b16 %v10428
    %v10756 = vunpack.c.l.b16 %v10429
    %v10757 = vunpack.c.h.b16 %v10429
    %v10758 = vunpack.c.l.b16 %v10430
    %v10759 = vunpack.c.h.b16 %v10430
    %v10760 = vunpack.c.l.b16 %v10431
    %v10761 = vunpack.c.h.b16 %v10431
    %v10762 = vunpack.c.l.b16 %v10432
    %v10763 = vunpack.c.h.b16 %v10432
    %v10764 = vunpack.c.l.b16 %v10433
    %v10765 = vunpack.c.h.b16 %v10433
    %v10766 = vunpack.c.l.b16 %v10434
    %v10767 = vunpack.c.h.b16 %v10434
    %v10768 = vunpack.c.l.b16 %v10435
    %v10769 = vunpack.c.h.b16 %v10435
    %v10770 = vunpack.c.l.b16 %v10436
    %v10771 = vunpack.c.h.b16 %v10436
    %v10772 = vunpack.c.l.b16 %v10437
    %v10773 = vunpack.c.h.b16 %v10437
    %v10774 = vunpack.c.l.b16 %v10438
    %v10775 = vunpack.c.h.b16 %v10438
    %v10776 = vunpack.c.l.b16 %v10439
    %v10777 = vunpack.c.h.b16 %v10439
    %v10778 = vunpack.c.l.b16 %v10440
    %v10779 = vunpack.c.h.b16 %v10440
    %v10780 = vunpack.c.l.b16 %v10441
    %v10781 = vunpack.c.h.b16 %v10441
    %v10782 = vunpack.c.l.b16 %v10442
    %v10783 = vunpack.c.h.b16 %v10442
    %v10784 = vunpack.c.l.b16 %v10443
    %v10785 = vunpack.c.h.b16 %v10443
    %v10786 = vunpack.c.l.b16 %v10444
    %v10787 = vunpack.c.h.b16 %v10444
    %v10788 = vunpack.c.l.b16 %v10445
    %v10789 = vunpack.c.h.b16 %v10445
    %v10790 = vunpack.c.l.b16 %v10446
    %v10791 = vunpack.c.h.b16 %v10446
    %v10792 = vunpack.c.l.b16 %v10447
    %v10793 = vunpack.c.h.b16 %v10447
    %v10794 = vunpack.c.l.b16 %v10448
    %v10795 = vunpack.c.h.b16 %v10448
    %v10796 = vunpack.c.l.b16 %v10449
    %v10797 = vunpack.c.h.b16 %v10449
    %v10798 = vunpack.c.l.b16 %v10450
    %v10799 = vunpack.c.h.b16 %v10450
    %v10800 = vunpack.c.l.b16 %v10451
    %v10801 = vunpack.c.h.b16 %v10451
    %v10802 = vunpack.c.l.b16 %v10452
    %v10803 = vunpack.c.h.b16 %v10452
    %v10804 = vunpack.c.l.b16 %v10453
    %v10805 = vunpack.c.h.b16 %v10453
    %v10806 = vunpack.c.l.b16 %v10454
    %v10807 = vunpack.c.h.b16 %v10454
    %v10808 = vunpack.c.l.b16 %v10455
    %v10809 = vunpack.c.h.b16 %v10455
    %v10810 = vunpack.c.l.b16 %v10456
    %v10811 = vunpack.c.h.b16 %v10456
    %v10812 = vunpack.c.l.b16 %v10457
    %v10813 = vunpack.c.h.b16 %v10457
    %v10814 = vunpack.c.l.b16 %v10458
    %v10815 = vunpack.c.h.b16 %v10458
    %v10816 = vunpack.c.l.b16 %v10459
    %v10817 = vunpack.c.h.b16 %v10459
    %v10818 = vunpack.c.l.b16 %v10460
    %v10819 = vunpack.c.h.b16 %v10460
    %v10820 = vunpack.c.l.b16 %v10461
    %v10821 = vunpack.c.h.b16 %v10461
    %v10822 = vunpack.c.l.b16 %v10462
    %v10823 = vunpack.c.h.b16 %v10462
    %v10824 = vunpack.c.l.b16 %v10463
    %v10825 = vunpack.c.h.b16 %v10463
    %v10826 = vunpack.c.l.b16 %v10464
    %v10827 = vunpack.c.h.b16 %v10464
    %v10828 = vunpack.c.l.b16 %v10465
    %v10829 = vunpack.c.h.b16 %v10465
    %v10830 = vunpack.c.l.b16 %v10466
    %v10831 = vunpack.c.h.b16 %v10466
    %v10832 = vunpack.c.l.b16 %v10467
    %v10833 = vunpack.c.h.b16 %v10467
    %v10834 = vunpack.c.l.b16 %v10468
    %v10835 = vunpack.c.h.b16 %v10468
    %v10836 = vunpack.c.l.b16 %v10469
    %v10837 = vunpack.c.h.b16 %v10469
    %v10838 = vunpack.c.l.b16 %v10470
    %v10839 = vunpack.c.h.b16 %v10470
    %v10840 = vunpack.c.l.b16 %v10471
    %v10841 = vunpack.c.h.b16 %v10471
    %v10842 = vunpack.c.l.b16 %v10472
    %v10843 = vunpack.c.h.b16 %v10472
    %v10844 = vunpack.c.l.b16 %v10473
    %v10845 = vunpack.c.h.b16 %v10473
    %v10846 = vunpack.c.l.b16 %v10474
    %v10847 = vunpack.c.h.b16 %v10474
    %v10848 = vunpack.c.l.b16 %v10475
    %v10849 = vunpack.c.h.b16 %v10475
    %v10850 = vunpack.c.l.b16 %v10476
    %v10851 = vunpack.c.h.b16 %v10476
    %v10852 = vunpack.c.l.b16 %v10477
    %v10853 = vunpack.c.h.b16 %v10477
    %v10854 = vunpack.c.l.b16 %v10478
    %v10855 = vunpack.c.h.b16 %v10478
    %v10856 = vunpack.c.l.b16 %v10479
    %v10857 = vunpack.c.h.b16 %v10479
    %v10858 = vunpack.c.l.b16 %v10480
    %v10859 = vunpack.c.h.b16 %v10480
    %v10860 = vunpack.c.l.b16 %v10481
    %v10861 = vunpack.c.h.b16 %v10481
    %v10862 = vunpack.c.l.b16 %v10482
    %v10863 = vunpack.c.h.b16 %v10482
    %v10864 = vunpack.c.l.b16 %v10483
    %v10865 = vunpack.c.h.b16 %v10483
    %v10866 = vunpack.c.l.b16 %v10484
    %v10867 = vunpack.c.h.b16 %v10484
    %v10868 = vunpack.c.l.b16 %v10485
    %v10869 = vunpack.c.h.b16 %v10485
    %v10870 = vunpack.c.l.b16 %v10486
    %v10871 = vunpack.c.h.b16 %v10486
    %v10872 = vunpack.c.l.b16 %v10487
    %v10873 = vunpack.c.h.b16 %v10487
    %v10874 = vunpack.c.l.b16 %v10488
    %v10875 = vunpack.c.h.b16 %v10488
    %v10876 = vunpack.c.l.b16 %v10489
    %v10877 = vunpack.c.h.b16 %v10489
    %v10878 = vunpack.c.l.b16 %v10490
    %v10879 = vunpack.c.h.b16 %v10490
    %v10880 = vunpack.c.l.b16 %v10491
    %v10881 = vunpack.c.h.b16 %v10491
    %v10882 = vpack.c.b16 %v10628, %v10626
    %v10883 = vpack.c.b16 %v10629, %v10627
    %v10884 = vpack.c.b16 %v10632, %v10630
    %v10885 = vpack.c.b16 %v10633, %v10631
    %v10886 = vpack.c.b16 %v10636, %v10634
    %v10887 = vpack.c.b16 %v10637, %v10635
    %v10888 = vpack.c.b16 %v10640, %v10638
    %v10889 = vpack.c.b16 %v10641, %v10639
    %v10890 = vpack.c.b16 %v10644, %v10642
    %v10891 = vpack.c.b16 %v10645, %v10643
    %v10892 = vpack.c.b16 %v10648, %v10646
    %v10893 = vpack.c.b16 %v10649, %v10647
    %v10894 = vpack.c.b16 %v10652, %v10650
    %v10895 = vpack.c.b16 %v10653, %v10651
    %v10896 = vpack.c.b16 %v10656, %v10654
    %v10897 = vpack.c.b16 %v10657, %v10655
    %v10898 = vpack.c.b16 %v10660, %v10658
    %v10899 = vpack.c.b16 %v10661, %v10659
    %v10900 = vpack.c.b16 %v10664, %v10662
    %v10901 = vpack.c.b16 %v10665, %v10663
    %v10902 = vpack.c.b16 %v10668, %v10666
    %v10903 = vpack.c.b16 %v10669, %v10667
    %v10904 = vpack.c.b16 %v10672, %v10670
    %v10905 = vpack.c.b16 %v10673, %v10671
    %v10906 = vpack.c.b16 %v10676, %v10674
    %v10907 = vpack.c.b16 %v10677, %v10675
    %v10908 = vpack.c.b16 %v10680, %v10678
    %v10909 = vpack.c.b16 %v10681, %v10679
    %v10910 = vpack.c.b16 %v10684, %v10682
    %v10911 = vpack.c.b16 %v10685, %v10683
    %v10912 = vpack.c.b16 %v10688, %v10686
    %v10913 = vpack.c.b16 %v10689, %v10687
    %v10914 = vpack.c.b16 %v10692, %v10690
    %v10915 = vpack.c.b16 %v10693, %v10691
    %v10916 = vpack.c.b16 %v10696, %v10694
    %v10917 = vpack.c.b16 %v10697, %v10695
    %v10918 = vpack.c.b16 %v10700, %v10698
    %v10919 = vpack.c.b16 %v10701, %v10699
    %v10920 = vpack.c.b16 %v10704, %v10702
    %v10921 = vpack.c.b16 %v10705, %v10703
    %v10922 = vpack.c.b16 %v10708, %v10706
    %v10923 = vpack.c.b16 %v10709, %v10707
    %v10924 = vpack.c.b16 %v10712, %v10710
    %v10925 = vpack.c.b16 %v10713, %v10711
    %v10926 = vpack.c.b16 %v10716, %v10714
    %v10927 = vpack.c.b16 %v10717, %v10715
    %v10928 = vpack.c.b16 %v10720, %v10718
    %v10929 = vpack.c.b16 %v10721, %v10719
    %v10930 = vpack.c.b16 %v10724, %v10722
    %v10931 = vpack.c.b16 %v10725, %v10723
    %v10932 = vpack.c.b16 %v10728, %v10726
    %v10933 = vpack.c.b16 %v10729, %v10727
    %v10934 = vpack.c.b16 %v10732, %v10730
    %v10935 = vpack.c.b16 %v10733, %v10731
    %v10936 = vpack.c.b16 %v10736, %v10734
    %v10937 = vpack.c.b16 %v10737, %v10735
    %v10938 = vpack.c.b16 %v10740, %v10738
    %v10939 = vpack.c.b16 %v10741, %v10739
    %v10940 = vpack.c.b16 %v10744, %v10742
    %v10941 = vpack.c.b16 %v10745, %v10743
    %v10942 = vpack.c.b16 %v10748, %v10746
    %v10943 = vpack.c.b16 %v10749, %v10747
    %v10944 = vpack.c.b16 %v10752, %v10750
    %v10945 = vpack.c.b16 %v10753, %v10751
    %v10946 = vpack.c.b16 %v10756, %v10754
    %v10947 = vpack.c.b16 %v10757, %v10755
    %v10948 = vpack.c.b16 %v10760, %v10758
    %v10949 = vpack.c.b16 %v10761, %v10759
    %v10950 = vpack.c.b16 %v10764, %v10762
    %v10951 = vpack.c.b16 %v10765, %v10763
    %v10952 = vpack.c.b16 %v10768, %v10766
    %v10953 = vpack.c.b16 %v10769, %v10767
    %v10954 = vpack.c.b16 %v10772, %v10770
    %v10955 = vpack.c.b16 %v10773, %v10771
    %v10956 = vpack.c.b16 %v10776, %v10774
    %v10957 = vpack.c.b16 %v10777, %v10775
    %v10958 = vpack.c.b16 %v10780, %v10778
    %v10959 = vpack.c.b16 %v10781, %v10779
    %v10960 = vpack.c.b16 %v10784, %v10782
    %v10961 = vpack.c.b16 %v10785, %v10783
    %v10962 = vpack.c.b16 %v10788, %v10786
    %v10963 = vpack.c.b16 %v10789, %v10787
    %v10964 = vpack.c.b16 %v10792, %v10790
    %v10965 = vpack.c.b16 %v10793, %v10791
    %v10966 = vpack.c.b16 %v10796, %v10794
    %v10967 = vpack.c.b16 %v10797, %v10795
    %v10968 = vpack.c.b16 %v10800, %v10798
    %v10969 = vpack.c.b16 %v10801, %v10799
    %v10970 = vpack.c.b16 %v10804, %v10802
    %v10971 = vpack.c.b16 %v10805, %v10803
    %v10972 = vpack.c.b16 %v10808, %v10806
    %v10973 = vpack.c.b16 %v10809, %v10807
    %v10974 = vpack.c.b16 %v10812, %v10810
    %v10975 = vpack.c.b16 %v10813, %v10811
    %v10976 = vpack.c.b16 %v10816, %v10814
    %v10977 = vpack.c.b16 %v10817, %v10815
    %v10978 = vpack.c.b16 %v10820, %v10818
    %v10979 = vpack.c.b16 %v10821, %v10819
    %v10980 = vpack.c.b16 %v10824, %v10822
    %v10981 = vpack.c.b16 %v10825, %v10823
    %v10982 = vpack.c.b16 %v10828, %v10826
    %v10983 = vpack.c.b16 %v10829, %v10827
    %v10984 = vpack.c.b16 %v10832, %v10830
    %v10985 = vpack.c.b16 %v10833, %v10831
    %v10986 = vpack.c.b16 %v10836, %v10834
    %v10987 = vpack.c.b16 %v10837, %v10835
    %v10988 = vpack.c.b16 %v10840, %v10838
    %v10989 = vpack.c.b16 %v10841, %v10839
    %v10990 = vpack.c.b16 %v10844, %v10842
    %v10991 = vpack.c.b16 %v10845, %v10843
    %v10992 = vpack.c.b16 %v10848, %v10846
    %v10993 = vpack.c.b16 %v10849, %v10847
    %v10994 = vpack.c.b16 %v10852, %v10850
    %v10995 = vpack.c.b16 %v10853, %v10851
    %v10996 = vpack.c.b16 %v10856, %v10854
    %v10997 = vpack.c.b16 %v10857, %v10855
    %v10998 = vpack.c.b16 %v10860, %v10858
    %v10999 = vpack.c.b16 %v10861, %v10859
    %v11000 = vpack.c.b16 %v10864, %v10862
    %v11001 = vpack.c.b16 %v10865, %v10863
    %v11002 = vpack.c.b16 %v10868, %v10866
    %v11003 = vpack.c.b16 %v10869, %v10867
    %v11004 = vpack.c.b16 %v10872, %v10870
    %v11005 = vpack.c.b16 %v10873, %v10871
    %v11006 = vpack.c.b16 %v10876, %v10874
    %v11007 = vpack.c.b16 %v10877, %v10875
    %v11008 = vpack.c.b16 %v10880, %v10878
    %v11009 = vpack.c.b16 %v10881, %v10879
    %11138 = vmatpush.bf16.msra.mxu0 %v10896
    %11139 = vmatpush.bf16.msra.mxu0 %v10894
    %11140 = vmatpush.bf16.msra.mxu0 %v10892
    %11141 = vmatpush.bf16.msra.mxu0 %v10890
    %11142 = vmatpush.bf16.msra.mxu0 %v10888
    %11143 = vmatpush.bf16.msra.mxu0 %v10886
    %11144 = vmatpush.bf16.msra.mxu0 %v10884
    %11145 = vmatpush.bf16.msra.mxu0 %v10882
    %11146 = vmatmul.bf16.gmra.mxu0 %v10355
    %v11147 = vpop.f32.mrf.mxu0
    %v11148 = vadd.f32 %v10494, %v11147
    %v11149 = vpop.f32.mrf.mxu0
    %11150 = vdwg.mxu0
    %11151 = vmatpush.bf16.msra.mxu0 %v10912
    %11152 = vmatpush.bf16.msra.mxu0 %v10910
    %11153 = vmatpush.bf16.msra.mxu0 %v10908
    %11154 = vmatpush.bf16.msra.mxu0 %v10906
    %11155 = vmatpush.bf16.msra.mxu0 %v10904
    %11156 = vmatpush.bf16.msra.mxu0 %v10902
    %11157 = vmatpush.bf16.msra.mxu0 %v10900
    %11158 = vmatpush.bf16.msra.mxu0 %v10898
    %11159 = vmatmul.bf16.gmra.mxu0 %v10356
    %v11160 = vpop.f32.mrf.mxu0
    %v11161 = vadd.f32 %v11148, %v11160
    %v11162 = vpop.f32.mrf.mxu0
    %11163 = vdwg.mxu0
    %11164 = vmatpush.bf16.msra.mxu0 %v10928
    %11165 = vmatpush.bf16.msra.mxu0 %v10926
    %11166 = vmatpush.bf16.msra.mxu0 %v10924
    %11167 = vmatpush.bf16.msra.mxu0 %v10922
    %11168 = vmatpush.bf16.msra.mxu0 %v10920
    %11169 = vmatpush.bf16.msra.mxu0 %v10918
    %11170 = vmatpush.bf16.msra.mxu0 %v10916
    %11171 = vmatpush.bf16.msra.mxu0 %v10914
    %11172 = vmatmul.bf16.gmra.mxu0 %v10357
    %v11173 = vpop.f32.mrf.mxu0
    %v11174 = vadd.f32 %v11161, %v11173
    %v11175 = vpop.f32.mrf.mxu0
    %11176 = vdwg.mxu0
    %11177 = vmatpush.bf16.msra.mxu0 %v10944
    %11178 = vmatpush.bf16.msra.mxu0 %v10942
    %11179 = vmatpush.bf16.msra.mxu0 %v10940
    %11180 = vmatpush.bf16.msra.mxu0 %v10938
    %11181 = vmatpush.bf16.msra.mxu0 %v10936
    %11182 = vmatpush.bf16.msra.mxu0 %v10934
    %11183 = vmatpush.bf16.msra.mxu0 %v10932
    %11184 = vmatpush.bf16.msra.mxu0 %v10930
    %11185 = vmatmul.bf16.gmra.mxu0 %v10358
    %v11186 = vpop.f32.mrf.mxu0
    %v11187 = vadd.f32 %v11174, %v11186
    %v11188 = vpop.f32.mrf.mxu0
    %11189 = vdwg.mxu0
    %11190 = vmatpush.bf16.msra.mxu0 %v10960
    %11191 = vmatpush.bf16.msra.mxu0 %v10958
    %11192 = vmatpush.bf16.msra.mxu0 %v10956
    %11193 = vmatpush.bf16.msra.mxu0 %v10954
    %11194 = vmatpush.bf16.msra.mxu0 %v10952
    %11195 = vmatpush.bf16.msra.mxu0 %v10950
    %11196 = vmatpush.bf16.msra.mxu0 %v10948
    %11197 = vmatpush.bf16.msra.mxu0 %v10946
    %11198 = vmatmul.bf16.gmra.mxu0 %v10359
    %v11199 = vpop.f32.mrf.mxu0
    %v11200 = vadd.f32 %v11187, %v11199
    %v11201 = vpop.f32.mrf.mxu0
    %11202 = vdwg.mxu0
    %11203 = vmatpush.bf16.msra.mxu0 %v10976
    %11204 = vmatpush.bf16.msra.mxu0 %v10974
    %11205 = vmatpush.bf16.msra.mxu0 %v10972
    %11206 = vmatpush.bf16.msra.mxu0 %v10970
    %11207 = vmatpush.bf16.msra.mxu0 %v10968
    %11208 = vmatpush.bf16.msra.mxu0 %v10966
    %11209 = vmatpush.bf16.msra.mxu0 %v10964
    %11210 = vmatpush.bf16.msra.mxu0 %v10962
    %11211 = vmatmul.bf16.gmra.mxu0 %v10360
    %v11212 = vpop.f32.mrf.mxu0
    %v11213 = vadd.f32 %v11200, %v11212
    %v11214 = vpop.f32.mrf.mxu0
    %11215 = vdwg.mxu0
    %11216 = vmatpush.bf16.msra.mxu0 %v10992
    %11217 = vmatpush.bf16.msra.mxu0 %v10990
    %11218 = vmatpush.bf16.msra.mxu0 %v10988
    %11219 = vmatpush.bf16.msra.mxu0 %v10986
    %11220 = vmatpush.bf16.msra.mxu0 %v10984
    %11221 = vmatpush.bf16.msra.mxu0 %v10982
    %11222 = vmatpush.bf16.msra.mxu0 %v10980
    %11223 = vmatpush.bf16.msra.mxu0 %v10978
    %11224 = vmatmul.bf16.gmra.mxu0 %v10361
    %v11225 = vpop.f32.mrf.mxu0
    %v11226 = vadd.f32 %v11213, %v11225
    %v11227 = vpop.f32.mrf.mxu0
    %11228 = vdwg.mxu0
    %11229 = vmatpush.bf16.msra.mxu0 %v11008
    %11230 = vmatpush.bf16.msra.mxu0 %v11006
    %11231 = vmatpush.bf16.msra.mxu0 %v11004
    %11232 = vmatpush.bf16.msra.mxu0 %v11002
    %11233 = vmatpush.bf16.msra.mxu0 %v11000
    %11234 = vmatpush.bf16.msra.mxu0 %v10998
    %11235 = vmatpush.bf16.msra.mxu0 %v10996
    %11236 = vmatpush.bf16.msra.mxu0 %v10994
    %11237 = vmatmul.bf16.gmra.mxu0 %v10362
    %v11238 = vpop.f32.mrf.mxu0
    %v11239 = vadd.f32 %v11226, %v11238
    %v11240 = vpop.f32.mrf.mxu0
    %11241 = vdwg.mxu0
    %11242 = vmatpush.bf16.msra.mxu0 %v10897
    %11243 = vmatpush.bf16.msra.mxu0 %v10895
    %11244 = vmatpush.bf16.msra.mxu0 %v10893
    %11245 = vmatpush.bf16.msra.mxu0 %v10891
    %11246 = vmatpush.bf16.msra.mxu0 %v10889
    %11247 = vmatpush.bf16.msra.mxu0 %v10887
    %11248 = vmatpush.bf16.msra.mxu0 %v10885
    %11249 = vmatpush.bf16.msra.mxu0 %v10883
    %11250 = vmatmul.bf16.gmra.mxu0 %v10355
    %v11251 = vpop.f32.mrf.mxu0
    %v11252 = vadd.f32 %v10495, %v11251
    %v11253 = vpop.f32.mrf.mxu0
    %11254 = vdwg.mxu0
    %11255 = vmatpush.bf16.msra.mxu0 %v10913
    %11256 = vmatpush.bf16.msra.mxu0 %v10911
    %11257 = vmatpush.bf16.msra.mxu0 %v10909
    %11258 = vmatpush.bf16.msra.mxu0 %v10907
    %11259 = vmatpush.bf16.msra.mxu0 %v10905
    %11260 = vmatpush.bf16.msra.mxu0 %v10903
    %11261 = vmatpush.bf16.msra.mxu0 %v10901
    %11262 = vmatpush.bf16.msra.mxu0 %v10899
    %11263 = vmatmul.bf16.gmra.mxu0 %v10356
    %v11264 = vpop.f32.mrf.mxu0
    %v11265 = vadd.f32 %v11252, %v11264
    %v11266 = vpop.f32.mrf.mxu0
    %11267 = vdwg.mxu0
    %11268 = vmatpush.bf16.msra.mxu0 %v10929
    %11269 = vmatpush.bf16.msra.mxu0 %v10927
    %11270 = vmatpush.bf16.msra.mxu0 %v10925
    %11271 = vmatpush.bf16.msra.mxu0 %v10923
    %11272 = vmatpush.bf16.msra.mxu0 %v10921
    %11273 = vmatpush.bf16.msra.mxu0 %v10919
    %11274 = vmatpush.bf16.msra.mxu0 %v10917
    %11275 = vmatpush.bf16.msra.mxu0 %v10915
    %11276 = vmatmul.bf16.gmra.mxu0 %v10357
    %v11277 = vpop.f32.mrf.mxu0
    %v11278 = vadd.f32 %v11265, %v11277
    %v11279 = vpop.f32.mrf.mxu0
    %11280 = vdwg.mxu0
    %11281 = vmatpush.bf16.msra.mxu0 %v10945
    %11282 = vmatpush.bf16.msra.mxu0 %v10943
    %11283 = vmatpush.bf16.msra.mxu0 %v10941
    %11284 = vmatpush.bf16.msra.mxu0 %v10939
    %11285 = vmatpush.bf16.msra.mxu0 %v10937
    %11286 = vmatpush.bf16.msra.mxu0 %v10935
    %11287 = vmatpush.bf16.msra.mxu0 %v10933
    %11288 = vmatpush.bf16.msra.mxu0 %v10931
    %11289 = vmatmul.bf16.gmra.mxu0 %v10358
    %v11290 = vpop.f32.mrf.mxu0
    %v11291 = vadd.f32 %v11278, %v11290
    %v11292 = vpop.f32.mrf.mxu0
    %11293 = vdwg.mxu0
    %11294 = vmatpush.bf16.msra.mxu0 %v10961
    %11295 = vmatpush.bf16.msra.mxu0 %v10959
    %11296 = vmatpush.bf16.msra.mxu0 %v10957
    %11297 = vmatpush.bf16.msra.mxu0 %v10955
    %11298 = vmatpush.bf16.msra.mxu0 %v10953
    %11299 = vmatpush.bf16.msra.mxu0 %v10951
    %11300 = vmatpush.bf16.msra.mxu0 %v10949
    %11301 = vmatpush.bf16.msra.mxu0 %v10947
    %11302 = vmatmul.bf16.gmra.mxu0 %v10359
    %v11303 = vpop.f32.mrf.mxu0
    %v11304 = vadd.f32 %v11291, %v11303
    %v11305 = vpop.f32.mrf.mxu0
    %11306 = vdwg.mxu0
    %11307 = vmatpush.bf16.msra.mxu0 %v10977
    %11308 = vmatpush.bf16.msra.mxu0 %v10975
    %11309 = vmatpush.bf16.msra.mxu0 %v10973
    %11310 = vmatpush.bf16.msra.mxu0 %v10971
    %11311 = vmatpush.bf16.msra.mxu0 %v10969
    %11312 = vmatpush.bf16.msra.mxu0 %v10967
    %11313 = vmatpush.bf16.msra.mxu0 %v10965
    %11314 = vmatpush.bf16.msra.mxu0 %v10963
    %11315 = vmatmul.bf16.gmra.mxu0 %v10360
    %v11316 = vpop.f32.mrf.mxu0
    %v11317 = vadd.f32 %v11304, %v11316
    %v11318 = vpop.f32.mrf.mxu0
    %11319 = vdwg.mxu0
    %11320 = vmatpush.bf16.msra.mxu0 %v10993
    %11321 = vmatpush.bf16.msra.mxu0 %v10991
    %11322 = vmatpush.bf16.msra.mxu0 %v10989
    %11323 = vmatpush.bf16.msra.mxu0 %v10987
    %11324 = vmatpush.bf16.msra.mxu0 %v10985
    %11325 = vmatpush.bf16.msra.mxu0 %v10983
    %11326 = vmatpush.bf16.msra.mxu0 %v10981
    %11327 = vmatpush.bf16.msra.mxu0 %v10979
    %11328 = vmatmul.bf16.gmra.mxu0 %v10361
    %v11329 = vpop.f32.mrf.mxu0
    %v11330 = vadd.f32 %v11317, %v11329
    %v11331 = vpop.f32.mrf.mxu0
    %11332 = vdwg.mxu0
    %11333 = vmatpush.bf16.msra.mxu0 %v11009
    %11334 = vmatpush.bf16.msra.mxu0 %v11007
    %11335 = vmatpush.bf16.msra.mxu0 %v11005
    %11336 = vmatpush.bf16.msra.mxu0 %v11003
    %11337 = vmatpush.bf16.msra.mxu0 %v11001
    %11338 = vmatpush.bf16.msra.mxu0 %v10999
    %11339 = vmatpush.bf16.msra.mxu0 %v10997
    %11340 = vmatpush.bf16.msra.mxu0 %v10995
    %11341 = vmatmul.bf16.gmra.mxu0 %v10362
    %v11342 = vpop.f32.mrf.mxu0
    %v11343 = vadd.f32 %v11330, %v11342
    %v11344 = vpop.f32.mrf.mxu0
    %11345 = vdwg.mxu0
    %v11346 = vadd.f32 %v9219, %v11239
    %v11347 = vadd.f32 %v9220, %v11343
    %v11348 = vld [vmem:[#allocation10 + $0x2b] sm:$0x3]
    %v11349 = vld [vmem:[#allocation10 + $0x2d] sm:$0x3]
    %v11350 = vadd.f32 %v11346, %v11347
    %11351 = vadd.xlane.f32.xlu0 %v11350
    %v11352 = vpop.xlane.xlu0 %11351
    %v11353 = vmul.f32 %v11352, %v7100
    %v11354 = vsub.f32 %v11346, %v11353
    %v11355 = vsub.f32 %v11347, %v11353
    %v11356 = vmul.f32 %v11354, %v11354
    %v11357 = vmul.f32 %v11355, %v11355
    %v11358 = vadd.f32 %v11356, %v11357
    %11359 = vadd.xlane.f32.xlu0 %v11358
    %v11360 = vpop.xlane.xlu0 %11359
    %v11361 = vmul.f32 %v11360, %v7100
    %v11362 = vadd.f32 %v11361, 1e-05
    %v11363 = vrsqrt.pop %v11362
    %v11364 = vmul.f32 %v11363, %v11362
    %v11365 = vmul.f32 %v11364, %v11363
    %v11366 = vmul.f32 0.5, %v11365
    %v11367 = vsub.f32 1.5, %v11366
    %v11368 = vmul.f32 %v11363, %v11367
    %vm11369 = vweird.f32 %v11362
    %vm11370 = vweird.f32 %v11363
    %vm11371 = vmor %vm11369, %vm11370
    %v11372 = vsel %vm11371, %v11363, %v11368
    %v11373 = vmul.f32 %v11354, %v11372
    %v11374 = vmul.f32 %v11355, %v11372
    %v11376 = vperm.slane %v11348, 0
    %v11377 = vperm.slane %v11348, 1
    %v11380 = vmul.f32 %v11373, %v11376
    %v11381 = vmul.f32 %v11374, %v11377
    %v11383 = vperm.slane %v11349, 0
    %v11384 = vperm.slane %v11349, 1
    %v11387 = vadd.f32 %v11380, %v11383
    %v11388 = vadd.f32 %v11381, %v11384
    %v11389 = vpack.c.bf16 %v11387, %v11387
    %v11390 = vpack.c.bf16 %v11388, %v11388
    %s11391 = scalar_lea.vmem [#allocation22], 2048
    %v11392 = vld [vmem:[%s11391] sm:$0xff]
    %v11393 = vld [vmem:[%s11391 + $0x8] sm:$0xff]
    %v11394 = vld [vmem:[%s11391 + $0x10] sm:$0xff]
    %v11395 = vld [vmem:[%s11391 + $0x18] sm:$0xff]
    %v11396 = vld [vmem:[%s11391 + $0x20] sm:$0xff]
    %v11397 = vld [vmem:[%s11391 + $0x28] sm:$0xff]
    %v11398 = vld [vmem:[%s11391 + $0x30] sm:$0xff]
    %v11399 = vld [vmem:[%s11391 + $0x38] sm:$0xff]
    %v11400 = vld [vmem:[%s11391 + $0x40] sm:$0xff]
    %v11401 = vld [vmem:[%s11391 + $0x48] sm:$0xff]
    %v11402 = vld [vmem:[%s11391 + $0x50] sm:$0xff]
    %v11403 = vld [vmem:[%s11391 + $0x58] sm:$0xff]
    %v11404 = vld [vmem:[%s11391 + $0x60] sm:$0xff]
    %v11405 = vld [vmem:[%s11391 + $0x68] sm:$0xff]
    %v11406 = vld [vmem:[%s11391 + $0x70] sm:$0xff]
    %v11407 = vld [vmem:[%s11391 + $0x78] sm:$0xff]
    %v11408 = vld [vmem:[%s11391 + $0x80] sm:$0xff]
    %v11409 = vld [vmem:[%s11391 + $0x88] sm:$0xff]
    %v11410 = vld [vmem:[%s11391 + $0x90] sm:$0xff]
    %v11411 = vld [vmem:[%s11391 + $0x98] sm:$0xff]
    %v11412 = vld [vmem:[%s11391 + $0xa0] sm:$0xff]
    %v11413 = vld [vmem:[%s11391 + $0xa8] sm:$0xff]
    %v11414 = vld [vmem:[%s11391 + $0xb0] sm:$0xff]
    %v11415 = vld [vmem:[%s11391 + $0xb8] sm:$0xff]
    %v11416 = vld [vmem:[%s11391 + $0xc0] sm:$0xff]
    %v11417 = vld [vmem:[%s11391 + $0xc8] sm:$0xff]
    %v11418 = vld [vmem:[%s11391 + $0xd0] sm:$0xff]
    %v11419 = vld [vmem:[%s11391 + $0xd8] sm:$0xff]
    %v11420 = vld [vmem:[%s11391 + $0xe0] sm:$0xff]
    %v11421 = vld [vmem:[%s11391 + $0xe8] sm:$0xff]
    %v11422 = vld [vmem:[%s11391 + $0xf0] sm:$0xff]
    %v11423 = vld [vmem:[%s11391 + $0xf8] sm:$0xff]
    %v11424 = vld [vmem:[%s11391 + $0x100] sm:$0xff]
    %v11425 = vld [vmem:[%s11391 + $0x108] sm:$0xff]
    %v11426 = vld [vmem:[%s11391 + $0x110] sm:$0xff]
    %v11427 = vld [vmem:[%s11391 + $0x118] sm:$0xff]
    %v11428 = vld [vmem:[%s11391 + $0x120] sm:$0xff]
    %v11429 = vld [vmem:[%s11391 + $0x128] sm:$0xff]
    %v11430 = vld [vmem:[%s11391 + $0x130] sm:$0xff]
    %v11431 = vld [vmem:[%s11391 + $0x138] sm:$0xff]
    %v11432 = vld [vmem:[%s11391 + $0x140] sm:$0xff]
    %v11433 = vld [vmem:[%s11391 + $0x148] sm:$0xff]
    %v11434 = vld [vmem:[%s11391 + $0x150] sm:$0xff]
    %v11435 = vld [vmem:[%s11391 + $0x158] sm:$0xff]
    %v11436 = vld [vmem:[%s11391 + $0x160] sm:$0xff]
    %v11437 = vld [vmem:[%s11391 + $0x168] sm:$0xff]
    %v11438 = vld [vmem:[%s11391 + $0x170] sm:$0xff]
    %v11439 = vld [vmem:[%s11391 + $0x178] sm:$0xff]
    %v11440 = vld [vmem:[%s11391 + $0x180] sm:$0xff]
    %v11441 = vld [vmem:[%s11391 + $0x188] sm:$0xff]
    %v11442 = vld [vmem:[%s11391 + $0x190] sm:$0xff]
    %v11443 = vld [vmem:[%s11391 + $0x198] sm:$0xff]
    %v11444 = vld [vmem:[%s11391 + $0x1a0] sm:$0xff]
    %v11445 = vld [vmem:[%s11391 + $0x1a8] sm:$0xff]
    %v11446 = vld [vmem:[%s11391 + $0x1b0] sm:$0xff]
    %v11447 = vld [vmem:[%s11391 + $0x1b8] sm:$0xff]
    %v11448 = vld [vmem:[%s11391 + $0x1c0] sm:$0xff]
    %v11449 = vld [vmem:[%s11391 + $0x1c8] sm:$0xff]
    %v11450 = vld [vmem:[%s11391 + $0x1d0] sm:$0xff]
    %v11451 = vld [vmem:[%s11391 + $0x1d8] sm:$0xff]
    %v11452 = vld [vmem:[%s11391 + $0x1e0] sm:$0xff]
    %v11453 = vld [vmem:[%s11391 + $0x1e8] sm:$0xff]
    %v11454 = vld [vmem:[%s11391 + $0x1f0] sm:$0xff]
    %v11455 = vld [vmem:[%s11391 + $0x1f8] sm:$0xff]
    %v11456 = vld [vmem:[%s11391 + $0x200] sm:$0xff]
    %v11457 = vld [vmem:[%s11391 + $0x208] sm:$0xff]
    %v11458 = vld [vmem:[%s11391 + $0x210] sm:$0xff]
    %v11459 = vld [vmem:[%s11391 + $0x218] sm:$0xff]
    %v11460 = vld [vmem:[%s11391 + $0x220] sm:$0xff]
    %v11461 = vld [vmem:[%s11391 + $0x228] sm:$0xff]
    %v11462 = vld [vmem:[%s11391 + $0x230] sm:$0xff]
    %v11463 = vld [vmem:[%s11391 + $0x238] sm:$0xff]
    %v11464 = vld [vmem:[%s11391 + $0x240] sm:$0xff]
    %v11465 = vld [vmem:[%s11391 + $0x248] sm:$0xff]
    %v11466 = vld [vmem:[%s11391 + $0x250] sm:$0xff]
    %v11467 = vld [vmem:[%s11391 + $0x258] sm:$0xff]
    %v11468 = vld [vmem:[%s11391 + $0x260] sm:$0xff]
    %v11469 = vld [vmem:[%s11391 + $0x268] sm:$0xff]
    %v11470 = vld [vmem:[%s11391 + $0x270] sm:$0xff]
    %v11471 = vld [vmem:[%s11391 + $0x278] sm:$0xff]
    %v11472 = vld [vmem:[%s11391 + $0x280] sm:$0xff]
    %v11473 = vld [vmem:[%s11391 + $0x288] sm:$0xff]
    %v11474 = vld [vmem:[%s11391 + $0x290] sm:$0xff]
    %v11475 = vld [vmem:[%s11391 + $0x298] sm:$0xff]
    %v11476 = vld [vmem:[%s11391 + $0x2a0] sm:$0xff]
    %v11477 = vld [vmem:[%s11391 + $0x2a8] sm:$0xff]
    %v11478 = vld [vmem:[%s11391 + $0x2b0] sm:$0xff]
    %v11479 = vld [vmem:[%s11391 + $0x2b8] sm:$0xff]
    %v11480 = vld [vmem:[%s11391 + $0x2c0] sm:$0xff]
    %v11481 = vld [vmem:[%s11391 + $0x2c8] sm:$0xff]
    %v11482 = vld [vmem:[%s11391 + $0x2d0] sm:$0xff]
    %v11483 = vld [vmem:[%s11391 + $0x2d8] sm:$0xff]
    %v11484 = vld [vmem:[%s11391 + $0x2e0] sm:$0xff]
    %v11485 = vld [vmem:[%s11391 + $0x2e8] sm:$0xff]
    %v11486 = vld [vmem:[%s11391 + $0x2f0] sm:$0xff]
    %v11487 = vld [vmem:[%s11391 + $0x2f8] sm:$0xff]
    %v11488 = vld [vmem:[%s11391 + $0x300] sm:$0xff]
    %v11489 = vld [vmem:[%s11391 + $0x308] sm:$0xff]
    %v11490 = vld [vmem:[%s11391 + $0x310] sm:$0xff]
    %v11491 = vld [vmem:[%s11391 + $0x318] sm:$0xff]
    %v11492 = vld [vmem:[%s11391 + $0x320] sm:$0xff]
    %v11493 = vld [vmem:[%s11391 + $0x328] sm:$0xff]
    %v11494 = vld [vmem:[%s11391 + $0x330] sm:$0xff]
    %v11495 = vld [vmem:[%s11391 + $0x338] sm:$0xff]
    %v11496 = vld [vmem:[%s11391 + $0x340] sm:$0xff]
    %v11497 = vld [vmem:[%s11391 + $0x348] sm:$0xff]
    %v11498 = vld [vmem:[%s11391 + $0x350] sm:$0xff]
    %v11499 = vld [vmem:[%s11391 + $0x358] sm:$0xff]
    %v11500 = vld [vmem:[%s11391 + $0x360] sm:$0xff]
    %v11501 = vld [vmem:[%s11391 + $0x368] sm:$0xff]
    %v11502 = vld [vmem:[%s11391 + $0x370] sm:$0xff]
    %v11503 = vld [vmem:[%s11391 + $0x378] sm:$0xff]
    %v11504 = vld [vmem:[%s11391 + $0x380] sm:$0xff]
    %v11505 = vld [vmem:[%s11391 + $0x388] sm:$0xff]
    %v11506 = vld [vmem:[%s11391 + $0x390] sm:$0xff]
    %v11507 = vld [vmem:[%s11391 + $0x398] sm:$0xff]
    %v11508 = vld [vmem:[%s11391 + $0x3a0] sm:$0xff]
    %v11509 = vld [vmem:[%s11391 + $0x3a8] sm:$0xff]
    %v11510 = vld [vmem:[%s11391 + $0x3b0] sm:$0xff]
    %v11511 = vld [vmem:[%s11391 + $0x3b8] sm:$0xff]
    %v11512 = vld [vmem:[%s11391 + $0x3c0] sm:$0xff]
    %v11513 = vld [vmem:[%s11391 + $0x3c8] sm:$0xff]
    %v11514 = vld [vmem:[%s11391 + $0x3d0] sm:$0xff]
    %v11515 = vld [vmem:[%s11391 + $0x3d8] sm:$0xff]
    %v11516 = vld [vmem:[%s11391 + $0x3e0] sm:$0xff]
    %v11517 = vld [vmem:[%s11391 + $0x3e8] sm:$0xff]
    %v11518 = vld [vmem:[%s11391 + $0x3f0] sm:$0xff]
    %v11519 = vld [vmem:[%s11391 + $0x3f8] sm:$0xff]
    %v11520 = vld [vmem:[#allocation10 + $0x2f] sm:$0xff]
    %v11522 = vperm.slane %v11520, 0
    %v11523 = vperm.slane %v11520, 1
    %v11524 = vperm.slane %v11520, 2
    %v11525 = vperm.slane %v11520, 3
    %v11526 = vperm.slane %v11520, 4
    %v11527 = vperm.slane %v11520, 5
    %v11528 = vperm.slane %v11520, 6
    %v11529 = vperm.slane %v11520, 7
    %v11666 = vunpack.c.l.b16 %v11392
    %v11667 = vunpack.c.h.b16 %v11392
    %v11668 = vunpack.c.l.b16 %v11393
    %v11669 = vunpack.c.h.b16 %v11393
    %v11670 = vunpack.c.l.b16 %v11394
    %v11671 = vunpack.c.h.b16 %v11394
    %v11672 = vunpack.c.l.b16 %v11395
    %v11673 = vunpack.c.h.b16 %v11395
    %v11674 = vunpack.c.l.b16 %v11396
    %v11675 = vunpack.c.h.b16 %v11396
    %v11676 = vunpack.c.l.b16 %v11397
    %v11677 = vunpack.c.h.b16 %v11397
    %v11678 = vunpack.c.l.b16 %v11398
    %v11679 = vunpack.c.h.b16 %v11398
    %v11680 = vunpack.c.l.b16 %v11399
    %v11681 = vunpack.c.h.b16 %v11399
    %v11682 = vunpack.c.l.b16 %v11400
    %v11683 = vunpack.c.h.b16 %v11400
    %v11684 = vunpack.c.l.b16 %v11401
    %v11685 = vunpack.c.h.b16 %v11401
    %v11686 = vunpack.c.l.b16 %v11402
    %v11687 = vunpack.c.h.b16 %v11402
    %v11688 = vunpack.c.l.b16 %v11403
    %v11689 = vunpack.c.h.b16 %v11403
    %v11690 = vunpack.c.l.b16 %v11404
    %v11691 = vunpack.c.h.b16 %v11404
    %v11692 = vunpack.c.l.b16 %v11405
    %v11693 = vunpack.c.h.b16 %v11405
    %v11694 = vunpack.c.l.b16 %v11406
    %v11695 = vunpack.c.h.b16 %v11406
    %v11696 = vunpack.c.l.b16 %v11407
    %v11697 = vunpack.c.h.b16 %v11407
    %v11698 = vunpack.c.l.b16 %v11408
    %v11699 = vunpack.c.h.b16 %v11408
    %v11700 = vunpack.c.l.b16 %v11409
    %v11701 = vunpack.c.h.b16 %v11409
    %v11702 = vunpack.c.l.b16 %v11410
    %v11703 = vunpack.c.h.b16 %v11410
    %v11704 = vunpack.c.l.b16 %v11411
    %v11705 = vunpack.c.h.b16 %v11411
    %v11706 = vunpack.c.l.b16 %v11412
    %v11707 = vunpack.c.h.b16 %v11412
    %v11708 = vunpack.c.l.b16 %v11413
    %v11709 = vunpack.c.h.b16 %v11413
    %v11710 = vunpack.c.l.b16 %v11414
    %v11711 = vunpack.c.h.b16 %v11414
    %v11712 = vunpack.c.l.b16 %v11415
    %v11713 = vunpack.c.h.b16 %v11415
    %v11714 = vunpack.c.l.b16 %v11416
    %v11715 = vunpack.c.h.b16 %v11416
    %v11716 = vunpack.c.l.b16 %v11417
    %v11717 = vunpack.c.h.b16 %v11417
    %v11718 = vunpack.c.l.b16 %v11418
    %v11719 = vunpack.c.h.b16 %v11418
    %v11720 = vunpack.c.l.b16 %v11419
    %v11721 = vunpack.c.h.b16 %v11419
    %v11722 = vunpack.c.l.b16 %v11420
    %v11723 = vunpack.c.h.b16 %v11420
    %v11724 = vunpack.c.l.b16 %v11421
    %v11725 = vunpack.c.h.b16 %v11421
    %v11726 = vunpack.c.l.b16 %v11422
    %v11727 = vunpack.c.h.b16 %v11422
    %v11728 = vunpack.c.l.b16 %v11423
    %v11729 = vunpack.c.h.b16 %v11423
    %v11730 = vunpack.c.l.b16 %v11424
    %v11731 = vunpack.c.h.b16 %v11424
    %v11732 = vunpack.c.l.b16 %v11425
    %v11733 = vunpack.c.h.b16 %v11425
    %v11734 = vunpack.c.l.b16 %v11426
    %v11735 = vunpack.c.h.b16 %v11426
    %v11736 = vunpack.c.l.b16 %v11427
    %v11737 = vunpack.c.h.b16 %v11427
    %v11738 = vunpack.c.l.b16 %v11428
    %v11739 = vunpack.c.h.b16 %v11428
    %v11740 = vunpack.c.l.b16 %v11429
    %v11741 = vunpack.c.h.b16 %v11429
    %v11742 = vunpack.c.l.b16 %v11430
    %v11743 = vunpack.c.h.b16 %v11430
    %v11744 = vunpack.c.l.b16 %v11431
    %v11745 = vunpack.c.h.b16 %v11431
    %v11746 = vunpack.c.l.b16 %v11432
    %v11747 = vunpack.c.h.b16 %v11432
    %v11748 = vunpack.c.l.b16 %v11433
    %v11749 = vunpack.c.h.b16 %v11433
    %v11750 = vunpack.c.l.b16 %v11434
    %v11751 = vunpack.c.h.b16 %v11434
    %v11752 = vunpack.c.l.b16 %v11435
    %v11753 = vunpack.c.h.b16 %v11435
    %v11754 = vunpack.c.l.b16 %v11436
    %v11755 = vunpack.c.h.b16 %v11436
    %v11756 = vunpack.c.l.b16 %v11437
    %v11757 = vunpack.c.h.b16 %v11437
    %v11758 = vunpack.c.l.b16 %v11438
    %v11759 = vunpack.c.h.b16 %v11438
    %v11760 = vunpack.c.l.b16 %v11439
    %v11761 = vunpack.c.h.b16 %v11439
    %v11762 = vunpack.c.l.b16 %v11440
    %v11763 = vunpack.c.h.b16 %v11440
    %v11764 = vunpack.c.l.b16 %v11441
    %v11765 = vunpack.c.h.b16 %v11441
    %v11766 = vunpack.c.l.b16 %v11442
    %v11767 = vunpack.c.h.b16 %v11442
    %v11768 = vunpack.c.l.b16 %v11443
    %v11769 = vunpack.c.h.b16 %v11443
    %v11770 = vunpack.c.l.b16 %v11444
    %v11771 = vunpack.c.h.b16 %v11444
    %v11772 = vunpack.c.l.b16 %v11445
    %v11773 = vunpack.c.h.b16 %v11445
    %v11774 = vunpack.c.l.b16 %v11446
    %v11775 = vunpack.c.h.b16 %v11446
    %v11776 = vunpack.c.l.b16 %v11447
    %v11777 = vunpack.c.h.b16 %v11447
    %v11778 = vunpack.c.l.b16 %v11448
    %v11779 = vunpack.c.h.b16 %v11448
    %v11780 = vunpack.c.l.b16 %v11449
    %v11781 = vunpack.c.h.b16 %v11449
    %v11782 = vunpack.c.l.b16 %v11450
    %v11783 = vunpack.c.h.b16 %v11450
    %v11784 = vunpack.c.l.b16 %v11451
    %v11785 = vunpack.c.h.b16 %v11451
    %v11786 = vunpack.c.l.b16 %v11452
    %v11787 = vunpack.c.h.b16 %v11452
    %v11788 = vunpack.c.l.b16 %v11453
    %v11789 = vunpack.c.h.b16 %v11453
    %v11790 = vunpack.c.l.b16 %v11454
    %v11791 = vunpack.c.h.b16 %v11454
    %v11792 = vunpack.c.l.b16 %v11455
    %v11793 = vunpack.c.h.b16 %v11455
    %v11794 = vunpack.c.l.b16 %v11456
    %v11795 = vunpack.c.h.b16 %v11456
    %v11796 = vunpack.c.l.b16 %v11457
    %v11797 = vunpack.c.h.b16 %v11457
    %v11798 = vunpack.c.l.b16 %v11458
    %v11799 = vunpack.c.h.b16 %v11458
    %v11800 = vunpack.c.l.b16 %v11459
    %v11801 = vunpack.c.h.b16 %v11459
    %v11802 = vunpack.c.l.b16 %v11460
    %v11803 = vunpack.c.h.b16 %v11460
    %v11804 = vunpack.c.l.b16 %v11461
    %v11805 = vunpack.c.h.b16 %v11461
    %v11806 = vunpack.c.l.b16 %v11462
    %v11807 = vunpack.c.h.b16 %v11462
    %v11808 = vunpack.c.l.b16 %v11463
    %v11809 = vunpack.c.h.b16 %v11463
    %v11810 = vunpack.c.l.b16 %v11464
    %v11811 = vunpack.c.h.b16 %v11464
    %v11812 = vunpack.c.l.b16 %v11465
    %v11813 = vunpack.c.h.b16 %v11465
    %v11814 = vunpack.c.l.b16 %v11466
    %v11815 = vunpack.c.h.b16 %v11466
    %v11816 = vunpack.c.l.b16 %v11467
    %v11817 = vunpack.c.h.b16 %v11467
    %v11818 = vunpack.c.l.b16 %v11468
    %v11819 = vunpack.c.h.b16 %v11468
    %v11820 = vunpack.c.l.b16 %v11469
    %v11821 = vunpack.c.h.b16 %v11469
    %v11822 = vunpack.c.l.b16 %v11470
    %v11823 = vunpack.c.h.b16 %v11470
    %v11824 = vunpack.c.l.b16 %v11471
    %v11825 = vunpack.c.h.b16 %v11471
    %v11826 = vunpack.c.l.b16 %v11472
    %v11827 = vunpack.c.h.b16 %v11472
    %v11828 = vunpack.c.l.b16 %v11473
    %v11829 = vunpack.c.h.b16 %v11473
    %v11830 = vunpack.c.l.b16 %v11474
    %v11831 = vunpack.c.h.b16 %v11474
    %v11832 = vunpack.c.l.b16 %v11475
    %v11833 = vunpack.c.h.b16 %v11475
    %v11834 = vunpack.c.l.b16 %v11476
    %v11835 = vunpack.c.h.b16 %v11476
    %v11836 = vunpack.c.l.b16 %v11477
    %v11837 = vunpack.c.h.b16 %v11477
    %v11838 = vunpack.c.l.b16 %v11478
    %v11839 = vunpack.c.h.b16 %v11478
    %v11840 = vunpack.c.l.b16 %v11479
    %v11841 = vunpack.c.h.b16 %v11479
    %v11842 = vunpack.c.l.b16 %v11480
    %v11843 = vunpack.c.h.b16 %v11480
    %v11844 = vunpack.c.l.b16 %v11481
    %v11845 = vunpack.c.h.b16 %v11481
    %v11846 = vunpack.c.l.b16 %v11482
    %v11847 = vunpack.c.h.b16 %v11482
    %v11848 = vunpack.c.l.b16 %v11483
    %v11849 = vunpack.c.h.b16 %v11483
    %v11850 = vunpack.c.l.b16 %v11484
    %v11851 = vunpack.c.h.b16 %v11484
    %v11852 = vunpack.c.l.b16 %v11485
    %v11853 = vunpack.c.h.b16 %v11485
    %v11854 = vunpack.c.l.b16 %v11486
    %v11855 = vunpack.c.h.b16 %v11486
    %v11856 = vunpack.c.l.b16 %v11487
    %v11857 = vunpack.c.h.b16 %v11487
    %v11858 = vunpack.c.l.b16 %v11488
    %v11859 = vunpack.c.h.b16 %v11488
    %v11860 = vunpack.c.l.b16 %v11489
    %v11861 = vunpack.c.h.b16 %v11489
    %v11862 = vunpack.c.l.b16 %v11490
    %v11863 = vunpack.c.h.b16 %v11490
    %v11864 = vunpack.c.l.b16 %v11491
    %v11865 = vunpack.c.h.b16 %v11491
    %v11866 = vunpack.c.l.b16 %v11492
    %v11867 = vunpack.c.h.b16 %v11492
    %v11868 = vunpack.c.l.b16 %v11493
    %v11869 = vunpack.c.h.b16 %v11493
    %v11870 = vunpack.c.l.b16 %v11494
    %v11871 = vunpack.c.h.b16 %v11494
    %v11872 = vunpack.c.l.b16 %v11495
    %v11873 = vunpack.c.h.b16 %v11495
    %v11874 = vunpack.c.l.b16 %v11496
    %v11875 = vunpack.c.h.b16 %v11496
    %v11876 = vunpack.c.l.b16 %v11497
    %v11877 = vunpack.c.h.b16 %v11497
    %v11878 = vunpack.c.l.b16 %v11498
    %v11879 = vunpack.c.h.b16 %v11498
    %v11880 = vunpack.c.l.b16 %v11499
    %v11881 = vunpack.c.h.b16 %v11499
    %v11882 = vunpack.c.l.b16 %v11500
    %v11883 = vunpack.c.h.b16 %v11500
    %v11884 = vunpack.c.l.b16 %v11501
    %v11885 = vunpack.c.h.b16 %v11501
    %v11886 = vunpack.c.l.b16 %v11502
    %v11887 = vunpack.c.h.b16 %v11502
    %v11888 = vunpack.c.l.b16 %v11503
    %v11889 = vunpack.c.h.b16 %v11503
    %v11890 = vunpack.c.l.b16 %v11504
    %v11891 = vunpack.c.h.b16 %v11504
    %v11892 = vunpack.c.l.b16 %v11505
    %v11893 = vunpack.c.h.b16 %v11505
    %v11894 = vunpack.c.l.b16 %v11506
    %v11895 = vunpack.c.h.b16 %v11506
    %v11896 = vunpack.c.l.b16 %v11507
    %v11897 = vunpack.c.h.b16 %v11507
    %v11898 = vunpack.c.l.b16 %v11508
    %v11899 = vunpack.c.h.b16 %v11508
    %v11900 = vunpack.c.l.b16 %v11509
    %v11901 = vunpack.c.h.b16 %v11509
    %v11902 = vunpack.c.l.b16 %v11510
    %v11903 = vunpack.c.h.b16 %v11510
    %v11904 = vunpack.c.l.b16 %v11511
    %v11905 = vunpack.c.h.b16 %v11511
    %v11906 = vunpack.c.l.b16 %v11512
    %v11907 = vunpack.c.h.b16 %v11512
    %v11908 = vunpack.c.l.b16 %v11513
    %v11909 = vunpack.c.h.b16 %v11513
    %v11910 = vunpack.c.l.b16 %v11514
    %v11911 = vunpack.c.h.b16 %v11514
    %v11912 = vunpack.c.l.b16 %v11515
    %v11913 = vunpack.c.h.b16 %v11515
    %v11914 = vunpack.c.l.b16 %v11516
    %v11915 = vunpack.c.h.b16 %v11516
    %v11916 = vunpack.c.l.b16 %v11517
    %v11917 = vunpack.c.h.b16 %v11517
    %v11918 = vunpack.c.l.b16 %v11518
    %v11919 = vunpack.c.h.b16 %v11518
    %v11920 = vunpack.c.l.b16 %v11519
    %v11921 = vunpack.c.h.b16 %v11519
    %v11922 = vpack.c.b16 %v11674, %v11666
    %v11923 = vpack.c.b16 %v11675, %v11667
    %v11924 = vpack.c.b16 %v11676, %v11668
    %v11925 = vpack.c.b16 %v11677, %v11669
    %v11926 = vpack.c.b16 %v11678, %v11670
    %v11927 = vpack.c.b16 %v11679, %v11671
    %v11928 = vpack.c.b16 %v11680, %v11672
    %v11929 = vpack.c.b16 %v11681, %v11673
    %v11930 = vpack.c.b16 %v11690, %v11682
    %v11931 = vpack.c.b16 %v11691, %v11683
    %v11932 = vpack.c.b16 %v11692, %v11684
    %v11933 = vpack.c.b16 %v11693, %v11685
    %v11934 = vpack.c.b16 %v11694, %v11686
    %v11935 = vpack.c.b16 %v11695, %v11687
    %v11936 = vpack.c.b16 %v11696, %v11688
    %v11937 = vpack.c.b16 %v11697, %v11689
    %v11938 = vpack.c.b16 %v11706, %v11698
    %v11939 = vpack.c.b16 %v11707, %v11699
    %v11940 = vpack.c.b16 %v11708, %v11700
    %v11941 = vpack.c.b16 %v11709, %v11701
    %v11942 = vpack.c.b16 %v11710, %v11702
    %v11943 = vpack.c.b16 %v11711, %v11703
    %v11944 = vpack.c.b16 %v11712, %v11704
    %v11945 = vpack.c.b16 %v11713, %v11705
    %v11946 = vpack.c.b16 %v11722, %v11714
    %v11947 = vpack.c.b16 %v11723, %v11715
    %v11948 = vpack.c.b16 %v11724, %v11716
    %v11949 = vpack.c.b16 %v11725, %v11717
    %v11950 = vpack.c.b16 %v11726, %v11718
    %v11951 = vpack.c.b16 %v11727, %v11719
    %v11952 = vpack.c.b16 %v11728, %v11720
    %v11953 = vpack.c.b16 %v11729, %v11721
    %v11954 = vpack.c.b16 %v11738, %v11730
    %v11955 = vpack.c.b16 %v11739, %v11731
    %v11956 = vpack.c.b16 %v11740, %v11732
    %v11957 = vpack.c.b16 %v11741, %v11733
    %v11958 = vpack.c.b16 %v11742, %v11734
    %v11959 = vpack.c.b16 %v11743, %v11735
    %v11960 = vpack.c.b16 %v11744, %v11736
    %v11961 = vpack.c.b16 %v11745, %v11737
    %v11962 = vpack.c.b16 %v11754, %v11746
    %v11963 = vpack.c.b16 %v11755, %v11747
    %v11964 = vpack.c.b16 %v11756, %v11748
    %v11965 = vpack.c.b16 %v11757, %v11749
    %v11966 = vpack.c.b16 %v11758, %v11750
    %v11967 = vpack.c.b16 %v11759, %v11751
    %v11968 = vpack.c.b16 %v11760, %v11752
    %v11969 = vpack.c.b16 %v11761, %v11753
    %v11970 = vpack.c.b16 %v11770, %v11762
    %v11971 = vpack.c.b16 %v11771, %v11763
    %v11972 = vpack.c.b16 %v11772, %v11764
    %v11973 = vpack.c.b16 %v11773, %v11765
    %v11974 = vpack.c.b16 %v11774, %v11766
    %v11975 = vpack.c.b16 %v11775, %v11767
    %v11976 = vpack.c.b16 %v11776, %v11768
    %v11977 = vpack.c.b16 %v11777, %v11769
    %v11978 = vpack.c.b16 %v11786, %v11778
    %v11979 = vpack.c.b16 %v11787, %v11779
    %v11980 = vpack.c.b16 %v11788, %v11780
    %v11981 = vpack.c.b16 %v11789, %v11781
    %v11982 = vpack.c.b16 %v11790, %v11782
    %v11983 = vpack.c.b16 %v11791, %v11783
    %v11984 = vpack.c.b16 %v11792, %v11784
    %v11985 = vpack.c.b16 %v11793, %v11785
    %v11986 = vpack.c.b16 %v11802, %v11794
    %v11987 = vpack.c.b16 %v11803, %v11795
    %v11988 = vpack.c.b16 %v11804, %v11796
    %v11989 = vpack.c.b16 %v11805, %v11797
    %v11990 = vpack.c.b16 %v11806, %v11798
    %v11991 = vpack.c.b16 %v11807, %v11799
    %v11992 = vpack.c.b16 %v11808, %v11800
    %v11993 = vpack.c.b16 %v11809, %v11801
    %v11994 = vpack.c.b16 %v11818, %v11810
    %v11995 = vpack.c.b16 %v11819, %v11811
    %v11996 = vpack.c.b16 %v11820, %v11812
    %v11997 = vpack.c.b16 %v11821, %v11813
    %v11998 = vpack.c.b16 %v11822, %v11814
    %v11999 = vpack.c.b16 %v11823, %v11815
    %v12000 = vpack.c.b16 %v11824, %v11816
    %v12001 = vpack.c.b16 %v11825, %v11817
    %v12002 = vpack.c.b16 %v11834, %v11826
    %v12003 = vpack.c.b16 %v11835, %v11827
    %v12004 = vpack.c.b16 %v11836, %v11828
    %v12005 = vpack.c.b16 %v11837, %v11829
    %v12006 = vpack.c.b16 %v11838, %v11830
    %v12007 = vpack.c.b16 %v11839, %v11831
    %v12008 = vpack.c.b16 %v11840, %v11832
    %v12009 = vpack.c.b16 %v11841, %v11833
    %v12010 = vpack.c.b16 %v11850, %v11842
    %v12011 = vpack.c.b16 %v11851, %v11843
    %v12012 = vpack.c.b16 %v11852, %v11844
    %v12013 = vpack.c.b16 %v11853, %v11845
    %v12014 = vpack.c.b16 %v11854, %v11846
    %v12015 = vpack.c.b16 %v11855, %v11847
    %v12016 = vpack.c.b16 %v11856, %v11848
    %v12017 = vpack.c.b16 %v11857, %v11849
    %v12018 = vpack.c.b16 %v11866, %v11858
    %v12019 = vpack.c.b16 %v11867, %v11859
    %v12020 = vpack.c.b16 %v11868, %v11860
    %v12021 = vpack.c.b16 %v11869, %v11861
    %v12022 = vpack.c.b16 %v11870, %v11862
    %v12023 = vpack.c.b16 %v11871, %v11863
    %v12024 = vpack.c.b16 %v11872, %v11864
    %v12025 = vpack.c.b16 %v11873, %v11865
    %v12026 = vpack.c.b16 %v11882, %v11874
    %v12027 = vpack.c.b16 %v11883, %v11875
    %v12028 = vpack.c.b16 %v11884, %v11876
    %v12029 = vpack.c.b16 %v11885, %v11877
    %v12030 = vpack.c.b16 %v11886, %v11878
    %v12031 = vpack.c.b16 %v11887, %v11879
    %v12032 = vpack.c.b16 %v11888, %v11880
    %v12033 = vpack.c.b16 %v11889, %v11881
    %v12034 = vpack.c.b16 %v11898, %v11890
    %v12035 = vpack.c.b16 %v11899, %v11891
    %v12036 = vpack.c.b16 %v11900, %v11892
    %v12037 = vpack.c.b16 %v11901, %v11893
    %v12038 = vpack.c.b16 %v11902, %v11894
    %v12039 = vpack.c.b16 %v11903, %v11895
    %v12040 = vpack.c.b16 %v11904, %v11896
    %v12041 = vpack.c.b16 %v11905, %v11897
    %v12042 = vpack.c.b16 %v11914, %v11906
    %v12043 = vpack.c.b16 %v11915, %v11907
    %v12044 = vpack.c.b16 %v11916, %v11908
    %v12045 = vpack.c.b16 %v11917, %v11909
    %v12046 = vpack.c.b16 %v11918, %v11910
    %v12047 = vpack.c.b16 %v11919, %v11911
    %v12048 = vpack.c.b16 %v11920, %v11912
    %v12049 = vpack.c.b16 %v11921, %v11913
    %12178 = vmatpush.bf16.msra.mxu0 %v11978
    %12179 = vmatpush.bf16.msra.mxu0 %v11970
    %12180 = vmatpush.bf16.msra.mxu0 %v11962
    %12181 = vmatpush.bf16.msra.mxu0 %v11954
    %12182 = vmatpush.bf16.msra.mxu0 %v11946
    %12183 = vmatpush.bf16.msra.mxu0 %v11938
    %12184 = vmatpush.bf16.msra.mxu0 %v11930
    %12185 = vmatpush.bf16.msra.mxu0 %v11922
    %12186 = vmatmul.bf16.gmra.mxu0 %v11389
    %v12187 = vpop.f32.mrf.mxu0
    %v12188 = vadd.f32 %v11522, %v12187
    %v12189 = vpop.f32.mrf.mxu0
    %12190 = vdwg.mxu0
    %12191 = vmatpush.bf16.msra.mxu0 %v12042
    %12192 = vmatpush.bf16.msra.mxu0 %v12034
    %12193 = vmatpush.bf16.msra.mxu0 %v12026
    %12194 = vmatpush.bf16.msra.mxu0 %v12018
    %12195 = vmatpush.bf16.msra.mxu0 %v12010
    %12196 = vmatpush.bf16.msra.mxu0 %v12002
    %12197 = vmatpush.bf16.msra.mxu0 %v11994
    %12198 = vmatpush.bf16.msra.mxu0 %v11986
    %12199 = vmatmul.bf16.gmra.mxu0 %v11390
    %v12200 = vpop.f32.mrf.mxu0
    %v12201 = vadd.f32 %v12188, %v12200
    %v12202 = vpop.f32.mrf.mxu0
    %12203 = vdwg.mxu0
    %12204 = vmatpush.bf16.msra.mxu0 %v11979
    %12205 = vmatpush.bf16.msra.mxu0 %v11971
    %12206 = vmatpush.bf16.msra.mxu0 %v11963
    %12207 = vmatpush.bf16.msra.mxu0 %v11955
    %12208 = vmatpush.bf16.msra.mxu0 %v11947
    %12209 = vmatpush.bf16.msra.mxu0 %v11939
    %12210 = vmatpush.bf16.msra.mxu0 %v11931
    %12211 = vmatpush.bf16.msra.mxu0 %v11923
    %12212 = vmatmul.bf16.gmra.mxu0 %v11389
    %v12213 = vpop.f32.mrf.mxu0
    %v12214 = vadd.f32 %v11523, %v12213
    %v12215 = vpop.f32.mrf.mxu0
    %12216 = vdwg.mxu0
    %12217 = vmatpush.bf16.msra.mxu0 %v12043
    %12218 = vmatpush.bf16.msra.mxu0 %v12035
    %12219 = vmatpush.bf16.msra.mxu0 %v12027
    %12220 = vmatpush.bf16.msra.mxu0 %v12019
    %12221 = vmatpush.bf16.msra.mxu0 %v12011
    %12222 = vmatpush.bf16.msra.mxu0 %v12003
    %12223 = vmatpush.bf16.msra.mxu0 %v11995
    %12224 = vmatpush.bf16.msra.mxu0 %v11987
    %12225 = vmatmul.bf16.gmra.mxu0 %v11390
    %v12226 = vpop.f32.mrf.mxu0
    %v12227 = vadd.f32 %v12214, %v12226
    %v12228 = vpop.f32.mrf.mxu0
    %12229 = vdwg.mxu0
    %12230 = vmatpush.bf16.msra.mxu0 %v11980
    %12231 = vmatpush.bf16.msra.mxu0 %v11972
    %12232 = vmatpush.bf16.msra.mxu0 %v11964
    %12233 = vmatpush.bf16.msra.mxu0 %v11956
    %12234 = vmatpush.bf16.msra.mxu0 %v11948
    %12235 = vmatpush.bf16.msra.mxu0 %v11940
    %12236 = vmatpush.bf16.msra.mxu0 %v11932
    %12237 = vmatpush.bf16.msra.mxu0 %v11924
    %12238 = vmatmul.bf16.gmra.mxu0 %v11389
    %v12239 = vpop.f32.mrf.mxu0
    %v12240 = vadd.f32 %v11524, %v12239
    %v12241 = vpop.f32.mrf.mxu0
    %12242 = vdwg.mxu0
    %12243 = vmatpush.bf16.msra.mxu0 %v12044
    %12244 = vmatpush.bf16.msra.mxu0 %v12036
    %12245 = vmatpush.bf16.msra.mxu0 %v12028
    %12246 = vmatpush.bf16.msra.mxu0 %v12020
    %12247 = vmatpush.bf16.msra.mxu0 %v12012
    %12248 = vmatpush.bf16.msra.mxu0 %v12004
    %12249 = vmatpush.bf16.msra.mxu0 %v11996
    %12250 = vmatpush.bf16.msra.mxu0 %v11988
    %12251 = vmatmul.bf16.gmra.mxu0 %v11390
    %v12252 = vpop.f32.mrf.mxu0
    %v12253 = vadd.f32 %v12240, %v12252
    %v12254 = vpop.f32.mrf.mxu0
    %12255 = vdwg.mxu0
    %12256 = vmatpush.bf16.msra.mxu0 %v11981
    %12257 = vmatpush.bf16.msra.mxu0 %v11973
    %12258 = vmatpush.bf16.msra.mxu0 %v11965
    %12259 = vmatpush.bf16.msra.mxu0 %v11957
    %12260 = vmatpush.bf16.msra.mxu0 %v11949
    %12261 = vmatpush.bf16.msra.mxu0 %v11941
    %12262 = vmatpush.bf16.msra.mxu0 %v11933
    %12263 = vmatpush.bf16.msra.mxu0 %v11925
    %12264 = vmatmul.bf16.gmra.mxu0 %v11389
    %v12265 = vpop.f32.mrf.mxu0
    %v12266 = vadd.f32 %v11525, %v12265
    %v12267 = vpop.f32.mrf.mxu0
    %12268 = vdwg.mxu0
    %12269 = vmatpush.bf16.msra.mxu0 %v12045
    %12270 = vmatpush.bf16.msra.mxu0 %v12037
    %12271 = vmatpush.bf16.msra.mxu0 %v12029
    %12272 = vmatpush.bf16.msra.mxu0 %v12021
    %12273 = vmatpush.bf16.msra.mxu0 %v12013
    %12274 = vmatpush.bf16.msra.mxu0 %v12005
    %12275 = vmatpush.bf16.msra.mxu0 %v11997
    %12276 = vmatpush.bf16.msra.mxu0 %v11989
    %12277 = vmatmul.bf16.gmra.mxu0 %v11390
    %v12278 = vpop.f32.mrf.mxu0
    %v12279 = vadd.f32 %v12266, %v12278
    %v12280 = vpop.f32.mrf.mxu0
    %12281 = vdwg.mxu0
    %12282 = vmatpush.bf16.msra.mxu0 %v11982
    %12283 = vmatpush.bf16.msra.mxu0 %v11974
    %12284 = vmatpush.bf16.msra.mxu0 %v11966
    %12285 = vmatpush.bf16.msra.mxu0 %v11958
    %12286 = vmatpush.bf16.msra.mxu0 %v11950
    %12287 = vmatpush.bf16.msra.mxu0 %v11942
    %12288 = vmatpush.bf16.msra.mxu0 %v11934
    %12289 = vmatpush.bf16.msra.mxu0 %v11926
    %12290 = vmatmul.bf16.gmra.mxu0 %v11389
    %v12291 = vpop.f32.mrf.mxu0
    %v12292 = vadd.f32 %v11526, %v12291
    %v12293 = vpop.f32.mrf.mxu0
    %12294 = vdwg.mxu0
    %12295 = vmatpush.bf16.msra.mxu0 %v12046
    %12296 = vmatpush.bf16.msra.mxu0 %v12038
    %12297 = vmatpush.bf16.msra.mxu0 %v12030
    %12298 = vmatpush.bf16.msra.mxu0 %v12022
    %12299 = vmatpush.bf16.msra.mxu0 %v12014
    %12300 = vmatpush.bf16.msra.mxu0 %v12006
    %12301 = vmatpush.bf16.msra.mxu0 %v11998
    %12302 = vmatpush.bf16.msra.mxu0 %v11990
    %12303 = vmatmul.bf16.gmra.mxu0 %v11390
    %v12304 = vpop.f32.mrf.mxu0
    %v12305 = vadd.f32 %v12292, %v12304
    %v12306 = vpop.f32.mrf.mxu0
    %12307 = vdwg.mxu0
    %12308 = vmatpush.bf16.msra.mxu0 %v11983
    %12309 = vmatpush.bf16.msra.mxu0 %v11975
    %12310 = vmatpush.bf16.msra.mxu0 %v11967
    %12311 = vmatpush.bf16.msra.mxu0 %v11959
    %12312 = vmatpush.bf16.msra.mxu0 %v11951
    %12313 = vmatpush.bf16.msra.mxu0 %v11943
    %12314 = vmatpush.bf16.msra.mxu0 %v11935
    %12315 = vmatpush.bf16.msra.mxu0 %v11927
    %12316 = vmatmul.bf16.gmra.mxu0 %v11389
    %v12317 = vpop.f32.mrf.mxu0
    %v12318 = vadd.f32 %v11527, %v12317
    %v12319 = vpop.f32.mrf.mxu0
    %12320 = vdwg.mxu0
    %12321 = vmatpush.bf16.msra.mxu0 %v12047
    %12322 = vmatpush.bf16.msra.mxu0 %v12039
    %12323 = vmatpush.bf16.msra.mxu0 %v12031
    %12324 = vmatpush.bf16.msra.mxu0 %v12023
    %12325 = vmatpush.bf16.msra.mxu0 %v12015
    %12326 = vmatpush.bf16.msra.mxu0 %v12007
    %12327 = vmatpush.bf16.msra.mxu0 %v11999
    %12328 = vmatpush.bf16.msra.mxu0 %v11991
    %12329 = vmatmul.bf16.gmra.mxu0 %v11390
    %v12330 = vpop.f32.mrf.mxu0
    %v12331 = vadd.f32 %v12318, %v12330
    %v12332 = vpop.f32.mrf.mxu0
    %12333 = vdwg.mxu0
    %12334 = vmatpush.bf16.msra.mxu0 %v11984
    %12335 = vmatpush.bf16.msra.mxu0 %v11976
    %12336 = vmatpush.bf16.msra.mxu0 %v11968
    %12337 = vmatpush.bf16.msra.mxu0 %v11960
    %12338 = vmatpush.bf16.msra.mxu0 %v11952
    %12339 = vmatpush.bf16.msra.mxu0 %v11944
    %12340 = vmatpush.bf16.msra.mxu0 %v11936
    %12341 = vmatpush.bf16.msra.mxu0 %v11928
    %12342 = vmatmul.bf16.gmra.mxu0 %v11389
    %v12343 = vpop.f32.mrf.mxu0
    %v12344 = vadd.f32 %v11528, %v12343
    %v12345 = vpop.f32.mrf.mxu0
    %12346 = vdwg.mxu0
    %12347 = vmatpush.bf16.msra.mxu0 %v12048
    %12348 = vmatpush.bf16.msra.mxu0 %v12040
    %12349 = vmatpush.bf16.msra.mxu0 %v12032
    %12350 = vmatpush.bf16.msra.mxu0 %v12024
    %12351 = vmatpush.bf16.msra.mxu0 %v12016
    %12352 = vmatpush.bf16.msra.mxu0 %v12008
    %12353 = vmatpush.bf16.msra.mxu0 %v12000
    %12354 = vmatpush.bf16.msra.mxu0 %v11992
    %12355 = vmatmul.bf16.gmra.mxu0 %v11390
    %v12356 = vpop.f32.mrf.mxu0
    %v12357 = vadd.f32 %v12344, %v12356
    %v12358 = vpop.f32.mrf.mxu0
    %12359 = vdwg.mxu0
    %12360 = vmatpush.bf16.msra.mxu0 %v11985
    %12361 = vmatpush.bf16.msra.mxu0 %v11977
    %12362 = vmatpush.bf16.msra.mxu0 %v11969
    %12363 = vmatpush.bf16.msra.mxu0 %v11961
    %12364 = vmatpush.bf16.msra.mxu0 %v11953
    %12365 = vmatpush.bf16.msra.mxu0 %v11945
    %12366 = vmatpush.bf16.msra.mxu0 %v11937
    %12367 = vmatpush.bf16.msra.mxu0 %v11929
    %12368 = vmatmul.bf16.gmra.mxu0 %v11389
    %v12369 = vpop.f32.mrf.mxu0
    %v12370 = vadd.f32 %v11529, %v12369
    %v12371 = vpop.f32.mrf.mxu0
    %12372 = vdwg.mxu0
    %12373 = vmatpush.bf16.msra.mxu0 %v12049
    %12374 = vmatpush.bf16.msra.mxu0 %v12041
    %12375 = vmatpush.bf16.msra.mxu0 %v12033
    %12376 = vmatpush.bf16.msra.mxu0 %v12025
    %12377 = vmatpush.bf16.msra.mxu0 %v12017
    %12378 = vmatpush.bf16.msra.mxu0 %v12009
    %12379 = vmatpush.bf16.msra.mxu0 %v12001
    %12380 = vmatpush.bf16.msra.mxu0 %v11993
    %12381 = vmatmul.bf16.gmra.mxu0 %v11390
    %v12382 = vpop.f32.mrf.mxu0
    %v12383 = vadd.f32 %v12370, %v12382
    %v12384 = vpop.f32.mrf.mxu0
    %12385 = vdwg.mxu0
    %v12386 = vmin.f32 %v12201, 20.0
    %v12387 = vmin.f32 %v12227, 20.0
    %v12388 = vmin.f32 %v12253, 20.0
    %v12389 = vmin.f32 %v12279, 20.0
    %v12390 = vmin.f32 %v12305, 20.0
    %v12391 = vmin.f32 %v12331, 20.0
    %v12392 = vmin.f32 %v12357, 20.0
    %v12393 = vmin.f32 %v12383, 20.0
    %v12394 = vmul.f32 %v12386, 1.442695
    %v12395 = vpow.pop %v12394
    %v12396 = vmul.f32 %v12387, 1.442695
    %v12397 = vpow.pop %v12396
    %v12398 = vmul.f32 %v12388, 1.442695
    %v12399 = vpow.pop %v12398
    %v12400 = vmul.f32 %v12389, 1.442695
    %v12401 = vpow.pop %v12400
    %v12402 = vmul.f32 %v12390, 1.442695
    %v12403 = vpow.pop %v12402
    %v12404 = vmul.f32 %v12391, 1.442695
    %v12405 = vpow.pop %v12404
    %v12406 = vmul.f32 %v12392, 1.442695
    %v12407 = vpow.pop %v12406
    %v12408 = vmul.f32 %v12393, 1.442695
    %v12409 = vpow.pop %v12408
    %v12410 = vadd.f32 %v12395, 1.0
    %v12411 = vadd.f32 %v12397, 1.0
    %v12412 = vadd.f32 %v12399, 1.0
    %v12413 = vadd.f32 %v12401, 1.0
    %v12414 = vadd.f32 %v12403, 1.0
    %v12415 = vadd.f32 %v12405, 1.0
    %v12416 = vadd.f32 %v12407, 1.0
    %v12417 = vadd.f32 %v12409, 1.0
    %v12418 = vmul.f32 %v12410, %v12410
    %v12419 = vmul.f32 %v12411, %v12411
    %v12420 = vmul.f32 %v12412, %v12412
    %v12421 = vmul.f32 %v12413, %v12413
    %v12422 = vmul.f32 %v12414, %v12414
    %v12423 = vmul.f32 %v12415, %v12415
    %v12424 = vmul.f32 %v12416, %v12416
    %v12425 = vmul.f32 %v12417, %v12417
    %v12426 = vsub.f32 %v12418, 1.0
    %v12427 = vsub.f32 %v12419, 1.0
    %v12428 = vsub.f32 %v12420, 1.0
    %v12429 = vsub.f32 %v12421, 1.0
    %v12430 = vsub.f32 %v12422, 1.0
    %v12431 = vsub.f32 %v12423, 1.0
    %v12432 = vsub.f32 %v12424, 1.0
    %v12433 = vsub.f32 %v12425, 1.0
    %v12434 = vmul.f32 %v12201, %v12426
    %v12435 = vmul.f32 %v12227, %v12427
    %v12436 = vmul.f32 %v12253, %v12428
    %v12437 = vmul.f32 %v12279, %v12429
    %v12438 = vmul.f32 %v12305, %v12430
    %v12439 = vmul.f32 %v12331, %v12431
    %v12440 = vmul.f32 %v12357, %v12432
    %v12441 = vmul.f32 %v12383, %v12433
    %v12442 = vadd.f32 %v12418, 1.0
    %v12443 = vadd.f32 %v12419, 1.0
    %v12444 = vadd.f32 %v12420, 1.0
    %v12445 = vadd.f32 %v12421, 1.0
    %v12446 = vadd.f32 %v12422, 1.0
    %v12447 = vadd.f32 %v12423, 1.0
    %v12448 = vadd.f32 %v12424, 1.0
    %v12449 = vadd.f32 %v12425, 1.0
    %v12450 = vrcp.pop %v12442
    %v12451 = vrcp.pop %v12443
    %v12452 = vrcp.pop %v12444
    %v12453 = vrcp.pop %v12445
    %v12454 = vrcp.pop %v12446
    %v12455 = vrcp.pop %v12447
    %v12456 = vrcp.pop %v12448
    %v12457 = vrcp.pop %v12449
    %v12458 = vmul.f32 %v12434, %v12450
    %v12459 = vmul.f32 %v12435, %v12451
    %v12460 = vmul.f32 %v12436, %v12452
    %v12461 = vmul.f32 %v12437, %v12453
    %v12462 = vmul.f32 %v12438, %v12454
    %v12463 = vmul.f32 %v12439, %v12455
    %v12464 = vmul.f32 %v12440, %v12456
    %v12465 = vmul.f32 %v12441, %v12457
    %vm12466 = vcmp.gt.f32.partialorder %v12201, 20.0
    %vm12467 = vcmp.gt.f32.partialorder %v12227, 20.0
    %vm12468 = vcmp.gt.f32.partialorder %v12253, 20.0
    %vm12469 = vcmp.gt.f32.partialorder %v12279, 20.0
    %vm12470 = vcmp.gt.f32.partialorder %v12305, 20.0
    %vm12471 = vcmp.gt.f32.partialorder %v12331, 20.0
    %vm12472 = vcmp.gt.f32.partialorder %v12357, 20.0
    %vm12473 = vcmp.gt.f32.partialorder %v12383, 20.0
    %v12474 = vsel %vm12466, %v12201, %v12458
    %v12475 = vsel %vm12467, %v12227, %v12459
    %v12476 = vsel %vm12468, %v12253, %v12460
    %v12477 = vsel %vm12469, %v12279, %v12461
    %v12478 = vsel %vm12470, %v12305, %v12462
    %v12479 = vsel %vm12471, %v12331, %v12463
    %v12480 = vsel %vm12472, %v12357, %v12464
    %v12481 = vsel %vm12473, %v12383, %v12465
    %v12482 = vpack.c.bf16 %v12474, %v12474
    %v12483 = vpack.c.bf16 %v12475, %v12475
    %v12484 = vpack.c.bf16 %v12476, %v12476
    %v12485 = vpack.c.bf16 %v12477, %v12477
    %v12486 = vpack.c.bf16 %v12478, %v12478
    %v12487 = vpack.c.bf16 %v12479, %v12479
    %v12488 = vpack.c.bf16 %v12480, %v12480
    %v12489 = vpack.c.bf16 %v12481, %v12481
    %s12490 = scalar_lea.vmem [#allocation23], 2048
    %v12491 = vld [vmem:[%s12490] sm:$0xff]
    %v12492 = vld [vmem:[%s12490 + $0x8] sm:$0xff]
    %v12493 = vld [vmem:[%s12490 + $0x10] sm:$0xff]
    %v12494 = vld [vmem:[%s12490 + $0x18] sm:$0xff]
    %v12495 = vld [vmem:[%s12490 + $0x20] sm:$0xff]
    %v12496 = vld [vmem:[%s12490 + $0x28] sm:$0xff]
    %v12497 = vld [vmem:[%s12490 + $0x30] sm:$0xff]
    %v12498 = vld [vmem:[%s12490 + $0x38] sm:$0xff]
    %v12499 = vld [vmem:[%s12490 + $0x40] sm:$0xff]
    %v12500 = vld [vmem:[%s12490 + $0x48] sm:$0xff]
    %v12501 = vld [vmem:[%s12490 + $0x50] sm:$0xff]
    %v12502 = vld [vmem:[%s12490 + $0x58] sm:$0xff]
    %v12503 = vld [vmem:[%s12490 + $0x60] sm:$0xff]
    %v12504 = vld [vmem:[%s12490 + $0x68] sm:$0xff]
    %v12505 = vld [vmem:[%s12490 + $0x70] sm:$0xff]
    %v12506 = vld [vmem:[%s12490 + $0x78] sm:$0xff]
    %v12507 = vld [vmem:[%s12490 + $0x80] sm:$0xff]
    %v12508 = vld [vmem:[%s12490 + $0x88] sm:$0xff]
    %v12509 = vld [vmem:[%s12490 + $0x90] sm:$0xff]
    %v12510 = vld [vmem:[%s12490 + $0x98] sm:$0xff]
    %v12511 = vld [vmem:[%s12490 + $0xa0] sm:$0xff]
    %v12512 = vld [vmem:[%s12490 + $0xa8] sm:$0xff]
    %v12513 = vld [vmem:[%s12490 + $0xb0] sm:$0xff]
    %v12514 = vld [vmem:[%s12490 + $0xb8] sm:$0xff]
    %v12515 = vld [vmem:[%s12490 + $0xc0] sm:$0xff]
    %v12516 = vld [vmem:[%s12490 + $0xc8] sm:$0xff]
    %v12517 = vld [vmem:[%s12490 + $0xd0] sm:$0xff]
    %v12518 = vld [vmem:[%s12490 + $0xd8] sm:$0xff]
    %v12519 = vld [vmem:[%s12490 + $0xe0] sm:$0xff]
    %v12520 = vld [vmem:[%s12490 + $0xe8] sm:$0xff]
    %v12521 = vld [vmem:[%s12490 + $0xf0] sm:$0xff]
    %v12522 = vld [vmem:[%s12490 + $0xf8] sm:$0xff]
    %v12523 = vld [vmem:[%s12490 + $0x100] sm:$0xff]
    %v12524 = vld [vmem:[%s12490 + $0x108] sm:$0xff]
    %v12525 = vld [vmem:[%s12490 + $0x110] sm:$0xff]
    %v12526 = vld [vmem:[%s12490 + $0x118] sm:$0xff]
    %v12527 = vld [vmem:[%s12490 + $0x120] sm:$0xff]
    %v12528 = vld [vmem:[%s12490 + $0x128] sm:$0xff]
    %v12529 = vld [vmem:[%s12490 + $0x130] sm:$0xff]
    %v12530 = vld [vmem:[%s12490 + $0x138] sm:$0xff]
    %v12531 = vld [vmem:[%s12490 + $0x140] sm:$0xff]
    %v12532 = vld [vmem:[%s12490 + $0x148] sm:$0xff]
    %v12533 = vld [vmem:[%s12490 + $0x150] sm:$0xff]
    %v12534 = vld [vmem:[%s12490 + $0x158] sm:$0xff]
    %v12535 = vld [vmem:[%s12490 + $0x160] sm:$0xff]
    %v12536 = vld [vmem:[%s12490 + $0x168] sm:$0xff]
    %v12537 = vld [vmem:[%s12490 + $0x170] sm:$0xff]
    %v12538 = vld [vmem:[%s12490 + $0x178] sm:$0xff]
    %v12539 = vld [vmem:[%s12490 + $0x180] sm:$0xff]
    %v12540 = vld [vmem:[%s12490 + $0x188] sm:$0xff]
    %v12541 = vld [vmem:[%s12490 + $0x190] sm:$0xff]
    %v12542 = vld [vmem:[%s12490 + $0x198] sm:$0xff]
    %v12543 = vld [vmem:[%s12490 + $0x1a0] sm:$0xff]
    %v12544 = vld [vmem:[%s12490 + $0x1a8] sm:$0xff]
    %v12545 = vld [vmem:[%s12490 + $0x1b0] sm:$0xff]
    %v12546 = vld [vmem:[%s12490 + $0x1b8] sm:$0xff]
    %v12547 = vld [vmem:[%s12490 + $0x1c0] sm:$0xff]
    %v12548 = vld [vmem:[%s12490 + $0x1c8] sm:$0xff]
    %v12549 = vld [vmem:[%s12490 + $0x1d0] sm:$0xff]
    %v12550 = vld [vmem:[%s12490 + $0x1d8] sm:$0xff]
    %v12551 = vld [vmem:[%s12490 + $0x1e0] sm:$0xff]
    %v12552 = vld [vmem:[%s12490 + $0x1e8] sm:$0xff]
    %v12553 = vld [vmem:[%s12490 + $0x1f0] sm:$0xff]
    %v12554 = vld [vmem:[%s12490 + $0x1f8] sm:$0xff]
    %v12555 = vld [vmem:[%s12490 + $0x200] sm:$0xff]
    %v12556 = vld [vmem:[%s12490 + $0x208] sm:$0xff]
    %v12557 = vld [vmem:[%s12490 + $0x210] sm:$0xff]
    %v12558 = vld [vmem:[%s12490 + $0x218] sm:$0xff]
    %v12559 = vld [vmem:[%s12490 + $0x220] sm:$0xff]
    %v12560 = vld [vmem:[%s12490 + $0x228] sm:$0xff]
    %v12561 = vld [vmem:[%s12490 + $0x230] sm:$0xff]
    %v12562 = vld [vmem:[%s12490 + $0x238] sm:$0xff]
    %v12563 = vld [vmem:[%s12490 + $0x240] sm:$0xff]
    %v12564 = vld [vmem:[%s12490 + $0x248] sm:$0xff]
    %v12565 = vld [vmem:[%s12490 + $0x250] sm:$0xff]
    %v12566 = vld [vmem:[%s12490 + $0x258] sm:$0xff]
    %v12567 = vld [vmem:[%s12490 + $0x260] sm:$0xff]
    %v12568 = vld [vmem:[%s12490 + $0x268] sm:$0xff]
    %v12569 = vld [vmem:[%s12490 + $0x270] sm:$0xff]
    %v12570 = vld [vmem:[%s12490 + $0x278] sm:$0xff]
    %v12571 = vld [vmem:[%s12490 + $0x280] sm:$0xff]
    %v12572 = vld [vmem:[%s12490 + $0x288] sm:$0xff]
    %v12573 = vld [vmem:[%s12490 + $0x290] sm:$0xff]
    %v12574 = vld [vmem:[%s12490 + $0x298] sm:$0xff]
    %v12575 = vld [vmem:[%s12490 + $0x2a0] sm:$0xff]
    %v12576 = vld [vmem:[%s12490 + $0x2a8] sm:$0xff]
    %v12577 = vld [vmem:[%s12490 + $0x2b0] sm:$0xff]
    %v12578 = vld [vmem:[%s12490 + $0x2b8] sm:$0xff]
    %v12579 = vld [vmem:[%s12490 + $0x2c0] sm:$0xff]
    %v12580 = vld [vmem:[%s12490 + $0x2c8] sm:$0xff]
    %v12581 = vld [vmem:[%s12490 + $0x2d0] sm:$0xff]
    %v12582 = vld [vmem:[%s12490 + $0x2d8] sm:$0xff]
    %v12583 = vld [vmem:[%s12490 + $0x2e0] sm:$0xff]
    %v12584 = vld [vmem:[%s12490 + $0x2e8] sm:$0xff]
    %v12585 = vld [vmem:[%s12490 + $0x2f0] sm:$0xff]
    %v12586 = vld [vmem:[%s12490 + $0x2f8] sm:$0xff]
    %v12587 = vld [vmem:[%s12490 + $0x300] sm:$0xff]
    %v12588 = vld [vmem:[%s12490 + $0x308] sm:$0xff]
    %v12589 = vld [vmem:[%s12490 + $0x310] sm:$0xff]
    %v12590 = vld [vmem:[%s12490 + $0x318] sm:$0xff]
    %v12591 = vld [vmem:[%s12490 + $0x320] sm:$0xff]
    %v12592 = vld [vmem:[%s12490 + $0x328] sm:$0xff]
    %v12593 = vld [vmem:[%s12490 + $0x330] sm:$0xff]
    %v12594 = vld [vmem:[%s12490 + $0x338] sm:$0xff]
    %v12595 = vld [vmem:[%s12490 + $0x340] sm:$0xff]
    %v12596 = vld [vmem:[%s12490 + $0x348] sm:$0xff]
    %v12597 = vld [vmem:[%s12490 + $0x350] sm:$0xff]
    %v12598 = vld [vmem:[%s12490 + $0x358] sm:$0xff]
    %v12599 = vld [vmem:[%s12490 + $0x360] sm:$0xff]
    %v12600 = vld [vmem:[%s12490 + $0x368] sm:$0xff]
    %v12601 = vld [vmem:[%s12490 + $0x370] sm:$0xff]
    %v12602 = vld [vmem:[%s12490 + $0x378] sm:$0xff]
    %v12603 = vld [vmem:[%s12490 + $0x380] sm:$0xff]
    %v12604 = vld [vmem:[%s12490 + $0x388] sm:$0xff]
    %v12605 = vld [vmem:[%s12490 + $0x390] sm:$0xff]
    %v12606 = vld [vmem:[%s12490 + $0x398] sm:$0xff]
    %v12607 = vld [vmem:[%s12490 + $0x3a0] sm:$0xff]
    %v12608 = vld [vmem:[%s12490 + $0x3a8] sm:$0xff]
    %v12609 = vld [vmem:[%s12490 + $0x3b0] sm:$0xff]
    %v12610 = vld [vmem:[%s12490 + $0x3b8] sm:$0xff]
    %v12611 = vld [vmem:[%s12490 + $0x3c0] sm:$0xff]
    %v12612 = vld [vmem:[%s12490 + $0x3c8] sm:$0xff]
    %v12613 = vld [vmem:[%s12490 + $0x3d0] sm:$0xff]
    %v12614 = vld [vmem:[%s12490 + $0x3d8] sm:$0xff]
    %v12615 = vld [vmem:[%s12490 + $0x3e0] sm:$0xff]
    %v12616 = vld [vmem:[%s12490 + $0x3e8] sm:$0xff]
    %v12617 = vld [vmem:[%s12490 + $0x3f0] sm:$0xff]
    %v12618 = vld [vmem:[%s12490 + $0x3f8] sm:$0xff]
    %v12619 = vld [vmem:[#allocation10 + $0x37] sm:$0x3]
    %v12621 = vperm.slane %v12619, 0
    %v12622 = vperm.slane %v12619, 1
    %v12753 = vunpack.c.l.b16 %v12491
    %v12754 = vunpack.c.h.b16 %v12491
    %v12755 = vunpack.c.l.b16 %v12492
    %v12756 = vunpack.c.h.b16 %v12492
    %v12757 = vunpack.c.l.b16 %v12493
    %v12758 = vunpack.c.h.b16 %v12493
    %v12759 = vunpack.c.l.b16 %v12494
    %v12760 = vunpack.c.h.b16 %v12494
    %v12761 = vunpack.c.l.b16 %v12495
    %v12762 = vunpack.c.h.b16 %v12495
    %v12763 = vunpack.c.l.b16 %v12496
    %v12764 = vunpack.c.h.b16 %v12496
    %v12765 = vunpack.c.l.b16 %v12497
    %v12766 = vunpack.c.h.b16 %v12497
    %v12767 = vunpack.c.l.b16 %v12498
    %v12768 = vunpack.c.h.b16 %v12498
    %v12769 = vunpack.c.l.b16 %v12499
    %v12770 = vunpack.c.h.b16 %v12499
    %v12771 = vunpack.c.l.b16 %v12500
    %v12772 = vunpack.c.h.b16 %v12500
    %v12773 = vunpack.c.l.b16 %v12501
    %v12774 = vunpack.c.h.b16 %v12501
    %v12775 = vunpack.c.l.b16 %v12502
    %v12776 = vunpack.c.h.b16 %v12502
    %v12777 = vunpack.c.l.b16 %v12503
    %v12778 = vunpack.c.h.b16 %v12503
    %v12779 = vunpack.c.l.b16 %v12504
    %v12780 = vunpack.c.h.b16 %v12504
    %v12781 = vunpack.c.l.b16 %v12505
    %v12782 = vunpack.c.h.b16 %v12505
    %v12783 = vunpack.c.l.b16 %v12506
    %v12784 = vunpack.c.h.b16 %v12506
    %v12785 = vunpack.c.l.b16 %v12507
    %v12786 = vunpack.c.h.b16 %v12507
    %v12787 = vunpack.c.l.b16 %v12508
    %v12788 = vunpack.c.h.b16 %v12508
    %v12789 = vunpack.c.l.b16 %v12509
    %v12790 = vunpack.c.h.b16 %v12509
    %v12791 = vunpack.c.l.b16 %v12510
    %v12792 = vunpack.c.h.b16 %v12510
    %v12793 = vunpack.c.l.b16 %v12511
    %v12794 = vunpack.c.h.b16 %v12511
    %v12795 = vunpack.c.l.b16 %v12512
    %v12796 = vunpack.c.h.b16 %v12512
    %v12797 = vunpack.c.l.b16 %v12513
    %v12798 = vunpack.c.h.b16 %v12513
    %v12799 = vunpack.c.l.b16 %v12514
    %v12800 = vunpack.c.h.b16 %v12514
    %v12801 = vunpack.c.l.b16 %v12515
    %v12802 = vunpack.c.h.b16 %v12515
    %v12803 = vunpack.c.l.b16 %v12516
    %v12804 = vunpack.c.h.b16 %v12516
    %v12805 = vunpack.c.l.b16 %v12517
    %v12806 = vunpack.c.h.b16 %v12517
    %v12807 = vunpack.c.l.b16 %v12518
    %v12808 = vunpack.c.h.b16 %v12518
    %v12809 = vunpack.c.l.b16 %v12519
    %v12810 = vunpack.c.h.b16 %v12519
    %v12811 = vunpack.c.l.b16 %v12520
    %v12812 = vunpack.c.h.b16 %v12520
    %v12813 = vunpack.c.l.b16 %v12521
    %v12814 = vunpack.c.h.b16 %v12521
    %v12815 = vunpack.c.l.b16 %v12522
    %v12816 = vunpack.c.h.b16 %v12522
    %v12817 = vunpack.c.l.b16 %v12523
    %v12818 = vunpack.c.h.b16 %v12523
    %v12819 = vunpack.c.l.b16 %v12524
    %v12820 = vunpack.c.h.b16 %v12524
    %v12821 = vunpack.c.l.b16 %v12525
    %v12822 = vunpack.c.h.b16 %v12525
    %v12823 = vunpack.c.l.b16 %v12526
    %v12824 = vunpack.c.h.b16 %v12526
    %v12825 = vunpack.c.l.b16 %v12527
    %v12826 = vunpack.c.h.b16 %v12527
    %v12827 = vunpack.c.l.b16 %v12528
    %v12828 = vunpack.c.h.b16 %v12528
    %v12829 = vunpack.c.l.b16 %v12529
    %v12830 = vunpack.c.h.b16 %v12529
    %v12831 = vunpack.c.l.b16 %v12530
    %v12832 = vunpack.c.h.b16 %v12530
    %v12833 = vunpack.c.l.b16 %v12531
    %v12834 = vunpack.c.h.b16 %v12531
    %v12835 = vunpack.c.l.b16 %v12532
    %v12836 = vunpack.c.h.b16 %v12532
    %v12837 = vunpack.c.l.b16 %v12533
    %v12838 = vunpack.c.h.b16 %v12533
    %v12839 = vunpack.c.l.b16 %v12534
    %v12840 = vunpack.c.h.b16 %v12534
    %v12841 = vunpack.c.l.b16 %v12535
    %v12842 = vunpack.c.h.b16 %v12535
    %v12843 = vunpack.c.l.b16 %v12536
    %v12844 = vunpack.c.h.b16 %v12536
    %v12845 = vunpack.c.l.b16 %v12537
    %v12846 = vunpack.c.h.b16 %v12537
    %v12847 = vunpack.c.l.b16 %v12538
    %v12848 = vunpack.c.h.b16 %v12538
    %v12849 = vunpack.c.l.b16 %v12539
    %v12850 = vunpack.c.h.b16 %v12539
    %v12851 = vunpack.c.l.b16 %v12540
    %v12852 = vunpack.c.h.b16 %v12540
    %v12853 = vunpack.c.l.b16 %v12541
    %v12854 = vunpack.c.h.b16 %v12541
    %v12855 = vunpack.c.l.b16 %v12542
    %v12856 = vunpack.c.h.b16 %v12542
    %v12857 = vunpack.c.l.b16 %v12543
    %v12858 = vunpack.c.h.b16 %v12543
    %v12859 = vunpack.c.l.b16 %v12544
    %v12860 = vunpack.c.h.b16 %v12544
    %v12861 = vunpack.c.l.b16 %v12545
    %v12862 = vunpack.c.h.b16 %v12545
    %v12863 = vunpack.c.l.b16 %v12546
    %v12864 = vunpack.c.h.b16 %v12546
    %v12865 = vunpack.c.l.b16 %v12547
    %v12866 = vunpack.c.h.b16 %v12547
    %v12867 = vunpack.c.l.b16 %v12548
    %v12868 = vunpack.c.h.b16 %v12548
    %v12869 = vunpack.c.l.b16 %v12549
    %v12870 = vunpack.c.h.b16 %v12549
    %v12871 = vunpack.c.l.b16 %v12550
    %v12872 = vunpack.c.h.b16 %v12550
    %v12873 = vunpack.c.l.b16 %v12551
    %v12874 = vunpack.c.h.b16 %v12551
    %v12875 = vunpack.c.l.b16 %v12552
    %v12876 = vunpack.c.h.b16 %v12552
    %v12877 = vunpack.c.l.b16 %v12553
    %v12878 = vunpack.c.h.b16 %v12553
    %v12879 = vunpack.c.l.b16 %v12554
    %v12880 = vunpack.c.h.b16 %v12554
    %v12881 = vunpack.c.l.b16 %v12555
    %v12882 = vunpack.c.h.b16 %v12555
    %v12883 = vunpack.c.l.b16 %v12556
    %v12884 = vunpack.c.h.b16 %v12556
    %v12885 = vunpack.c.l.b16 %v12557
    %v12886 = vunpack.c.h.b16 %v12557
    %v12887 = vunpack.c.l.b16 %v12558
    %v12888 = vunpack.c.h.b16 %v12558
    %v12889 = vunpack.c.l.b16 %v12559
    %v12890 = vunpack.c.h.b16 %v12559
    %v12891 = vunpack.c.l.b16 %v12560
    %v12892 = vunpack.c.h.b16 %v12560
    %v12893 = vunpack.c.l.b16 %v12561
    %v12894 = vunpack.c.h.b16 %v12561
    %v12895 = vunpack.c.l.b16 %v12562
    %v12896 = vunpack.c.h.b16 %v12562
    %v12897 = vunpack.c.l.b16 %v12563
    %v12898 = vunpack.c.h.b16 %v12563
    %v12899 = vunpack.c.l.b16 %v12564
    %v12900 = vunpack.c.h.b16 %v12564
    %v12901 = vunpack.c.l.b16 %v12565
    %v12902 = vunpack.c.h.b16 %v12565
    %v12903 = vunpack.c.l.b16 %v12566
    %v12904 = vunpack.c.h.b16 %v12566
    %v12905 = vunpack.c.l.b16 %v12567
    %v12906 = vunpack.c.h.b16 %v12567
    %v12907 = vunpack.c.l.b16 %v12568
    %v12908 = vunpack.c.h.b16 %v12568
    %v12909 = vunpack.c.l.b16 %v12569
    %v12910 = vunpack.c.h.b16 %v12569
    %v12911 = vunpack.c.l.b16 %v12570
    %v12912 = vunpack.c.h.b16 %v12570
    %v12913 = vunpack.c.l.b16 %v12571
    %v12914 = vunpack.c.h.b16 %v12571
    %v12915 = vunpack.c.l.b16 %v12572
    %v12916 = vunpack.c.h.b16 %v12572
    %v12917 = vunpack.c.l.b16 %v12573
    %v12918 = vunpack.c.h.b16 %v12573
    %v12919 = vunpack.c.l.b16 %v12574
    %v12920 = vunpack.c.h.b16 %v12574
    %v12921 = vunpack.c.l.b16 %v12575
    %v12922 = vunpack.c.h.b16 %v12575
    %v12923 = vunpack.c.l.b16 %v12576
    %v12924 = vunpack.c.h.b16 %v12576
    %v12925 = vunpack.c.l.b16 %v12577
    %v12926 = vunpack.c.h.b16 %v12577
    %v12927 = vunpack.c.l.b16 %v12578
    %v12928 = vunpack.c.h.b16 %v12578
    %v12929 = vunpack.c.l.b16 %v12579
    %v12930 = vunpack.c.h.b16 %v12579
    %v12931 = vunpack.c.l.b16 %v12580
    %v12932 = vunpack.c.h.b16 %v12580
    %v12933 = vunpack.c.l.b16 %v12581
    %v12934 = vunpack.c.h.b16 %v12581
    %v12935 = vunpack.c.l.b16 %v12582
    %v12936 = vunpack.c.h.b16 %v12582
    %v12937 = vunpack.c.l.b16 %v12583
    %v12938 = vunpack.c.h.b16 %v12583
    %v12939 = vunpack.c.l.b16 %v12584
    %v12940 = vunpack.c.h.b16 %v12584
    %v12941 = vunpack.c.l.b16 %v12585
    %v12942 = vunpack.c.h.b16 %v12585
    %v12943 = vunpack.c.l.b16 %v12586
    %v12944 = vunpack.c.h.b16 %v12586
    %v12945 = vunpack.c.l.b16 %v12587
    %v12946 = vunpack.c.h.b16 %v12587
    %v12947 = vunpack.c.l.b16 %v12588
    %v12948 = vunpack.c.h.b16 %v12588
    %v12949 = vunpack.c.l.b16 %v12589
    %v12950 = vunpack.c.h.b16 %v12589
    %v12951 = vunpack.c.l.b16 %v12590
    %v12952 = vunpack.c.h.b16 %v12590
    %v12953 = vunpack.c.l.b16 %v12591
    %v12954 = vunpack.c.h.b16 %v12591
    %v12955 = vunpack.c.l.b16 %v12592
    %v12956 = vunpack.c.h.b16 %v12592
    %v12957 = vunpack.c.l.b16 %v12593
    %v12958 = vunpack.c.h.b16 %v12593
    %v12959 = vunpack.c.l.b16 %v12594
    %v12960 = vunpack.c.h.b16 %v12594
    %v12961 = vunpack.c.l.b16 %v12595
    %v12962 = vunpack.c.h.b16 %v12595
    %v12963 = vunpack.c.l.b16 %v12596
    %v12964 = vunpack.c.h.b16 %v12596
    %v12965 = vunpack.c.l.b16 %v12597
    %v12966 = vunpack.c.h.b16 %v12597
    %v12967 = vunpack.c.l.b16 %v12598
    %v12968 = vunpack.c.h.b16 %v12598
    %v12969 = vunpack.c.l.b16 %v12599
    %v12970 = vunpack.c.h.b16 %v12599
    %v12971 = vunpack.c.l.b16 %v12600
    %v12972 = vunpack.c.h.b16 %v12600
    %v12973 = vunpack.c.l.b16 %v12601
    %v12974 = vunpack.c.h.b16 %v12601
    %v12975 = vunpack.c.l.b16 %v12602
    %v12976 = vunpack.c.h.b16 %v12602
    %v12977 = vunpack.c.l.b16 %v12603
    %v12978 = vunpack.c.h.b16 %v12603
    %v12979 = vunpack.c.l.b16 %v12604
    %v12980 = vunpack.c.h.b16 %v12604
    %v12981 = vunpack.c.l.b16 %v12605
    %v12982 = vunpack.c.h.b16 %v12605
    %v12983 = vunpack.c.l.b16 %v12606
    %v12984 = vunpack.c.h.b16 %v12606
    %v12985 = vunpack.c.l.b16 %v12607
    %v12986 = vunpack.c.h.b16 %v12607
    %v12987 = vunpack.c.l.b16 %v12608
    %v12988 = vunpack.c.h.b16 %v12608
    %v12989 = vunpack.c.l.b16 %v12609
    %v12990 = vunpack.c.h.b16 %v12609
    %v12991 = vunpack.c.l.b16 %v12610
    %v12992 = vunpack.c.h.b16 %v12610
    %v12993 = vunpack.c.l.b16 %v12611
    %v12994 = vunpack.c.h.b16 %v12611
    %v12995 = vunpack.c.l.b16 %v12612
    %v12996 = vunpack.c.h.b16 %v12612
    %v12997 = vunpack.c.l.b16 %v12613
    %v12998 = vunpack.c.h.b16 %v12613
    %v12999 = vunpack.c.l.b16 %v12614
    %v13000 = vunpack.c.h.b16 %v12614
    %v13001 = vunpack.c.l.b16 %v12615
    %v13002 = vunpack.c.h.b16 %v12615
    %v13003 = vunpack.c.l.b16 %v12616
    %v13004 = vunpack.c.h.b16 %v12616
    %v13005 = vunpack.c.l.b16 %v12617
    %v13006 = vunpack.c.h.b16 %v12617
    %v13007 = vunpack.c.l.b16 %v12618
    %v13008 = vunpack.c.h.b16 %v12618
    %v13009 = vpack.c.b16 %v12755, %v12753
    %v13010 = vpack.c.b16 %v12756, %v12754
    %v13011 = vpack.c.b16 %v12759, %v12757
    %v13012 = vpack.c.b16 %v12760, %v12758
    %v13013 = vpack.c.b16 %v12763, %v12761
    %v13014 = vpack.c.b16 %v12764, %v12762
    %v13015 = vpack.c.b16 %v12767, %v12765
    %v13016 = vpack.c.b16 %v12768, %v12766
    %v13017 = vpack.c.b16 %v12771, %v12769
    %v13018 = vpack.c.b16 %v12772, %v12770
    %v13019 = vpack.c.b16 %v12775, %v12773
    %v13020 = vpack.c.b16 %v12776, %v12774
    %v13021 = vpack.c.b16 %v12779, %v12777
    %v13022 = vpack.c.b16 %v12780, %v12778
    %v13023 = vpack.c.b16 %v12783, %v12781
    %v13024 = vpack.c.b16 %v12784, %v12782
    %v13025 = vpack.c.b16 %v12787, %v12785
    %v13026 = vpack.c.b16 %v12788, %v12786
    %v13027 = vpack.c.b16 %v12791, %v12789
    %v13028 = vpack.c.b16 %v12792, %v12790
    %v13029 = vpack.c.b16 %v12795, %v12793
    %v13030 = vpack.c.b16 %v12796, %v12794
    %v13031 = vpack.c.b16 %v12799, %v12797
    %v13032 = vpack.c.b16 %v12800, %v12798
    %v13033 = vpack.c.b16 %v12803, %v12801
    %v13034 = vpack.c.b16 %v12804, %v12802
    %v13035 = vpack.c.b16 %v12807, %v12805
    %v13036 = vpack.c.b16 %v12808, %v12806
    %v13037 = vpack.c.b16 %v12811, %v12809
    %v13038 = vpack.c.b16 %v12812, %v12810
    %v13039 = vpack.c.b16 %v12815, %v12813
    %v13040 = vpack.c.b16 %v12816, %v12814
    %v13041 = vpack.c.b16 %v12819, %v12817
    %v13042 = vpack.c.b16 %v12820, %v12818
    %v13043 = vpack.c.b16 %v12823, %v12821
    %v13044 = vpack.c.b16 %v12824, %v12822
    %v13045 = vpack.c.b16 %v12827, %v12825
    %v13046 = vpack.c.b16 %v12828, %v12826
    %v13047 = vpack.c.b16 %v12831, %v12829
    %v13048 = vpack.c.b16 %v12832, %v12830
    %v13049 = vpack.c.b16 %v12835, %v12833
    %v13050 = vpack.c.b16 %v12836, %v12834
    %v13051 = vpack.c.b16 %v12839, %v12837
    %v13052 = vpack.c.b16 %v12840, %v12838
    %v13053 = vpack.c.b16 %v12843, %v12841
    %v13054 = vpack.c.b16 %v12844, %v12842
    %v13055 = vpack.c.b16 %v12847, %v12845
    %v13056 = vpack.c.b16 %v12848, %v12846
    %v13057 = vpack.c.b16 %v12851, %v12849
    %v13058 = vpack.c.b16 %v12852, %v12850
    %v13059 = vpack.c.b16 %v12855, %v12853
    %v13060 = vpack.c.b16 %v12856, %v12854
    %v13061 = vpack.c.b16 %v12859, %v12857
    %v13062 = vpack.c.b16 %v12860, %v12858
    %v13063 = vpack.c.b16 %v12863, %v12861
    %v13064 = vpack.c.b16 %v12864, %v12862
    %v13065 = vpack.c.b16 %v12867, %v12865
    %v13066 = vpack.c.b16 %v12868, %v12866
    %v13067 = vpack.c.b16 %v12871, %v12869
    %v13068 = vpack.c.b16 %v12872, %v12870
    %v13069 = vpack.c.b16 %v12875, %v12873
    %v13070 = vpack.c.b16 %v12876, %v12874
    %v13071 = vpack.c.b16 %v12879, %v12877
    %v13072 = vpack.c.b16 %v12880, %v12878
    %v13073 = vpack.c.b16 %v12883, %v12881
    %v13074 = vpack.c.b16 %v12884, %v12882
    %v13075 = vpack.c.b16 %v12887, %v12885
    %v13076 = vpack.c.b16 %v12888, %v12886
    %v13077 = vpack.c.b16 %v12891, %v12889
    %v13078 = vpack.c.b16 %v12892, %v12890
    %v13079 = vpack.c.b16 %v12895, %v12893
    %v13080 = vpack.c.b16 %v12896, %v12894
    %v13081 = vpack.c.b16 %v12899, %v12897
    %v13082 = vpack.c.b16 %v12900, %v12898
    %v13083 = vpack.c.b16 %v12903, %v12901
    %v13084 = vpack.c.b16 %v12904, %v12902
    %v13085 = vpack.c.b16 %v12907, %v12905
    %v13086 = vpack.c.b16 %v12908, %v12906
    %v13087 = vpack.c.b16 %v12911, %v12909
    %v13088 = vpack.c.b16 %v12912, %v12910
    %v13089 = vpack.c.b16 %v12915, %v12913
    %v13090 = vpack.c.b16 %v12916, %v12914
    %v13091 = vpack.c.b16 %v12919, %v12917
    %v13092 = vpack.c.b16 %v12920, %v12918
    %v13093 = vpack.c.b16 %v12923, %v12921
    %v13094 = vpack.c.b16 %v12924, %v12922
    %v13095 = vpack.c.b16 %v12927, %v12925
    %v13096 = vpack.c.b16 %v12928, %v12926
    %v13097 = vpack.c.b16 %v12931, %v12929
    %v13098 = vpack.c.b16 %v12932, %v12930
    %v13099 = vpack.c.b16 %v12935, %v12933
    %v13100 = vpack.c.b16 %v12936, %v12934
    %v13101 = vpack.c.b16 %v12939, %v12937
    %v13102 = vpack.c.b16 %v12940, %v12938
    %v13103 = vpack.c.b16 %v12943, %v12941
    %v13104 = vpack.c.b16 %v12944, %v12942
    %v13105 = vpack.c.b16 %v12947, %v12945
    %v13106 = vpack.c.b16 %v12948, %v12946
    %v13107 = vpack.c.b16 %v12951, %v12949
    %v13108 = vpack.c.b16 %v12952, %v12950
    %v13109 = vpack.c.b16 %v12955, %v12953
    %v13110 = vpack.c.b16 %v12956, %v12954
    %v13111 = vpack.c.b16 %v12959, %v12957
    %v13112 = vpack.c.b16 %v12960, %v12958
    %v13113 = vpack.c.b16 %v12963, %v12961
    %v13114 = vpack.c.b16 %v12964, %v12962
    %v13115 = vpack.c.b16 %v12967, %v12965
    %v13116 = vpack.c.b16 %v12968, %v12966
    %v13117 = vpack.c.b16 %v12971, %v12969
    %v13118 = vpack.c.b16 %v12972, %v12970
    %v13119 = vpack.c.b16 %v12975, %v12973
    %v13120 = vpack.c.b16 %v12976, %v12974
    %v13121 = vpack.c.b16 %v12979, %v12977
    %v13122 = vpack.c.b16 %v12980, %v12978
    %v13123 = vpack.c.b16 %v12983, %v12981
    %v13124 = vpack.c.b16 %v12984, %v12982
    %v13125 = vpack.c.b16 %v12987, %v12985
    %v13126 = vpack.c.b16 %v12988, %v12986
    %v13127 = vpack.c.b16 %v12991, %v12989
    %v13128 = vpack.c.b16 %v12992, %v12990
    %v13129 = vpack.c.b16 %v12995, %v12993
    %v13130 = vpack.c.b16 %v12996, %v12994
    %v13131 = vpack.c.b16 %v12999, %v12997
    %v13132 = vpack.c.b16 %v13000, %v12998
    %v13133 = vpack.c.b16 %v13003, %v13001
    %v13134 = vpack.c.b16 %v13004, %v13002
    %v13135 = vpack.c.b16 %v13007, %v13005
    %v13136 = vpack.c.b16 %v13008, %v13006
    %13265 = vmatpush.bf16.msra.mxu0 %v13023
    %13266 = vmatpush.bf16.msra.mxu0 %v13021
    %13267 = vmatpush.bf16.msra.mxu0 %v13019
    %13268 = vmatpush.bf16.msra.mxu0 %v13017
    %13269 = vmatpush.bf16.msra.mxu0 %v13015
    %13270 = vmatpush.bf16.msra.mxu0 %v13013
    %13271 = vmatpush.bf16.msra.mxu0 %v13011
    %13272 = vmatpush.bf16.msra.mxu0 %v13009
    %13273 = vmatmul.bf16.gmra.mxu0 %v12482
    %v13274 = vpop.f32.mrf.mxu0
    %v13275 = vadd.f32 %v12621, %v13274
    %v13276 = vpop.f32.mrf.mxu0
    %13277 = vdwg.mxu0
    %13278 = vmatpush.bf16.msra.mxu0 %v13039
    %13279 = vmatpush.bf16.msra.mxu0 %v13037
    %13280 = vmatpush.bf16.msra.mxu0 %v13035
    %13281 = vmatpush.bf16.msra.mxu0 %v13033
    %13282 = vmatpush.bf16.msra.mxu0 %v13031
    %13283 = vmatpush.bf16.msra.mxu0 %v13029
    %13284 = vmatpush.bf16.msra.mxu0 %v13027
    %13285 = vmatpush.bf16.msra.mxu0 %v13025
    %13286 = vmatmul.bf16.gmra.mxu0 %v12483
    %v13287 = vpop.f32.mrf.mxu0
    %v13288 = vadd.f32 %v13275, %v13287
    %v13289 = vpop.f32.mrf.mxu0
    %13290 = vdwg.mxu0
    %13291 = vmatpush.bf16.msra.mxu0 %v13055
    %13292 = vmatpush.bf16.msra.mxu0 %v13053
    %13293 = vmatpush.bf16.msra.mxu0 %v13051
    %13294 = vmatpush.bf16.msra.mxu0 %v13049
    %13295 = vmatpush.bf16.msra.mxu0 %v13047
    %13296 = vmatpush.bf16.msra.mxu0 %v13045
    %13297 = vmatpush.bf16.msra.mxu0 %v13043
    %13298 = vmatpush.bf16.msra.mxu0 %v13041
    %13299 = vmatmul.bf16.gmra.mxu0 %v12484
    %v13300 = vpop.f32.mrf.mxu0
    %v13301 = vadd.f32 %v13288, %v13300
    %v13302 = vpop.f32.mrf.mxu0
    %13303 = vdwg.mxu0
    %13304 = vmatpush.bf16.msra.mxu0 %v13071
    %13305 = vmatpush.bf16.msra.mxu0 %v13069
    %13306 = vmatpush.bf16.msra.mxu0 %v13067
    %13307 = vmatpush.bf16.msra.mxu0 %v13065
    %13308 = vmatpush.bf16.msra.mxu0 %v13063
    %13309 = vmatpush.bf16.msra.mxu0 %v13061
    %13310 = vmatpush.bf16.msra.mxu0 %v13059
    %13311 = vmatpush.bf16.msra.mxu0 %v13057
    %13312 = vmatmul.bf16.gmra.mxu0 %v12485
    %v13313 = vpop.f32.mrf.mxu0
    %v13314 = vadd.f32 %v13301, %v13313
    %v13315 = vpop.f32.mrf.mxu0
    %13316 = vdwg.mxu0
    %13317 = vmatpush.bf16.msra.mxu0 %v13087
    %13318 = vmatpush.bf16.msra.mxu0 %v13085
    %13319 = vmatpush.bf16.msra.mxu0 %v13083
    %13320 = vmatpush.bf16.msra.mxu0 %v13081
    %13321 = vmatpush.bf16.msra.mxu0 %v13079
    %13322 = vmatpush.bf16.msra.mxu0 %v13077
    %13323 = vmatpush.bf16.msra.mxu0 %v13075
    %13324 = vmatpush.bf16.msra.mxu0 %v13073
    %13325 = vmatmul.bf16.gmra.mxu0 %v12486
    %v13326 = vpop.f32.mrf.mxu0
    %v13327 = vadd.f32 %v13314, %v13326
    %v13328 = vpop.f32.mrf.mxu0
    %13329 = vdwg.mxu0
    %13330 = vmatpush.bf16.msra.mxu0 %v13103
    %13331 = vmatpush.bf16.msra.mxu0 %v13101
    %13332 = vmatpush.bf16.msra.mxu0 %v13099
    %13333 = vmatpush.bf16.msra.mxu0 %v13097
    %13334 = vmatpush.bf16.msra.mxu0 %v13095
    %13335 = vmatpush.bf16.msra.mxu0 %v13093
    %13336 = vmatpush.bf16.msra.mxu0 %v13091
    %13337 = vmatpush.bf16.msra.mxu0 %v13089
    %13338 = vmatmul.bf16.gmra.mxu0 %v12487
    %v13339 = vpop.f32.mrf.mxu0
    %v13340 = vadd.f32 %v13327, %v13339
    %v13341 = vpop.f32.mrf.mxu0
    %13342 = vdwg.mxu0
    %13343 = vmatpush.bf16.msra.mxu0 %v13119
    %13344 = vmatpush.bf16.msra.mxu0 %v13117
    %13345 = vmatpush.bf16.msra.mxu0 %v13115
    %13346 = vmatpush.bf16.msra.mxu0 %v13113
    %13347 = vmatpush.bf16.msra.mxu0 %v13111
    %13348 = vmatpush.bf16.msra.mxu0 %v13109
    %13349 = vmatpush.bf16.msra.mxu0 %v13107
    %13350 = vmatpush.bf16.msra.mxu0 %v13105
    %13351 = vmatmul.bf16.gmra.mxu0 %v12488
    %v13352 = vpop.f32.mrf.mxu0
    %v13353 = vadd.f32 %v13340, %v13352
    %v13354 = vpop.f32.mrf.mxu0
    %13355 = vdwg.mxu0
    %13356 = vmatpush.bf16.msra.mxu0 %v13135
    %13357 = vmatpush.bf16.msra.mxu0 %v13133
    %13358 = vmatpush.bf16.msra.mxu0 %v13131
    %13359 = vmatpush.bf16.msra.mxu0 %v13129
    %13360 = vmatpush.bf16.msra.mxu0 %v13127
    %13361 = vmatpush.bf16.msra.mxu0 %v13125
    %13362 = vmatpush.bf16.msra.mxu0 %v13123
    %13363 = vmatpush.bf16.msra.mxu0 %v13121
    %13364 = vmatmul.bf16.gmra.mxu0 %v12489
    %v13365 = vpop.f32.mrf.mxu0
    %v13366 = vadd.f32 %v13353, %v13365
    %v13367 = vpop.f32.mrf.mxu0
    %13368 = vdwg.mxu0
    %13369 = vmatpush.bf16.msra.mxu0 %v13024
    %13370 = vmatpush.bf16.msra.mxu0 %v13022
    %13371 = vmatpush.bf16.msra.mxu0 %v13020
    %13372 = vmatpush.bf16.msra.mxu0 %v13018
    %13373 = vmatpush.bf16.msra.mxu0 %v13016
    %13374 = vmatpush.bf16.msra.mxu0 %v13014
    %13375 = vmatpush.bf16.msra.mxu0 %v13012
    %13376 = vmatpush.bf16.msra.mxu0 %v13010
    %13377 = vmatmul.bf16.gmra.mxu0 %v12482
    %v13378 = vpop.f32.mrf.mxu0
    %v13379 = vadd.f32 %v12622, %v13378
    %v13380 = vpop.f32.mrf.mxu0
    %13381 = vdwg.mxu0
    %13382 = vmatpush.bf16.msra.mxu0 %v13040
    %13383 = vmatpush.bf16.msra.mxu0 %v13038
    %13384 = vmatpush.bf16.msra.mxu0 %v13036
    %13385 = vmatpush.bf16.msra.mxu0 %v13034
    %13386 = vmatpush.bf16.msra.mxu0 %v13032
    %13387 = vmatpush.bf16.msra.mxu0 %v13030
    %13388 = vmatpush.bf16.msra.mxu0 %v13028
    %13389 = vmatpush.bf16.msra.mxu0 %v13026
    %13390 = vmatmul.bf16.gmra.mxu0 %v12483
    %v13391 = vpop.f32.mrf.mxu0
    %v13392 = vadd.f32 %v13379, %v13391
    %v13393 = vpop.f32.mrf.mxu0
    %13394 = vdwg.mxu0
    %13395 = vmatpush.bf16.msra.mxu0 %v13056
    %13396 = vmatpush.bf16.msra.mxu0 %v13054
    %13397 = vmatpush.bf16.msra.mxu0 %v13052
    %13398 = vmatpush.bf16.msra.mxu0 %v13050
    %13399 = vmatpush.bf16.msra.mxu0 %v13048
    %13400 = vmatpush.bf16.msra.mxu0 %v13046
    %13401 = vmatpush.bf16.msra.mxu0 %v13044
    %13402 = vmatpush.bf16.msra.mxu0 %v13042
    %13403 = vmatmul.bf16.gmra.mxu0 %v12484
    %v13404 = vpop.f32.mrf.mxu0
    %v13405 = vadd.f32 %v13392, %v13404
    %v13406 = vpop.f32.mrf.mxu0
    %13407 = vdwg.mxu0
    %13408 = vmatpush.bf16.msra.mxu0 %v13072
    %13409 = vmatpush.bf16.msra.mxu0 %v13070
    %13410 = vmatpush.bf16.msra.mxu0 %v13068
    %13411 = vmatpush.bf16.msra.mxu0 %v13066
    %13412 = vmatpush.bf16.msra.mxu0 %v13064
    %13413 = vmatpush.bf16.msra.mxu0 %v13062
    %13414 = vmatpush.bf16.msra.mxu0 %v13060
    %13415 = vmatpush.bf16.msra.mxu0 %v13058
    %13416 = vmatmul.bf16.gmra.mxu0 %v12485
    %v13417 = vpop.f32.mrf.mxu0
    %v13418 = vadd.f32 %v13405, %v13417
    %v13419 = vpop.f32.mrf.mxu0
    %13420 = vdwg.mxu0
    %13421 = vmatpush.bf16.msra.mxu0 %v13088
    %13422 = vmatpush.bf16.msra.mxu0 %v13086
    %13423 = vmatpush.bf16.msra.mxu0 %v13084
    %13424 = vmatpush.bf16.msra.mxu0 %v13082
    %13425 = vmatpush.bf16.msra.mxu0 %v13080
    %13426 = vmatpush.bf16.msra.mxu0 %v13078
    %13427 = vmatpush.bf16.msra.mxu0 %v13076
    %13428 = vmatpush.bf16.msra.mxu0 %v13074
    %13429 = vmatmul.bf16.gmra.mxu0 %v12486
    %v13430 = vpop.f32.mrf.mxu0
    %v13431 = vadd.f32 %v13418, %v13430
    %v13432 = vpop.f32.mrf.mxu0
    %13433 = vdwg.mxu0
    %13434 = vmatpush.bf16.msra.mxu0 %v13104
    %13435 = vmatpush.bf16.msra.mxu0 %v13102
    %13436 = vmatpush.bf16.msra.mxu0 %v13100
    %13437 = vmatpush.bf16.msra.mxu0 %v13098
    %13438 = vmatpush.bf16.msra.mxu0 %v13096
    %13439 = vmatpush.bf16.msra.mxu0 %v13094
    %13440 = vmatpush.bf16.msra.mxu0 %v13092
    %13441 = vmatpush.bf16.msra.mxu0 %v13090
    %13442 = vmatmul.bf16.gmra.mxu0 %v12487
    %v13443 = vpop.f32.mrf.mxu0
    %v13444 = vadd.f32 %v13431, %v13443
    %v13445 = vpop.f32.mrf.mxu0
    %13446 = vdwg.mxu0
    %13447 = vmatpush.bf16.msra.mxu0 %v13120
    %13448 = vmatpush.bf16.msra.mxu0 %v13118
    %13449 = vmatpush.bf16.msra.mxu0 %v13116
    %13450 = vmatpush.bf16.msra.mxu0 %v13114
    %13451 = vmatpush.bf16.msra.mxu0 %v13112
    %13452 = vmatpush.bf16.msra.mxu0 %v13110
    %13453 = vmatpush.bf16.msra.mxu0 %v13108
    %13454 = vmatpush.bf16.msra.mxu0 %v13106
    %13455 = vmatmul.bf16.gmra.mxu0 %v12488
    %v13456 = vpop.f32.mrf.mxu0
    %v13457 = vadd.f32 %v13444, %v13456
    %v13458 = vpop.f32.mrf.mxu0
    %13459 = vdwg.mxu0
    %13460 = vmatpush.bf16.msra.mxu0 %v13136
    %13461 = vmatpush.bf16.msra.mxu0 %v13134
    %13462 = vmatpush.bf16.msra.mxu0 %v13132
    %13463 = vmatpush.bf16.msra.mxu0 %v13130
    %13464 = vmatpush.bf16.msra.mxu0 %v13128
    %13465 = vmatpush.bf16.msra.mxu0 %v13126
    %13466 = vmatpush.bf16.msra.mxu0 %v13124
    %13467 = vmatpush.bf16.msra.mxu0 %v13122
    %13468 = vmatmul.bf16.gmra.mxu0 %v12489
    %v13469 = vpop.f32.mrf.mxu0
    %v13470 = vadd.f32 %v13457, %v13469
    %v13471 = vpop.f32.mrf.mxu0
    %13472 = vdwg.mxu0
    %v13473 = vadd.f32 %v11346, %v13366
    %v13474 = vadd.f32 %v11347, %v13470
    %v13475 = vmin.f32 %v13473, 20.0
    %v13476 = vmin.f32 %v13474, 20.0
    %v13477 = vmul.f32 %v13475, 1.442695
    %v13478 = vpow.pop %v13477
    %v13479 = vmul.f32 %v13476, 1.442695
    %v13480 = vpow.pop %v13479
    %v13481 = vadd.f32 %v13478, 1.0
    %v13482 = vadd.f32 %v13480, 1.0
    %v13483 = vmul.f32 %v13481, %v13481
    %v13484 = vmul.f32 %v13482, %v13482
    %v13485 = vsub.f32 %v13483, 1.0
    %v13486 = vsub.f32 %v13484, 1.0
    %v13487 = vmul.f32 %v13473, %v13485
    %v13488 = vmul.f32 %v13474, %v13486
    %v13489 = vadd.f32 %v13483, 1.0
    %v13490 = vadd.f32 %v13484, 1.0
    %v13491 = vrcp.pop %v13489
    %v13492 = vrcp.pop %v13490
    %v13493 = vmul.f32 %v13487, %v13491
    %v13494 = vmul.f32 %v13488, %v13492
    %vm13495 = vcmp.gt.f32.partialorder %v13473, 20.0
    %vm13496 = vcmp.gt.f32.partialorder %v13474, 20.0
    %v13497 = vsel %vm13495, %v13473, %v13493
    %v13498 = vsel %vm13496, %v13474, %v13494
    %v13499 = vpack.c.bf16 %v13497, %v13497
    %v13500 = vpack.c.bf16 %v13498, %v13498
    %v13501 = vld [vmem:[#allocation25] sm:$0xf]
    %v13502 = vld [vmem:[#allocation25 + $0x4] sm:$0xf]
    %v13503 = vld [vmem:[#allocation25 + $0x8] sm:$0xf]
    %v13504 = vld [vmem:[#allocation25 + $0xc] sm:$0xf]
    %v13505 = vld [vmem:[#allocation25 + $0x10] sm:$0xf]
    %v13506 = vld [vmem:[#allocation25 + $0x14] sm:$0xf]
    %v13507 = vld [vmem:[#allocation25 + $0x18] sm:$0xf]
    %v13508 = vld [vmem:[#allocation25 + $0x1c] sm:$0xf]
    %v13509 = vld [vmem:[#allocation25 + $0x20] sm:$0xf]
    %v13510 = vld [vmem:[#allocation25 + $0x24] sm:$0xf]
    %v13511 = vld [vmem:[#allocation25 + $0x28] sm:$0xf]
    %v13512 = vld [vmem:[#allocation25 + $0x2c] sm:$0xf]
    %v13513 = vld [vmem:[#allocation25 + $0x30] sm:$0xf]
    %v13514 = vld [vmem:[#allocation25 + $0x34] sm:$0xf]
    %v13515 = vld [vmem:[#allocation25 + $0x38] sm:$0xf]
    %v13516 = vld [vmem:[#allocation25 + $0x3c] sm:$0xf]
    %v13517 = vld [vmem:[#allocation25 + $0x40] sm:$0xf]
    %v13518 = vld [vmem:[#allocation25 + $0x44] sm:$0xf]
    %v13519 = vld [vmem:[#allocation25 + $0x48] sm:$0xf]
    %v13520 = vld [vmem:[#allocation25 + $0x4c] sm:$0xf]
    %v13521 = vld [vmem:[#allocation25 + $0x50] sm:$0xf]
    %v13522 = vld [vmem:[#allocation25 + $0x54] sm:$0xf]
    %v13523 = vld [vmem:[#allocation25 + $0x58] sm:$0xf]
    %v13524 = vld [vmem:[#allocation25 + $0x5c] sm:$0xf]
    %v13525 = vld [vmem:[#allocation25 + $0x60] sm:$0xf]
    %v13526 = vld [vmem:[#allocation25 + $0x64] sm:$0xf]
    %v13527 = vld [vmem:[#allocation25 + $0x68] sm:$0xf]
    %v13528 = vld [vmem:[#allocation25 + $0x6c] sm:$0xf]
    %v13529 = vld [vmem:[#allocation25 + $0x70] sm:$0xf]
    %v13530 = vld [vmem:[#allocation25 + $0x74] sm:$0xf]
    %v13531 = vld [vmem:[#allocation25 + $0x78] sm:$0xf]
    %v13532 = vld [vmem:[#allocation25 + $0x7c] sm:$0xf]
    %v13533 = vld [vmem:[#allocation10 + $0xe] sm:$0x1]
    %v13535 = vperm.slane %v13533, 0
    %v13569 = vunpack.c.l.b16 %v13501
    %v13570 = vunpack.c.l.b16 %v13502
    %v13571 = vunpack.c.l.b16 %v13503
    %v13572 = vunpack.c.l.b16 %v13504
    %v13573 = vunpack.c.l.b16 %v13505
    %v13574 = vunpack.c.l.b16 %v13506
    %v13575 = vunpack.c.l.b16 %v13507
    %v13576 = vunpack.c.l.b16 %v13508
    %v13577 = vunpack.c.l.b16 %v13509
    %v13578 = vunpack.c.l.b16 %v13510
    %v13579 = vunpack.c.l.b16 %v13511
    %v13580 = vunpack.c.l.b16 %v13512
    %v13581 = vunpack.c.l.b16 %v13513
    %v13582 = vunpack.c.l.b16 %v13514
    %v13583 = vunpack.c.l.b16 %v13515
    %v13584 = vunpack.c.l.b16 %v13516
    %v13585 = vunpack.c.l.b16 %v13517
    %v13586 = vunpack.c.l.b16 %v13518
    %v13587 = vunpack.c.l.b16 %v13519
    %v13588 = vunpack.c.l.b16 %v13520
    %v13589 = vunpack.c.l.b16 %v13521
    %v13590 = vunpack.c.l.b16 %v13522
    %v13591 = vunpack.c.l.b16 %v13523
    %v13592 = vunpack.c.l.b16 %v13524
    %v13593 = vunpack.c.l.b16 %v13525
    %v13594 = vunpack.c.l.b16 %v13526
    %v13595 = vunpack.c.l.b16 %v13527
    %v13596 = vunpack.c.l.b16 %v13528
    %v13597 = vunpack.c.l.b16 %v13529
    %v13598 = vunpack.c.l.b16 %v13530
    %v13599 = vunpack.c.l.b16 %v13531
    %v13600 = vunpack.c.l.b16 %v13532
    %v13601 = vpack.c.b16 %v13570, %v13569
    %v13602 = vpack.c.b16 %v13572, %v13571
    %v13603 = vpack.c.b16 %v13574, %v13573
    %v13604 = vpack.c.b16 %v13576, %v13575
    %v13605 = vpack.c.b16 %v13578, %v13577
    %v13606 = vpack.c.b16 %v13580, %v13579
    %v13607 = vpack.c.b16 %v13582, %v13581
    %v13608 = vpack.c.b16 %v13584, %v13583
    %v13609 = vpack.c.b16 %v13586, %v13585
    %v13610 = vpack.c.b16 %v13588, %v13587
    %v13611 = vpack.c.b16 %v13590, %v13589
    %v13612 = vpack.c.b16 %v13592, %v13591
    %v13613 = vpack.c.b16 %v13594, %v13593
    %v13614 = vpack.c.b16 %v13596, %v13595
    %v13615 = vpack.c.b16 %v13598, %v13597
    %v13616 = vpack.c.b16 %v13600, %v13599
    %13633 = vmatpush.bf16.msra.mxu0 %v13608
    %13634 = vmatpush.bf16.msra.mxu0 %v13607
    %13635 = vmatpush.bf16.msra.mxu0 %v13606
    %13636 = vmatpush.bf16.msra.mxu0 %v13605
    %13637 = vmatpush.bf16.msra.mxu0 %v13604
    %13638 = vmatpush.bf16.msra.mxu0 %v13603
    %13639 = vmatpush.bf16.msra.mxu0 %v13602
    %13640 = vmatpush.bf16.msra.mxu0 %v13601
    %13641 = vmatmul.bf16.gmra.mxu0 %v13499
    %v13642 = vpop.f32.mrf.mxu0
    %v13643 = vadd.f32 %v13535, %v13642
    %v13644 = vpop.f32.mrf.mxu0
    %13645 = vdwg.mxu0
    %13646 = vmatpush.bf16.msra.mxu0 %v13616
    %13647 = vmatpush.bf16.msra.mxu0 %v13615
    %13648 = vmatpush.bf16.msra.mxu0 %v13614
    %13649 = vmatpush.bf16.msra.mxu0 %v13613
    %13650 = vmatpush.bf16.msra.mxu0 %v13612
    %13651 = vmatpush.bf16.msra.mxu0 %v13611
    %13652 = vmatpush.bf16.msra.mxu0 %v13610
    %13653 = vmatpush.bf16.msra.mxu0 %v13609
    %13654 = vmatmul.bf16.gmra.mxu0 %v13500
    %v13655 = vpop.f32.mrf.mxu0
    %v13656 = vadd.f32 %v13643, %v13655
    %v13657 = vpop.f32.mrf.mxu0
    %13658 = vdwg.mxu0
    %13659 = vst [vmem:[#allocation26] sm:$0xff] %v13656
    // Predicated region
    $region122: #{tpu_custom_call.1} parent=1 // pred_check
      _
    $region123: #{tpu_custom_call.1} parent=1 // pred_check_branch
      %13661 = sbr.rel (0) target = $region125
    $region124: #{tpu_custom_call.1} parent=1 // pred_region
      %13663 = vsyncadd [#allocation4], 0
      %s13665 = sshll.u32 [#allocation26], 4
      %s13666 = int_to_ptr.vmem [resolvable:$true] %s13665
      %s13667 = sshll.u32 %s15, 4
      %s13668 = int_to_ptr.hbm [resolvable:$true] %s13667
      %13670 = dma.vmem_to_hbm [thread:$0]  %s13666, 128, %s13668, [#allocation4]
    $region125: #{tpu_custom_call.1} parent=1 // pred_fallthru
      _
    // Predicated region
    $region126: #{tpu_custom_call.1} parent=1 // pred_check
      _
    $region127: #{tpu_custom_call.1} parent=1 // pred_check_branch
      %13672 = sbr.rel (0) target = $region129
    $region128: #{tpu_custom_call.1} parent=1 // pred_region
      %13674 = dma.done [#allocation4], 128
    $region129: #{tpu_custom_call.1} parent=1 // pred_fallthru
      _
    %13675 = vsyncpa [#allocation3], 1
    %13676 = vsyncpa [#allocation6], 1
    %13677 = vsyncpa [#allocation9], 1
    %13678 = vsyncpa [#allocation12], 1
    %13679 = vsyncpa [#allocation15], 1
    %13680 = vsyncpa [#allocation18], 1
    %13681 = vsyncpa [#allocation21], 1
    %13682 = vsyncpa [#allocation24], 1
    %13683 = vsyncpa [#allocation4], 1

</llo_original>
